<compile_context>
chip_gen: v6e
topology: v6e:2x2x1
jax: 0.10.0
libtpu: 0.0.40
codegen_flags: <defaults>
</compile_context>

<pallas_src>
import functools

import jax
import jax.numpy as jnp
from jax import lax
from jax.experimental import pallas as pl
from jax.experimental.pallas import tpu as pltpu


def _round_up(x, m):
    return ((x + m - 1) // m) * m


def _vq_kernel(x_ref, cb_ref, cbt_ref, e2_ref,
               q_ref, enc_ref, sse_ref, cnt_ref, *, M):
    """One grid step processes a tile of `tm` flattened pixels.

    x_ref   : (tm, D)    input tile (f32, NHWC-flattened)
    cb_ref  : (K, D)     codebook (resident, constant block index)
    cbt_ref : (D, K)     pre-transposed codebook (resident)
    e2_ref  : (1, K)     precomputed ||e_k||^2 (resident)
    q_ref   : (tm, D)    quantized output tile
    enc_ref : (tm, K)    one-hot encodings tile
    sse_ref : (1, 1, 1)  per-tile sum-of-squared-error partial
    cnt_ref : (1, 1, K)  per-tile per-code count partial
    """
    i = pl.program_id(0)
    tm, D = x_ref.shape
    K = e2_ref.shape[-1]

    x = x_ref[...]  # (tm, D) f32

    # Distance used for the argmin: ||e||^2 - 2 x.e  (||x||^2 is constant per
    # row and does not change the argmin, so it is dropped).
    if D <= 16 and K <= 512:
        # Tiny contraction: unrolled VPU broadcast-MAC instead of a tiny MXU
        # matmul that would leave the systolic array almost entirely idle.
        xe = x[:, 0:1] * cbt_ref[0:1, :]
        for d in range(1, D):
            xe = xe + x[:, d:d + 1] * cbt_ref[d:d + 1, :]
    else:
        xe = jnp.dot(x, cbt_ref[...], preferred_element_type=jnp.float32)
    dist = e2_ref[...] - 2.0 * xe                                   # (tm, K)

    # argmin over codes (first index on ties, matching torch.argmin)
    iota_k = lax.broadcasted_iota(jnp.int32, (tm, K), 1)
    mind = jnp.min(dist, axis=1, keepdims=True)                     # (tm, 1)
    idx = jnp.min(jnp.where(dist == mind, iota_k, K), axis=1, keepdims=True)

    enc = (iota_k == idx).astype(jnp.float32)                       # (tm, K)

    # Quantize: select the chosen codebook row per pixel.
    if K <= 64:
        cb = cb_ref[...]                                            # (K, D)
        q = (idx == 0).astype(jnp.float32) * cb[0:1, :]
        for k in range(1, K):
            q = q + (idx == k).astype(jnp.float32) * cb[k:k + 1, :]
    else:
        q = jnp.dot(enc, cb_ref[...], preferred_element_type=jnp.float32)

    q_ref[...] = q.astype(q_ref.dtype)
    enc_ref[...] = enc.astype(enc_ref.dtype)

    # Mask rows beyond the true M (zero padding) out of the statistics.
    row = i * tm + lax.broadcasted_iota(jnp.int32, (tm, 1), 0)      # (tm, 1)
    valid = (row < M).astype(jnp.float32)                           # (tm, 1)

    diff = q - x
    sse_ref[0] = jnp.sum(valid * diff * diff, axis=0,
                         keepdims=True).sum(axis=1, keepdims=True)  # (1, 1)
    cnt_ref[0] = jnp.sum(valid * enc, axis=0, keepdims=True)        # (1, K)


def _vq_flat(flat_x, cb, cb_t, e2, *, tile_m, m_valid):
    """Run the Pallas kernel over the padded, flattened (Mp, D) input."""
    Mp, D = flat_x.shape
    K = cb.shape[0]
    assert Mp % tile_m == 0
    grid = Mp // tile_m

    out_shapes = (
        jax.ShapeDtypeStruct((Mp, D), jnp.float32),       # quantized (padded)
        jax.ShapeDtypeStruct((Mp, K), jnp.float32),       # one-hot encodings
        jax.ShapeDtypeStruct((grid, 1, 1), jnp.float32),  # per-tile SSE partials
        jax.ShapeDtypeStruct((grid, 1, K), jnp.float32),  # per-tile count partials
    )

    kernel = functools.partial(_vq_kernel, M=m_valid)

    return pl.pallas_call(
        kernel,
        out_shape=out_shapes,
        grid_spec=pltpu.PrefetchScalarGridSpec(
            num_scalar_prefetch=0,
            grid=(grid,),
            in_specs=[
                pl.BlockSpec((tile_m, D), lambda i: (i, 0)),
                # Codebook & hoisted derived tensors are resident (constant
                # block index). At large K*D consider pipeline_mode=
                # pl.Buffered(1) on these to save VMEM under v7x's 64 MiB.
                pl.BlockSpec((K, D), lambda i: (0, 0)),
                pl.BlockSpec((D, K), lambda i: (0, 0)),
                pl.BlockSpec((1, K), lambda i: (0, 0)),
            ],
            out_specs=[
                pl.BlockSpec((tile_m, D), lambda i: (i, 0)),
                pl.BlockSpec((tile_m, K), lambda i: (i, 0)),
                pl.BlockSpec((1, 1, 1), lambda i: (i, 0, 0)),
                pl.BlockSpec((1, 1, K), lambda i: (i, 0, 0)),
            ],
        ),
        compiler_params=pltpu.CompilerParams(
            # No cross-step accumulators (per-tile partials) -> the grid axis
            # is embarrassingly parallel; v7x can shard it across both TCs.
            dimension_semantics=("parallel",),
        ),
    )(flat_x, cb, cb_t, e2)


@functools.partial(jax.jit, static_argnames=("commitment_cost", "tile_m"))
def vector_quantizer_forward(x_nchw, codebook, *, commitment_cost=0.25,
                             tile_m=None):
    """Pallas implementation of VectorQuantizer.forward.

    x_nchw   : (N, C, H, W) with C == embedding_dim
    codebook : (num_embeddings, embedding_dim)
    Returns  : (loss, quantized_nchw, perplexity, encodings)
    """
    N, C, H, W = x_nchw.shape
    K, D = codebook.shape
    assert C == D

    x_nhwc = jnp.transpose(x_nchw, (0, 2, 3, 1))          # NCHW -> NHWC
    flat_x = x_nhwc.reshape(-1, D).astype(jnp.float32)    # (M, D)
    M = flat_x.shape[0]

    if tile_m is None:
        # Large tiles amortize the ~0.35us/step grid overhead. Per-tile VMEM
        # is ~tile_m*(2D+K)*4 bytes double-buffered, so 4096 is tiny here;
        # re-derive the cap against v7x's 64 MiB VMEM if K/D scale up.
        tile_m = min(4096, _round_up(M, 8))
    Mp = _round_up(M, tile_m)
    if Mp != M:
        flat_x = jnp.pad(flat_x, ((0, Mp - M), (0, 0)))   # padded rows masked

    # Hoisted codebook preprocessing (done once, outside the grid loop).
    cb = codebook.astype(jnp.float32)                     # (K, D)
    cb_t = cb.T                                           # (D, K)
    e2 = jnp.sum(cb * cb, axis=1)[None, :]                # (1, K)

    q_pad, enc_pad, sse_parts, cnt_parts = _vq_flat(
        flat_x, cb, cb_t, e2, tile_m=tile_m, m_valid=M)

    q_flat = q_pad[:M]
    encodings = enc_pad[:M]

    # loss: q_latent_loss + beta * e_latent_loss (identical MSE in fwd pass)
    sse = jnp.sum(sse_parts)
    mse = sse / (M * D)
    loss = (1.0 + commitment_cost) * mse

    # perplexity from per-code counts (tiny K-length reduction in plain JAX)
    counts = jnp.sum(cnt_parts[:, 0, :], axis=0)          # (K,)
    avg_probs = counts / M
    perplexity = jnp.exp(-jnp.sum(avg_probs * jnp.log(avg_probs + 1e-10)))

    # straight-through: quantized = input + (quantized - input).detach()
    # forward value == quantized.
    quantized_nchw = jnp.transpose(q_flat.reshape(N, H, W, D), (0, 3, 1, 2))

    return loss, quantized_nchw, perplexity, encodings


if __name__ == "__main__":
    # config: embedding_dim=4 (channels), num_embeddings=16, beta=0.25
    embedding_dim = 4
    num_embeddings = 16
    beta = 0.25

    key = jax.random.PRNGKey(0)
    k_x, k_cb = jax.random.split(key)

    # deterministic codebook init matching nn.Embedding.uniform_(-1/K, 1/K)
    codebook = jax.random.uniform(
        k_cb, (num_embeddings, embedding_dim),
        minval=-1.0 / num_embeddings, maxval=1.0 / num_embeddings,
        dtype=jnp.float32,
    )
    x = jax.random.normal(k_x, (2, embedding_dim, 16, 16), dtype=jnp.float32)

    loss, quantized, perplexity, encodings = vector_quantizer_forward(
        x, codebook, commitment_cost=beta)
    jax.block_until_ready((loss, quantized, perplexity, encodings))

    # Pure-JAX reference mirroring the PyTorch forward, for a sanity check.
    def reference(x_nchw, cb, b):
        xh = jnp.transpose(x_nchw, (0, 2, 3, 1))
        flat = xh.reshape(-1, cb.shape[1])
        d = (jnp.sum(flat ** 2, axis=1, keepdims=True)
             + jnp.sum(cb ** 2, axis=1) - 2.0 * flat @ cb.T)
        idx = jnp.argmin(d, axis=1)
        enc = jax.nn.one_hot(idx, cb.shape[0], dtype=jnp.float32)
        q = enc @ cb
        mse = jnp.mean((q - flat) ** 2)
        l = (1.0 + b) * mse
        avg = jnp.mean(enc, axis=0)
        p = jnp.exp(-jnp.sum(avg * jnp.log(avg + 1e-10)))
        qn = jnp.transpose(q.reshape(xh.shape), (0, 3, 1, 2))
        return l, qn, p, enc

    r_loss, r_q, r_p, r_enc = reference(x, codebook, beta)

    assert quantized.shape == x.shape
    assert encodings.shape == (2 * 16 * 16, num_embeddings)
    assert bool(jnp.allclose(loss, r_loss, rtol=1e-4, atol=1e-6))
    assert bool(jnp.allclose(quantized, r_q, rtol=1e-5, atol=1e-6))
    assert bool(jnp.allclose(perplexity, r_p, rtol=1e-4, atol=1e-5))
    assert bool(jnp.allclose(encodings, r_enc))
    print("KERNEL_OK")
</pallas_src>

<mosaic_0001>
module attributes {stable_mosaic.version = 11 : i64} {
  func.func @_vq_kernel(%arg0: i32, %arg1: memref<512x4xf32, #tpu.memory_space<vmem>>, %arg2: memref<16x4xf32, #tpu.memory_space<vmem>>, %arg3: memref<4x16xf32, #tpu.memory_space<vmem>>, %arg4: memref<1x16xf32, #tpu.memory_space<vmem>>, %arg5: memref<512x4xf32, #tpu.memory_space<vmem>>, %arg6: memref<512x16xf32, #tpu.memory_space<vmem>>, %arg7: memref<1x1x1xf32, #tpu.memory_space<vmem>>, %arg8: memref<1x1x16xf32, #tpu.memory_space<vmem>>) attributes {dimension_semantics = [#tpu.dimension_semantics<parallel>], iteration_bounds = array<i64: 1>, scalar_prefetch = 0 : i64, scratch_operands = 0 : i64, tpu.core_type = #tpu.core_type<tc>, window_params = [{transform_indices = @transform_0, window_bounds = array<i64: 512, 4>}, {pipeline_mode = #tpu.pipeline_mode<synchronous>, transform_indices = @transform_1, window_bounds = array<i64: 16, 4>}, {pipeline_mode = #tpu.pipeline_mode<synchronous>, transform_indices = @transform_2, window_bounds = array<i64: 4, 16>}, {pipeline_mode = #tpu.pipeline_mode<synchronous>, transform_indices = @transform_3, window_bounds = array<i64: 1, 16>}, {transform_indices = @transform_4, window_bounds = array<i64: 512, 4>}, {transform_indices = @transform_5, window_bounds = array<i64: 512, 16>}, {transform_indices = @transform_6, window_bounds = array<i64: 1, 1, 1>}, {transform_indices = @transform_7, window_bounds = array<i64: 1, 1, 16>}]} {
    %c0 = arith.constant 0 : index
    %c0_0 = arith.constant 0 : index
    %0 = vector.load %arg1[%c0, %c0_0] : memref<512x4xf32, #tpu.memory_space<vmem>>, vector<512x4xf32>
    %1 = vector.extract_strided_slice %0 {offsets = [0, 0], sizes = [512, 1], strides = [1, 1]} : vector<512x4xf32> to vector<512x1xf32>
    %c0_1 = arith.constant 0 : index
    %c0_2 = arith.constant 0 : index
    %2 = vector.load %arg3[%c0_1, %c0_2] : memref<4x16xf32, #tpu.memory_space<vmem>>, vector<1x16xf32>
    %3 = vector.broadcast %1 : vector<512x1xf32> to vector<512x16xf32>
    %4 = vector.broadcast %2 : vector<1x16xf32> to vector<512x16xf32>
    %5 = arith.mulf %3, %4 : vector<512x16xf32>
    %6 = vector.extract_strided_slice %0 {offsets = [0, 1], sizes = [512, 1], strides = [1, 1]} : vector<512x4xf32> to vector<512x1xf32>
    %c1 = arith.constant 1 : index
    %c0_3 = arith.constant 0 : index
    %7 = vector.load %arg3[%c1, %c0_3] : memref<4x16xf32, #tpu.memory_space<vmem>>, vector<1x16xf32>
    %8 = vector.broadcast %6 : vector<512x1xf32> to vector<512x16xf32>
    %9 = vector.broadcast %7 : vector<1x16xf32> to vector<512x16xf32>
    %10 = arith.mulf %8, %9 : vector<512x16xf32>
    %11 = arith.addf %5, %10 : vector<512x16xf32>
    %12 = vector.extract_strided_slice %0 {offsets = [0, 2], sizes = [512, 1], strides = [1, 1]} : vector<512x4xf32> to vector<512x1xf32>
    %c2 = arith.constant 2 : index
    %c0_4 = arith.constant 0 : index
    %13 = vector.load %arg3[%c2, %c0_4] : memref<4x16xf32, #tpu.memory_space<vmem>>, vector<1x16xf32>
    %14 = vector.broadcast %12 : vector<512x1xf32> to vector<512x16xf32>
    %15 = vector.broadcast %13 : vector<1x16xf32> to vector<512x16xf32>
    %16 = arith.mulf %14, %15 : vector<512x16xf32>
    %17 = arith.addf %11, %16 : vector<512x16xf32>
    %18 = vector.extract_strided_slice %0 {offsets = [0, 3], sizes = [512, 1], strides = [1, 1]} : vector<512x4xf32> to vector<512x1xf32>
    %c3 = arith.constant 3 : index
    %c0_5 = arith.constant 0 : index
    %19 = vector.load %arg3[%c3, %c0_5] : memref<4x16xf32, #tpu.memory_space<vmem>>, vector<1x16xf32>
    %20 = vector.broadcast %18 : vector<512x1xf32> to vector<512x16xf32>
    %21 = vector.broadcast %19 : vector<1x16xf32> to vector<512x16xf32>
    %22 = arith.mulf %20, %21 : vector<512x16xf32>
    %23 = arith.addf %17, %22 : vector<512x16xf32>
    %c0_6 = arith.constant 0 : index
    %c0_7 = arith.constant 0 : index
    %24 = vector.load %arg4[%c0_6, %c0_7] : memref<1x16xf32, #tpu.memory_space<vmem>>, vector<1x16xf32>
    %cst = arith.constant 2.000000e+00 : f32
    %25 = vector.broadcast %cst : f32 to vector<512x16xf32>
    %26 = arith.mulf %25, %23 : vector<512x16xf32>
    %27 = vector.broadcast %24 : vector<1x16xf32> to vector<512x16xf32>
    %28 = arith.subf %27, %26 : vector<512x16xf32>
    %29 = tpu.iota {dimensions = array<i32: 1>} : vector<512x16xi32>
    %cst_8 = arith.constant dense<0x7F800000> : vector<512xf32>
    %30 = vector.multi_reduction <minimumf>, %28, %cst_8 [1] : vector<512x16xf32> to vector<512xf32>
    %31 = vector.shape_cast %30 : vector<512xf32> to vector<512x1xf32>
    %32 = vector.broadcast %31 : vector<512x1xf32> to vector<512x16xf32>
    %33 = arith.cmpf oeq, %28, %32 : vector<512x16xf32>
    %c16_i32 = arith.constant 16 : i32
    %34 = vector.broadcast %c16_i32 : i32 to vector<512x16xi32>
    %35 = arith.select %33, %29, %34 : vector<512x16xi1>, vector<512x16xi32>
    %cst_9 = arith.constant dense<2147483647> : vector<512xi32>
    %36 = vector.multi_reduction <minsi>, %35, %cst_9 [1] : vector<512x16xi32> to vector<512xi32>
    %37 = vector.shape_cast %36 : vector<512xi32> to vector<512x1xi32>
    %38 = vector.broadcast %37 : vector<512x1xi32> to vector<512x16xi32>
    %39 = arith.cmpi eq, %29, %38 : vector<512x16xi32>
    %40 = arith.extui %39 : vector<512x16xi1> to vector<512x16xi32>
    %41 = arith.sitofp %40 : vector<512x16xi32> to vector<512x16xf32>
    %c0_10 = arith.constant 0 : index
    %c0_11 = arith.constant 0 : index
    %42 = vector.load %arg2[%c0_10, %c0_11] : memref<16x4xf32, #tpu.memory_space<vmem>>, vector<16x4xf32>
    %c0_i32 = arith.constant 0 : i32
    %43 = vector.broadcast %c0_i32 : i32 to vector<512x1xi32>
    %44 = arith.cmpi eq, %37, %43 : vector<512x1xi32>
    %45 = arith.extui %44 : vector<512x1xi1> to vector<512x1xi32>
    %46 = arith.sitofp %45 : vector<512x1xi32> to vector<512x1xf32>
    %47 = vector.extract_strided_slice %42 {offsets = [0, 0], sizes = [1, 4], strides = [1, 1]} : vector<16x4xf32> to vector<1x4xf32>
    %48 = vector.broadcast %46 : vector<512x1xf32> to vector<512x4xf32>
    %49 = vector.broadcast %47 : vector<1x4xf32> to vector<512x4xf32>
    %50 = arith.mulf %48, %49 : vector<512x4xf32>
    %c1_i32 = arith.constant 1 : i32
    %51 = vector.broadcast %c1_i32 : i32 to vector<512x1xi32>
    %52 = arith.cmpi eq, %37, %51 : vector<512x1xi32>
    %53 = arith.extui %52 : vector<512x1xi1> to vector<512x1xi32>
    %54 = arith.sitofp %53 : vector<512x1xi32> to vector<512x1xf32>
    %55 = vector.extract_strided_slice %42 {offsets = [1, 0], sizes = [1, 4], strides = [1, 1]} : vector<16x4xf32> to vector<1x4xf32>
    %56 = vector.broadcast %54 : vector<512x1xf32> to vector<512x4xf32>
    %57 = vector.broadcast %55 : vector<1x4xf32> to vector<512x4xf32>
    %58 = arith.mulf %56, %57 : vector<512x4xf32>
    %59 = arith.addf %50, %58 : vector<512x4xf32>
    %c2_i32 = arith.constant 2 : i32
    %60 = vector.broadcast %c2_i32 : i32 to vector<512x1xi32>
    %61 = arith.cmpi eq, %37, %60 : vector<512x1xi32>
    %62 = arith.extui %61 : vector<512x1xi1> to vector<512x1xi32>
    %63 = arith.sitofp %62 : vector<512x1xi32> to vector<512x1xf32>
    %64 = vector.extract_strided_slice %42 {offsets = [2, 0], sizes = [1, 4], strides = [1, 1]} : vector<16x4xf32> to vector<1x4xf32>
    %65 = vector.broadcast %63 : vector<512x1xf32> to vector<512x4xf32>
    %66 = vector.broadcast %64 : vector<1x4xf32> to vector<512x4xf32>
    %67 = arith.mulf %65, %66 : vector<512x4xf32>
    %68 = arith.addf %59, %67 : vector<512x4xf32>
    %c3_i32 = arith.constant 3 : i32
    %69 = vector.broadcast %c3_i32 : i32 to vector<512x1xi32>
    %70 = arith.cmpi eq, %37, %69 : vector<512x1xi32>
    %71 = arith.extui %70 : vector<512x1xi1> to vector<512x1xi32>
    %72 = arith.sitofp %71 : vector<512x1xi32> to vector<512x1xf32>
    %73 = vector.extract_strided_slice %42 {offsets = [3, 0], sizes = [1, 4], strides = [1, 1]} : vector<16x4xf32> to vector<1x4xf32>
    %74 = vector.broadcast %72 : vector<512x1xf32> to vector<512x4xf32>
    %75 = vector.broadcast %73 : vector<1x4xf32> to vector<512x4xf32>
    %76 = arith.mulf %74, %75 : vector<512x4xf32>
    %77 = arith.addf %68, %76 : vector<512x4xf32>
    %c4_i32 = arith.constant 4 : i32
    %78 = vector.broadcast %c4_i32 : i32 to vector<512x1xi32>
    %79 = arith.cmpi eq, %37, %78 : vector<512x1xi32>
    %80 = arith.extui %79 : vector<512x1xi1> to vector<512x1xi32>
    %81 = arith.sitofp %80 : vector<512x1xi32> to vector<512x1xf32>
    %82 = vector.extract_strided_slice %42 {offsets = [4, 0], sizes = [1, 4], strides = [1, 1]} : vector<16x4xf32> to vector<1x4xf32>
    %83 = vector.broadcast %81 : vector<512x1xf32> to vector<512x4xf32>
    %84 = vector.broadcast %82 : vector<1x4xf32> to vector<512x4xf32>
    %85 = arith.mulf %83, %84 : vector<512x4xf32>
    %86 = arith.addf %77, %85 : vector<512x4xf32>
    %c5_i32 = arith.constant 5 : i32
    %87 = vector.broadcast %c5_i32 : i32 to vector<512x1xi32>
    %88 = arith.cmpi eq, %37, %87 : vector<512x1xi32>
    %89 = arith.extui %88 : vector<512x1xi1> to vector<512x1xi32>
    %90 = arith.sitofp %89 : vector<512x1xi32> to vector<512x1xf32>
    %91 = vector.extract_strided_slice %42 {offsets = [5, 0], sizes = [1, 4], strides = [1, 1]} : vector<16x4xf32> to vector<1x4xf32>
    %92 = vector.broadcast %90 : vector<512x1xf32> to vector<512x4xf32>
    %93 = vector.broadcast %91 : vector<1x4xf32> to vector<512x4xf32>
    %94 = arith.mulf %92, %93 : vector<512x4xf32>
    %95 = arith.addf %86, %94 : vector<512x4xf32>
    %c6_i32 = arith.constant 6 : i32
    %96 = vector.broadcast %c6_i32 : i32 to vector<512x1xi32>
    %97 = arith.cmpi eq, %37, %96 : vector<512x1xi32>
    %98 = arith.extui %97 : vector<512x1xi1> to vector<512x1xi32>
    %99 = arith.sitofp %98 : vector<512x1xi32> to vector<512x1xf32>
    %100 = vector.extract_strided_slice %42 {offsets = [6, 0], sizes = [1, 4], strides = [1, 1]} : vector<16x4xf32> to vector<1x4xf32>
    %101 = vector.broadcast %99 : vector<512x1xf32> to vector<512x4xf32>
    %102 = vector.broadcast %100 : vector<1x4xf32> to vector<512x4xf32>
    %103 = arith.mulf %101, %102 : vector<512x4xf32>
    %104 = arith.addf %95, %103 : vector<512x4xf32>
    %c7_i32 = arith.constant 7 : i32
    %105 = vector.broadcast %c7_i32 : i32 to vector<512x1xi32>
    %106 = arith.cmpi eq, %37, %105 : vector<512x1xi32>
    %107 = arith.extui %106 : vector<512x1xi1> to vector<512x1xi32>
    %108 = arith.sitofp %107 : vector<512x1xi32> to vector<512x1xf32>
    %109 = vector.extract_strided_slice %42 {offsets = [7, 0], sizes = [1, 4], strides = [1, 1]} : vector<16x4xf32> to vector<1x4xf32>
    %110 = vector.broadcast %108 : vector<512x1xf32> to vector<512x4xf32>
    %111 = vector.broadcast %109 : vector<1x4xf32> to vector<512x4xf32>
    %112 = arith.mulf %110, %111 : vector<512x4xf32>
    %113 = arith.addf %104, %112 : vector<512x4xf32>
    %c8_i32 = arith.constant 8 : i32
    %114 = vector.broadcast %c8_i32 : i32 to vector<512x1xi32>
    %115 = arith.cmpi eq, %37, %114 : vector<512x1xi32>
    %116 = arith.extui %115 : vector<512x1xi1> to vector<512x1xi32>
    %117 = arith.sitofp %116 : vector<512x1xi32> to vector<512x1xf32>
    %118 = vector.extract_strided_slice %42 {offsets = [8, 0], sizes = [1, 4], strides = [1, 1]} : vector<16x4xf32> to vector<1x4xf32>
    %119 = vector.broadcast %117 : vector<512x1xf32> to vector<512x4xf32>
    %120 = vector.broadcast %118 : vector<1x4xf32> to vector<512x4xf32>
    %121 = arith.mulf %119, %120 : vector<512x4xf32>
    %122 = arith.addf %113, %121 : vector<512x4xf32>
    %c9_i32 = arith.constant 9 : i32
    %123 = vector.broadcast %c9_i32 : i32 to vector<512x1xi32>
    %124 = arith.cmpi eq, %37, %123 : vector<512x1xi32>
    %125 = arith.extui %124 : vector<512x1xi1> to vector<512x1xi32>
    %126 = arith.sitofp %125 : vector<512x1xi32> to vector<512x1xf32>
    %127 = vector.extract_strided_slice %42 {offsets = [9, 0], sizes = [1, 4], strides = [1, 1]} : vector<16x4xf32> to vector<1x4xf32>
    %128 = vector.broadcast %126 : vector<512x1xf32> to vector<512x4xf32>
    %129 = vector.broadcast %127 : vector<1x4xf32> to vector<512x4xf32>
    %130 = arith.mulf %128, %129 : vector<512x4xf32>
    %131 = arith.addf %122, %130 : vector<512x4xf32>
    %c10_i32 = arith.constant 10 : i32
    %132 = vector.broadcast %c10_i32 : i32 to vector<512x1xi32>
    %133 = arith.cmpi eq, %37, %132 : vector<512x1xi32>
    %134 = arith.extui %133 : vector<512x1xi1> to vector<512x1xi32>
    %135 = arith.sitofp %134 : vector<512x1xi32> to vector<512x1xf32>
    %136 = vector.extract_strided_slice %42 {offsets = [10, 0], sizes = [1, 4], strides = [1, 1]} : vector<16x4xf32> to vector<1x4xf32>
    %137 = vector.broadcast %135 : vector<512x1xf32> to vector<512x4xf32>
    %138 = vector.broadcast %136 : vector<1x4xf32> to vector<512x4xf32>
    %139 = arith.mulf %137, %138 : vector<512x4xf32>
    %140 = arith.addf %131, %139 : vector<512x4xf32>
    %c11_i32 = arith.constant 11 : i32
    %141 = vector.broadcast %c11_i32 : i32 to vector<512x1xi32>
    %142 = arith.cmpi eq, %37, %141 : vector<512x1xi32>
    %143 = arith.extui %142 : vector<512x1xi1> to vector<512x1xi32>
    %144 = arith.sitofp %143 : vector<512x1xi32> to vector<512x1xf32>
    %145 = vector.extract_strided_slice %42 {offsets = [11, 0], sizes = [1, 4], strides = [1, 1]} : vector<16x4xf32> to vector<1x4xf32>
    %146 = vector.broadcast %144 : vector<512x1xf32> to vector<512x4xf32>
    %147 = vector.broadcast %145 : vector<1x4xf32> to vector<512x4xf32>
    %148 = arith.mulf %146, %147 : vector<512x4xf32>
    %149 = arith.addf %140, %148 : vector<512x4xf32>
    %c12_i32 = arith.constant 12 : i32
    %150 = vector.broadcast %c12_i32 : i32 to vector<512x1xi32>
    %151 = arith.cmpi eq, %37, %150 : vector<512x1xi32>
    %152 = arith.extui %151 : vector<512x1xi1> to vector<512x1xi32>
    %153 = arith.sitofp %152 : vector<512x1xi32> to vector<512x1xf32>
    %154 = vector.extract_strided_slice %42 {offsets = [12, 0], sizes = [1, 4], strides = [1, 1]} : vector<16x4xf32> to vector<1x4xf32>
    %155 = vector.broadcast %153 : vector<512x1xf32> to vector<512x4xf32>
    %156 = vector.broadcast %154 : vector<1x4xf32> to vector<512x4xf32>
    %157 = arith.mulf %155, %156 : vector<512x4xf32>
    %158 = arith.addf %149, %157 : vector<512x4xf32>
    %c13_i32 = arith.constant 13 : i32
    %159 = vector.broadcast %c13_i32 : i32 to vector<512x1xi32>
    %160 = arith.cmpi eq, %37, %159 : vector<512x1xi32>
    %161 = arith.extui %160 : vector<512x1xi1> to vector<512x1xi32>
    %162 = arith.sitofp %161 : vector<512x1xi32> to vector<512x1xf32>
    %163 = vector.extract_strided_slice %42 {offsets = [13, 0], sizes = [1, 4], strides = [1, 1]} : vector<16x4xf32> to vector<1x4xf32>
    %164 = vector.broadcast %162 : vector<512x1xf32> to vector<512x4xf32>
    %165 = vector.broadcast %163 : vector<1x4xf32> to vector<512x4xf32>
    %166 = arith.mulf %164, %165 : vector<512x4xf32>
    %167 = arith.addf %158, %166 : vector<512x4xf32>
    %c14_i32 = arith.constant 14 : i32
    %168 = vector.broadcast %c14_i32 : i32 to vector<512x1xi32>
    %169 = arith.cmpi eq, %37, %168 : vector<512x1xi32>
    %170 = arith.extui %169 : vector<512x1xi1> to vector<512x1xi32>
    %171 = arith.sitofp %170 : vector<512x1xi32> to vector<512x1xf32>
    %172 = vector.extract_strided_slice %42 {offsets = [14, 0], sizes = [1, 4], strides = [1, 1]} : vector<16x4xf32> to vector<1x4xf32>
    %173 = vector.broadcast %171 : vector<512x1xf32> to vector<512x4xf32>
    %174 = vector.broadcast %172 : vector<1x4xf32> to vector<512x4xf32>
    %175 = arith.mulf %173, %174 : vector<512x4xf32>
    %176 = arith.addf %167, %175 : vector<512x4xf32>
    %c15_i32 = arith.constant 15 : i32
    %177 = vector.broadcast %c15_i32 : i32 to vector<512x1xi32>
    %178 = arith.cmpi eq, %37, %177 : vector<512x1xi32>
    %179 = arith.extui %178 : vector<512x1xi1> to vector<512x1xi32>
    %180 = arith.sitofp %179 : vector<512x1xi32> to vector<512x1xf32>
    %181 = vector.extract_strided_slice %42 {offsets = [15, 0], sizes = [1, 4], strides = [1, 1]} : vector<16x4xf32> to vector<1x4xf32>
    %182 = vector.broadcast %180 : vector<512x1xf32> to vector<512x4xf32>
    %183 = vector.broadcast %181 : vector<1x4xf32> to vector<512x4xf32>
    %184 = arith.mulf %182, %183 : vector<512x4xf32>
    %185 = arith.addf %176, %184 : vector<512x4xf32>
    %c0_12 = arith.constant 0 : index
    %c0_13 = arith.constant 0 : index
    %186 = vector.load %arg5[%c0_12, %c0_13] : memref<512x4xf32, #tpu.memory_space<vmem>>, vector<512x4xf32>
    tpu.vector_store %arg5[%c0_12, %c0_13], %185 {strides = array<i32>} : memref<512x4xf32, #tpu.memory_space<vmem>>, vector<512x4xf32>,
    %c0_14 = arith.constant 0 : index
    %c0_15 = arith.constant 0 : index
    %187 = vector.load %arg6[%c0_14, %c0_15] : memref<512x16xf32, #tpu.memory_space<vmem>>, vector<512x16xf32>
    tpu.vector_store %arg6[%c0_14, %c0_15], %41 {strides = array<i32>} : memref<512x16xf32, #tpu.memory_space<vmem>>, vector<512x16xf32>,
    %c512_i32 = arith.constant 512 : i32
    %188 = arith.muli %arg0, %c512_i32 : i32
    %189 = tpu.iota {dimensions = array<i32: 0>} : vector<512x1xi32>
    %190 = vector.broadcast %188 : i32 to vector<512x1xi32>
    %191 = arith.addi %190, %189 : vector<512x1xi32>
    %c512_i32_16 = arith.constant 512 : i32
    %192 = vector.broadcast %c512_i32_16 : i32 to vector<512x1xi32>
    %193 = arith.cmpi slt, %191, %192 : vector<512x1xi32>
    %194 = arith.extui %193 : vector<512x1xi1> to vector<512x1xi32>
    %195 = arith.sitofp %194 : vector<512x1xi32> to vector<512x1xf32>
    %196 = arith.subf %185, %0 : vector<512x4xf32>
    %197 = vector.broadcast %195 : vector<512x1xf32> to vector<512x4xf32>
    %198 = arith.mulf %197, %196 : vector<512x4xf32>
    %199 = arith.mulf %198, %196 : vector<512x4xf32>
    %cst_17 = arith.constant dense<0.000000e+00> : vector<4xf32>
    %200 = vector.multi_reduction <add>, %199, %cst_17 [0] : vector<512x4xf32> to vector<4xf32>
    %201 = vector.shape_cast %200 : vector<4xf32> to vector<1x4xf32>
    %cst_18 = arith.constant dense<0.000000e+00> : vector<1xf32>
    %202 = vector.multi_reduction <add>, %201, %cst_18 [1] : vector<1x4xf32> to vector<1xf32>
    %203 = vector.shape_cast %202 : vector<1xf32> to vector<1x1xf32>
    %c0_19 = arith.constant 0 : index
    %c0_20 = arith.constant 0 : index
    %c0_21 = arith.constant 0 : index
    %204 = vector.load %arg7[%c0_19, %c0_20, %c0_21] : memref<1x1x1xf32, #tpu.memory_space<vmem>>, vector<1x1x1xf32>
    %205 = vector.shape_cast %204 : vector<1x1x1xf32> to vector<1x1xf32>
    %206 = vector.shape_cast %203 : vector<1x1xf32> to vector<1x1x1xf32>
    tpu.vector_store %arg7[%c0_19, %c0_20, %c0_21], %206 {strides = array<i32>} : memref<1x1x1xf32, #tpu.memory_space<vmem>>, vector<1x1x1xf32>,
    %207 = vector.broadcast %195 : vector<512x1xf32> to vector<512x16xf32>
    %208 = arith.mulf %207, %41 : vector<512x16xf32>
    %cst_22 = arith.constant dense<0.000000e+00> : vector<16xf32>
    %209 = vector.multi_reduction <add>, %208, %cst_22 [0] : vector<512x16xf32> to vector<16xf32>
    %210 = vector.shape_cast %209 : vector<16xf32> to vector<1x16xf32>
    %c0_23 = arith.constant 0 : index
    %c0_24 = arith.constant 0 : index
    %c0_25 = arith.constant 0 : index
    %211 = vector.load %arg8[%c0_23, %c0_24, %c0_25] : memref<1x1x16xf32, #tpu.memory_space<vmem>>, vector<1x1x16xf32>
    %212 = vector.shape_cast %211 : vector<1x1x16xf32> to vector<1x16xf32>
    %213 = vector.shape_cast %210 : vector<1x16xf32> to vector<1x1x16xf32>
    tpu.vector_store %arg8[%c0_23, %c0_24, %c0_25], %213 {strides = array<i32>} : memref<1x1x16xf32, #tpu.memory_space<vmem>>, vector<1x1x16xf32>,
    return
  }
  func.func @transform_0(%arg0: i32) -> (i32, i32) {
    %c0_i32 = arith.constant 0 : i32
    %c0_i32_0 = arith.constant 0 : i32
    return %arg0, %c0_i32 : i32, i32
  }
  func.func @transform_1(%arg0: i32) -> (i32, i32) {
    %c0_i32 = arith.constant 0 : i32
    %c0_i32_0 = arith.constant 0 : i32
    %c0_i32_1 = arith.constant 0 : i32
    return %c0_i32, %c0_i32_0 : i32, i32
  }
  func.func @transform_2(%arg0: i32) -> (i32, i32) {
    %c0_i32 = arith.constant 0 : i32
    %c0_i32_0 = arith.constant 0 : i32
    %c0_i32_1 = arith.constant 0 : i32
    return %c0_i32, %c0_i32_0 : i32, i32
  }
  func.func @transform_3(%arg0: i32) -> (i32, i32) {
    %c0_i32 = arith.constant 0 : i32
    %c0_i32_0 = arith.constant 0 : i32
    %c0_i32_1 = arith.constant 0 : i32
    return %c0_i32, %c0_i32_0 : i32, i32
  }
  func.func @transform_4(%arg0: i32) -> (i32, i32) {
    %c0_i32 = arith.constant 0 : i32
    %c0_i32_0 = arith.constant 0 : i32
    return %arg0, %c0_i32 : i32, i32
  }
  func.func @transform_5(%arg0: i32) -> (i32, i32) {
    %c0_i32 = arith.constant 0 : i32
    %c0_i32_0 = arith.constant 0 : i32
    return %arg0, %c0_i32 : i32, i32
  }
  func.func @transform_6(%arg0: i32) -> (i32, i32, i32) {
    %c0_i32 = arith.constant 0 : i32
    %c0_i32_0 = arith.constant 0 : i32
    %c0_i32_1 = arith.constant 0 : i32
    return %arg0, %c0_i32, %c0_i32_0 : i32, i32, i32
  }
  func.func @transform_7(%arg0: i32) -> (i32, i32, i32) {
    %c0_i32 = arith.constant 0 : i32
    %c0_i32_0 = arith.constant 0 : i32
    %c0_i32_1 = arith.constant 0 : i32
    return %arg0, %c0_i32, %c0_i32_0 : i32, i32, i32
  }
}

</mosaic_0001>

<llo_original>
// kernel: vector_quantizer_forward.1
$region0: #{vector_quantizer_forward.1}
  #allocation0 [shape = 'u32[]', space=smem, size = 0x4, offset = 0x4, fixed_abs, tag = 'smem constant byte address 0x4 - core index']
  #allocation1 [shape = 'u32[144,128]{1,0:T(1,128)}', space=vmem, size = 0x12000, scoped, tag = 'internal scratch']
  %s0 = inlined_call_operand.vmem [shape: f32[512,4], index: 0, kind: input, shape index: {}]
  %s1 = inlined_call_operand.vmem [shape: f32[16,4], index: 1, kind: input, shape index: {}]
  %s2 = inlined_call_operand.vmem [shape: f32[4,16], index: 2, kind: input, shape index: {}]
  %s3 = inlined_call_operand.vmem [shape: f32[1,16], index: 3, kind: input, shape index: {}]
  %s4 = inlined_call_operand.vmem [shape: f32[512,4], index: 4, kind: output, shape index: {0}]
  %s5 = inlined_call_operand.vmem [shape: f32[512,16], index: 5, kind: output, shape index: {1}]
  %s6 = inlined_call_operand.hbm [shape: f32[1,1,1], index: 6, kind: output, shape index: {2}]
  %s7 = inlined_call_operand.vmem [shape: f32[1,1,16], index: 7, kind: output, shape index: {3}]
  %8 = xla_tuple %s4, %s5, %s6, %s7
  %s9 = sld [smem:[#allocation0]]
  $region50: #{vector_quantizer_forward.1} parent=0
    _
  %s11 = ssub.s32 1, %s9
  %s12 = scalar_select 0, %s11, %s9
  $region1: #{vector_quantizer_forward.1} parent=0
    #allocation2 [shape = 'u8[512]{0}', space=vmem, size = 0x400, scoped, tag = 'output window, operand 2, single buffered']
    #allocation3 [shape = 's32[1]{0}', space=sflag, size = 0x4, scoped, tag = 'scoped memory for vector_quantizer_forward.1']
    %13 = vsyncpa [#allocation3], 0
    // Predicated region
    $region2: #{vector_quantizer_forward.1} parent=1 // pred_check
      _
    $region3: #{vector_quantizer_forward.1} parent=1 // pred_check_branch
      %15 = sbr.rel (0) target = $region5
    $region4: #{vector_quantizer_forward.1} parent=1 // pred_region
      _
    $region5: #{vector_quantizer_forward.1} parent=1 // pred_fallthru
      _
    // Predicated region
    $region6: #{vector_quantizer_forward.1} parent=1 // pred_check
      _
    $region7: #{vector_quantizer_forward.1} parent=1 // pred_check_branch
      %17 = sbr.rel (0) target = $region9
    $region8: #{vector_quantizer_forward.1} parent=1 // pred_region
      _
    $region9: #{vector_quantizer_forward.1} parent=1 // pred_fallthru
      _
    // Predicated region
    $region10: #{vector_quantizer_forward.1} parent=1 // pred_check
      _
    $region11: #{vector_quantizer_forward.1} parent=1 // pred_check_branch
      %19 = sbr.rel (0) target = $region13
    $region12: #{vector_quantizer_forward.1} parent=1 // pred_region
      _
    $region13: #{vector_quantizer_forward.1} parent=1 // pred_fallthru
      _
    // Predicated region
    $region14: #{vector_quantizer_forward.1} parent=1 // pred_check
      _
    $region15: #{vector_quantizer_forward.1} parent=1 // pred_check_branch
      %21 = sbr.rel (0) target = $region17
    $region16: #{vector_quantizer_forward.1} parent=1 // pred_region
      _
    $region17: #{vector_quantizer_forward.1} parent=1 // pred_fallthru
      _
    %v22 = vld [vmem:[%s0] sm:$0xff]
    %v23 = vld [vmem:[%s0 + $0x8] sm:$0xff]
    %v24 = vld [vmem:[%s0 + $0x10] sm:$0xff]
    %v25 = vld [vmem:[%s0 + $0x18] sm:$0xff]
    %v26 = vld [vmem:[%s0 + $0x20] sm:$0xff]
    %v27 = vld [vmem:[%s0 + $0x28] sm:$0xff]
    %v28 = vld [vmem:[%s0 + $0x30] sm:$0xff]
    %v29 = vld [vmem:[%s0 + $0x38] sm:$0xff]
    %v30 = vld [vmem:[%s0 + $0x40] sm:$0xff]
    %v31 = vld [vmem:[%s0 + $0x48] sm:$0xff]
    %v32 = vld [vmem:[%s0 + $0x50] sm:$0xff]
    %v33 = vld [vmem:[%s0 + $0x58] sm:$0xff]
    %v34 = vld [vmem:[%s0 + $0x60] sm:$0xff]
    %v35 = vld [vmem:[%s0 + $0x68] sm:$0xff]
    %v36 = vld [vmem:[%s0 + $0x70] sm:$0xff]
    %v37 = vld [vmem:[%s0 + $0x78] sm:$0xff]
    %v38 = vld [vmem:[%s0 + $0x80] sm:$0xff]
    %v39 = vld [vmem:[%s0 + $0x88] sm:$0xff]
    %v40 = vld [vmem:[%s0 + $0x90] sm:$0xff]
    %v41 = vld [vmem:[%s0 + $0x98] sm:$0xff]
    %v42 = vld [vmem:[%s0 + $0xa0] sm:$0xff]
    %v43 = vld [vmem:[%s0 + $0xa8] sm:$0xff]
    %v44 = vld [vmem:[%s0 + $0xb0] sm:$0xff]
    %v45 = vld [vmem:[%s0 + $0xb8] sm:$0xff]
    %v46 = vld [vmem:[%s0 + $0xc0] sm:$0xff]
    %v47 = vld [vmem:[%s0 + $0xc8] sm:$0xff]
    %v48 = vld [vmem:[%s0 + $0xd0] sm:$0xff]
    %v49 = vld [vmem:[%s0 + $0xd8] sm:$0xff]
    %v50 = vld [vmem:[%s0 + $0xe0] sm:$0xff]
    %v51 = vld [vmem:[%s0 + $0xe8] sm:$0xff]
    %v52 = vld [vmem:[%s0 + $0xf0] sm:$0xff]
    %v53 = vld [vmem:[%s0 + $0xf8] sm:$0xff]
    %v54 = vld [vmem:[%s0 + $0x100] sm:$0xff]
    %v55 = vld [vmem:[%s0 + $0x108] sm:$0xff]
    %v56 = vld [vmem:[%s0 + $0x110] sm:$0xff]
    %v57 = vld [vmem:[%s0 + $0x118] sm:$0xff]
    %v58 = vld [vmem:[%s0 + $0x120] sm:$0xff]
    %v59 = vld [vmem:[%s0 + $0x128] sm:$0xff]
    %v60 = vld [vmem:[%s0 + $0x130] sm:$0xff]
    %v61 = vld [vmem:[%s0 + $0x138] sm:$0xff]
    %v62 = vld [vmem:[%s0 + $0x140] sm:$0xff]
    %v63 = vld [vmem:[%s0 + $0x148] sm:$0xff]
    %v64 = vld [vmem:[%s0 + $0x150] sm:$0xff]
    %v65 = vld [vmem:[%s0 + $0x158] sm:$0xff]
    %v66 = vld [vmem:[%s0 + $0x160] sm:$0xff]
    %v67 = vld [vmem:[%s0 + $0x168] sm:$0xff]
    %v68 = vld [vmem:[%s0 + $0x170] sm:$0xff]
    %v69 = vld [vmem:[%s0 + $0x178] sm:$0xff]
    %v70 = vld [vmem:[%s0 + $0x180] sm:$0xff]
    %v71 = vld [vmem:[%s0 + $0x188] sm:$0xff]
    %v72 = vld [vmem:[%s0 + $0x190] sm:$0xff]
    %v73 = vld [vmem:[%s0 + $0x198] sm:$0xff]
    %v74 = vld [vmem:[%s0 + $0x1a0] sm:$0xff]
    %v75 = vld [vmem:[%s0 + $0x1a8] sm:$0xff]
    %v76 = vld [vmem:[%s0 + $0x1b0] sm:$0xff]
    %v77 = vld [vmem:[%s0 + $0x1b8] sm:$0xff]
    %v78 = vld [vmem:[%s0 + $0x1c0] sm:$0xff]
    %v79 = vld [vmem:[%s0 + $0x1c8] sm:$0xff]
    %v80 = vld [vmem:[%s0 + $0x1d0] sm:$0xff]
    %v81 = vld [vmem:[%s0 + $0x1d8] sm:$0xff]
    %v82 = vld [vmem:[%s0 + $0x1e0] sm:$0xff]
    %v83 = vld [vmem:[%s0 + $0x1e8] sm:$0xff]
    %v84 = vld [vmem:[%s0 + $0x1f0] sm:$0xff]
    %v85 = vld [vmem:[%s0 + $0x1f8] sm:$0xff]
    %v86 = vld [vmem:[%s2] sm:$0x1]
    %88 = vset.pattern.permute.xlu0 0
    %89 = vperm.xlu0 %88, %v22
    %v90 = vpop.permute.xlu0 %89
    %93 = vset.pattern.permute.xlu0 0
    %94 = vperm.xlu0 %93, %v23
    %v95 = vpop.permute.xlu0 %94
    %98 = vset.pattern.permute.xlu0 0
    %99 = vperm.xlu0 %98, %v24
    %v100 = vpop.permute.xlu0 %99
    %103 = vset.pattern.permute.xlu0 0
    %104 = vperm.xlu0 %103, %v25
    %v105 = vpop.permute.xlu0 %104
    %108 = vset.pattern.permute.xlu0 0
    %109 = vperm.xlu0 %108, %v26
    %v110 = vpop.permute.xlu0 %109
    %113 = vset.pattern.permute.xlu0 0
    %114 = vperm.xlu0 %113, %v27
    %v115 = vpop.permute.xlu0 %114
    %118 = vset.pattern.permute.xlu0 0
    %119 = vperm.xlu0 %118, %v28
    %v120 = vpop.permute.xlu0 %119
    %123 = vset.pattern.permute.xlu0 0
    %124 = vperm.xlu0 %123, %v29
    %v125 = vpop.permute.xlu0 %124
    %128 = vset.pattern.permute.xlu0 0
    %129 = vperm.xlu0 %128, %v30
    %v130 = vpop.permute.xlu0 %129
    %133 = vset.pattern.permute.xlu0 0
    %134 = vperm.xlu0 %133, %v31
    %v135 = vpop.permute.xlu0 %134
    %138 = vset.pattern.permute.xlu0 0
    %139 = vperm.xlu0 %138, %v32
    %v140 = vpop.permute.xlu0 %139
    %143 = vset.pattern.permute.xlu0 0
    %144 = vperm.xlu0 %143, %v33
    %v145 = vpop.permute.xlu0 %144
    %148 = vset.pattern.permute.xlu0 0
    %149 = vperm.xlu0 %148, %v34
    %v150 = vpop.permute.xlu0 %149
    %153 = vset.pattern.permute.xlu0 0
    %154 = vperm.xlu0 %153, %v35
    %v155 = vpop.permute.xlu0 %154
    %158 = vset.pattern.permute.xlu0 0
    %159 = vperm.xlu0 %158, %v36
    %v160 = vpop.permute.xlu0 %159
    %163 = vset.pattern.permute.xlu0 0
    %164 = vperm.xlu0 %163, %v37
    %v165 = vpop.permute.xlu0 %164
    %168 = vset.pattern.permute.xlu0 0
    %169 = vperm.xlu0 %168, %v38
    %v170 = vpop.permute.xlu0 %169
    %173 = vset.pattern.permute.xlu0 0
    %174 = vperm.xlu0 %173, %v39
    %v175 = vpop.permute.xlu0 %174
    %178 = vset.pattern.permute.xlu0 0
    %179 = vperm.xlu0 %178, %v40
    %v180 = vpop.permute.xlu0 %179
    %183 = vset.pattern.permute.xlu0 0
    %184 = vperm.xlu0 %183, %v41
    %v185 = vpop.permute.xlu0 %184
    %188 = vset.pattern.permute.xlu0 0
    %189 = vperm.xlu0 %188, %v42
    %v190 = vpop.permute.xlu0 %189
    %193 = vset.pattern.permute.xlu0 0
    %194 = vperm.xlu0 %193, %v43
    %v195 = vpop.permute.xlu0 %194
    %198 = vset.pattern.permute.xlu0 0
    %199 = vperm.xlu0 %198, %v44
    %v200 = vpop.permute.xlu0 %199
    %203 = vset.pattern.permute.xlu0 0
    %204 = vperm.xlu0 %203, %v45
    %v205 = vpop.permute.xlu0 %204
    %208 = vset.pattern.permute.xlu0 0
    %209 = vperm.xlu0 %208, %v46
    %v210 = vpop.permute.xlu0 %209
    %213 = vset.pattern.permute.xlu0 0
    %214 = vperm.xlu0 %213, %v47
    %v215 = vpop.permute.xlu0 %214
    %218 = vset.pattern.permute.xlu0 0
    %219 = vperm.xlu0 %218, %v48
    %v220 = vpop.permute.xlu0 %219
    %223 = vset.pattern.permute.xlu0 0
    %224 = vperm.xlu0 %223, %v49
    %v225 = vpop.permute.xlu0 %224
    %228 = vset.pattern.permute.xlu0 0
    %229 = vperm.xlu0 %228, %v50
    %v230 = vpop.permute.xlu0 %229
    %233 = vset.pattern.permute.xlu0 0
    %234 = vperm.xlu0 %233, %v51
    %v235 = vpop.permute.xlu0 %234
    %238 = vset.pattern.permute.xlu0 0
    %239 = vperm.xlu0 %238, %v52
    %v240 = vpop.permute.xlu0 %239
    %243 = vset.pattern.permute.xlu0 0
    %244 = vperm.xlu0 %243, %v53
    %v245 = vpop.permute.xlu0 %244
    %248 = vset.pattern.permute.xlu0 0
    %249 = vperm.xlu0 %248, %v54
    %v250 = vpop.permute.xlu0 %249
    %253 = vset.pattern.permute.xlu0 0
    %254 = vperm.xlu0 %253, %v55
    %v255 = vpop.permute.xlu0 %254
    %258 = vset.pattern.permute.xlu0 0
    %259 = vperm.xlu0 %258, %v56
    %v260 = vpop.permute.xlu0 %259
    %263 = vset.pattern.permute.xlu0 0
    %264 = vperm.xlu0 %263, %v57
    %v265 = vpop.permute.xlu0 %264
    %268 = vset.pattern.permute.xlu0 0
    %269 = vperm.xlu0 %268, %v58
    %v270 = vpop.permute.xlu0 %269
    %273 = vset.pattern.permute.xlu0 0
    %274 = vperm.xlu0 %273, %v59
    %v275 = vpop.permute.xlu0 %274
    %278 = vset.pattern.permute.xlu0 0
    %279 = vperm.xlu0 %278, %v60
    %v280 = vpop.permute.xlu0 %279
    %283 = vset.pattern.permute.xlu0 0
    %284 = vperm.xlu0 %283, %v61
    %v285 = vpop.permute.xlu0 %284
    %288 = vset.pattern.permute.xlu0 0
    %289 = vperm.xlu0 %288, %v62
    %v290 = vpop.permute.xlu0 %289
    %293 = vset.pattern.permute.xlu0 0
    %294 = vperm.xlu0 %293, %v63
    %v295 = vpop.permute.xlu0 %294
    %298 = vset.pattern.permute.xlu0 0
    %299 = vperm.xlu0 %298, %v64
    %v300 = vpop.permute.xlu0 %299
    %303 = vset.pattern.permute.xlu0 0
    %304 = vperm.xlu0 %303, %v65
    %v305 = vpop.permute.xlu0 %304
    %308 = vset.pattern.permute.xlu0 0
    %309 = vperm.xlu0 %308, %v66
    %v310 = vpop.permute.xlu0 %309
    %313 = vset.pattern.permute.xlu0 0
    %314 = vperm.xlu0 %313, %v67
    %v315 = vpop.permute.xlu0 %314
    %318 = vset.pattern.permute.xlu0 0
    %319 = vperm.xlu0 %318, %v68
    %v320 = vpop.permute.xlu0 %319
    %323 = vset.pattern.permute.xlu0 0
    %324 = vperm.xlu0 %323, %v69
    %v325 = vpop.permute.xlu0 %324
    %328 = vset.pattern.permute.xlu0 0
    %329 = vperm.xlu0 %328, %v70
    %v330 = vpop.permute.xlu0 %329
    %333 = vset.pattern.permute.xlu0 0
    %334 = vperm.xlu0 %333, %v71
    %v335 = vpop.permute.xlu0 %334
    %338 = vset.pattern.permute.xlu0 0
    %339 = vperm.xlu0 %338, %v72
    %v340 = vpop.permute.xlu0 %339
    %343 = vset.pattern.permute.xlu0 0
    %344 = vperm.xlu0 %343, %v73
    %v345 = vpop.permute.xlu0 %344
    %348 = vset.pattern.permute.xlu0 0
    %349 = vperm.xlu0 %348, %v74
    %v350 = vpop.permute.xlu0 %349
    %353 = vset.pattern.permute.xlu0 0
    %354 = vperm.xlu0 %353, %v75
    %v355 = vpop.permute.xlu0 %354
    %358 = vset.pattern.permute.xlu0 0
    %359 = vperm.xlu0 %358, %v76
    %v360 = vpop.permute.xlu0 %359
    %363 = vset.pattern.permute.xlu0 0
    %364 = vperm.xlu0 %363, %v77
    %v365 = vpop.permute.xlu0 %364
    %368 = vset.pattern.permute.xlu0 0
    %369 = vperm.xlu0 %368, %v78
    %v370 = vpop.permute.xlu0 %369
    %373 = vset.pattern.permute.xlu0 0
    %374 = vperm.xlu0 %373, %v79
    %v375 = vpop.permute.xlu0 %374
    %378 = vset.pattern.permute.xlu0 0
    %379 = vperm.xlu0 %378, %v80
    %v380 = vpop.permute.xlu0 %379
    %383 = vset.pattern.permute.xlu0 0
    %384 = vperm.xlu0 %383, %v81
    %v385 = vpop.permute.xlu0 %384
    %388 = vset.pattern.permute.xlu0 0
    %389 = vperm.xlu0 %388, %v82
    %v390 = vpop.permute.xlu0 %389
    %393 = vset.pattern.permute.xlu0 0
    %394 = vperm.xlu0 %393, %v83
    %v395 = vpop.permute.xlu0 %394
    %398 = vset.pattern.permute.xlu0 0
    %399 = vperm.xlu0 %398, %v84
    %v400 = vpop.permute.xlu0 %399
    %403 = vset.pattern.permute.xlu0 0
    %404 = vperm.xlu0 %403, %v85
    %v405 = vpop.permute.xlu0 %404
    %v407 = vlaneseq
    %v408 = vshrl.u32 %v407, 7
    %v409 = vsub.s32 0, %v408
    %v410 = vrot.slane %v86, %v409
    %v411 = vmul.f32 %v90, %v410
    %v412 = vmul.f32 %v95, %v410
    %v413 = vmul.f32 %v100, %v410
    %v414 = vmul.f32 %v105, %v410
    %v415 = vmul.f32 %v110, %v410
    %v416 = vmul.f32 %v115, %v410
    %v417 = vmul.f32 %v120, %v410
    %v418 = vmul.f32 %v125, %v410
    %v419 = vmul.f32 %v130, %v410
    %v420 = vmul.f32 %v135, %v410
    %v421 = vmul.f32 %v140, %v410
    %v422 = vmul.f32 %v145, %v410
    %v423 = vmul.f32 %v150, %v410
    %v424 = vmul.f32 %v155, %v410
    %v425 = vmul.f32 %v160, %v410
    %v426 = vmul.f32 %v165, %v410
    %v427 = vmul.f32 %v170, %v410
    %v428 = vmul.f32 %v175, %v410
    %v429 = vmul.f32 %v180, %v410
    %v430 = vmul.f32 %v185, %v410
    %v431 = vmul.f32 %v190, %v410
    %v432 = vmul.f32 %v195, %v410
    %v433 = vmul.f32 %v200, %v410
    %v434 = vmul.f32 %v205, %v410
    %v435 = vmul.f32 %v210, %v410
    %v436 = vmul.f32 %v215, %v410
    %v437 = vmul.f32 %v220, %v410
    %v438 = vmul.f32 %v225, %v410
    %v439 = vmul.f32 %v230, %v410
    %v440 = vmul.f32 %v235, %v410
    %v441 = vmul.f32 %v240, %v410
    %v442 = vmul.f32 %v245, %v410
    %v443 = vmul.f32 %v250, %v410
    %v444 = vmul.f32 %v255, %v410
    %v445 = vmul.f32 %v260, %v410
    %v446 = vmul.f32 %v265, %v410
    %v447 = vmul.f32 %v270, %v410
    %v448 = vmul.f32 %v275, %v410
    %v449 = vmul.f32 %v280, %v410
    %v450 = vmul.f32 %v285, %v410
    %v451 = vmul.f32 %v290, %v410
    %v452 = vmul.f32 %v295, %v410
    %v453 = vmul.f32 %v300, %v410
    %v454 = vmul.f32 %v305, %v410
    %v455 = vmul.f32 %v310, %v410
    %v456 = vmul.f32 %v315, %v410
    %v457 = vmul.f32 %v320, %v410
    %v458 = vmul.f32 %v325, %v410
    %v459 = vmul.f32 %v330, %v410
    %v460 = vmul.f32 %v335, %v410
    %v461 = vmul.f32 %v340, %v410
    %v462 = vmul.f32 %v345, %v410
    %v463 = vmul.f32 %v350, %v410
    %v464 = vmul.f32 %v355, %v410
    %v465 = vmul.f32 %v360, %v410
    %v466 = vmul.f32 %v365, %v410
    %v467 = vmul.f32 %v370, %v410
    %v468 = vmul.f32 %v375, %v410
    %v469 = vmul.f32 %v380, %v410
    %v470 = vmul.f32 %v385, %v410
    %v471 = vmul.f32 %v390, %v410
    %v472 = vmul.f32 %v395, %v410
    %v473 = vmul.f32 %v400, %v410
    %v474 = vmul.f32 %v405, %v410
    %v475 = vld [vmem:[%s2 + $0x1] sm:$0x1]
    %476 = vset.pattern.permute.xlu0 1
    %477 = vperm.xlu0 %476, %v22
    %v478 = vpop.permute.xlu0 %477
    %480 = vset.pattern.permute.xlu0 1
    %481 = vperm.xlu0 %480, %v23
    %v482 = vpop.permute.xlu0 %481
    %484 = vset.pattern.permute.xlu0 1
    %485 = vperm.xlu0 %484, %v24
    %v486 = vpop.permute.xlu0 %485
    %488 = vset.pattern.permute.xlu0 1
    %489 = vperm.xlu0 %488, %v25
    %v490 = vpop.permute.xlu0 %489
    %492 = vset.pattern.permute.xlu0 1
    %493 = vperm.xlu0 %492, %v26
    %v494 = vpop.permute.xlu0 %493
    %496 = vset.pattern.permute.xlu0 1
    %497 = vperm.xlu0 %496, %v27
    %v498 = vpop.permute.xlu0 %497
    %500 = vset.pattern.permute.xlu0 1
    %501 = vperm.xlu0 %500, %v28
    %v502 = vpop.permute.xlu0 %501
    %504 = vset.pattern.permute.xlu0 1
    %505 = vperm.xlu0 %504, %v29
    %v506 = vpop.permute.xlu0 %505
    %508 = vset.pattern.permute.xlu0 1
    %509 = vperm.xlu0 %508, %v30
    %v510 = vpop.permute.xlu0 %509
    %512 = vset.pattern.permute.xlu0 1
    %513 = vperm.xlu0 %512, %v31
    %v514 = vpop.permute.xlu0 %513
    %516 = vset.pattern.permute.xlu0 1
    %517 = vperm.xlu0 %516, %v32
    %v518 = vpop.permute.xlu0 %517
    %520 = vset.pattern.permute.xlu0 1
    %521 = vperm.xlu0 %520, %v33
    %v522 = vpop.permute.xlu0 %521
    %524 = vset.pattern.permute.xlu0 1
    %525 = vperm.xlu0 %524, %v34
    %v526 = vpop.permute.xlu0 %525
    %528 = vset.pattern.permute.xlu0 1
    %529 = vperm.xlu0 %528, %v35
    %v530 = vpop.permute.xlu0 %529
    %532 = vset.pattern.permute.xlu0 1
    %533 = vperm.xlu0 %532, %v36
    %v534 = vpop.permute.xlu0 %533
    %536 = vset.pattern.permute.xlu0 1
    %537 = vperm.xlu0 %536, %v37
    %v538 = vpop.permute.xlu0 %537
    %540 = vset.pattern.permute.xlu0 1
    %541 = vperm.xlu0 %540, %v38
    %v542 = vpop.permute.xlu0 %541
    %544 = vset.pattern.permute.xlu0 1
    %545 = vperm.xlu0 %544, %v39
    %v546 = vpop.permute.xlu0 %545
    %548 = vset.pattern.permute.xlu0 1
    %549 = vperm.xlu0 %548, %v40
    %v550 = vpop.permute.xlu0 %549
    %552 = vset.pattern.permute.xlu0 1
    %553 = vperm.xlu0 %552, %v41
    %v554 = vpop.permute.xlu0 %553
    %556 = vset.pattern.permute.xlu0 1
    %557 = vperm.xlu0 %556, %v42
    %v558 = vpop.permute.xlu0 %557
    %560 = vset.pattern.permute.xlu0 1
    %561 = vperm.xlu0 %560, %v43
    %v562 = vpop.permute.xlu0 %561
    %564 = vset.pattern.permute.xlu0 1
    %565 = vperm.xlu0 %564, %v44
    %v566 = vpop.permute.xlu0 %565
    %568 = vset.pattern.permute.xlu0 1
    %569 = vperm.xlu0 %568, %v45
    %v570 = vpop.permute.xlu0 %569
    %572 = vset.pattern.permute.xlu0 1
    %573 = vperm.xlu0 %572, %v46
    %v574 = vpop.permute.xlu0 %573
    %576 = vset.pattern.permute.xlu0 1
    %577 = vperm.xlu0 %576, %v47
    %v578 = vpop.permute.xlu0 %577
    %580 = vset.pattern.permute.xlu0 1
    %581 = vperm.xlu0 %580, %v48
    %v582 = vpop.permute.xlu0 %581
    %584 = vset.pattern.permute.xlu0 1
    %585 = vperm.xlu0 %584, %v49
    %v586 = vpop.permute.xlu0 %585
    %588 = vset.pattern.permute.xlu0 1
    %589 = vperm.xlu0 %588, %v50
    %v590 = vpop.permute.xlu0 %589
    %592 = vset.pattern.permute.xlu0 1
    %593 = vperm.xlu0 %592, %v51
    %v594 = vpop.permute.xlu0 %593
    %596 = vset.pattern.permute.xlu0 1
    %597 = vperm.xlu0 %596, %v52
    %v598 = vpop.permute.xlu0 %597
    %600 = vset.pattern.permute.xlu0 1
    %601 = vperm.xlu0 %600, %v53
    %v602 = vpop.permute.xlu0 %601
    %604 = vset.pattern.permute.xlu0 1
    %605 = vperm.xlu0 %604, %v54
    %v606 = vpop.permute.xlu0 %605
    %608 = vset.pattern.permute.xlu0 1
    %609 = vperm.xlu0 %608, %v55
    %v610 = vpop.permute.xlu0 %609
    %612 = vset.pattern.permute.xlu0 1
    %613 = vperm.xlu0 %612, %v56
    %v614 = vpop.permute.xlu0 %613
    %616 = vset.pattern.permute.xlu0 1
    %617 = vperm.xlu0 %616, %v57
    %v618 = vpop.permute.xlu0 %617
    %620 = vset.pattern.permute.xlu0 1
    %621 = vperm.xlu0 %620, %v58
    %v622 = vpop.permute.xlu0 %621
    %624 = vset.pattern.permute.xlu0 1
    %625 = vperm.xlu0 %624, %v59
    %v626 = vpop.permute.xlu0 %625
    %628 = vset.pattern.permute.xlu0 1
    %629 = vperm.xlu0 %628, %v60
    %v630 = vpop.permute.xlu0 %629
    %632 = vset.pattern.permute.xlu0 1
    %633 = vperm.xlu0 %632, %v61
    %v634 = vpop.permute.xlu0 %633
    %636 = vset.pattern.permute.xlu0 1
    %637 = vperm.xlu0 %636, %v62
    %v638 = vpop.permute.xlu0 %637
    %640 = vset.pattern.permute.xlu0 1
    %641 = vperm.xlu0 %640, %v63
    %v642 = vpop.permute.xlu0 %641
    %644 = vset.pattern.permute.xlu0 1
    %645 = vperm.xlu0 %644, %v64
    %v646 = vpop.permute.xlu0 %645
    %648 = vset.pattern.permute.xlu0 1
    %649 = vperm.xlu0 %648, %v65
    %v650 = vpop.permute.xlu0 %649
    %652 = vset.pattern.permute.xlu0 1
    %653 = vperm.xlu0 %652, %v66
    %v654 = vpop.permute.xlu0 %653
    %656 = vset.pattern.permute.xlu0 1
    %657 = vperm.xlu0 %656, %v67
    %v658 = vpop.permute.xlu0 %657
    %660 = vset.pattern.permute.xlu0 1
    %661 = vperm.xlu0 %660, %v68
    %v662 = vpop.permute.xlu0 %661
    %664 = vset.pattern.permute.xlu0 1
    %665 = vperm.xlu0 %664, %v69
    %v666 = vpop.permute.xlu0 %665
    %668 = vset.pattern.permute.xlu0 1
    %669 = vperm.xlu0 %668, %v70
    %v670 = vpop.permute.xlu0 %669
    %672 = vset.pattern.permute.xlu0 1
    %673 = vperm.xlu0 %672, %v71
    %v674 = vpop.permute.xlu0 %673
    %676 = vset.pattern.permute.xlu0 1
    %677 = vperm.xlu0 %676, %v72
    %v678 = vpop.permute.xlu0 %677
    %680 = vset.pattern.permute.xlu0 1
    %681 = vperm.xlu0 %680, %v73
    %v682 = vpop.permute.xlu0 %681
    %684 = vset.pattern.permute.xlu0 1
    %685 = vperm.xlu0 %684, %v74
    %v686 = vpop.permute.xlu0 %685
    %688 = vset.pattern.permute.xlu0 1
    %689 = vperm.xlu0 %688, %v75
    %v690 = vpop.permute.xlu0 %689
    %692 = vset.pattern.permute.xlu0 1
    %693 = vperm.xlu0 %692, %v76
    %v694 = vpop.permute.xlu0 %693
    %696 = vset.pattern.permute.xlu0 1
    %697 = vperm.xlu0 %696, %v77
    %v698 = vpop.permute.xlu0 %697
    %700 = vset.pattern.permute.xlu0 1
    %701 = vperm.xlu0 %700, %v78
    %v702 = vpop.permute.xlu0 %701
    %704 = vset.pattern.permute.xlu0 1
    %705 = vperm.xlu0 %704, %v79
    %v706 = vpop.permute.xlu0 %705
    %708 = vset.pattern.permute.xlu0 1
    %709 = vperm.xlu0 %708, %v80
    %v710 = vpop.permute.xlu0 %709
    %712 = vset.pattern.permute.xlu0 1
    %713 = vperm.xlu0 %712, %v81
    %v714 = vpop.permute.xlu0 %713
    %716 = vset.pattern.permute.xlu0 1
    %717 = vperm.xlu0 %716, %v82
    %v718 = vpop.permute.xlu0 %717
    %720 = vset.pattern.permute.xlu0 1
    %721 = vperm.xlu0 %720, %v83
    %v722 = vpop.permute.xlu0 %721
    %724 = vset.pattern.permute.xlu0 1
    %725 = vperm.xlu0 %724, %v84
    %v726 = vpop.permute.xlu0 %725
    %728 = vset.pattern.permute.xlu0 1
    %729 = vperm.xlu0 %728, %v85
    %v730 = vpop.permute.xlu0 %729
    %v732 = vlaneseq
    %v733 = vshrl.u32 %v732, 7
    %v734 = vsub.s32 0, %v733
    %v735 = vrot.slane %v475, %v734
    %v736 = vmul.f32 %v478, %v735
    %v737 = vmul.f32 %v482, %v735
    %v738 = vmul.f32 %v486, %v735
    %v739 = vmul.f32 %v490, %v735
    %v740 = vmul.f32 %v494, %v735
    %v741 = vmul.f32 %v498, %v735
    %v742 = vmul.f32 %v502, %v735
    %v743 = vmul.f32 %v506, %v735
    %v744 = vmul.f32 %v510, %v735
    %v745 = vmul.f32 %v514, %v735
    %v746 = vmul.f32 %v518, %v735
    %v747 = vmul.f32 %v522, %v735
    %v748 = vmul.f32 %v526, %v735
    %v749 = vmul.f32 %v530, %v735
    %v750 = vmul.f32 %v534, %v735
    %v751 = vmul.f32 %v538, %v735
    %v752 = vmul.f32 %v542, %v735
    %v753 = vmul.f32 %v546, %v735
    %v754 = vmul.f32 %v550, %v735
    %v755 = vmul.f32 %v554, %v735
    %v756 = vmul.f32 %v558, %v735
    %v757 = vmul.f32 %v562, %v735
    %v758 = vmul.f32 %v566, %v735
    %v759 = vmul.f32 %v570, %v735
    %v760 = vmul.f32 %v574, %v735
    %v761 = vmul.f32 %v578, %v735
    %v762 = vmul.f32 %v582, %v735
    %v763 = vmul.f32 %v586, %v735
    %v764 = vmul.f32 %v590, %v735
    %v765 = vmul.f32 %v594, %v735
    %v766 = vmul.f32 %v598, %v735
    %v767 = vmul.f32 %v602, %v735
    %v768 = vmul.f32 %v606, %v735
    %v769 = vmul.f32 %v610, %v735
    %v770 = vmul.f32 %v614, %v735
    %v771 = vmul.f32 %v618, %v735
    %v772 = vmul.f32 %v622, %v735
    %v773 = vmul.f32 %v626, %v735
    %v774 = vmul.f32 %v630, %v735
    %v775 = vmul.f32 %v634, %v735
    %v776 = vmul.f32 %v638, %v735
    %v777 = vmul.f32 %v642, %v735
    %v778 = vmul.f32 %v646, %v735
    %v779 = vmul.f32 %v650, %v735
    %v780 = vmul.f32 %v654, %v735
    %v781 = vmul.f32 %v658, %v735
    %v782 = vmul.f32 %v662, %v735
    %v783 = vmul.f32 %v666, %v735
    %v784 = vmul.f32 %v670, %v735
    %v785 = vmul.f32 %v674, %v735
    %v786 = vmul.f32 %v678, %v735
    %v787 = vmul.f32 %v682, %v735
    %v788 = vmul.f32 %v686, %v735
    %v789 = vmul.f32 %v690, %v735
    %v790 = vmul.f32 %v694, %v735
    %v791 = vmul.f32 %v698, %v735
    %v792 = vmul.f32 %v702, %v735
    %v793 = vmul.f32 %v706, %v735
    %v794 = vmul.f32 %v710, %v735
    %v795 = vmul.f32 %v714, %v735
    %v796 = vmul.f32 %v718, %v735
    %v797 = vmul.f32 %v722, %v735
    %v798 = vmul.f32 %v726, %v735
    %v799 = vmul.f32 %v730, %v735
    %v800 = vadd.f32 %v411, %v736
    %v801 = vadd.f32 %v412, %v737
    %v802 = vadd.f32 %v413, %v738
    %v803 = vadd.f32 %v414, %v739
    %v804 = vadd.f32 %v415, %v740
    %v805 = vadd.f32 %v416, %v741
    %v806 = vadd.f32 %v417, %v742
    %v807 = vadd.f32 %v418, %v743
    %v808 = vadd.f32 %v419, %v744
    %v809 = vadd.f32 %v420, %v745
    %v810 = vadd.f32 %v421, %v746
    %v811 = vadd.f32 %v422, %v747
    %v812 = vadd.f32 %v423, %v748
    %v813 = vadd.f32 %v424, %v749
    %v814 = vadd.f32 %v425, %v750
    %v815 = vadd.f32 %v426, %v751
    %v816 = vadd.f32 %v427, %v752
    %v817 = vadd.f32 %v428, %v753
    %v818 = vadd.f32 %v429, %v754
    %v819 = vadd.f32 %v430, %v755
    %v820 = vadd.f32 %v431, %v756
    %v821 = vadd.f32 %v432, %v757
    %v822 = vadd.f32 %v433, %v758
    %v823 = vadd.f32 %v434, %v759
    %v824 = vadd.f32 %v435, %v760
    %v825 = vadd.f32 %v436, %v761
    %v826 = vadd.f32 %v437, %v762
    %v827 = vadd.f32 %v438, %v763
    %v828 = vadd.f32 %v439, %v764
    %v829 = vadd.f32 %v440, %v765
    %v830 = vadd.f32 %v441, %v766
    %v831 = vadd.f32 %v442, %v767
    %v832 = vadd.f32 %v443, %v768
    %v833 = vadd.f32 %v444, %v769
    %v834 = vadd.f32 %v445, %v770
    %v835 = vadd.f32 %v446, %v771
    %v836 = vadd.f32 %v447, %v772
    %v837 = vadd.f32 %v448, %v773
    %v838 = vadd.f32 %v449, %v774
    %v839 = vadd.f32 %v450, %v775
    %v840 = vadd.f32 %v451, %v776
    %v841 = vadd.f32 %v452, %v777
    %v842 = vadd.f32 %v453, %v778
    %v843 = vadd.f32 %v454, %v779
    %v844 = vadd.f32 %v455, %v780
    %v845 = vadd.f32 %v456, %v781
    %v846 = vadd.f32 %v457, %v782
    %v847 = vadd.f32 %v458, %v783
    %v848 = vadd.f32 %v459, %v784
    %v849 = vadd.f32 %v460, %v785
    %v850 = vadd.f32 %v461, %v786
    %v851 = vadd.f32 %v462, %v787
    %v852 = vadd.f32 %v463, %v788
    %v853 = vadd.f32 %v464, %v789
    %v854 = vadd.f32 %v465, %v790
    %v855 = vadd.f32 %v466, %v791
    %v856 = vadd.f32 %v467, %v792
    %v857 = vadd.f32 %v468, %v793
    %v858 = vadd.f32 %v469, %v794
    %v859 = vadd.f32 %v470, %v795
    %v860 = vadd.f32 %v471, %v796
    %v861 = vadd.f32 %v472, %v797
    %v862 = vadd.f32 %v473, %v798
    %v863 = vadd.f32 %v474, %v799
    %v864 = vld [vmem:[%s2 + $0x2] sm:$0x1]
    %865 = vset.pattern.permute.xlu0 2
    %866 = vperm.xlu0 %865, %v22
    %v867 = vpop.permute.xlu0 %866
    %869 = vset.pattern.permute.xlu0 2
    %870 = vperm.xlu0 %869, %v23
    %v871 = vpop.permute.xlu0 %870
    %873 = vset.pattern.permute.xlu0 2
    %874 = vperm.xlu0 %873, %v24
    %v875 = vpop.permute.xlu0 %874
    %877 = vset.pattern.permute.xlu0 2
    %878 = vperm.xlu0 %877, %v25
    %v879 = vpop.permute.xlu0 %878
    %881 = vset.pattern.permute.xlu0 2
    %882 = vperm.xlu0 %881, %v26
    %v883 = vpop.permute.xlu0 %882
    %885 = vset.pattern.permute.xlu0 2
    %886 = vperm.xlu0 %885, %v27
    %v887 = vpop.permute.xlu0 %886
    %889 = vset.pattern.permute.xlu0 2
    %890 = vperm.xlu0 %889, %v28
    %v891 = vpop.permute.xlu0 %890
    %893 = vset.pattern.permute.xlu0 2
    %894 = vperm.xlu0 %893, %v29
    %v895 = vpop.permute.xlu0 %894
    %897 = vset.pattern.permute.xlu0 2
    %898 = vperm.xlu0 %897, %v30
    %v899 = vpop.permute.xlu0 %898
    %901 = vset.pattern.permute.xlu0 2
    %902 = vperm.xlu0 %901, %v31
    %v903 = vpop.permute.xlu0 %902
    %905 = vset.pattern.permute.xlu0 2
    %906 = vperm.xlu0 %905, %v32
    %v907 = vpop.permute.xlu0 %906
    %909 = vset.pattern.permute.xlu0 2
    %910 = vperm.xlu0 %909, %v33
    %v911 = vpop.permute.xlu0 %910
    %913 = vset.pattern.permute.xlu0 2
    %914 = vperm.xlu0 %913, %v34
    %v915 = vpop.permute.xlu0 %914
    %917 = vset.pattern.permute.xlu0 2
    %918 = vperm.xlu0 %917, %v35
    %v919 = vpop.permute.xlu0 %918
    %921 = vset.pattern.permute.xlu0 2
    %922 = vperm.xlu0 %921, %v36
    %v923 = vpop.permute.xlu0 %922
    %925 = vset.pattern.permute.xlu0 2
    %926 = vperm.xlu0 %925, %v37
    %v927 = vpop.permute.xlu0 %926
    %929 = vset.pattern.permute.xlu0 2
    %930 = vperm.xlu0 %929, %v38
    %v931 = vpop.permute.xlu0 %930
    %933 = vset.pattern.permute.xlu0 2
    %934 = vperm.xlu0 %933, %v39
    %v935 = vpop.permute.xlu0 %934
    %937 = vset.pattern.permute.xlu0 2
    %938 = vperm.xlu0 %937, %v40
    %v939 = vpop.permute.xlu0 %938
    %941 = vset.pattern.permute.xlu0 2
    %942 = vperm.xlu0 %941, %v41
    %v943 = vpop.permute.xlu0 %942
    %945 = vset.pattern.permute.xlu0 2
    %946 = vperm.xlu0 %945, %v42
    %v947 = vpop.permute.xlu0 %946
    %949 = vset.pattern.permute.xlu0 2
    %950 = vperm.xlu0 %949, %v43
    %v951 = vpop.permute.xlu0 %950
    %953 = vset.pattern.permute.xlu0 2
    %954 = vperm.xlu0 %953, %v44
    %v955 = vpop.permute.xlu0 %954
    %957 = vset.pattern.permute.xlu0 2
    %958 = vperm.xlu0 %957, %v45
    %v959 = vpop.permute.xlu0 %958
    %961 = vset.pattern.permute.xlu0 2
    %962 = vperm.xlu0 %961, %v46
    %v963 = vpop.permute.xlu0 %962
    %965 = vset.pattern.permute.xlu0 2
    %966 = vperm.xlu0 %965, %v47
    %v967 = vpop.permute.xlu0 %966
    %969 = vset.pattern.permute.xlu0 2
    %970 = vperm.xlu0 %969, %v48
    %v971 = vpop.permute.xlu0 %970
    %973 = vset.pattern.permute.xlu0 2
    %974 = vperm.xlu0 %973, %v49
    %v975 = vpop.permute.xlu0 %974
    %977 = vset.pattern.permute.xlu0 2
    %978 = vperm.xlu0 %977, %v50
    %v979 = vpop.permute.xlu0 %978
    %981 = vset.pattern.permute.xlu0 2
    %982 = vperm.xlu0 %981, %v51
    %v983 = vpop.permute.xlu0 %982
    %985 = vset.pattern.permute.xlu0 2
    %986 = vperm.xlu0 %985, %v52
    %v987 = vpop.permute.xlu0 %986
    %989 = vset.pattern.permute.xlu0 2
    %990 = vperm.xlu0 %989, %v53
    %v991 = vpop.permute.xlu0 %990
    %993 = vset.pattern.permute.xlu0 2
    %994 = vperm.xlu0 %993, %v54
    %v995 = vpop.permute.xlu0 %994
    %997 = vset.pattern.permute.xlu0 2
    %998 = vperm.xlu0 %997, %v55
    %v999 = vpop.permute.xlu0 %998
    %1001 = vset.pattern.permute.xlu0 2
    %1002 = vperm.xlu0 %1001, %v56
    %v1003 = vpop.permute.xlu0 %1002
    %1005 = vset.pattern.permute.xlu0 2
    %1006 = vperm.xlu0 %1005, %v57
    %v1007 = vpop.permute.xlu0 %1006
    %1009 = vset.pattern.permute.xlu0 2
    %1010 = vperm.xlu0 %1009, %v58
    %v1011 = vpop.permute.xlu0 %1010
    %1013 = vset.pattern.permute.xlu0 2
    %1014 = vperm.xlu0 %1013, %v59
    %v1015 = vpop.permute.xlu0 %1014
    %1017 = vset.pattern.permute.xlu0 2
    %1018 = vperm.xlu0 %1017, %v60
    %v1019 = vpop.permute.xlu0 %1018
    %1021 = vset.pattern.permute.xlu0 2
    %1022 = vperm.xlu0 %1021, %v61
    %v1023 = vpop.permute.xlu0 %1022
    %1025 = vset.pattern.permute.xlu0 2
    %1026 = vperm.xlu0 %1025, %v62
    %v1027 = vpop.permute.xlu0 %1026
    %1029 = vset.pattern.permute.xlu0 2
    %1030 = vperm.xlu0 %1029, %v63
    %v1031 = vpop.permute.xlu0 %1030
    %1033 = vset.pattern.permute.xlu0 2
    %1034 = vperm.xlu0 %1033, %v64
    %v1035 = vpop.permute.xlu0 %1034
    %1037 = vset.pattern.permute.xlu0 2
    %1038 = vperm.xlu0 %1037, %v65
    %v1039 = vpop.permute.xlu0 %1038
    %1041 = vset.pattern.permute.xlu0 2
    %1042 = vperm.xlu0 %1041, %v66
    %v1043 = vpop.permute.xlu0 %1042
    %1045 = vset.pattern.permute.xlu0 2
    %1046 = vperm.xlu0 %1045, %v67
    %v1047 = vpop.permute.xlu0 %1046
    %1049 = vset.pattern.permute.xlu0 2
    %1050 = vperm.xlu0 %1049, %v68
    %v1051 = vpop.permute.xlu0 %1050
    %1053 = vset.pattern.permute.xlu0 2
    %1054 = vperm.xlu0 %1053, %v69
    %v1055 = vpop.permute.xlu0 %1054
    %1057 = vset.pattern.permute.xlu0 2
    %1058 = vperm.xlu0 %1057, %v70
    %v1059 = vpop.permute.xlu0 %1058
    %1061 = vset.pattern.permute.xlu0 2
    %1062 = vperm.xlu0 %1061, %v71
    %v1063 = vpop.permute.xlu0 %1062
    %1065 = vset.pattern.permute.xlu0 2
    %1066 = vperm.xlu0 %1065, %v72
    %v1067 = vpop.permute.xlu0 %1066
    %1069 = vset.pattern.permute.xlu0 2
    %1070 = vperm.xlu0 %1069, %v73
    %v1071 = vpop.permute.xlu0 %1070
    %1073 = vset.pattern.permute.xlu0 2
    %1074 = vperm.xlu0 %1073, %v74
    %v1075 = vpop.permute.xlu0 %1074
    %1077 = vset.pattern.permute.xlu0 2
    %1078 = vperm.xlu0 %1077, %v75
    %v1079 = vpop.permute.xlu0 %1078
    %1081 = vset.pattern.permute.xlu0 2
    %1082 = vperm.xlu0 %1081, %v76
    %v1083 = vpop.permute.xlu0 %1082
    %1085 = vset.pattern.permute.xlu0 2
    %1086 = vperm.xlu0 %1085, %v77
    %v1087 = vpop.permute.xlu0 %1086
    %1089 = vset.pattern.permute.xlu0 2
    %1090 = vperm.xlu0 %1089, %v78
    %v1091 = vpop.permute.xlu0 %1090
    %1093 = vset.pattern.permute.xlu0 2
    %1094 = vperm.xlu0 %1093, %v79
    %v1095 = vpop.permute.xlu0 %1094
    %1097 = vset.pattern.permute.xlu0 2
    %1098 = vperm.xlu0 %1097, %v80
    %v1099 = vpop.permute.xlu0 %1098
    %1101 = vset.pattern.permute.xlu0 2
    %1102 = vperm.xlu0 %1101, %v81
    %v1103 = vpop.permute.xlu0 %1102
    %1105 = vset.pattern.permute.xlu0 2
    %1106 = vperm.xlu0 %1105, %v82
    %v1107 = vpop.permute.xlu0 %1106
    %1109 = vset.pattern.permute.xlu0 2
    %1110 = vperm.xlu0 %1109, %v83
    %v1111 = vpop.permute.xlu0 %1110
    %1113 = vset.pattern.permute.xlu0 2
    %1114 = vperm.xlu0 %1113, %v84
    %v1115 = vpop.permute.xlu0 %1114
    %1117 = vset.pattern.permute.xlu0 2
    %1118 = vperm.xlu0 %1117, %v85
    %v1119 = vpop.permute.xlu0 %1118
    %v1121 = vlaneseq
    %v1122 = vshrl.u32 %v1121, 7
    %v1123 = vsub.s32 0, %v1122
    %v1124 = vrot.slane %v864, %v1123
    %v1125 = vmul.f32 %v867, %v1124
    %v1126 = vmul.f32 %v871, %v1124
    %v1127 = vmul.f32 %v875, %v1124
    %v1128 = vmul.f32 %v879, %v1124
    %v1129 = vmul.f32 %v883, %v1124
    %v1130 = vmul.f32 %v887, %v1124
    %v1131 = vmul.f32 %v891, %v1124
    %v1132 = vmul.f32 %v895, %v1124
    %v1133 = vmul.f32 %v899, %v1124
    %v1134 = vmul.f32 %v903, %v1124
    %v1135 = vmul.f32 %v907, %v1124
    %v1136 = vmul.f32 %v911, %v1124
    %v1137 = vmul.f32 %v915, %v1124
    %v1138 = vmul.f32 %v919, %v1124
    %v1139 = vmul.f32 %v923, %v1124
    %v1140 = vmul.f32 %v927, %v1124
    %v1141 = vmul.f32 %v931, %v1124
    %v1142 = vmul.f32 %v935, %v1124
    %v1143 = vmul.f32 %v939, %v1124
    %v1144 = vmul.f32 %v943, %v1124
    %v1145 = vmul.f32 %v947, %v1124
    %v1146 = vmul.f32 %v951, %v1124
    %v1147 = vmul.f32 %v955, %v1124
    %v1148 = vmul.f32 %v959, %v1124
    %v1149 = vmul.f32 %v963, %v1124
    %v1150 = vmul.f32 %v967, %v1124
    %v1151 = vmul.f32 %v971, %v1124
    %v1152 = vmul.f32 %v975, %v1124
    %v1153 = vmul.f32 %v979, %v1124
    %v1154 = vmul.f32 %v983, %v1124
    %v1155 = vmul.f32 %v987, %v1124
    %v1156 = vmul.f32 %v991, %v1124
    %v1157 = vmul.f32 %v995, %v1124
    %v1158 = vmul.f32 %v999, %v1124
    %v1159 = vmul.f32 %v1003, %v1124
    %v1160 = vmul.f32 %v1007, %v1124
    %v1161 = vmul.f32 %v1011, %v1124
    %v1162 = vmul.f32 %v1015, %v1124
    %v1163 = vmul.f32 %v1019, %v1124
    %v1164 = vmul.f32 %v1023, %v1124
    %v1165 = vmul.f32 %v1027, %v1124
    %v1166 = vmul.f32 %v1031, %v1124
    %v1167 = vmul.f32 %v1035, %v1124
    %v1168 = vmul.f32 %v1039, %v1124
    %v1169 = vmul.f32 %v1043, %v1124
    %v1170 = vmul.f32 %v1047, %v1124
    %v1171 = vmul.f32 %v1051, %v1124
    %v1172 = vmul.f32 %v1055, %v1124
    %v1173 = vmul.f32 %v1059, %v1124
    %v1174 = vmul.f32 %v1063, %v1124
    %v1175 = vmul.f32 %v1067, %v1124
    %v1176 = vmul.f32 %v1071, %v1124
    %v1177 = vmul.f32 %v1075, %v1124
    %v1178 = vmul.f32 %v1079, %v1124
    %v1179 = vmul.f32 %v1083, %v1124
    %v1180 = vmul.f32 %v1087, %v1124
    %v1181 = vmul.f32 %v1091, %v1124
    %v1182 = vmul.f32 %v1095, %v1124
    %v1183 = vmul.f32 %v1099, %v1124
    %v1184 = vmul.f32 %v1103, %v1124
    %v1185 = vmul.f32 %v1107, %v1124
    %v1186 = vmul.f32 %v1111, %v1124
    %v1187 = vmul.f32 %v1115, %v1124
    %v1188 = vmul.f32 %v1119, %v1124
    %v1189 = vadd.f32 %v800, %v1125
    %v1190 = vadd.f32 %v801, %v1126
    %v1191 = vadd.f32 %v802, %v1127
    %v1192 = vadd.f32 %v803, %v1128
    %v1193 = vadd.f32 %v804, %v1129
    %v1194 = vadd.f32 %v805, %v1130
    %v1195 = vadd.f32 %v806, %v1131
    %v1196 = vadd.f32 %v807, %v1132
    %v1197 = vadd.f32 %v808, %v1133
    %v1198 = vadd.f32 %v809, %v1134
    %v1199 = vadd.f32 %v810, %v1135
    %v1200 = vadd.f32 %v811, %v1136
    %v1201 = vadd.f32 %v812, %v1137
    %v1202 = vadd.f32 %v813, %v1138
    %v1203 = vadd.f32 %v814, %v1139
    %v1204 = vadd.f32 %v815, %v1140
    %v1205 = vadd.f32 %v816, %v1141
    %v1206 = vadd.f32 %v817, %v1142
    %v1207 = vadd.f32 %v818, %v1143
    %v1208 = vadd.f32 %v819, %v1144
    %v1209 = vadd.f32 %v820, %v1145
    %v1210 = vadd.f32 %v821, %v1146
    %v1211 = vadd.f32 %v822, %v1147
    %v1212 = vadd.f32 %v823, %v1148
    %v1213 = vadd.f32 %v824, %v1149
    %v1214 = vadd.f32 %v825, %v1150
    %v1215 = vadd.f32 %v826, %v1151
    %v1216 = vadd.f32 %v827, %v1152
    %v1217 = vadd.f32 %v828, %v1153
    %v1218 = vadd.f32 %v829, %v1154
    %v1219 = vadd.f32 %v830, %v1155
    %v1220 = vadd.f32 %v831, %v1156
    %v1221 = vadd.f32 %v832, %v1157
    %v1222 = vadd.f32 %v833, %v1158
    %v1223 = vadd.f32 %v834, %v1159
    %v1224 = vadd.f32 %v835, %v1160
    %v1225 = vadd.f32 %v836, %v1161
    %v1226 = vadd.f32 %v837, %v1162
    %v1227 = vadd.f32 %v838, %v1163
    %v1228 = vadd.f32 %v839, %v1164
    %v1229 = vadd.f32 %v840, %v1165
    %v1230 = vadd.f32 %v841, %v1166
    %v1231 = vadd.f32 %v842, %v1167
    %v1232 = vadd.f32 %v843, %v1168
    %v1233 = vadd.f32 %v844, %v1169
    %v1234 = vadd.f32 %v845, %v1170
    %v1235 = vadd.f32 %v846, %v1171
    %v1236 = vadd.f32 %v847, %v1172
    %v1237 = vadd.f32 %v848, %v1173
    %v1238 = vadd.f32 %v849, %v1174
    %v1239 = vadd.f32 %v850, %v1175
    %v1240 = vadd.f32 %v851, %v1176
    %v1241 = vadd.f32 %v852, %v1177
    %v1242 = vadd.f32 %v853, %v1178
    %v1243 = vadd.f32 %v854, %v1179
    %v1244 = vadd.f32 %v855, %v1180
    %v1245 = vadd.f32 %v856, %v1181
    %v1246 = vadd.f32 %v857, %v1182
    %v1247 = vadd.f32 %v858, %v1183
    %v1248 = vadd.f32 %v859, %v1184
    %v1249 = vadd.f32 %v860, %v1185
    %v1250 = vadd.f32 %v861, %v1186
    %v1251 = vadd.f32 %v862, %v1187
    %v1252 = vadd.f32 %v863, %v1188
    %v1253 = vld [vmem:[%s2 + $0x3] sm:$0x1]
    %1254 = vset.pattern.permute.xlu0 3
    %1255 = vperm.xlu0 %1254, %v22
    %v1256 = vpop.permute.xlu0 %1255
    %1258 = vset.pattern.permute.xlu0 3
    %1259 = vperm.xlu0 %1258, %v23
    %v1260 = vpop.permute.xlu0 %1259
    %1262 = vset.pattern.permute.xlu0 3
    %1263 = vperm.xlu0 %1262, %v24
    %v1264 = vpop.permute.xlu0 %1263
    %1266 = vset.pattern.permute.xlu0 3
    %1267 = vperm.xlu0 %1266, %v25
    %v1268 = vpop.permute.xlu0 %1267
    %1270 = vset.pattern.permute.xlu0 3
    %1271 = vperm.xlu0 %1270, %v26
    %v1272 = vpop.permute.xlu0 %1271
    %1274 = vset.pattern.permute.xlu0 3
    %1275 = vperm.xlu0 %1274, %v27
    %v1276 = vpop.permute.xlu0 %1275
    %1278 = vset.pattern.permute.xlu0 3
    %1279 = vperm.xlu0 %1278, %v28
    %v1280 = vpop.permute.xlu0 %1279
    %1282 = vset.pattern.permute.xlu0 3
    %1283 = vperm.xlu0 %1282, %v29
    %v1284 = vpop.permute.xlu0 %1283
    %1286 = vset.pattern.permute.xlu0 3
    %1287 = vperm.xlu0 %1286, %v30
    %v1288 = vpop.permute.xlu0 %1287
    %1290 = vset.pattern.permute.xlu0 3
    %1291 = vperm.xlu0 %1290, %v31
    %v1292 = vpop.permute.xlu0 %1291
    %1294 = vset.pattern.permute.xlu0 3
    %1295 = vperm.xlu0 %1294, %v32
    %v1296 = vpop.permute.xlu0 %1295
    %1298 = vset.pattern.permute.xlu0 3
    %1299 = vperm.xlu0 %1298, %v33
    %v1300 = vpop.permute.xlu0 %1299
    %1302 = vset.pattern.permute.xlu0 3
    %1303 = vperm.xlu0 %1302, %v34
    %v1304 = vpop.permute.xlu0 %1303
    %1306 = vset.pattern.permute.xlu0 3
    %1307 = vperm.xlu0 %1306, %v35
    %v1308 = vpop.permute.xlu0 %1307
    %1310 = vset.pattern.permute.xlu0 3
    %1311 = vperm.xlu0 %1310, %v36
    %v1312 = vpop.permute.xlu0 %1311
    %1314 = vset.pattern.permute.xlu0 3
    %1315 = vperm.xlu0 %1314, %v37
    %v1316 = vpop.permute.xlu0 %1315
    %1318 = vset.pattern.permute.xlu0 3
    %1319 = vperm.xlu0 %1318, %v38
    %v1320 = vpop.permute.xlu0 %1319
    %1322 = vset.pattern.permute.xlu0 3
    %1323 = vperm.xlu0 %1322, %v39
    %v1324 = vpop.permute.xlu0 %1323
    %1326 = vset.pattern.permute.xlu0 3
    %1327 = vperm.xlu0 %1326, %v40
    %v1328 = vpop.permute.xlu0 %1327
    %1330 = vset.pattern.permute.xlu0 3
    %1331 = vperm.xlu0 %1330, %v41
    %v1332 = vpop.permute.xlu0 %1331
    %1334 = vset.pattern.permute.xlu0 3
    %1335 = vperm.xlu0 %1334, %v42
    %v1336 = vpop.permute.xlu0 %1335
    %1338 = vset.pattern.permute.xlu0 3
    %1339 = vperm.xlu0 %1338, %v43
    %v1340 = vpop.permute.xlu0 %1339
    %1342 = vset.pattern.permute.xlu0 3
    %1343 = vperm.xlu0 %1342, %v44
    %v1344 = vpop.permute.xlu0 %1343
    %1346 = vset.pattern.permute.xlu0 3
    %1347 = vperm.xlu0 %1346, %v45
    %v1348 = vpop.permute.xlu0 %1347
    %1350 = vset.pattern.permute.xlu0 3
    %1351 = vperm.xlu0 %1350, %v46
    %v1352 = vpop.permute.xlu0 %1351
    %1354 = vset.pattern.permute.xlu0 3
    %1355 = vperm.xlu0 %1354, %v47
    %v1356 = vpop.permute.xlu0 %1355
    %1358 = vset.pattern.permute.xlu0 3
    %1359 = vperm.xlu0 %1358, %v48
    %v1360 = vpop.permute.xlu0 %1359
    %1362 = vset.pattern.permute.xlu0 3
    %1363 = vperm.xlu0 %1362, %v49
    %v1364 = vpop.permute.xlu0 %1363
    %1366 = vset.pattern.permute.xlu0 3
    %1367 = vperm.xlu0 %1366, %v50
    %v1368 = vpop.permute.xlu0 %1367
    %1370 = vset.pattern.permute.xlu0 3
    %1371 = vperm.xlu0 %1370, %v51
    %v1372 = vpop.permute.xlu0 %1371
    %1374 = vset.pattern.permute.xlu0 3
    %1375 = vperm.xlu0 %1374, %v52
    %v1376 = vpop.permute.xlu0 %1375
    %1378 = vset.pattern.permute.xlu0 3
    %1379 = vperm.xlu0 %1378, %v53
    %v1380 = vpop.permute.xlu0 %1379
    %1382 = vset.pattern.permute.xlu0 3
    %1383 = vperm.xlu0 %1382, %v54
    %v1384 = vpop.permute.xlu0 %1383
    %1386 = vset.pattern.permute.xlu0 3
    %1387 = vperm.xlu0 %1386, %v55
    %v1388 = vpop.permute.xlu0 %1387
    %1390 = vset.pattern.permute.xlu0 3
    %1391 = vperm.xlu0 %1390, %v56
    %v1392 = vpop.permute.xlu0 %1391
    %1394 = vset.pattern.permute.xlu0 3
    %1395 = vperm.xlu0 %1394, %v57
    %v1396 = vpop.permute.xlu0 %1395
    %1398 = vset.pattern.permute.xlu0 3
    %1399 = vperm.xlu0 %1398, %v58
    %v1400 = vpop.permute.xlu0 %1399
    %1402 = vset.pattern.permute.xlu0 3
    %1403 = vperm.xlu0 %1402, %v59
    %v1404 = vpop.permute.xlu0 %1403
    %1406 = vset.pattern.permute.xlu0 3
    %1407 = vperm.xlu0 %1406, %v60
    %v1408 = vpop.permute.xlu0 %1407
    %1410 = vset.pattern.permute.xlu0 3
    %1411 = vperm.xlu0 %1410, %v61
    %v1412 = vpop.permute.xlu0 %1411
    %1414 = vset.pattern.permute.xlu0 3
    %1415 = vperm.xlu0 %1414, %v62
    %v1416 = vpop.permute.xlu0 %1415
    %1418 = vset.pattern.permute.xlu0 3
    %1419 = vperm.xlu0 %1418, %v63
    %v1420 = vpop.permute.xlu0 %1419
    %1422 = vset.pattern.permute.xlu0 3
    %1423 = vperm.xlu0 %1422, %v64
    %v1424 = vpop.permute.xlu0 %1423
    %1426 = vset.pattern.permute.xlu0 3
    %1427 = vperm.xlu0 %1426, %v65
    %v1428 = vpop.permute.xlu0 %1427
    %1430 = vset.pattern.permute.xlu0 3
    %1431 = vperm.xlu0 %1430, %v66
    %v1432 = vpop.permute.xlu0 %1431
    %1434 = vset.pattern.permute.xlu0 3
    %1435 = vperm.xlu0 %1434, %v67
    %v1436 = vpop.permute.xlu0 %1435
    %1438 = vset.pattern.permute.xlu0 3
    %1439 = vperm.xlu0 %1438, %v68
    %v1440 = vpop.permute.xlu0 %1439
    %1442 = vset.pattern.permute.xlu0 3
    %1443 = vperm.xlu0 %1442, %v69
    %v1444 = vpop.permute.xlu0 %1443
    %1446 = vset.pattern.permute.xlu0 3
    %1447 = vperm.xlu0 %1446, %v70
    %v1448 = vpop.permute.xlu0 %1447
    %1450 = vset.pattern.permute.xlu0 3
    %1451 = vperm.xlu0 %1450, %v71
    %v1452 = vpop.permute.xlu0 %1451
    %1454 = vset.pattern.permute.xlu0 3
    %1455 = vperm.xlu0 %1454, %v72
    %v1456 = vpop.permute.xlu0 %1455
    %1458 = vset.pattern.permute.xlu0 3
    %1459 = vperm.xlu0 %1458, %v73
    %v1460 = vpop.permute.xlu0 %1459
    %1462 = vset.pattern.permute.xlu0 3
    %1463 = vperm.xlu0 %1462, %v74
    %v1464 = vpop.permute.xlu0 %1463
    %1466 = vset.pattern.permute.xlu0 3
    %1467 = vperm.xlu0 %1466, %v75
    %v1468 = vpop.permute.xlu0 %1467
    %1470 = vset.pattern.permute.xlu0 3
    %1471 = vperm.xlu0 %1470, %v76
    %v1472 = vpop.permute.xlu0 %1471
    %1474 = vset.pattern.permute.xlu0 3
    %1475 = vperm.xlu0 %1474, %v77
    %v1476 = vpop.permute.xlu0 %1475
    %1478 = vset.pattern.permute.xlu0 3
    %1479 = vperm.xlu0 %1478, %v78
    %v1480 = vpop.permute.xlu0 %1479
    %1482 = vset.pattern.permute.xlu0 3
    %1483 = vperm.xlu0 %1482, %v79
    %v1484 = vpop.permute.xlu0 %1483
    %1486 = vset.pattern.permute.xlu0 3
    %1487 = vperm.xlu0 %1486, %v80
    %v1488 = vpop.permute.xlu0 %1487
    %1490 = vset.pattern.permute.xlu0 3
    %1491 = vperm.xlu0 %1490, %v81
    %v1492 = vpop.permute.xlu0 %1491
    %1494 = vset.pattern.permute.xlu0 3
    %1495 = vperm.xlu0 %1494, %v82
    %v1496 = vpop.permute.xlu0 %1495
    %1498 = vset.pattern.permute.xlu0 3
    %1499 = vperm.xlu0 %1498, %v83
    %v1500 = vpop.permute.xlu0 %1499
    %1502 = vset.pattern.permute.xlu0 3
    %1503 = vperm.xlu0 %1502, %v84
    %v1504 = vpop.permute.xlu0 %1503
    %1506 = vset.pattern.permute.xlu0 3
    %1507 = vperm.xlu0 %1506, %v85
    %v1508 = vpop.permute.xlu0 %1507
    %v1510 = vlaneseq
    %v1511 = vshrl.u32 %v1510, 7
    %v1512 = vsub.s32 0, %v1511
    %v1513 = vrot.slane %v1253, %v1512
    %v1514 = vmul.f32 %v1256, %v1513
    %v1515 = vmul.f32 %v1260, %v1513
    %v1516 = vmul.f32 %v1264, %v1513
    %v1517 = vmul.f32 %v1268, %v1513
    %v1518 = vmul.f32 %v1272, %v1513
    %v1519 = vmul.f32 %v1276, %v1513
    %v1520 = vmul.f32 %v1280, %v1513
    %v1521 = vmul.f32 %v1284, %v1513
    %v1522 = vmul.f32 %v1288, %v1513
    %v1523 = vmul.f32 %v1292, %v1513
    %v1524 = vmul.f32 %v1296, %v1513
    %v1525 = vmul.f32 %v1300, %v1513
    %v1526 = vmul.f32 %v1304, %v1513
    %v1527 = vmul.f32 %v1308, %v1513
    %v1528 = vmul.f32 %v1312, %v1513
    %v1529 = vmul.f32 %v1316, %v1513
    %v1530 = vmul.f32 %v1320, %v1513
    %v1531 = vmul.f32 %v1324, %v1513
    %v1532 = vmul.f32 %v1328, %v1513
    %v1533 = vmul.f32 %v1332, %v1513
    %v1534 = vmul.f32 %v1336, %v1513
    %v1535 = vmul.f32 %v1340, %v1513
    %v1536 = vmul.f32 %v1344, %v1513
    %v1537 = vmul.f32 %v1348, %v1513
    %v1538 = vmul.f32 %v1352, %v1513
    %v1539 = vmul.f32 %v1356, %v1513
    %v1540 = vmul.f32 %v1360, %v1513
    %v1541 = vmul.f32 %v1364, %v1513
    %v1542 = vmul.f32 %v1368, %v1513
    %v1543 = vmul.f32 %v1372, %v1513
    %v1544 = vmul.f32 %v1376, %v1513
    %v1545 = vmul.f32 %v1380, %v1513
    %v1546 = vmul.f32 %v1384, %v1513
    %v1547 = vmul.f32 %v1388, %v1513
    %v1548 = vmul.f32 %v1392, %v1513
    %v1549 = vmul.f32 %v1396, %v1513
    %v1550 = vmul.f32 %v1400, %v1513
    %v1551 = vmul.f32 %v1404, %v1513
    %v1552 = vmul.f32 %v1408, %v1513
    %v1553 = vmul.f32 %v1412, %v1513
    %v1554 = vmul.f32 %v1416, %v1513
    %v1555 = vmul.f32 %v1420, %v1513
    %v1556 = vmul.f32 %v1424, %v1513
    %v1557 = vmul.f32 %v1428, %v1513
    %v1558 = vmul.f32 %v1432, %v1513
    %v1559 = vmul.f32 %v1436, %v1513
    %v1560 = vmul.f32 %v1440, %v1513
    %v1561 = vmul.f32 %v1444, %v1513
    %v1562 = vmul.f32 %v1448, %v1513
    %v1563 = vmul.f32 %v1452, %v1513
    %v1564 = vmul.f32 %v1456, %v1513
    %v1565 = vmul.f32 %v1460, %v1513
    %v1566 = vmul.f32 %v1464, %v1513
    %v1567 = vmul.f32 %v1468, %v1513
    %v1568 = vmul.f32 %v1472, %v1513
    %v1569 = vmul.f32 %v1476, %v1513
    %v1570 = vmul.f32 %v1480, %v1513
    %v1571 = vmul.f32 %v1484, %v1513
    %v1572 = vmul.f32 %v1488, %v1513
    %v1573 = vmul.f32 %v1492, %v1513
    %v1574 = vmul.f32 %v1496, %v1513
    %v1575 = vmul.f32 %v1500, %v1513
    %v1576 = vmul.f32 %v1504, %v1513
    %v1577 = vmul.f32 %v1508, %v1513
    %v1578 = vadd.f32 %v1189, %v1514
    %v1579 = vadd.f32 %v1190, %v1515
    %v1580 = vadd.f32 %v1191, %v1516
    %v1581 = vadd.f32 %v1192, %v1517
    %v1582 = vadd.f32 %v1193, %v1518
    %v1583 = vadd.f32 %v1194, %v1519
    %v1584 = vadd.f32 %v1195, %v1520
    %v1585 = vadd.f32 %v1196, %v1521
    %v1586 = vadd.f32 %v1197, %v1522
    %v1587 = vadd.f32 %v1198, %v1523
    %v1588 = vadd.f32 %v1199, %v1524
    %v1589 = vadd.f32 %v1200, %v1525
    %v1590 = vadd.f32 %v1201, %v1526
    %v1591 = vadd.f32 %v1202, %v1527
    %v1592 = vadd.f32 %v1203, %v1528
    %v1593 = vadd.f32 %v1204, %v1529
    %v1594 = vadd.f32 %v1205, %v1530
    %v1595 = vadd.f32 %v1206, %v1531
    %v1596 = vadd.f32 %v1207, %v1532
    %v1597 = vadd.f32 %v1208, %v1533
    %v1598 = vadd.f32 %v1209, %v1534
    %v1599 = vadd.f32 %v1210, %v1535
    %v1600 = vadd.f32 %v1211, %v1536
    %v1601 = vadd.f32 %v1212, %v1537
    %v1602 = vadd.f32 %v1213, %v1538
    %v1603 = vadd.f32 %v1214, %v1539
    %v1604 = vadd.f32 %v1215, %v1540
    %v1605 = vadd.f32 %v1216, %v1541
    %v1606 = vadd.f32 %v1217, %v1542
    %v1607 = vadd.f32 %v1218, %v1543
    %v1608 = vadd.f32 %v1219, %v1544
    %v1609 = vadd.f32 %v1220, %v1545
    %v1610 = vadd.f32 %v1221, %v1546
    %v1611 = vadd.f32 %v1222, %v1547
    %v1612 = vadd.f32 %v1223, %v1548
    %v1613 = vadd.f32 %v1224, %v1549
    %v1614 = vadd.f32 %v1225, %v1550
    %v1615 = vadd.f32 %v1226, %v1551
    %v1616 = vadd.f32 %v1227, %v1552
    %v1617 = vadd.f32 %v1228, %v1553
    %v1618 = vadd.f32 %v1229, %v1554
    %v1619 = vadd.f32 %v1230, %v1555
    %v1620 = vadd.f32 %v1231, %v1556
    %v1621 = vadd.f32 %v1232, %v1557
    %v1622 = vadd.f32 %v1233, %v1558
    %v1623 = vadd.f32 %v1234, %v1559
    %v1624 = vadd.f32 %v1235, %v1560
    %v1625 = vadd.f32 %v1236, %v1561
    %v1626 = vadd.f32 %v1237, %v1562
    %v1627 = vadd.f32 %v1238, %v1563
    %v1628 = vadd.f32 %v1239, %v1564
    %v1629 = vadd.f32 %v1240, %v1565
    %v1630 = vadd.f32 %v1241, %v1566
    %v1631 = vadd.f32 %v1242, %v1567
    %v1632 = vadd.f32 %v1243, %v1568
    %v1633 = vadd.f32 %v1244, %v1569
    %v1634 = vadd.f32 %v1245, %v1570
    %v1635 = vadd.f32 %v1246, %v1571
    %v1636 = vadd.f32 %v1247, %v1572
    %v1637 = vadd.f32 %v1248, %v1573
    %v1638 = vadd.f32 %v1249, %v1574
    %v1639 = vadd.f32 %v1250, %v1575
    %v1640 = vadd.f32 %v1251, %v1576
    %v1641 = vadd.f32 %v1252, %v1577
    %v1642 = vld [vmem:[%s3] sm:$0x1]
    %v1643 = vmul.f32 %v1578, 2.0
    %v1644 = vmul.f32 %v1579, 2.0
    %v1645 = vmul.f32 %v1580, 2.0
    %v1646 = vmul.f32 %v1581, 2.0
    %v1647 = vmul.f32 %v1582, 2.0
    %v1648 = vmul.f32 %v1583, 2.0
    %v1649 = vmul.f32 %v1584, 2.0
    %v1650 = vmul.f32 %v1585, 2.0
    %v1651 = vmul.f32 %v1586, 2.0
    %v1652 = vmul.f32 %v1587, 2.0
    %v1653 = vmul.f32 %v1588, 2.0
    %v1654 = vmul.f32 %v1589, 2.0
    %v1655 = vmul.f32 %v1590, 2.0
    %v1656 = vmul.f32 %v1591, 2.0
    %v1657 = vmul.f32 %v1592, 2.0
    %v1658 = vmul.f32 %v1593, 2.0
    %v1659 = vmul.f32 %v1594, 2.0
    %v1660 = vmul.f32 %v1595, 2.0
    %v1661 = vmul.f32 %v1596, 2.0
    %v1662 = vmul.f32 %v1597, 2.0
    %v1663 = vmul.f32 %v1598, 2.0
    %v1664 = vmul.f32 %v1599, 2.0
    %v1665 = vmul.f32 %v1600, 2.0
    %v1666 = vmul.f32 %v1601, 2.0
    %v1667 = vmul.f32 %v1602, 2.0
    %v1668 = vmul.f32 %v1603, 2.0
    %v1669 = vmul.f32 %v1604, 2.0
    %v1670 = vmul.f32 %v1605, 2.0
    %v1671 = vmul.f32 %v1606, 2.0
    %v1672 = vmul.f32 %v1607, 2.0
    %v1673 = vmul.f32 %v1608, 2.0
    %v1674 = vmul.f32 %v1609, 2.0
    %v1675 = vmul.f32 %v1610, 2.0
    %v1676 = vmul.f32 %v1611, 2.0
    %v1677 = vmul.f32 %v1612, 2.0
    %v1678 = vmul.f32 %v1613, 2.0
    %v1679 = vmul.f32 %v1614, 2.0
    %v1680 = vmul.f32 %v1615, 2.0
    %v1681 = vmul.f32 %v1616, 2.0
    %v1682 = vmul.f32 %v1617, 2.0
    %v1683 = vmul.f32 %v1618, 2.0
    %v1684 = vmul.f32 %v1619, 2.0
    %v1685 = vmul.f32 %v1620, 2.0
    %v1686 = vmul.f32 %v1621, 2.0
    %v1687 = vmul.f32 %v1622, 2.0
    %v1688 = vmul.f32 %v1623, 2.0
    %v1689 = vmul.f32 %v1624, 2.0
    %v1690 = vmul.f32 %v1625, 2.0
    %v1691 = vmul.f32 %v1626, 2.0
    %v1692 = vmul.f32 %v1627, 2.0
    %v1693 = vmul.f32 %v1628, 2.0
    %v1694 = vmul.f32 %v1629, 2.0
    %v1695 = vmul.f32 %v1630, 2.0
    %v1696 = vmul.f32 %v1631, 2.0
    %v1697 = vmul.f32 %v1632, 2.0
    %v1698 = vmul.f32 %v1633, 2.0
    %v1699 = vmul.f32 %v1634, 2.0
    %v1700 = vmul.f32 %v1635, 2.0
    %v1701 = vmul.f32 %v1636, 2.0
    %v1702 = vmul.f32 %v1637, 2.0
    %v1703 = vmul.f32 %v1638, 2.0
    %v1704 = vmul.f32 %v1639, 2.0
    %v1705 = vmul.f32 %v1640, 2.0
    %v1706 = vmul.f32 %v1641, 2.0
    %v1708 = vlaneseq
    %v1709 = vshrl.u32 %v1708, 7
    %v1710 = vsub.s32 0, %v1709
    %v1711 = vrot.slane %v1642, %v1710
    %v1713 = vsub.f32 %v1711, %v1643
    %v1714 = vsub.f32 %v1711, %v1644
    %v1715 = vsub.f32 %v1711, %v1645
    %v1716 = vsub.f32 %v1711, %v1646
    %v1717 = vsub.f32 %v1711, %v1647
    %v1718 = vsub.f32 %v1711, %v1648
    %v1719 = vsub.f32 %v1711, %v1649
    %v1720 = vsub.f32 %v1711, %v1650
    %v1721 = vsub.f32 %v1711, %v1651
    %v1722 = vsub.f32 %v1711, %v1652
    %v1723 = vsub.f32 %v1711, %v1653
    %v1724 = vsub.f32 %v1711, %v1654
    %v1725 = vsub.f32 %v1711, %v1655
    %v1726 = vsub.f32 %v1711, %v1656
    %v1727 = vsub.f32 %v1711, %v1657
    %v1728 = vsub.f32 %v1711, %v1658
    %v1729 = vsub.f32 %v1711, %v1659
    %v1730 = vsub.f32 %v1711, %v1660
    %v1731 = vsub.f32 %v1711, %v1661
    %v1732 = vsub.f32 %v1711, %v1662
    %v1733 = vsub.f32 %v1711, %v1663
    %v1734 = vsub.f32 %v1711, %v1664
    %v1735 = vsub.f32 %v1711, %v1665
    %v1736 = vsub.f32 %v1711, %v1666
    %v1737 = vsub.f32 %v1711, %v1667
    %v1738 = vsub.f32 %v1711, %v1668
    %v1739 = vsub.f32 %v1711, %v1669
    %v1740 = vsub.f32 %v1711, %v1670
    %v1741 = vsub.f32 %v1711, %v1671
    %v1742 = vsub.f32 %v1711, %v1672
    %v1743 = vsub.f32 %v1711, %v1673
    %v1744 = vsub.f32 %v1711, %v1674
    %v1745 = vsub.f32 %v1711, %v1675
    %v1746 = vsub.f32 %v1711, %v1676
    %v1747 = vsub.f32 %v1711, %v1677
    %v1748 = vsub.f32 %v1711, %v1678
    %v1749 = vsub.f32 %v1711, %v1679
    %v1750 = vsub.f32 %v1711, %v1680
    %v1751 = vsub.f32 %v1711, %v1681
    %v1752 = vsub.f32 %v1711, %v1682
    %v1753 = vsub.f32 %v1711, %v1683
    %v1754 = vsub.f32 %v1711, %v1684
    %v1755 = vsub.f32 %v1711, %v1685
    %v1756 = vsub.f32 %v1711, %v1686
    %v1757 = vsub.f32 %v1711, %v1687
    %v1758 = vsub.f32 %v1711, %v1688
    %v1759 = vsub.f32 %v1711, %v1689
    %v1760 = vsub.f32 %v1711, %v1690
    %v1761 = vsub.f32 %v1711, %v1691
    %v1762 = vsub.f32 %v1711, %v1692
    %v1763 = vsub.f32 %v1711, %v1693
    %v1764 = vsub.f32 %v1711, %v1694
    %v1765 = vsub.f32 %v1711, %v1695
    %v1766 = vsub.f32 %v1711, %v1696
    %v1767 = vsub.f32 %v1711, %v1697
    %v1768 = vsub.f32 %v1711, %v1698
    %v1769 = vsub.f32 %v1711, %v1699
    %v1770 = vsub.f32 %v1711, %v1700
    %v1771 = vsub.f32 %v1711, %v1701
    %v1772 = vsub.f32 %v1711, %v1702
    %v1773 = vsub.f32 %v1711, %v1703
    %v1774 = vsub.f32 %v1711, %v1704
    %v1775 = vsub.f32 %v1711, %v1705
    %v1776 = vsub.f32 %v1711, %v1706
    %v1777 = vlaneseq
    %v1778 = vand.u32 %v1777, 127
    %vm1779 = vcmask 130048
    %v1780 = vsel %vm1779, %v1713, inf
    %1781 = vmin.xlane.f32.xlu0 %v1780
    %v1782 = vpop.xlane.xlu0 %1781
    %v1783 = vsel %vm1779, %v1714, inf
    %1784 = vmin.xlane.f32.xlu0 %v1783
    %v1785 = vpop.xlane.xlu0 %1784
    %v1786 = vsel %vm1779, %v1715, inf
    %1787 = vmin.xlane.f32.xlu0 %v1786
    %v1788 = vpop.xlane.xlu0 %1787
    %v1789 = vsel %vm1779, %v1716, inf
    %1790 = vmin.xlane.f32.xlu0 %v1789
    %v1791 = vpop.xlane.xlu0 %1790
    %v1792 = vsel %vm1779, %v1717, inf
    %1793 = vmin.xlane.f32.xlu0 %v1792
    %v1794 = vpop.xlane.xlu0 %1793
    %v1795 = vsel %vm1779, %v1718, inf
    %1796 = vmin.xlane.f32.xlu0 %v1795
    %v1797 = vpop.xlane.xlu0 %1796
    %v1798 = vsel %vm1779, %v1719, inf
    %1799 = vmin.xlane.f32.xlu0 %v1798
    %v1800 = vpop.xlane.xlu0 %1799
    %v1801 = vsel %vm1779, %v1720, inf
    %1802 = vmin.xlane.f32.xlu0 %v1801
    %v1803 = vpop.xlane.xlu0 %1802
    %v1804 = vsel %vm1779, %v1721, inf
    %1805 = vmin.xlane.f32.xlu0 %v1804
    %v1806 = vpop.xlane.xlu0 %1805
    %v1807 = vsel %vm1779, %v1722, inf
    %1808 = vmin.xlane.f32.xlu0 %v1807
    %v1809 = vpop.xlane.xlu0 %1808
    %v1810 = vsel %vm1779, %v1723, inf
    %1811 = vmin.xlane.f32.xlu0 %v1810
    %v1812 = vpop.xlane.xlu0 %1811
    %v1813 = vsel %vm1779, %v1724, inf
    %1814 = vmin.xlane.f32.xlu0 %v1813
    %v1815 = vpop.xlane.xlu0 %1814
    %v1816 = vsel %vm1779, %v1725, inf
    %1817 = vmin.xlane.f32.xlu0 %v1816
    %v1818 = vpop.xlane.xlu0 %1817
    %v1819 = vsel %vm1779, %v1726, inf
    %1820 = vmin.xlane.f32.xlu0 %v1819
    %v1821 = vpop.xlane.xlu0 %1820
    %v1822 = vsel %vm1779, %v1727, inf
    %1823 = vmin.xlane.f32.xlu0 %v1822
    %v1824 = vpop.xlane.xlu0 %1823
    %v1825 = vsel %vm1779, %v1728, inf
    %1826 = vmin.xlane.f32.xlu0 %v1825
    %v1827 = vpop.xlane.xlu0 %1826
    %v1828 = vsel %vm1779, %v1729, inf
    %1829 = vmin.xlane.f32.xlu0 %v1828
    %v1830 = vpop.xlane.xlu0 %1829
    %v1831 = vsel %vm1779, %v1730, inf
    %1832 = vmin.xlane.f32.xlu0 %v1831
    %v1833 = vpop.xlane.xlu0 %1832
    %v1834 = vsel %vm1779, %v1731, inf
    %1835 = vmin.xlane.f32.xlu0 %v1834
    %v1836 = vpop.xlane.xlu0 %1835
    %v1837 = vsel %vm1779, %v1732, inf
    %1838 = vmin.xlane.f32.xlu0 %v1837
    %v1839 = vpop.xlane.xlu0 %1838
    %v1840 = vsel %vm1779, %v1733, inf
    %1841 = vmin.xlane.f32.xlu0 %v1840
    %v1842 = vpop.xlane.xlu0 %1841
    %v1843 = vsel %vm1779, %v1734, inf
    %1844 = vmin.xlane.f32.xlu0 %v1843
    %v1845 = vpop.xlane.xlu0 %1844
    %v1846 = vsel %vm1779, %v1735, inf
    %1847 = vmin.xlane.f32.xlu0 %v1846
    %v1848 = vpop.xlane.xlu0 %1847
    %v1849 = vsel %vm1779, %v1736, inf
    %1850 = vmin.xlane.f32.xlu0 %v1849
    %v1851 = vpop.xlane.xlu0 %1850
    %v1852 = vsel %vm1779, %v1737, inf
    %1853 = vmin.xlane.f32.xlu0 %v1852
    %v1854 = vpop.xlane.xlu0 %1853
    %v1855 = vsel %vm1779, %v1738, inf
    %1856 = vmin.xlane.f32.xlu0 %v1855
    %v1857 = vpop.xlane.xlu0 %1856
    %v1858 = vsel %vm1779, %v1739, inf
    %1859 = vmin.xlane.f32.xlu0 %v1858
    %v1860 = vpop.xlane.xlu0 %1859
    %v1861 = vsel %vm1779, %v1740, inf
    %1862 = vmin.xlane.f32.xlu0 %v1861
    %v1863 = vpop.xlane.xlu0 %1862
    %v1864 = vsel %vm1779, %v1741, inf
    %1865 = vmin.xlane.f32.xlu0 %v1864
    %v1866 = vpop.xlane.xlu0 %1865
    %v1867 = vsel %vm1779, %v1742, inf
    %1868 = vmin.xlane.f32.xlu0 %v1867
    %v1869 = vpop.xlane.xlu0 %1868
    %v1870 = vsel %vm1779, %v1743, inf
    %1871 = vmin.xlane.f32.xlu0 %v1870
    %v1872 = vpop.xlane.xlu0 %1871
    %v1873 = vsel %vm1779, %v1744, inf
    %1874 = vmin.xlane.f32.xlu0 %v1873
    %v1875 = vpop.xlane.xlu0 %1874
    %v1876 = vsel %vm1779, %v1745, inf
    %1877 = vmin.xlane.f32.xlu0 %v1876
    %v1878 = vpop.xlane.xlu0 %1877
    %v1879 = vsel %vm1779, %v1746, inf
    %1880 = vmin.xlane.f32.xlu0 %v1879
    %v1881 = vpop.xlane.xlu0 %1880
    %v1882 = vsel %vm1779, %v1747, inf
    %1883 = vmin.xlane.f32.xlu0 %v1882
    %v1884 = vpop.xlane.xlu0 %1883
    %v1885 = vsel %vm1779, %v1748, inf
    %1886 = vmin.xlane.f32.xlu0 %v1885
    %v1887 = vpop.xlane.xlu0 %1886
    %v1888 = vsel %vm1779, %v1749, inf
    %1889 = vmin.xlane.f32.xlu0 %v1888
    %v1890 = vpop.xlane.xlu0 %1889
    %v1891 = vsel %vm1779, %v1750, inf
    %1892 = vmin.xlane.f32.xlu0 %v1891
    %v1893 = vpop.xlane.xlu0 %1892
    %v1894 = vsel %vm1779, %v1751, inf
    %1895 = vmin.xlane.f32.xlu0 %v1894
    %v1896 = vpop.xlane.xlu0 %1895
    %v1897 = vsel %vm1779, %v1752, inf
    %1898 = vmin.xlane.f32.xlu0 %v1897
    %v1899 = vpop.xlane.xlu0 %1898
    %v1900 = vsel %vm1779, %v1753, inf
    %1901 = vmin.xlane.f32.xlu0 %v1900
    %v1902 = vpop.xlane.xlu0 %1901
    %v1903 = vsel %vm1779, %v1754, inf
    %1904 = vmin.xlane.f32.xlu0 %v1903
    %v1905 = vpop.xlane.xlu0 %1904
    %v1906 = vsel %vm1779, %v1755, inf
    %1907 = vmin.xlane.f32.xlu0 %v1906
    %v1908 = vpop.xlane.xlu0 %1907
    %v1909 = vsel %vm1779, %v1756, inf
    %1910 = vmin.xlane.f32.xlu0 %v1909
    %v1911 = vpop.xlane.xlu0 %1910
    %v1912 = vsel %vm1779, %v1757, inf
    %1913 = vmin.xlane.f32.xlu0 %v1912
    %v1914 = vpop.xlane.xlu0 %1913
    %v1915 = vsel %vm1779, %v1758, inf
    %1916 = vmin.xlane.f32.xlu0 %v1915
    %v1917 = vpop.xlane.xlu0 %1916
    %v1918 = vsel %vm1779, %v1759, inf
    %1919 = vmin.xlane.f32.xlu0 %v1918
    %v1920 = vpop.xlane.xlu0 %1919
    %v1921 = vsel %vm1779, %v1760, inf
    %1922 = vmin.xlane.f32.xlu0 %v1921
    %v1923 = vpop.xlane.xlu0 %1922
    %v1924 = vsel %vm1779, %v1761, inf
    %1925 = vmin.xlane.f32.xlu0 %v1924
    %v1926 = vpop.xlane.xlu0 %1925
    %v1927 = vsel %vm1779, %v1762, inf
    %1928 = vmin.xlane.f32.xlu0 %v1927
    %v1929 = vpop.xlane.xlu0 %1928
    %v1930 = vsel %vm1779, %v1763, inf
    %1931 = vmin.xlane.f32.xlu0 %v1930
    %v1932 = vpop.xlane.xlu0 %1931
    %v1933 = vsel %vm1779, %v1764, inf
    %1934 = vmin.xlane.f32.xlu0 %v1933
    %v1935 = vpop.xlane.xlu0 %1934
    %v1936 = vsel %vm1779, %v1765, inf
    %1937 = vmin.xlane.f32.xlu0 %v1936
    %v1938 = vpop.xlane.xlu0 %1937
    %v1939 = vsel %vm1779, %v1766, inf
    %1940 = vmin.xlane.f32.xlu0 %v1939
    %v1941 = vpop.xlane.xlu0 %1940
    %v1942 = vsel %vm1779, %v1767, inf
    %1943 = vmin.xlane.f32.xlu0 %v1942
    %v1944 = vpop.xlane.xlu0 %1943
    %v1945 = vsel %vm1779, %v1768, inf
    %1946 = vmin.xlane.f32.xlu0 %v1945
    %v1947 = vpop.xlane.xlu0 %1946
    %v1948 = vsel %vm1779, %v1769, inf
    %1949 = vmin.xlane.f32.xlu0 %v1948
    %v1950 = vpop.xlane.xlu0 %1949
    %v1951 = vsel %vm1779, %v1770, inf
    %1952 = vmin.xlane.f32.xlu0 %v1951
    %v1953 = vpop.xlane.xlu0 %1952
    %v1954 = vsel %vm1779, %v1771, inf
    %1955 = vmin.xlane.f32.xlu0 %v1954
    %v1956 = vpop.xlane.xlu0 %1955
    %v1957 = vsel %vm1779, %v1772, inf
    %1958 = vmin.xlane.f32.xlu0 %v1957
    %v1959 = vpop.xlane.xlu0 %1958
    %v1960 = vsel %vm1779, %v1773, inf
    %1961 = vmin.xlane.f32.xlu0 %v1960
    %v1962 = vpop.xlane.xlu0 %1961
    %v1963 = vsel %vm1779, %v1774, inf
    %1964 = vmin.xlane.f32.xlu0 %v1963
    %v1965 = vpop.xlane.xlu0 %1964
    %v1966 = vsel %vm1779, %v1775, inf
    %1967 = vmin.xlane.f32.xlu0 %v1966
    %v1968 = vpop.xlane.xlu0 %1967
    %v1969 = vsel %vm1779, %v1776, inf
    %1970 = vmin.xlane.f32.xlu0 %v1969
    %v1971 = vpop.xlane.xlu0 %1970
    %vm1972 = vcmp.eq.f32.partialorder %v1713, %v1782
    %vm1973 = vcmp.eq.f32.partialorder %v1714, %v1785
    %vm1974 = vcmp.eq.f32.partialorder %v1715, %v1788
    %vm1975 = vcmp.eq.f32.partialorder %v1716, %v1791
    %vm1976 = vcmp.eq.f32.partialorder %v1717, %v1794
    %vm1977 = vcmp.eq.f32.partialorder %v1718, %v1797
    %vm1978 = vcmp.eq.f32.partialorder %v1719, %v1800
    %vm1979 = vcmp.eq.f32.partialorder %v1720, %v1803
    %vm1980 = vcmp.eq.f32.partialorder %v1721, %v1806
    %vm1981 = vcmp.eq.f32.partialorder %v1722, %v1809
    %vm1982 = vcmp.eq.f32.partialorder %v1723, %v1812
    %vm1983 = vcmp.eq.f32.partialorder %v1724, %v1815
    %vm1984 = vcmp.eq.f32.partialorder %v1725, %v1818
    %vm1985 = vcmp.eq.f32.partialorder %v1726, %v1821
    %vm1986 = vcmp.eq.f32.partialorder %v1727, %v1824
    %vm1987 = vcmp.eq.f32.partialorder %v1728, %v1827
    %vm1988 = vcmp.eq.f32.partialorder %v1729, %v1830
    %vm1989 = vcmp.eq.f32.partialorder %v1730, %v1833
    %vm1990 = vcmp.eq.f32.partialorder %v1731, %v1836
    %vm1991 = vcmp.eq.f32.partialorder %v1732, %v1839
    %vm1992 = vcmp.eq.f32.partialorder %v1733, %v1842
    %vm1993 = vcmp.eq.f32.partialorder %v1734, %v1845
    %vm1994 = vcmp.eq.f32.partialorder %v1735, %v1848
    %vm1995 = vcmp.eq.f32.partialorder %v1736, %v1851
    %vm1996 = vcmp.eq.f32.partialorder %v1737, %v1854
    %vm1997 = vcmp.eq.f32.partialorder %v1738, %v1857
    %vm1998 = vcmp.eq.f32.partialorder %v1739, %v1860
    %vm1999 = vcmp.eq.f32.partialorder %v1740, %v1863
    %vm2000 = vcmp.eq.f32.partialorder %v1741, %v1866
    %vm2001 = vcmp.eq.f32.partialorder %v1742, %v1869
    %vm2002 = vcmp.eq.f32.partialorder %v1743, %v1872
    %vm2003 = vcmp.eq.f32.partialorder %v1744, %v1875
    %vm2004 = vcmp.eq.f32.partialorder %v1745, %v1878
    %vm2005 = vcmp.eq.f32.partialorder %v1746, %v1881
    %vm2006 = vcmp.eq.f32.partialorder %v1747, %v1884
    %vm2007 = vcmp.eq.f32.partialorder %v1748, %v1887
    %vm2008 = vcmp.eq.f32.partialorder %v1749, %v1890
    %vm2009 = vcmp.eq.f32.partialorder %v1750, %v1893
    %vm2010 = vcmp.eq.f32.partialorder %v1751, %v1896
    %vm2011 = vcmp.eq.f32.partialorder %v1752, %v1899
    %vm2012 = vcmp.eq.f32.partialorder %v1753, %v1902
    %vm2013 = vcmp.eq.f32.partialorder %v1754, %v1905
    %vm2014 = vcmp.eq.f32.partialorder %v1755, %v1908
    %vm2015 = vcmp.eq.f32.partialorder %v1756, %v1911
    %vm2016 = vcmp.eq.f32.partialorder %v1757, %v1914
    %vm2017 = vcmp.eq.f32.partialorder %v1758, %v1917
    %vm2018 = vcmp.eq.f32.partialorder %v1759, %v1920
    %vm2019 = vcmp.eq.f32.partialorder %v1760, %v1923
    %vm2020 = vcmp.eq.f32.partialorder %v1761, %v1926
    %vm2021 = vcmp.eq.f32.partialorder %v1762, %v1929
    %vm2022 = vcmp.eq.f32.partialorder %v1763, %v1932
    %vm2023 = vcmp.eq.f32.partialorder %v1764, %v1935
    %vm2024 = vcmp.eq.f32.partialorder %v1765, %v1938
    %vm2025 = vcmp.eq.f32.partialorder %v1766, %v1941
    %vm2026 = vcmp.eq.f32.partialorder %v1767, %v1944
    %vm2027 = vcmp.eq.f32.partialorder %v1768, %v1947
    %vm2028 = vcmp.eq.f32.partialorder %v1769, %v1950
    %vm2029 = vcmp.eq.f32.partialorder %v1770, %v1953
    %vm2030 = vcmp.eq.f32.partialorder %v1771, %v1956
    %vm2031 = vcmp.eq.f32.partialorder %v1772, %v1959
    %vm2032 = vcmp.eq.f32.partialorder %v1773, %v1962
    %vm2033 = vcmp.eq.f32.partialorder %v1774, %v1965
    %vm2034 = vcmp.eq.f32.partialorder %v1775, %v1968
    %vm2035 = vcmp.eq.f32.partialorder %v1776, %v1971
    %v2036 = vsel %vm1972, %v1778, 16
    %v2037 = vsel %vm1973, %v1778, 16
    %v2038 = vsel %vm1974, %v1778, 16
    %v2039 = vsel %vm1975, %v1778, 16
    %v2040 = vsel %vm1976, %v1778, 16
    %v2041 = vsel %vm1977, %v1778, 16
    %v2042 = vsel %vm1978, %v1778, 16
    %v2043 = vsel %vm1979, %v1778, 16
    %v2044 = vsel %vm1980, %v1778, 16
    %v2045 = vsel %vm1981, %v1778, 16
    %v2046 = vsel %vm1982, %v1778, 16
    %v2047 = vsel %vm1983, %v1778, 16
    %v2048 = vsel %vm1984, %v1778, 16
    %v2049 = vsel %vm1985, %v1778, 16
    %v2050 = vsel %vm1986, %v1778, 16
    %v2051 = vsel %vm1987, %v1778, 16
    %v2052 = vsel %vm1988, %v1778, 16
    %v2053 = vsel %vm1989, %v1778, 16
    %v2054 = vsel %vm1990, %v1778, 16
    %v2055 = vsel %vm1991, %v1778, 16
    %v2056 = vsel %vm1992, %v1778, 16
    %v2057 = vsel %vm1993, %v1778, 16
    %v2058 = vsel %vm1994, %v1778, 16
    %v2059 = vsel %vm1995, %v1778, 16
    %v2060 = vsel %vm1996, %v1778, 16
    %v2061 = vsel %vm1997, %v1778, 16
    %v2062 = vsel %vm1998, %v1778, 16
    %v2063 = vsel %vm1999, %v1778, 16
    %v2064 = vsel %vm2000, %v1778, 16
    %v2065 = vsel %vm2001, %v1778, 16
    %v2066 = vsel %vm2002, %v1778, 16
    %v2067 = vsel %vm2003, %v1778, 16
    %v2068 = vsel %vm2004, %v1778, 16
    %v2069 = vsel %vm2005, %v1778, 16
    %v2070 = vsel %vm2006, %v1778, 16
    %v2071 = vsel %vm2007, %v1778, 16
    %v2072 = vsel %vm2008, %v1778, 16
    %v2073 = vsel %vm2009, %v1778, 16
    %v2074 = vsel %vm2010, %v1778, 16
    %v2075 = vsel %vm2011, %v1778, 16
    %v2076 = vsel %vm2012, %v1778, 16
    %v2077 = vsel %vm2013, %v1778, 16
    %v2078 = vsel %vm2014, %v1778, 16
    %v2079 = vsel %vm2015, %v1778, 16
    %v2080 = vsel %vm2016, %v1778, 16
    %v2081 = vsel %vm2017, %v1778, 16
    %v2082 = vsel %vm2018, %v1778, 16
    %v2083 = vsel %vm2019, %v1778, 16
    %v2084 = vsel %vm2020, %v1778, 16
    %v2085 = vsel %vm2021, %v1778, 16
    %v2086 = vsel %vm2022, %v1778, 16
    %v2087 = vsel %vm2023, %v1778, 16
    %v2088 = vsel %vm2024, %v1778, 16
    %v2089 = vsel %vm2025, %v1778, 16
    %v2090 = vsel %vm2026, %v1778, 16
    %v2091 = vsel %vm2027, %v1778, 16
    %v2092 = vsel %vm2028, %v1778, 16
    %v2093 = vsel %vm2029, %v1778, 16
    %v2094 = vsel %vm2030, %v1778, 16
    %v2095 = vsel %vm2031, %v1778, 16
    %v2096 = vsel %vm2032, %v1778, 16
    %v2097 = vsel %vm2033, %v1778, 16
    %v2098 = vsel %vm2034, %v1778, 16
    %v2099 = vsel %vm2035, %v1778, 16
    %v2100 = vsel %vm1779, %v2036, 2147483647
    %v2101 = vand.u32 %v2100, 65535
    %v2102 = vshra.s32 %v2100, 16
    %v2103 = vcvt.s32.f32 %v2101
    %v2104 = vcvt.s32.f32 %v2102
    %2105 = vmin.xlane.f32.xlu0 %v2104
    %v2106 = vpop.xlane.xlu0 %2105
    %vm2107 = vcmp.eq.f32.partialorder %v2104, %v2106
    %v2108 = vsel %vm2107, %v2103, inf
    %2109 = vmin.xlane.f32.xlu0 %v2108
    %v2110 = vpop.xlane.xlu0 %2109
    %v2111 = vcvt.f32.s32 %v2110
    %v2112 = vcvt.f32.s32 %v2106
    %v2113 = vshll.u32 %v2112, 16
    %v2114 = vadd.s32 %v2113, %v2111
    %v2115 = vsel %vm1779, %v2037, 2147483647
    %v2116 = vand.u32 %v2115, 65535
    %v2117 = vshra.s32 %v2115, 16
    %v2118 = vcvt.s32.f32 %v2116
    %v2119 = vcvt.s32.f32 %v2117
    %2120 = vmin.xlane.f32.xlu0 %v2119
    %v2121 = vpop.xlane.xlu0 %2120
    %vm2122 = vcmp.eq.f32.partialorder %v2119, %v2121
    %v2123 = vsel %vm2122, %v2118, inf
    %2124 = vmin.xlane.f32.xlu0 %v2123
    %v2125 = vpop.xlane.xlu0 %2124
    %v2126 = vcvt.f32.s32 %v2125
    %v2127 = vcvt.f32.s32 %v2121
    %v2128 = vshll.u32 %v2127, 16
    %v2129 = vadd.s32 %v2128, %v2126
    %v2130 = vsel %vm1779, %v2038, 2147483647
    %v2131 = vand.u32 %v2130, 65535
    %v2132 = vshra.s32 %v2130, 16
    %v2133 = vcvt.s32.f32 %v2131
    %v2134 = vcvt.s32.f32 %v2132
    %2135 = vmin.xlane.f32.xlu0 %v2134
    %v2136 = vpop.xlane.xlu0 %2135
    %vm2137 = vcmp.eq.f32.partialorder %v2134, %v2136
    %v2138 = vsel %vm2137, %v2133, inf
    %2139 = vmin.xlane.f32.xlu0 %v2138
    %v2140 = vpop.xlane.xlu0 %2139
    %v2141 = vcvt.f32.s32 %v2140
    %v2142 = vcvt.f32.s32 %v2136
    %v2143 = vshll.u32 %v2142, 16
    %v2144 = vadd.s32 %v2143, %v2141
    %v2145 = vsel %vm1779, %v2039, 2147483647
    %v2146 = vand.u32 %v2145, 65535
    %v2147 = vshra.s32 %v2145, 16
    %v2148 = vcvt.s32.f32 %v2146
    %v2149 = vcvt.s32.f32 %v2147
    %2150 = vmin.xlane.f32.xlu0 %v2149
    %v2151 = vpop.xlane.xlu0 %2150
    %vm2152 = vcmp.eq.f32.partialorder %v2149, %v2151
    %v2153 = vsel %vm2152, %v2148, inf
    %2154 = vmin.xlane.f32.xlu0 %v2153
    %v2155 = vpop.xlane.xlu0 %2154
    %v2156 = vcvt.f32.s32 %v2155
    %v2157 = vcvt.f32.s32 %v2151
    %v2158 = vshll.u32 %v2157, 16
    %v2159 = vadd.s32 %v2158, %v2156
    %v2160 = vsel %vm1779, %v2040, 2147483647
    %v2161 = vand.u32 %v2160, 65535
    %v2162 = vshra.s32 %v2160, 16
    %v2163 = vcvt.s32.f32 %v2161
    %v2164 = vcvt.s32.f32 %v2162
    %2165 = vmin.xlane.f32.xlu0 %v2164
    %v2166 = vpop.xlane.xlu0 %2165
    %vm2167 = vcmp.eq.f32.partialorder %v2164, %v2166
    %v2168 = vsel %vm2167, %v2163, inf
    %2169 = vmin.xlane.f32.xlu0 %v2168
    %v2170 = vpop.xlane.xlu0 %2169
    %v2171 = vcvt.f32.s32 %v2170
    %v2172 = vcvt.f32.s32 %v2166
    %v2173 = vshll.u32 %v2172, 16
    %v2174 = vadd.s32 %v2173, %v2171
    %v2175 = vsel %vm1779, %v2041, 2147483647
    %v2176 = vand.u32 %v2175, 65535
    %v2177 = vshra.s32 %v2175, 16
    %v2178 = vcvt.s32.f32 %v2176
    %v2179 = vcvt.s32.f32 %v2177
    %2180 = vmin.xlane.f32.xlu0 %v2179
    %v2181 = vpop.xlane.xlu0 %2180
    %vm2182 = vcmp.eq.f32.partialorder %v2179, %v2181
    %v2183 = vsel %vm2182, %v2178, inf
    %2184 = vmin.xlane.f32.xlu0 %v2183
    %v2185 = vpop.xlane.xlu0 %2184
    %v2186 = vcvt.f32.s32 %v2185
    %v2187 = vcvt.f32.s32 %v2181
    %v2188 = vshll.u32 %v2187, 16
    %v2189 = vadd.s32 %v2188, %v2186
    %v2190 = vsel %vm1779, %v2042, 2147483647
    %v2191 = vand.u32 %v2190, 65535
    %v2192 = vshra.s32 %v2190, 16
    %v2193 = vcvt.s32.f32 %v2191
    %v2194 = vcvt.s32.f32 %v2192
    %2195 = vmin.xlane.f32.xlu0 %v2194
    %v2196 = vpop.xlane.xlu0 %2195
    %vm2197 = vcmp.eq.f32.partialorder %v2194, %v2196
    %v2198 = vsel %vm2197, %v2193, inf
    %2199 = vmin.xlane.f32.xlu0 %v2198
    %v2200 = vpop.xlane.xlu0 %2199
    %v2201 = vcvt.f32.s32 %v2200
    %v2202 = vcvt.f32.s32 %v2196
    %v2203 = vshll.u32 %v2202, 16
    %v2204 = vadd.s32 %v2203, %v2201
    %v2205 = vsel %vm1779, %v2043, 2147483647
    %v2206 = vand.u32 %v2205, 65535
    %v2207 = vshra.s32 %v2205, 16
    %v2208 = vcvt.s32.f32 %v2206
    %v2209 = vcvt.s32.f32 %v2207
    %2210 = vmin.xlane.f32.xlu0 %v2209
    %v2211 = vpop.xlane.xlu0 %2210
    %vm2212 = vcmp.eq.f32.partialorder %v2209, %v2211
    %v2213 = vsel %vm2212, %v2208, inf
    %2214 = vmin.xlane.f32.xlu0 %v2213
    %v2215 = vpop.xlane.xlu0 %2214
    %v2216 = vcvt.f32.s32 %v2215
    %v2217 = vcvt.f32.s32 %v2211
    %v2218 = vshll.u32 %v2217, 16
    %v2219 = vadd.s32 %v2218, %v2216
    %v2220 = vsel %vm1779, %v2044, 2147483647
    %v2221 = vand.u32 %v2220, 65535
    %v2222 = vshra.s32 %v2220, 16
    %v2223 = vcvt.s32.f32 %v2221
    %v2224 = vcvt.s32.f32 %v2222
    %2225 = vmin.xlane.f32.xlu0 %v2224
    %v2226 = vpop.xlane.xlu0 %2225
    %vm2227 = vcmp.eq.f32.partialorder %v2224, %v2226
    %v2228 = vsel %vm2227, %v2223, inf
    %2229 = vmin.xlane.f32.xlu0 %v2228
    %v2230 = vpop.xlane.xlu0 %2229
    %v2231 = vcvt.f32.s32 %v2230
    %v2232 = vcvt.f32.s32 %v2226
    %v2233 = vshll.u32 %v2232, 16
    %v2234 = vadd.s32 %v2233, %v2231
    %v2235 = vsel %vm1779, %v2045, 2147483647
    %v2236 = vand.u32 %v2235, 65535
    %v2237 = vshra.s32 %v2235, 16
    %v2238 = vcvt.s32.f32 %v2236
    %v2239 = vcvt.s32.f32 %v2237
    %2240 = vmin.xlane.f32.xlu0 %v2239
    %v2241 = vpop.xlane.xlu0 %2240
    %vm2242 = vcmp.eq.f32.partialorder %v2239, %v2241
    %v2243 = vsel %vm2242, %v2238, inf
    %2244 = vmin.xlane.f32.xlu0 %v2243
    %v2245 = vpop.xlane.xlu0 %2244
    %v2246 = vcvt.f32.s32 %v2245
    %v2247 = vcvt.f32.s32 %v2241
    %v2248 = vshll.u32 %v2247, 16
    %v2249 = vadd.s32 %v2248, %v2246
    %v2250 = vsel %vm1779, %v2046, 2147483647
    %v2251 = vand.u32 %v2250, 65535
    %v2252 = vshra.s32 %v2250, 16
    %v2253 = vcvt.s32.f32 %v2251
    %v2254 = vcvt.s32.f32 %v2252
    %2255 = vmin.xlane.f32.xlu0 %v2254
    %v2256 = vpop.xlane.xlu0 %2255
    %vm2257 = vcmp.eq.f32.partialorder %v2254, %v2256
    %v2258 = vsel %vm2257, %v2253, inf
    %2259 = vmin.xlane.f32.xlu0 %v2258
    %v2260 = vpop.xlane.xlu0 %2259
    %v2261 = vcvt.f32.s32 %v2260
    %v2262 = vcvt.f32.s32 %v2256
    %v2263 = vshll.u32 %v2262, 16
    %v2264 = vadd.s32 %v2263, %v2261
    %v2265 = vsel %vm1779, %v2047, 2147483647
    %v2266 = vand.u32 %v2265, 65535
    %v2267 = vshra.s32 %v2265, 16
    %v2268 = vcvt.s32.f32 %v2266
    %v2269 = vcvt.s32.f32 %v2267
    %2270 = vmin.xlane.f32.xlu0 %v2269
    %v2271 = vpop.xlane.xlu0 %2270
    %vm2272 = vcmp.eq.f32.partialorder %v2269, %v2271
    %v2273 = vsel %vm2272, %v2268, inf
    %2274 = vmin.xlane.f32.xlu0 %v2273
    %v2275 = vpop.xlane.xlu0 %2274
    %v2276 = vcvt.f32.s32 %v2275
    %v2277 = vcvt.f32.s32 %v2271
    %v2278 = vshll.u32 %v2277, 16
    %v2279 = vadd.s32 %v2278, %v2276
    %v2280 = vsel %vm1779, %v2048, 2147483647
    %v2281 = vand.u32 %v2280, 65535
    %v2282 = vshra.s32 %v2280, 16
    %v2283 = vcvt.s32.f32 %v2281
    %v2284 = vcvt.s32.f32 %v2282
    %2285 = vmin.xlane.f32.xlu0 %v2284
    %v2286 = vpop.xlane.xlu0 %2285
    %vm2287 = vcmp.eq.f32.partialorder %v2284, %v2286
    %v2288 = vsel %vm2287, %v2283, inf
    %2289 = vmin.xlane.f32.xlu0 %v2288
    %v2290 = vpop.xlane.xlu0 %2289
    %v2291 = vcvt.f32.s32 %v2290
    %v2292 = vcvt.f32.s32 %v2286
    %v2293 = vshll.u32 %v2292, 16
    %v2294 = vadd.s32 %v2293, %v2291
    %v2295 = vsel %vm1779, %v2049, 2147483647
    %v2296 = vand.u32 %v2295, 65535
    %v2297 = vshra.s32 %v2295, 16
    %v2298 = vcvt.s32.f32 %v2296
    %v2299 = vcvt.s32.f32 %v2297
    %2300 = vmin.xlane.f32.xlu0 %v2299
    %v2301 = vpop.xlane.xlu0 %2300
    %vm2302 = vcmp.eq.f32.partialorder %v2299, %v2301
    %v2303 = vsel %vm2302, %v2298, inf
    %2304 = vmin.xlane.f32.xlu0 %v2303
    %v2305 = vpop.xlane.xlu0 %2304
    %v2306 = vcvt.f32.s32 %v2305
    %v2307 = vcvt.f32.s32 %v2301
    %v2308 = vshll.u32 %v2307, 16
    %v2309 = vadd.s32 %v2308, %v2306
    %v2310 = vsel %vm1779, %v2050, 2147483647
    %v2311 = vand.u32 %v2310, 65535
    %v2312 = vshra.s32 %v2310, 16
    %v2313 = vcvt.s32.f32 %v2311
    %v2314 = vcvt.s32.f32 %v2312
    %2315 = vmin.xlane.f32.xlu0 %v2314
    %v2316 = vpop.xlane.xlu0 %2315
    %vm2317 = vcmp.eq.f32.partialorder %v2314, %v2316
    %v2318 = vsel %vm2317, %v2313, inf
    %2319 = vmin.xlane.f32.xlu0 %v2318
    %v2320 = vpop.xlane.xlu0 %2319
    %v2321 = vcvt.f32.s32 %v2320
    %v2322 = vcvt.f32.s32 %v2316
    %v2323 = vshll.u32 %v2322, 16
    %v2324 = vadd.s32 %v2323, %v2321
    %v2325 = vsel %vm1779, %v2051, 2147483647
    %v2326 = vand.u32 %v2325, 65535
    %v2327 = vshra.s32 %v2325, 16
    %v2328 = vcvt.s32.f32 %v2326
    %v2329 = vcvt.s32.f32 %v2327
    %2330 = vmin.xlane.f32.xlu0 %v2329
    %v2331 = vpop.xlane.xlu0 %2330
    %vm2332 = vcmp.eq.f32.partialorder %v2329, %v2331
    %v2333 = vsel %vm2332, %v2328, inf
    %2334 = vmin.xlane.f32.xlu0 %v2333
    %v2335 = vpop.xlane.xlu0 %2334
    %v2336 = vcvt.f32.s32 %v2335
    %v2337 = vcvt.f32.s32 %v2331
    %v2338 = vshll.u32 %v2337, 16
    %v2339 = vadd.s32 %v2338, %v2336
    %v2340 = vsel %vm1779, %v2052, 2147483647
    %v2341 = vand.u32 %v2340, 65535
    %v2342 = vshra.s32 %v2340, 16
    %v2343 = vcvt.s32.f32 %v2341
    %v2344 = vcvt.s32.f32 %v2342
    %2345 = vmin.xlane.f32.xlu0 %v2344
    %v2346 = vpop.xlane.xlu0 %2345
    %vm2347 = vcmp.eq.f32.partialorder %v2344, %v2346
    %v2348 = vsel %vm2347, %v2343, inf
    %2349 = vmin.xlane.f32.xlu0 %v2348
    %v2350 = vpop.xlane.xlu0 %2349
    %v2351 = vcvt.f32.s32 %v2350
    %v2352 = vcvt.f32.s32 %v2346
    %v2353 = vshll.u32 %v2352, 16
    %v2354 = vadd.s32 %v2353, %v2351
    %v2355 = vsel %vm1779, %v2053, 2147483647
    %v2356 = vand.u32 %v2355, 65535
    %v2357 = vshra.s32 %v2355, 16
    %v2358 = vcvt.s32.f32 %v2356
    %v2359 = vcvt.s32.f32 %v2357
    %2360 = vmin.xlane.f32.xlu0 %v2359
    %v2361 = vpop.xlane.xlu0 %2360
    %vm2362 = vcmp.eq.f32.partialorder %v2359, %v2361
    %v2363 = vsel %vm2362, %v2358, inf
    %2364 = vmin.xlane.f32.xlu0 %v2363
    %v2365 = vpop.xlane.xlu0 %2364
    %v2366 = vcvt.f32.s32 %v2365
    %v2367 = vcvt.f32.s32 %v2361
    %v2368 = vshll.u32 %v2367, 16
    %v2369 = vadd.s32 %v2368, %v2366
    %v2370 = vsel %vm1779, %v2054, 2147483647
    %v2371 = vand.u32 %v2370, 65535
    %v2372 = vshra.s32 %v2370, 16
    %v2373 = vcvt.s32.f32 %v2371
    %v2374 = vcvt.s32.f32 %v2372
    %2375 = vmin.xlane.f32.xlu0 %v2374
    %v2376 = vpop.xlane.xlu0 %2375
    %vm2377 = vcmp.eq.f32.partialorder %v2374, %v2376
    %v2378 = vsel %vm2377, %v2373, inf
    %2379 = vmin.xlane.f32.xlu0 %v2378
    %v2380 = vpop.xlane.xlu0 %2379
    %v2381 = vcvt.f32.s32 %v2380
    %v2382 = vcvt.f32.s32 %v2376
    %v2383 = vshll.u32 %v2382, 16
    %v2384 = vadd.s32 %v2383, %v2381
    %v2385 = vsel %vm1779, %v2055, 2147483647
    %v2386 = vand.u32 %v2385, 65535
    %v2387 = vshra.s32 %v2385, 16
    %v2388 = vcvt.s32.f32 %v2386
    %v2389 = vcvt.s32.f32 %v2387
    %2390 = vmin.xlane.f32.xlu0 %v2389
    %v2391 = vpop.xlane.xlu0 %2390
    %vm2392 = vcmp.eq.f32.partialorder %v2389, %v2391
    %v2393 = vsel %vm2392, %v2388, inf
    %2394 = vmin.xlane.f32.xlu0 %v2393
    %v2395 = vpop.xlane.xlu0 %2394
    %v2396 = vcvt.f32.s32 %v2395
    %v2397 = vcvt.f32.s32 %v2391
    %v2398 = vshll.u32 %v2397, 16
    %v2399 = vadd.s32 %v2398, %v2396
    %v2400 = vsel %vm1779, %v2056, 2147483647
    %v2401 = vand.u32 %v2400, 65535
    %v2402 = vshra.s32 %v2400, 16
    %v2403 = vcvt.s32.f32 %v2401
    %v2404 = vcvt.s32.f32 %v2402
    %2405 = vmin.xlane.f32.xlu0 %v2404
    %v2406 = vpop.xlane.xlu0 %2405
    %vm2407 = vcmp.eq.f32.partialorder %v2404, %v2406
    %v2408 = vsel %vm2407, %v2403, inf
    %2409 = vmin.xlane.f32.xlu0 %v2408
    %v2410 = vpop.xlane.xlu0 %2409
    %v2411 = vcvt.f32.s32 %v2410
    %v2412 = vcvt.f32.s32 %v2406
    %v2413 = vshll.u32 %v2412, 16
    %v2414 = vadd.s32 %v2413, %v2411
    %v2415 = vsel %vm1779, %v2057, 2147483647
    %v2416 = vand.u32 %v2415, 65535
    %v2417 = vshra.s32 %v2415, 16
    %v2418 = vcvt.s32.f32 %v2416
    %v2419 = vcvt.s32.f32 %v2417
    %2420 = vmin.xlane.f32.xlu0 %v2419
    %v2421 = vpop.xlane.xlu0 %2420
    %vm2422 = vcmp.eq.f32.partialorder %v2419, %v2421
    %v2423 = vsel %vm2422, %v2418, inf
    %2424 = vmin.xlane.f32.xlu0 %v2423
    %v2425 = vpop.xlane.xlu0 %2424
    %v2426 = vcvt.f32.s32 %v2425
    %v2427 = vcvt.f32.s32 %v2421
    %v2428 = vshll.u32 %v2427, 16
    %v2429 = vadd.s32 %v2428, %v2426
    %v2430 = vsel %vm1779, %v2058, 2147483647
    %v2431 = vand.u32 %v2430, 65535
    %v2432 = vshra.s32 %v2430, 16
    %v2433 = vcvt.s32.f32 %v2431
    %v2434 = vcvt.s32.f32 %v2432
    %2435 = vmin.xlane.f32.xlu0 %v2434
    %v2436 = vpop.xlane.xlu0 %2435
    %vm2437 = vcmp.eq.f32.partialorder %v2434, %v2436
    %v2438 = vsel %vm2437, %v2433, inf
    %2439 = vmin.xlane.f32.xlu0 %v2438
    %v2440 = vpop.xlane.xlu0 %2439
    %v2441 = vcvt.f32.s32 %v2440
    %v2442 = vcvt.f32.s32 %v2436
    %v2443 = vshll.u32 %v2442, 16
    %v2444 = vadd.s32 %v2443, %v2441
    %v2445 = vsel %vm1779, %v2059, 2147483647
    %v2446 = vand.u32 %v2445, 65535
    %v2447 = vshra.s32 %v2445, 16
    %v2448 = vcvt.s32.f32 %v2446
    %v2449 = vcvt.s32.f32 %v2447
    %2450 = vmin.xlane.f32.xlu0 %v2449
    %v2451 = vpop.xlane.xlu0 %2450
    %vm2452 = vcmp.eq.f32.partialorder %v2449, %v2451
    %v2453 = vsel %vm2452, %v2448, inf
    %2454 = vmin.xlane.f32.xlu0 %v2453
    %v2455 = vpop.xlane.xlu0 %2454
    %v2456 = vcvt.f32.s32 %v2455
    %v2457 = vcvt.f32.s32 %v2451
    %v2458 = vshll.u32 %v2457, 16
    %v2459 = vadd.s32 %v2458, %v2456
    %v2460 = vsel %vm1779, %v2060, 2147483647
    %v2461 = vand.u32 %v2460, 65535
    %v2462 = vshra.s32 %v2460, 16
    %v2463 = vcvt.s32.f32 %v2461
    %v2464 = vcvt.s32.f32 %v2462
    %2465 = vmin.xlane.f32.xlu0 %v2464
    %v2466 = vpop.xlane.xlu0 %2465
    %vm2467 = vcmp.eq.f32.partialorder %v2464, %v2466
    %v2468 = vsel %vm2467, %v2463, inf
    %2469 = vmin.xlane.f32.xlu0 %v2468
    %v2470 = vpop.xlane.xlu0 %2469
    %v2471 = vcvt.f32.s32 %v2470
    %v2472 = vcvt.f32.s32 %v2466
    %v2473 = vshll.u32 %v2472, 16
    %v2474 = vadd.s32 %v2473, %v2471
    %v2475 = vsel %vm1779, %v2061, 2147483647
    %v2476 = vand.u32 %v2475, 65535
    %v2477 = vshra.s32 %v2475, 16
    %v2478 = vcvt.s32.f32 %v2476
    %v2479 = vcvt.s32.f32 %v2477
    %2480 = vmin.xlane.f32.xlu0 %v2479
    %v2481 = vpop.xlane.xlu0 %2480
    %vm2482 = vcmp.eq.f32.partialorder %v2479, %v2481
    %v2483 = vsel %vm2482, %v2478, inf
    %2484 = vmin.xlane.f32.xlu0 %v2483
    %v2485 = vpop.xlane.xlu0 %2484
    %v2486 = vcvt.f32.s32 %v2485
    %v2487 = vcvt.f32.s32 %v2481
    %v2488 = vshll.u32 %v2487, 16
    %v2489 = vadd.s32 %v2488, %v2486
    %v2490 = vsel %vm1779, %v2062, 2147483647
    %v2491 = vand.u32 %v2490, 65535
    %v2492 = vshra.s32 %v2490, 16
    %v2493 = vcvt.s32.f32 %v2491
    %v2494 = vcvt.s32.f32 %v2492
    %2495 = vmin.xlane.f32.xlu0 %v2494
    %v2496 = vpop.xlane.xlu0 %2495
    %vm2497 = vcmp.eq.f32.partialorder %v2494, %v2496
    %v2498 = vsel %vm2497, %v2493, inf
    %2499 = vmin.xlane.f32.xlu0 %v2498
    %v2500 = vpop.xlane.xlu0 %2499
    %v2501 = vcvt.f32.s32 %v2500
    %v2502 = vcvt.f32.s32 %v2496
    %v2503 = vshll.u32 %v2502, 16
    %v2504 = vadd.s32 %v2503, %v2501
    %v2505 = vsel %vm1779, %v2063, 2147483647
    %v2506 = vand.u32 %v2505, 65535
    %v2507 = vshra.s32 %v2505, 16
    %v2508 = vcvt.s32.f32 %v2506
    %v2509 = vcvt.s32.f32 %v2507
    %2510 = vmin.xlane.f32.xlu0 %v2509
    %v2511 = vpop.xlane.xlu0 %2510
    %vm2512 = vcmp.eq.f32.partialorder %v2509, %v2511
    %v2513 = vsel %vm2512, %v2508, inf
    %2514 = vmin.xlane.f32.xlu0 %v2513
    %v2515 = vpop.xlane.xlu0 %2514
    %v2516 = vcvt.f32.s32 %v2515
    %v2517 = vcvt.f32.s32 %v2511
    %v2518 = vshll.u32 %v2517, 16
    %v2519 = vadd.s32 %v2518, %v2516
    %v2520 = vsel %vm1779, %v2064, 2147483647
    %v2521 = vand.u32 %v2520, 65535
    %v2522 = vshra.s32 %v2520, 16
    %v2523 = vcvt.s32.f32 %v2521
    %v2524 = vcvt.s32.f32 %v2522
    %2525 = vmin.xlane.f32.xlu0 %v2524
    %v2526 = vpop.xlane.xlu0 %2525
    %vm2527 = vcmp.eq.f32.partialorder %v2524, %v2526
    %v2528 = vsel %vm2527, %v2523, inf
    %2529 = vmin.xlane.f32.xlu0 %v2528
    %v2530 = vpop.xlane.xlu0 %2529
    %v2531 = vcvt.f32.s32 %v2530
    %v2532 = vcvt.f32.s32 %v2526
    %v2533 = vshll.u32 %v2532, 16
    %v2534 = vadd.s32 %v2533, %v2531
    %v2535 = vsel %vm1779, %v2065, 2147483647
    %v2536 = vand.u32 %v2535, 65535
    %v2537 = vshra.s32 %v2535, 16
    %v2538 = vcvt.s32.f32 %v2536
    %v2539 = vcvt.s32.f32 %v2537
    %2540 = vmin.xlane.f32.xlu0 %v2539
    %v2541 = vpop.xlane.xlu0 %2540
    %vm2542 = vcmp.eq.f32.partialorder %v2539, %v2541
    %v2543 = vsel %vm2542, %v2538, inf
    %2544 = vmin.xlane.f32.xlu0 %v2543
    %v2545 = vpop.xlane.xlu0 %2544
    %v2546 = vcvt.f32.s32 %v2545
    %v2547 = vcvt.f32.s32 %v2541
    %v2548 = vshll.u32 %v2547, 16
    %v2549 = vadd.s32 %v2548, %v2546
    %v2550 = vsel %vm1779, %v2066, 2147483647
    %v2551 = vand.u32 %v2550, 65535
    %v2552 = vshra.s32 %v2550, 16
    %v2553 = vcvt.s32.f32 %v2551
    %v2554 = vcvt.s32.f32 %v2552
    %2555 = vmin.xlane.f32.xlu0 %v2554
    %v2556 = vpop.xlane.xlu0 %2555
    %vm2557 = vcmp.eq.f32.partialorder %v2554, %v2556
    %v2558 = vsel %vm2557, %v2553, inf
    %2559 = vmin.xlane.f32.xlu0 %v2558
    %v2560 = vpop.xlane.xlu0 %2559
    %v2561 = vcvt.f32.s32 %v2560
    %v2562 = vcvt.f32.s32 %v2556
    %v2563 = vshll.u32 %v2562, 16
    %v2564 = vadd.s32 %v2563, %v2561
    %v2565 = vsel %vm1779, %v2067, 2147483647
    %v2566 = vand.u32 %v2565, 65535
    %v2567 = vshra.s32 %v2565, 16
    %v2568 = vcvt.s32.f32 %v2566
    %v2569 = vcvt.s32.f32 %v2567
    %2570 = vmin.xlane.f32.xlu0 %v2569
    %v2571 = vpop.xlane.xlu0 %2570
    %vm2572 = vcmp.eq.f32.partialorder %v2569, %v2571
    %v2573 = vsel %vm2572, %v2568, inf
    %2574 = vmin.xlane.f32.xlu0 %v2573
    %v2575 = vpop.xlane.xlu0 %2574
    %v2576 = vcvt.f32.s32 %v2575
    %v2577 = vcvt.f32.s32 %v2571
    %v2578 = vshll.u32 %v2577, 16
    %v2579 = vadd.s32 %v2578, %v2576
    %v2580 = vsel %vm1779, %v2068, 2147483647
    %v2581 = vand.u32 %v2580, 65535
    %v2582 = vshra.s32 %v2580, 16
    %v2583 = vcvt.s32.f32 %v2581
    %v2584 = vcvt.s32.f32 %v2582
    %2585 = vmin.xlane.f32.xlu0 %v2584
    %v2586 = vpop.xlane.xlu0 %2585
    %vm2587 = vcmp.eq.f32.partialorder %v2584, %v2586
    %v2588 = vsel %vm2587, %v2583, inf
    %2589 = vmin.xlane.f32.xlu0 %v2588
    %v2590 = vpop.xlane.xlu0 %2589
    %v2591 = vcvt.f32.s32 %v2590
    %v2592 = vcvt.f32.s32 %v2586
    %v2593 = vshll.u32 %v2592, 16
    %v2594 = vadd.s32 %v2593, %v2591
    %v2595 = vsel %vm1779, %v2069, 2147483647
    %v2596 = vand.u32 %v2595, 65535
    %v2597 = vshra.s32 %v2595, 16
    %v2598 = vcvt.s32.f32 %v2596
    %v2599 = vcvt.s32.f32 %v2597
    %2600 = vmin.xlane.f32.xlu0 %v2599
    %v2601 = vpop.xlane.xlu0 %2600
    %vm2602 = vcmp.eq.f32.partialorder %v2599, %v2601
    %v2603 = vsel %vm2602, %v2598, inf
    %2604 = vmin.xlane.f32.xlu0 %v2603
    %v2605 = vpop.xlane.xlu0 %2604
    %v2606 = vcvt.f32.s32 %v2605
    %v2607 = vcvt.f32.s32 %v2601
    %v2608 = vshll.u32 %v2607, 16
    %v2609 = vadd.s32 %v2608, %v2606
    %v2610 = vsel %vm1779, %v2070, 2147483647
    %v2611 = vand.u32 %v2610, 65535
    %v2612 = vshra.s32 %v2610, 16
    %v2613 = vcvt.s32.f32 %v2611
    %v2614 = vcvt.s32.f32 %v2612
    %2615 = vmin.xlane.f32.xlu0 %v2614
    %v2616 = vpop.xlane.xlu0 %2615
    %vm2617 = vcmp.eq.f32.partialorder %v2614, %v2616
    %v2618 = vsel %vm2617, %v2613, inf
    %2619 = vmin.xlane.f32.xlu0 %v2618
    %v2620 = vpop.xlane.xlu0 %2619
    %v2621 = vcvt.f32.s32 %v2620
    %v2622 = vcvt.f32.s32 %v2616
    %v2623 = vshll.u32 %v2622, 16
    %v2624 = vadd.s32 %v2623, %v2621
    %v2625 = vsel %vm1779, %v2071, 2147483647
    %v2626 = vand.u32 %v2625, 65535
    %v2627 = vshra.s32 %v2625, 16
    %v2628 = vcvt.s32.f32 %v2626
    %v2629 = vcvt.s32.f32 %v2627
    %2630 = vmin.xlane.f32.xlu0 %v2629
    %v2631 = vpop.xlane.xlu0 %2630
    %vm2632 = vcmp.eq.f32.partialorder %v2629, %v2631
    %v2633 = vsel %vm2632, %v2628, inf
    %2634 = vmin.xlane.f32.xlu0 %v2633
    %v2635 = vpop.xlane.xlu0 %2634
    %v2636 = vcvt.f32.s32 %v2635
    %v2637 = vcvt.f32.s32 %v2631
    %v2638 = vshll.u32 %v2637, 16
    %v2639 = vadd.s32 %v2638, %v2636
    %v2640 = vsel %vm1779, %v2072, 2147483647
    %v2641 = vand.u32 %v2640, 65535
    %v2642 = vshra.s32 %v2640, 16
    %v2643 = vcvt.s32.f32 %v2641
    %v2644 = vcvt.s32.f32 %v2642
    %2645 = vmin.xlane.f32.xlu0 %v2644
    %v2646 = vpop.xlane.xlu0 %2645
    %vm2647 = vcmp.eq.f32.partialorder %v2644, %v2646
    %v2648 = vsel %vm2647, %v2643, inf
    %2649 = vmin.xlane.f32.xlu0 %v2648
    %v2650 = vpop.xlane.xlu0 %2649
    %v2651 = vcvt.f32.s32 %v2650
    %v2652 = vcvt.f32.s32 %v2646
    %v2653 = vshll.u32 %v2652, 16
    %v2654 = vadd.s32 %v2653, %v2651
    %v2655 = vsel %vm1779, %v2073, 2147483647
    %v2656 = vand.u32 %v2655, 65535
    %v2657 = vshra.s32 %v2655, 16
    %v2658 = vcvt.s32.f32 %v2656
    %v2659 = vcvt.s32.f32 %v2657
    %2660 = vmin.xlane.f32.xlu0 %v2659
    %v2661 = vpop.xlane.xlu0 %2660
    %vm2662 = vcmp.eq.f32.partialorder %v2659, %v2661
    %v2663 = vsel %vm2662, %v2658, inf
    %2664 = vmin.xlane.f32.xlu0 %v2663
    %v2665 = vpop.xlane.xlu0 %2664
    %v2666 = vcvt.f32.s32 %v2665
    %v2667 = vcvt.f32.s32 %v2661
    %v2668 = vshll.u32 %v2667, 16
    %v2669 = vadd.s32 %v2668, %v2666
    %v2670 = vsel %vm1779, %v2074, 2147483647
    %v2671 = vand.u32 %v2670, 65535
    %v2672 = vshra.s32 %v2670, 16
    %v2673 = vcvt.s32.f32 %v2671
    %v2674 = vcvt.s32.f32 %v2672
    %2675 = vmin.xlane.f32.xlu0 %v2674
    %v2676 = vpop.xlane.xlu0 %2675
    %vm2677 = vcmp.eq.f32.partialorder %v2674, %v2676
    %v2678 = vsel %vm2677, %v2673, inf
    %2679 = vmin.xlane.f32.xlu0 %v2678
    %v2680 = vpop.xlane.xlu0 %2679
    %v2681 = vcvt.f32.s32 %v2680
    %v2682 = vcvt.f32.s32 %v2676
    %v2683 = vshll.u32 %v2682, 16
    %v2684 = vadd.s32 %v2683, %v2681
    %v2685 = vsel %vm1779, %v2075, 2147483647
    %v2686 = vand.u32 %v2685, 65535
    %v2687 = vshra.s32 %v2685, 16
    %v2688 = vcvt.s32.f32 %v2686
    %v2689 = vcvt.s32.f32 %v2687
    %2690 = vmin.xlane.f32.xlu0 %v2689
    %v2691 = vpop.xlane.xlu0 %2690
    %vm2692 = vcmp.eq.f32.partialorder %v2689, %v2691
    %v2693 = vsel %vm2692, %v2688, inf
    %2694 = vmin.xlane.f32.xlu0 %v2693
    %v2695 = vpop.xlane.xlu0 %2694
    %v2696 = vcvt.f32.s32 %v2695
    %v2697 = vcvt.f32.s32 %v2691
    %v2698 = vshll.u32 %v2697, 16
    %v2699 = vadd.s32 %v2698, %v2696
    %v2700 = vsel %vm1779, %v2076, 2147483647
    %v2701 = vand.u32 %v2700, 65535
    %v2702 = vshra.s32 %v2700, 16
    %v2703 = vcvt.s32.f32 %v2701
    %v2704 = vcvt.s32.f32 %v2702
    %2705 = vmin.xlane.f32.xlu0 %v2704
    %v2706 = vpop.xlane.xlu0 %2705
    %vm2707 = vcmp.eq.f32.partialorder %v2704, %v2706
    %v2708 = vsel %vm2707, %v2703, inf
    %2709 = vmin.xlane.f32.xlu0 %v2708
    %v2710 = vpop.xlane.xlu0 %2709
    %v2711 = vcvt.f32.s32 %v2710
    %v2712 = vcvt.f32.s32 %v2706
    %v2713 = vshll.u32 %v2712, 16
    %v2714 = vadd.s32 %v2713, %v2711
    %v2715 = vsel %vm1779, %v2077, 2147483647
    %v2716 = vand.u32 %v2715, 65535
    %v2717 = vshra.s32 %v2715, 16
    %v2718 = vcvt.s32.f32 %v2716
    %v2719 = vcvt.s32.f32 %v2717
    %2720 = vmin.xlane.f32.xlu0 %v2719
    %v2721 = vpop.xlane.xlu0 %2720
    %vm2722 = vcmp.eq.f32.partialorder %v2719, %v2721
    %v2723 = vsel %vm2722, %v2718, inf
    %2724 = vmin.xlane.f32.xlu0 %v2723
    %v2725 = vpop.xlane.xlu0 %2724
    %v2726 = vcvt.f32.s32 %v2725
    %v2727 = vcvt.f32.s32 %v2721
    %v2728 = vshll.u32 %v2727, 16
    %v2729 = vadd.s32 %v2728, %v2726
    %v2730 = vsel %vm1779, %v2078, 2147483647
    %v2731 = vand.u32 %v2730, 65535
    %v2732 = vshra.s32 %v2730, 16
    %v2733 = vcvt.s32.f32 %v2731
    %v2734 = vcvt.s32.f32 %v2732
    %2735 = vmin.xlane.f32.xlu0 %v2734
    %v2736 = vpop.xlane.xlu0 %2735
    %vm2737 = vcmp.eq.f32.partialorder %v2734, %v2736
    %v2738 = vsel %vm2737, %v2733, inf
    %2739 = vmin.xlane.f32.xlu0 %v2738
    %v2740 = vpop.xlane.xlu0 %2739
    %v2741 = vcvt.f32.s32 %v2740
    %v2742 = vcvt.f32.s32 %v2736
    %v2743 = vshll.u32 %v2742, 16
    %v2744 = vadd.s32 %v2743, %v2741
    %v2745 = vsel %vm1779, %v2079, 2147483647
    %v2746 = vand.u32 %v2745, 65535
    %v2747 = vshra.s32 %v2745, 16
    %v2748 = vcvt.s32.f32 %v2746
    %v2749 = vcvt.s32.f32 %v2747
    %2750 = vmin.xlane.f32.xlu0 %v2749
    %v2751 = vpop.xlane.xlu0 %2750
    %vm2752 = vcmp.eq.f32.partialorder %v2749, %v2751
    %v2753 = vsel %vm2752, %v2748, inf
    %2754 = vmin.xlane.f32.xlu0 %v2753
    %v2755 = vpop.xlane.xlu0 %2754
    %v2756 = vcvt.f32.s32 %v2755
    %v2757 = vcvt.f32.s32 %v2751
    %v2758 = vshll.u32 %v2757, 16
    %v2759 = vadd.s32 %v2758, %v2756
    %v2760 = vsel %vm1779, %v2080, 2147483647
    %v2761 = vand.u32 %v2760, 65535
    %v2762 = vshra.s32 %v2760, 16
    %v2763 = vcvt.s32.f32 %v2761
    %v2764 = vcvt.s32.f32 %v2762
    %2765 = vmin.xlane.f32.xlu0 %v2764
    %v2766 = vpop.xlane.xlu0 %2765
    %vm2767 = vcmp.eq.f32.partialorder %v2764, %v2766
    %v2768 = vsel %vm2767, %v2763, inf
    %2769 = vmin.xlane.f32.xlu0 %v2768
    %v2770 = vpop.xlane.xlu0 %2769
    %v2771 = vcvt.f32.s32 %v2770
    %v2772 = vcvt.f32.s32 %v2766
    %v2773 = vshll.u32 %v2772, 16
    %v2774 = vadd.s32 %v2773, %v2771
    %v2775 = vsel %vm1779, %v2081, 2147483647
    %v2776 = vand.u32 %v2775, 65535
    %v2777 = vshra.s32 %v2775, 16
    %v2778 = vcvt.s32.f32 %v2776
    %v2779 = vcvt.s32.f32 %v2777
    %2780 = vmin.xlane.f32.xlu0 %v2779
    %v2781 = vpop.xlane.xlu0 %2780
    %vm2782 = vcmp.eq.f32.partialorder %v2779, %v2781
    %v2783 = vsel %vm2782, %v2778, inf
    %2784 = vmin.xlane.f32.xlu0 %v2783
    %v2785 = vpop.xlane.xlu0 %2784
    %v2786 = vcvt.f32.s32 %v2785
    %v2787 = vcvt.f32.s32 %v2781
    %v2788 = vshll.u32 %v2787, 16
    %v2789 = vadd.s32 %v2788, %v2786
    %v2790 = vsel %vm1779, %v2082, 2147483647
    %v2791 = vand.u32 %v2790, 65535
    %v2792 = vshra.s32 %v2790, 16
    %v2793 = vcvt.s32.f32 %v2791
    %v2794 = vcvt.s32.f32 %v2792
    %2795 = vmin.xlane.f32.xlu0 %v2794
    %v2796 = vpop.xlane.xlu0 %2795
    %vm2797 = vcmp.eq.f32.partialorder %v2794, %v2796
    %v2798 = vsel %vm2797, %v2793, inf
    %2799 = vmin.xlane.f32.xlu0 %v2798
    %v2800 = vpop.xlane.xlu0 %2799
    %v2801 = vcvt.f32.s32 %v2800
    %v2802 = vcvt.f32.s32 %v2796
    %v2803 = vshll.u32 %v2802, 16
    %v2804 = vadd.s32 %v2803, %v2801
    %v2805 = vsel %vm1779, %v2083, 2147483647
    %v2806 = vand.u32 %v2805, 65535
    %v2807 = vshra.s32 %v2805, 16
    %v2808 = vcvt.s32.f32 %v2806
    %v2809 = vcvt.s32.f32 %v2807
    %2810 = vmin.xlane.f32.xlu0 %v2809
    %v2811 = vpop.xlane.xlu0 %2810
    %vm2812 = vcmp.eq.f32.partialorder %v2809, %v2811
    %v2813 = vsel %vm2812, %v2808, inf
    %2814 = vmin.xlane.f32.xlu0 %v2813
    %v2815 = vpop.xlane.xlu0 %2814
    %v2816 = vcvt.f32.s32 %v2815
    %v2817 = vcvt.f32.s32 %v2811
    %v2818 = vshll.u32 %v2817, 16
    %v2819 = vadd.s32 %v2818, %v2816
    %v2820 = vsel %vm1779, %v2084, 2147483647
    %v2821 = vand.u32 %v2820, 65535
    %v2822 = vshra.s32 %v2820, 16
    %v2823 = vcvt.s32.f32 %v2821
    %v2824 = vcvt.s32.f32 %v2822
    %2825 = vmin.xlane.f32.xlu0 %v2824
    %v2826 = vpop.xlane.xlu0 %2825
    %vm2827 = vcmp.eq.f32.partialorder %v2824, %v2826
    %v2828 = vsel %vm2827, %v2823, inf
    %2829 = vmin.xlane.f32.xlu0 %v2828
    %v2830 = vpop.xlane.xlu0 %2829
    %v2831 = vcvt.f32.s32 %v2830
    %v2832 = vcvt.f32.s32 %v2826
    %v2833 = vshll.u32 %v2832, 16
    %v2834 = vadd.s32 %v2833, %v2831
    %v2835 = vsel %vm1779, %v2085, 2147483647
    %v2836 = vand.u32 %v2835, 65535
    %v2837 = vshra.s32 %v2835, 16
    %v2838 = vcvt.s32.f32 %v2836
    %v2839 = vcvt.s32.f32 %v2837
    %2840 = vmin.xlane.f32.xlu0 %v2839
    %v2841 = vpop.xlane.xlu0 %2840
    %vm2842 = vcmp.eq.f32.partialorder %v2839, %v2841
    %v2843 = vsel %vm2842, %v2838, inf
    %2844 = vmin.xlane.f32.xlu0 %v2843
    %v2845 = vpop.xlane.xlu0 %2844
    %v2846 = vcvt.f32.s32 %v2845
    %v2847 = vcvt.f32.s32 %v2841
    %v2848 = vshll.u32 %v2847, 16
    %v2849 = vadd.s32 %v2848, %v2846
    %v2850 = vsel %vm1779, %v2086, 2147483647
    %v2851 = vand.u32 %v2850, 65535
    %v2852 = vshra.s32 %v2850, 16
    %v2853 = vcvt.s32.f32 %v2851
    %v2854 = vcvt.s32.f32 %v2852
    %2855 = vmin.xlane.f32.xlu0 %v2854
    %v2856 = vpop.xlane.xlu0 %2855
    %vm2857 = vcmp.eq.f32.partialorder %v2854, %v2856
    %v2858 = vsel %vm2857, %v2853, inf
    %2859 = vmin.xlane.f32.xlu0 %v2858
    %v2860 = vpop.xlane.xlu0 %2859
    %v2861 = vcvt.f32.s32 %v2860
    %v2862 = vcvt.f32.s32 %v2856
    %v2863 = vshll.u32 %v2862, 16
    %v2864 = vadd.s32 %v2863, %v2861
    %v2865 = vsel %vm1779, %v2087, 2147483647
    %v2866 = vand.u32 %v2865, 65535
    %v2867 = vshra.s32 %v2865, 16
    %v2868 = vcvt.s32.f32 %v2866
    %v2869 = vcvt.s32.f32 %v2867
    %2870 = vmin.xlane.f32.xlu0 %v2869
    %v2871 = vpop.xlane.xlu0 %2870
    %vm2872 = vcmp.eq.f32.partialorder %v2869, %v2871
    %v2873 = vsel %vm2872, %v2868, inf
    %2874 = vmin.xlane.f32.xlu0 %v2873
    %v2875 = vpop.xlane.xlu0 %2874
    %v2876 = vcvt.f32.s32 %v2875
    %v2877 = vcvt.f32.s32 %v2871
    %v2878 = vshll.u32 %v2877, 16
    %v2879 = vadd.s32 %v2878, %v2876
    %v2880 = vsel %vm1779, %v2088, 2147483647
    %v2881 = vand.u32 %v2880, 65535
    %v2882 = vshra.s32 %v2880, 16
    %v2883 = vcvt.s32.f32 %v2881
    %v2884 = vcvt.s32.f32 %v2882
    %2885 = vmin.xlane.f32.xlu0 %v2884
    %v2886 = vpop.xlane.xlu0 %2885
    %vm2887 = vcmp.eq.f32.partialorder %v2884, %v2886
    %v2888 = vsel %vm2887, %v2883, inf
    %2889 = vmin.xlane.f32.xlu0 %v2888
    %v2890 = vpop.xlane.xlu0 %2889
    %v2891 = vcvt.f32.s32 %v2890
    %v2892 = vcvt.f32.s32 %v2886
    %v2893 = vshll.u32 %v2892, 16
    %v2894 = vadd.s32 %v2893, %v2891
    %v2895 = vsel %vm1779, %v2089, 2147483647
    %v2896 = vand.u32 %v2895, 65535
    %v2897 = vshra.s32 %v2895, 16
    %v2898 = vcvt.s32.f32 %v2896
    %v2899 = vcvt.s32.f32 %v2897
    %2900 = vmin.xlane.f32.xlu0 %v2899
    %v2901 = vpop.xlane.xlu0 %2900
    %vm2902 = vcmp.eq.f32.partialorder %v2899, %v2901
    %v2903 = vsel %vm2902, %v2898, inf
    %2904 = vmin.xlane.f32.xlu0 %v2903
    %v2905 = vpop.xlane.xlu0 %2904
    %v2906 = vcvt.f32.s32 %v2905
    %v2907 = vcvt.f32.s32 %v2901
    %v2908 = vshll.u32 %v2907, 16
    %v2909 = vadd.s32 %v2908, %v2906
    %v2910 = vsel %vm1779, %v2090, 2147483647
    %v2911 = vand.u32 %v2910, 65535
    %v2912 = vshra.s32 %v2910, 16
    %v2913 = vcvt.s32.f32 %v2911
    %v2914 = vcvt.s32.f32 %v2912
    %2915 = vmin.xlane.f32.xlu0 %v2914
    %v2916 = vpop.xlane.xlu0 %2915
    %vm2917 = vcmp.eq.f32.partialorder %v2914, %v2916
    %v2918 = vsel %vm2917, %v2913, inf
    %2919 = vmin.xlane.f32.xlu0 %v2918
    %v2920 = vpop.xlane.xlu0 %2919
    %v2921 = vcvt.f32.s32 %v2920
    %v2922 = vcvt.f32.s32 %v2916
    %v2923 = vshll.u32 %v2922, 16
    %v2924 = vadd.s32 %v2923, %v2921
    %v2925 = vsel %vm1779, %v2091, 2147483647
    %v2926 = vand.u32 %v2925, 65535
    %v2927 = vshra.s32 %v2925, 16
    %v2928 = vcvt.s32.f32 %v2926
    %v2929 = vcvt.s32.f32 %v2927
    %2930 = vmin.xlane.f32.xlu0 %v2929
    %v2931 = vpop.xlane.xlu0 %2930
    %vm2932 = vcmp.eq.f32.partialorder %v2929, %v2931
    %v2933 = vsel %vm2932, %v2928, inf
    %2934 = vmin.xlane.f32.xlu0 %v2933
    %v2935 = vpop.xlane.xlu0 %2934
    %v2936 = vcvt.f32.s32 %v2935
    %v2937 = vcvt.f32.s32 %v2931
    %v2938 = vshll.u32 %v2937, 16
    %v2939 = vadd.s32 %v2938, %v2936
    %v2940 = vsel %vm1779, %v2092, 2147483647
    %v2941 = vand.u32 %v2940, 65535
    %v2942 = vshra.s32 %v2940, 16
    %v2943 = vcvt.s32.f32 %v2941
    %v2944 = vcvt.s32.f32 %v2942
    %2945 = vmin.xlane.f32.xlu0 %v2944
    %v2946 = vpop.xlane.xlu0 %2945
    %vm2947 = vcmp.eq.f32.partialorder %v2944, %v2946
    %v2948 = vsel %vm2947, %v2943, inf
    %2949 = vmin.xlane.f32.xlu0 %v2948
    %v2950 = vpop.xlane.xlu0 %2949
    %v2951 = vcvt.f32.s32 %v2950
    %v2952 = vcvt.f32.s32 %v2946
    %v2953 = vshll.u32 %v2952, 16
    %v2954 = vadd.s32 %v2953, %v2951
    %v2955 = vsel %vm1779, %v2093, 2147483647
    %v2956 = vand.u32 %v2955, 65535
    %v2957 = vshra.s32 %v2955, 16
    %v2958 = vcvt.s32.f32 %v2956
    %v2959 = vcvt.s32.f32 %v2957
    %2960 = vmin.xlane.f32.xlu0 %v2959
    %v2961 = vpop.xlane.xlu0 %2960
    %vm2962 = vcmp.eq.f32.partialorder %v2959, %v2961
    %v2963 = vsel %vm2962, %v2958, inf
    %2964 = vmin.xlane.f32.xlu0 %v2963
    %v2965 = vpop.xlane.xlu0 %2964
    %v2966 = vcvt.f32.s32 %v2965
    %v2967 = vcvt.f32.s32 %v2961
    %v2968 = vshll.u32 %v2967, 16
    %v2969 = vadd.s32 %v2968, %v2966
    %v2970 = vsel %vm1779, %v2094, 2147483647
    %v2971 = vand.u32 %v2970, 65535
    %v2972 = vshra.s32 %v2970, 16
    %v2973 = vcvt.s32.f32 %v2971
    %v2974 = vcvt.s32.f32 %v2972
    %2975 = vmin.xlane.f32.xlu0 %v2974
    %v2976 = vpop.xlane.xlu0 %2975
    %vm2977 = vcmp.eq.f32.partialorder %v2974, %v2976
    %v2978 = vsel %vm2977, %v2973, inf
    %2979 = vmin.xlane.f32.xlu0 %v2978
    %v2980 = vpop.xlane.xlu0 %2979
    %v2981 = vcvt.f32.s32 %v2980
    %v2982 = vcvt.f32.s32 %v2976
    %v2983 = vshll.u32 %v2982, 16
    %v2984 = vadd.s32 %v2983, %v2981
    %v2985 = vsel %vm1779, %v2095, 2147483647
    %v2986 = vand.u32 %v2985, 65535
    %v2987 = vshra.s32 %v2985, 16
    %v2988 = vcvt.s32.f32 %v2986
    %v2989 = vcvt.s32.f32 %v2987
    %2990 = vmin.xlane.f32.xlu0 %v2989
    %v2991 = vpop.xlane.xlu0 %2990
    %vm2992 = vcmp.eq.f32.partialorder %v2989, %v2991
    %v2993 = vsel %vm2992, %v2988, inf
    %2994 = vmin.xlane.f32.xlu0 %v2993
    %v2995 = vpop.xlane.xlu0 %2994
    %v2996 = vcvt.f32.s32 %v2995
    %v2997 = vcvt.f32.s32 %v2991
    %v2998 = vshll.u32 %v2997, 16
    %v2999 = vadd.s32 %v2998, %v2996
    %v3000 = vsel %vm1779, %v2096, 2147483647
    %v3001 = vand.u32 %v3000, 65535
    %v3002 = vshra.s32 %v3000, 16
    %v3003 = vcvt.s32.f32 %v3001
    %v3004 = vcvt.s32.f32 %v3002
    %3005 = vmin.xlane.f32.xlu0 %v3004
    %v3006 = vpop.xlane.xlu0 %3005
    %vm3007 = vcmp.eq.f32.partialorder %v3004, %v3006
    %v3008 = vsel %vm3007, %v3003, inf
    %3009 = vmin.xlane.f32.xlu0 %v3008
    %v3010 = vpop.xlane.xlu0 %3009
    %v3011 = vcvt.f32.s32 %v3010
    %v3012 = vcvt.f32.s32 %v3006
    %v3013 = vshll.u32 %v3012, 16
    %v3014 = vadd.s32 %v3013, %v3011
    %v3015 = vsel %vm1779, %v2097, 2147483647
    %v3016 = vand.u32 %v3015, 65535
    %v3017 = vshra.s32 %v3015, 16
    %v3018 = vcvt.s32.f32 %v3016
    %v3019 = vcvt.s32.f32 %v3017
    %3020 = vmin.xlane.f32.xlu0 %v3019
    %v3021 = vpop.xlane.xlu0 %3020
    %vm3022 = vcmp.eq.f32.partialorder %v3019, %v3021
    %v3023 = vsel %vm3022, %v3018, inf
    %3024 = vmin.xlane.f32.xlu0 %v3023
    %v3025 = vpop.xlane.xlu0 %3024
    %v3026 = vcvt.f32.s32 %v3025
    %v3027 = vcvt.f32.s32 %v3021
    %v3028 = vshll.u32 %v3027, 16
    %v3029 = vadd.s32 %v3028, %v3026
    %v3030 = vsel %vm1779, %v2098, 2147483647
    %v3031 = vand.u32 %v3030, 65535
    %v3032 = vshra.s32 %v3030, 16
    %v3033 = vcvt.s32.f32 %v3031
    %v3034 = vcvt.s32.f32 %v3032
    %3035 = vmin.xlane.f32.xlu0 %v3034
    %v3036 = vpop.xlane.xlu0 %3035
    %vm3037 = vcmp.eq.f32.partialorder %v3034, %v3036
    %v3038 = vsel %vm3037, %v3033, inf
    %3039 = vmin.xlane.f32.xlu0 %v3038
    %v3040 = vpop.xlane.xlu0 %3039
    %v3041 = vcvt.f32.s32 %v3040
    %v3042 = vcvt.f32.s32 %v3036
    %v3043 = vshll.u32 %v3042, 16
    %v3044 = vadd.s32 %v3043, %v3041
    %v3045 = vsel %vm1779, %v2099, 2147483647
    %v3046 = vand.u32 %v3045, 65535
    %v3047 = vshra.s32 %v3045, 16
    %v3048 = vcvt.s32.f32 %v3046
    %v3049 = vcvt.s32.f32 %v3047
    %3050 = vmin.xlane.f32.xlu0 %v3049
    %v3051 = vpop.xlane.xlu0 %3050
    %vm3052 = vcmp.eq.f32.partialorder %v3049, %v3051
    %v3053 = vsel %vm3052, %v3048, inf
    %3054 = vmin.xlane.f32.xlu0 %v3053
    %v3055 = vpop.xlane.xlu0 %3054
    %v3056 = vcvt.f32.s32 %v3055
    %v3057 = vcvt.f32.s32 %v3051
    %v3058 = vshll.u32 %v3057, 16
    %v3059 = vadd.s32 %v3058, %v3056
    %vm3060 = vcmp.eq.s32.totalorder %v1778, %v2114
    %vm3061 = vcmp.eq.s32.totalorder %v1778, %v2129
    %vm3062 = vcmp.eq.s32.totalorder %v1778, %v2144
    %vm3063 = vcmp.eq.s32.totalorder %v1778, %v2159
    %vm3064 = vcmp.eq.s32.totalorder %v1778, %v2174
    %vm3065 = vcmp.eq.s32.totalorder %v1778, %v2189
    %vm3066 = vcmp.eq.s32.totalorder %v1778, %v2204
    %vm3067 = vcmp.eq.s32.totalorder %v1778, %v2219
    %vm3068 = vcmp.eq.s32.totalorder %v1778, %v2234
    %vm3069 = vcmp.eq.s32.totalorder %v1778, %v2249
    %vm3070 = vcmp.eq.s32.totalorder %v1778, %v2264
    %vm3071 = vcmp.eq.s32.totalorder %v1778, %v2279
    %vm3072 = vcmp.eq.s32.totalorder %v1778, %v2294
    %vm3073 = vcmp.eq.s32.totalorder %v1778, %v2309
    %vm3074 = vcmp.eq.s32.totalorder %v1778, %v2324
    %vm3075 = vcmp.eq.s32.totalorder %v1778, %v2339
    %vm3076 = vcmp.eq.s32.totalorder %v1778, %v2354
    %vm3077 = vcmp.eq.s32.totalorder %v1778, %v2369
    %vm3078 = vcmp.eq.s32.totalorder %v1778, %v2384
    %vm3079 = vcmp.eq.s32.totalorder %v1778, %v2399
    %vm3080 = vcmp.eq.s32.totalorder %v1778, %v2414
    %vm3081 = vcmp.eq.s32.totalorder %v1778, %v2429
    %vm3082 = vcmp.eq.s32.totalorder %v1778, %v2444
    %vm3083 = vcmp.eq.s32.totalorder %v1778, %v2459
    %vm3084 = vcmp.eq.s32.totalorder %v1778, %v2474
    %vm3085 = vcmp.eq.s32.totalorder %v1778, %v2489
    %vm3086 = vcmp.eq.s32.totalorder %v1778, %v2504
    %vm3087 = vcmp.eq.s32.totalorder %v1778, %v2519
    %vm3088 = vcmp.eq.s32.totalorder %v1778, %v2534
    %vm3089 = vcmp.eq.s32.totalorder %v1778, %v2549
    %vm3090 = vcmp.eq.s32.totalorder %v1778, %v2564
    %vm3091 = vcmp.eq.s32.totalorder %v1778, %v2579
    %vm3092 = vcmp.eq.s32.totalorder %v1778, %v2594
    %vm3093 = vcmp.eq.s32.totalorder %v1778, %v2609
    %vm3094 = vcmp.eq.s32.totalorder %v1778, %v2624
    %vm3095 = vcmp.eq.s32.totalorder %v1778, %v2639
    %vm3096 = vcmp.eq.s32.totalorder %v1778, %v2654
    %vm3097 = vcmp.eq.s32.totalorder %v1778, %v2669
    %vm3098 = vcmp.eq.s32.totalorder %v1778, %v2684
    %vm3099 = vcmp.eq.s32.totalorder %v1778, %v2699
    %vm3100 = vcmp.eq.s32.totalorder %v1778, %v2714
    %vm3101 = vcmp.eq.s32.totalorder %v1778, %v2729
    %vm3102 = vcmp.eq.s32.totalorder %v1778, %v2744
    %vm3103 = vcmp.eq.s32.totalorder %v1778, %v2759
    %vm3104 = vcmp.eq.s32.totalorder %v1778, %v2774
    %vm3105 = vcmp.eq.s32.totalorder %v1778, %v2789
    %vm3106 = vcmp.eq.s32.totalorder %v1778, %v2804
    %vm3107 = vcmp.eq.s32.totalorder %v1778, %v2819
    %vm3108 = vcmp.eq.s32.totalorder %v1778, %v2834
    %vm3109 = vcmp.eq.s32.totalorder %v1778, %v2849
    %vm3110 = vcmp.eq.s32.totalorder %v1778, %v2864
    %vm3111 = vcmp.eq.s32.totalorder %v1778, %v2879
    %vm3112 = vcmp.eq.s32.totalorder %v1778, %v2894
    %vm3113 = vcmp.eq.s32.totalorder %v1778, %v2909
    %vm3114 = vcmp.eq.s32.totalorder %v1778, %v2924
    %vm3115 = vcmp.eq.s32.totalorder %v1778, %v2939
    %vm3116 = vcmp.eq.s32.totalorder %v1778, %v2954
    %vm3117 = vcmp.eq.s32.totalorder %v1778, %v2969
    %vm3118 = vcmp.eq.s32.totalorder %v1778, %v2984
    %vm3119 = vcmp.eq.s32.totalorder %v1778, %v2999
    %vm3120 = vcmp.eq.s32.totalorder %v1778, %v3014
    %vm3121 = vcmp.eq.s32.totalorder %v1778, %v3029
    %vm3122 = vcmp.eq.s32.totalorder %v1778, %v3044
    %vm3123 = vcmp.eq.s32.totalorder %v1778, %v3059
    %v3124 = vsel %vm3060, 1, 0
    %v3125 = vsel %vm3061, 1, 0
    %v3126 = vsel %vm3062, 1, 0
    %v3127 = vsel %vm3063, 1, 0
    %v3128 = vsel %vm3064, 1, 0
    %v3129 = vsel %vm3065, 1, 0
    %v3130 = vsel %vm3066, 1, 0
    %v3131 = vsel %vm3067, 1, 0
    %v3132 = vsel %vm3068, 1, 0
    %v3133 = vsel %vm3069, 1, 0
    %v3134 = vsel %vm3070, 1, 0
    %v3135 = vsel %vm3071, 1, 0
    %v3136 = vsel %vm3072, 1, 0
    %v3137 = vsel %vm3073, 1, 0
    %v3138 = vsel %vm3074, 1, 0
    %v3139 = vsel %vm3075, 1, 0
    %v3140 = vsel %vm3076, 1, 0
    %v3141 = vsel %vm3077, 1, 0
    %v3142 = vsel %vm3078, 1, 0
    %v3143 = vsel %vm3079, 1, 0
    %v3144 = vsel %vm3080, 1, 0
    %v3145 = vsel %vm3081, 1, 0
    %v3146 = vsel %vm3082, 1, 0
    %v3147 = vsel %vm3083, 1, 0
    %v3148 = vsel %vm3084, 1, 0
    %v3149 = vsel %vm3085, 1, 0
    %v3150 = vsel %vm3086, 1, 0
    %v3151 = vsel %vm3087, 1, 0
    %v3152 = vsel %vm3088, 1, 0
    %v3153 = vsel %vm3089, 1, 0
    %v3154 = vsel %vm3090, 1, 0
    %v3155 = vsel %vm3091, 1, 0
    %v3156 = vsel %vm3092, 1, 0
    %v3157 = vsel %vm3093, 1, 0
    %v3158 = vsel %vm3094, 1, 0
    %v3159 = vsel %vm3095, 1, 0
    %v3160 = vsel %vm3096, 1, 0
    %v3161 = vsel %vm3097, 1, 0
    %v3162 = vsel %vm3098, 1, 0
    %v3163 = vsel %vm3099, 1, 0
    %v3164 = vsel %vm3100, 1, 0
    %v3165 = vsel %vm3101, 1, 0
    %v3166 = vsel %vm3102, 1, 0
    %v3167 = vsel %vm3103, 1, 0
    %v3168 = vsel %vm3104, 1, 0
    %v3169 = vsel %vm3105, 1, 0
    %v3170 = vsel %vm3106, 1, 0
    %v3171 = vsel %vm3107, 1, 0
    %v3172 = vsel %vm3108, 1, 0
    %v3173 = vsel %vm3109, 1, 0
    %v3174 = vsel %vm3110, 1, 0
    %v3175 = vsel %vm3111, 1, 0
    %v3176 = vsel %vm3112, 1, 0
    %v3177 = vsel %vm3113, 1, 0
    %v3178 = vsel %vm3114, 1, 0
    %v3179 = vsel %vm3115, 1, 0
    %v3180 = vsel %vm3116, 1, 0
    %v3181 = vsel %vm3117, 1, 0
    %v3182 = vsel %vm3118, 1, 0
    %v3183 = vsel %vm3119, 1, 0
    %v3184 = vsel %vm3120, 1, 0
    %v3185 = vsel %vm3121, 1, 0
    %v3186 = vsel %vm3122, 1, 0
    %v3187 = vsel %vm3123, 1, 0
    %v3188 = vcvt.s32.f32 %v3124
    %v3189 = vcvt.s32.f32 %v3125
    %v3190 = vcvt.s32.f32 %v3126
    %v3191 = vcvt.s32.f32 %v3127
    %v3192 = vcvt.s32.f32 %v3128
    %v3193 = vcvt.s32.f32 %v3129
    %v3194 = vcvt.s32.f32 %v3130
    %v3195 = vcvt.s32.f32 %v3131
    %v3196 = vcvt.s32.f32 %v3132
    %v3197 = vcvt.s32.f32 %v3133
    %v3198 = vcvt.s32.f32 %v3134
    %v3199 = vcvt.s32.f32 %v3135
    %v3200 = vcvt.s32.f32 %v3136
    %v3201 = vcvt.s32.f32 %v3137
    %v3202 = vcvt.s32.f32 %v3138
    %v3203 = vcvt.s32.f32 %v3139
    %v3204 = vcvt.s32.f32 %v3140
    %v3205 = vcvt.s32.f32 %v3141
    %v3206 = vcvt.s32.f32 %v3142
    %v3207 = vcvt.s32.f32 %v3143
    %v3208 = vcvt.s32.f32 %v3144
    %v3209 = vcvt.s32.f32 %v3145
    %v3210 = vcvt.s32.f32 %v3146
    %v3211 = vcvt.s32.f32 %v3147
    %v3212 = vcvt.s32.f32 %v3148
    %v3213 = vcvt.s32.f32 %v3149
    %v3214 = vcvt.s32.f32 %v3150
    %v3215 = vcvt.s32.f32 %v3151
    %v3216 = vcvt.s32.f32 %v3152
    %v3217 = vcvt.s32.f32 %v3153
    %v3218 = vcvt.s32.f32 %v3154
    %v3219 = vcvt.s32.f32 %v3155
    %v3220 = vcvt.s32.f32 %v3156
    %v3221 = vcvt.s32.f32 %v3157
    %v3222 = vcvt.s32.f32 %v3158
    %v3223 = vcvt.s32.f32 %v3159
    %v3224 = vcvt.s32.f32 %v3160
    %v3225 = vcvt.s32.f32 %v3161
    %v3226 = vcvt.s32.f32 %v3162
    %v3227 = vcvt.s32.f32 %v3163
    %v3228 = vcvt.s32.f32 %v3164
    %v3229 = vcvt.s32.f32 %v3165
    %v3230 = vcvt.s32.f32 %v3166
    %v3231 = vcvt.s32.f32 %v3167
    %v3232 = vcvt.s32.f32 %v3168
    %v3233 = vcvt.s32.f32 %v3169
    %v3234 = vcvt.s32.f32 %v3170
    %v3235 = vcvt.s32.f32 %v3171
    %v3236 = vcvt.s32.f32 %v3172
    %v3237 = vcvt.s32.f32 %v3173
    %v3238 = vcvt.s32.f32 %v3174
    %v3239 = vcvt.s32.f32 %v3175
    %v3240 = vcvt.s32.f32 %v3176
    %v3241 = vcvt.s32.f32 %v3177
    %v3242 = vcvt.s32.f32 %v3178
    %v3243 = vcvt.s32.f32 %v3179
    %v3244 = vcvt.s32.f32 %v3180
    %v3245 = vcvt.s32.f32 %v3181
    %v3246 = vcvt.s32.f32 %v3182
    %v3247 = vcvt.s32.f32 %v3183
    %v3248 = vcvt.s32.f32 %v3184
    %v3249 = vcvt.s32.f32 %v3185
    %v3250 = vcvt.s32.f32 %v3186
    %v3251 = vcvt.s32.f32 %v3187
    %v3252 = vld [vmem:[%s1] sm:$0xff]
    %v3253 = vld [vmem:[%s1 + $0x8] sm:$0xff]
    %vm3254 = vcmp.eq.s32.totalorder %v2114, 0
    %vm3255 = vcmp.eq.s32.totalorder %v2129, 0
    %vm3256 = vcmp.eq.s32.totalorder %v2144, 0
    %vm3257 = vcmp.eq.s32.totalorder %v2159, 0
    %vm3258 = vcmp.eq.s32.totalorder %v2174, 0
    %vm3259 = vcmp.eq.s32.totalorder %v2189, 0
    %vm3260 = vcmp.eq.s32.totalorder %v2204, 0
    %vm3261 = vcmp.eq.s32.totalorder %v2219, 0
    %vm3262 = vcmp.eq.s32.totalorder %v2234, 0
    %vm3263 = vcmp.eq.s32.totalorder %v2249, 0
    %vm3264 = vcmp.eq.s32.totalorder %v2264, 0
    %vm3265 = vcmp.eq.s32.totalorder %v2279, 0
    %vm3266 = vcmp.eq.s32.totalorder %v2294, 0
    %vm3267 = vcmp.eq.s32.totalorder %v2309, 0
    %vm3268 = vcmp.eq.s32.totalorder %v2324, 0
    %vm3269 = vcmp.eq.s32.totalorder %v2339, 0
    %vm3270 = vcmp.eq.s32.totalorder %v2354, 0
    %vm3271 = vcmp.eq.s32.totalorder %v2369, 0
    %vm3272 = vcmp.eq.s32.totalorder %v2384, 0
    %vm3273 = vcmp.eq.s32.totalorder %v2399, 0
    %vm3274 = vcmp.eq.s32.totalorder %v2414, 0
    %vm3275 = vcmp.eq.s32.totalorder %v2429, 0
    %vm3276 = vcmp.eq.s32.totalorder %v2444, 0
    %vm3277 = vcmp.eq.s32.totalorder %v2459, 0
    %vm3278 = vcmp.eq.s32.totalorder %v2474, 0
    %vm3279 = vcmp.eq.s32.totalorder %v2489, 0
    %vm3280 = vcmp.eq.s32.totalorder %v2504, 0
    %vm3281 = vcmp.eq.s32.totalorder %v2519, 0
    %vm3282 = vcmp.eq.s32.totalorder %v2534, 0
    %vm3283 = vcmp.eq.s32.totalorder %v2549, 0
    %vm3284 = vcmp.eq.s32.totalorder %v2564, 0
    %vm3285 = vcmp.eq.s32.totalorder %v2579, 0
    %vm3286 = vcmp.eq.s32.totalorder %v2594, 0
    %vm3287 = vcmp.eq.s32.totalorder %v2609, 0
    %vm3288 = vcmp.eq.s32.totalorder %v2624, 0
    %vm3289 = vcmp.eq.s32.totalorder %v2639, 0
    %vm3290 = vcmp.eq.s32.totalorder %v2654, 0
    %vm3291 = vcmp.eq.s32.totalorder %v2669, 0
    %vm3292 = vcmp.eq.s32.totalorder %v2684, 0
    %vm3293 = vcmp.eq.s32.totalorder %v2699, 0
    %vm3294 = vcmp.eq.s32.totalorder %v2714, 0
    %vm3295 = vcmp.eq.s32.totalorder %v2729, 0
    %vm3296 = vcmp.eq.s32.totalorder %v2744, 0
    %vm3297 = vcmp.eq.s32.totalorder %v2759, 0
    %vm3298 = vcmp.eq.s32.totalorder %v2774, 0
    %vm3299 = vcmp.eq.s32.totalorder %v2789, 0
    %vm3300 = vcmp.eq.s32.totalorder %v2804, 0
    %vm3301 = vcmp.eq.s32.totalorder %v2819, 0
    %vm3302 = vcmp.eq.s32.totalorder %v2834, 0
    %vm3303 = vcmp.eq.s32.totalorder %v2849, 0
    %vm3304 = vcmp.eq.s32.totalorder %v2864, 0
    %vm3305 = vcmp.eq.s32.totalorder %v2879, 0
    %vm3306 = vcmp.eq.s32.totalorder %v2894, 0
    %vm3307 = vcmp.eq.s32.totalorder %v2909, 0
    %vm3308 = vcmp.eq.s32.totalorder %v2924, 0
    %vm3309 = vcmp.eq.s32.totalorder %v2939, 0
    %vm3310 = vcmp.eq.s32.totalorder %v2954, 0
    %vm3311 = vcmp.eq.s32.totalorder %v2969, 0
    %vm3312 = vcmp.eq.s32.totalorder %v2984, 0
    %vm3313 = vcmp.eq.s32.totalorder %v2999, 0
    %vm3314 = vcmp.eq.s32.totalorder %v3014, 0
    %vm3315 = vcmp.eq.s32.totalorder %v3029, 0
    %vm3316 = vcmp.eq.s32.totalorder %v3044, 0
    %vm3317 = vcmp.eq.s32.totalorder %v3059, 0
    %v3318 = vsel %vm3254, 1, 0
    %v3319 = vsel %vm3255, 1, 0
    %v3320 = vsel %vm3256, 1, 0
    %v3321 = vsel %vm3257, 1, 0
    %v3322 = vsel %vm3258, 1, 0
    %v3323 = vsel %vm3259, 1, 0
    %v3324 = vsel %vm3260, 1, 0
    %v3325 = vsel %vm3261, 1, 0
    %v3326 = vsel %vm3262, 1, 0
    %v3327 = vsel %vm3263, 1, 0
    %v3328 = vsel %vm3264, 1, 0
    %v3329 = vsel %vm3265, 1, 0
    %v3330 = vsel %vm3266, 1, 0
    %v3331 = vsel %vm3267, 1, 0
    %v3332 = vsel %vm3268, 1, 0
    %v3333 = vsel %vm3269, 1, 0
    %v3334 = vsel %vm3270, 1, 0
    %v3335 = vsel %vm3271, 1, 0
    %v3336 = vsel %vm3272, 1, 0
    %v3337 = vsel %vm3273, 1, 0
    %v3338 = vsel %vm3274, 1, 0
    %v3339 = vsel %vm3275, 1, 0
    %v3340 = vsel %vm3276, 1, 0
    %v3341 = vsel %vm3277, 1, 0
    %v3342 = vsel %vm3278, 1, 0
    %v3343 = vsel %vm3279, 1, 0
    %v3344 = vsel %vm3280, 1, 0
    %v3345 = vsel %vm3281, 1, 0
    %v3346 = vsel %vm3282, 1, 0
    %v3347 = vsel %vm3283, 1, 0
    %v3348 = vsel %vm3284, 1, 0
    %v3349 = vsel %vm3285, 1, 0
    %v3350 = vsel %vm3286, 1, 0
    %v3351 = vsel %vm3287, 1, 0
    %v3352 = vsel %vm3288, 1, 0
    %v3353 = vsel %vm3289, 1, 0
    %v3354 = vsel %vm3290, 1, 0
    %v3355 = vsel %vm3291, 1, 0
    %v3356 = vsel %vm3292, 1, 0
    %v3357 = vsel %vm3293, 1, 0
    %v3358 = vsel %vm3294, 1, 0
    %v3359 = vsel %vm3295, 1, 0
    %v3360 = vsel %vm3296, 1, 0
    %v3361 = vsel %vm3297, 1, 0
    %v3362 = vsel %vm3298, 1, 0
    %v3363 = vsel %vm3299, 1, 0
    %v3364 = vsel %vm3300, 1, 0
    %v3365 = vsel %vm3301, 1, 0
    %v3366 = vsel %vm3302, 1, 0
    %v3367 = vsel %vm3303, 1, 0
    %v3368 = vsel %vm3304, 1, 0
    %v3369 = vsel %vm3305, 1, 0
    %v3370 = vsel %vm3306, 1, 0
    %v3371 = vsel %vm3307, 1, 0
    %v3372 = vsel %vm3308, 1, 0
    %v3373 = vsel %vm3309, 1, 0
    %v3374 = vsel %vm3310, 1, 0
    %v3375 = vsel %vm3311, 1, 0
    %v3376 = vsel %vm3312, 1, 0
    %v3377 = vsel %vm3313, 1, 0
    %v3378 = vsel %vm3314, 1, 0
    %v3379 = vsel %vm3315, 1, 0
    %v3380 = vsel %vm3316, 1, 0
    %v3381 = vsel %vm3317, 1, 0
    %v3382 = vcvt.s32.f32 %v3318
    %v3383 = vcvt.s32.f32 %v3319
    %v3384 = vcvt.s32.f32 %v3320
    %v3385 = vcvt.s32.f32 %v3321
    %v3386 = vcvt.s32.f32 %v3322
    %v3387 = vcvt.s32.f32 %v3323
    %v3388 = vcvt.s32.f32 %v3324
    %v3389 = vcvt.s32.f32 %v3325
    %v3390 = vcvt.s32.f32 %v3326
    %v3391 = vcvt.s32.f32 %v3327
    %v3392 = vcvt.s32.f32 %v3328
    %v3393 = vcvt.s32.f32 %v3329
    %v3394 = vcvt.s32.f32 %v3330
    %v3395 = vcvt.s32.f32 %v3331
    %v3396 = vcvt.s32.f32 %v3332
    %v3397 = vcvt.s32.f32 %v3333
    %v3398 = vcvt.s32.f32 %v3334
    %v3399 = vcvt.s32.f32 %v3335
    %v3400 = vcvt.s32.f32 %v3336
    %v3401 = vcvt.s32.f32 %v3337
    %v3402 = vcvt.s32.f32 %v3338
    %v3403 = vcvt.s32.f32 %v3339
    %v3404 = vcvt.s32.f32 %v3340
    %v3405 = vcvt.s32.f32 %v3341
    %v3406 = vcvt.s32.f32 %v3342
    %v3407 = vcvt.s32.f32 %v3343
    %v3408 = vcvt.s32.f32 %v3344
    %v3409 = vcvt.s32.f32 %v3345
    %v3410 = vcvt.s32.f32 %v3346
    %v3411 = vcvt.s32.f32 %v3347
    %v3412 = vcvt.s32.f32 %v3348
    %v3413 = vcvt.s32.f32 %v3349
    %v3414 = vcvt.s32.f32 %v3350
    %v3415 = vcvt.s32.f32 %v3351
    %v3416 = vcvt.s32.f32 %v3352
    %v3417 = vcvt.s32.f32 %v3353
    %v3418 = vcvt.s32.f32 %v3354
    %v3419 = vcvt.s32.f32 %v3355
    %v3420 = vcvt.s32.f32 %v3356
    %v3421 = vcvt.s32.f32 %v3357
    %v3422 = vcvt.s32.f32 %v3358
    %v3423 = vcvt.s32.f32 %v3359
    %v3424 = vcvt.s32.f32 %v3360
    %v3425 = vcvt.s32.f32 %v3361
    %v3426 = vcvt.s32.f32 %v3362
    %v3427 = vcvt.s32.f32 %v3363
    %v3428 = vcvt.s32.f32 %v3364
    %v3429 = vcvt.s32.f32 %v3365
    %v3430 = vcvt.s32.f32 %v3366
    %v3431 = vcvt.s32.f32 %v3367
    %v3432 = vcvt.s32.f32 %v3368
    %v3433 = vcvt.s32.f32 %v3369
    %v3434 = vcvt.s32.f32 %v3370
    %v3435 = vcvt.s32.f32 %v3371
    %v3436 = vcvt.s32.f32 %v3372
    %v3437 = vcvt.s32.f32 %v3373
    %v3438 = vcvt.s32.f32 %v3374
    %v3439 = vcvt.s32.f32 %v3375
    %v3440 = vcvt.s32.f32 %v3376
    %v3441 = vcvt.s32.f32 %v3377
    %v3442 = vcvt.s32.f32 %v3378
    %v3443 = vcvt.s32.f32 %v3379
    %v3444 = vcvt.s32.f32 %v3380
    %v3445 = vcvt.s32.f32 %v3381
    %v3446 = vlaneseq
    %v3447 = vshrl.u32 %v3446, 7
    %v3448 = vsub.s32 0, %v3447
    %v3449 = vrot.slane %v3252, %v3448
    %v3450 = vmul.f32 %v3382, %v3449
    %v3451 = vmul.f32 %v3383, %v3449
    %v3452 = vmul.f32 %v3384, %v3449
    %v3453 = vmul.f32 %v3385, %v3449
    %v3454 = vmul.f32 %v3386, %v3449
    %v3455 = vmul.f32 %v3387, %v3449
    %v3456 = vmul.f32 %v3388, %v3449
    %v3457 = vmul.f32 %v3389, %v3449
    %v3458 = vmul.f32 %v3390, %v3449
    %v3459 = vmul.f32 %v3391, %v3449
    %v3460 = vmul.f32 %v3392, %v3449
    %v3461 = vmul.f32 %v3393, %v3449
    %v3462 = vmul.f32 %v3394, %v3449
    %v3463 = vmul.f32 %v3395, %v3449
    %v3464 = vmul.f32 %v3396, %v3449
    %v3465 = vmul.f32 %v3397, %v3449
    %v3466 = vmul.f32 %v3398, %v3449
    %v3467 = vmul.f32 %v3399, %v3449
    %v3468 = vmul.f32 %v3400, %v3449
    %v3469 = vmul.f32 %v3401, %v3449
    %v3470 = vmul.f32 %v3402, %v3449
    %v3471 = vmul.f32 %v3403, %v3449
    %v3472 = vmul.f32 %v3404, %v3449
    %v3473 = vmul.f32 %v3405, %v3449
    %v3474 = vmul.f32 %v3406, %v3449
    %v3475 = vmul.f32 %v3407, %v3449
    %v3476 = vmul.f32 %v3408, %v3449
    %v3477 = vmul.f32 %v3409, %v3449
    %v3478 = vmul.f32 %v3410, %v3449
    %v3479 = vmul.f32 %v3411, %v3449
    %v3480 = vmul.f32 %v3412, %v3449
    %v3481 = vmul.f32 %v3413, %v3449
    %v3482 = vmul.f32 %v3414, %v3449
    %v3483 = vmul.f32 %v3415, %v3449
    %v3484 = vmul.f32 %v3416, %v3449
    %v3485 = vmul.f32 %v3417, %v3449
    %v3486 = vmul.f32 %v3418, %v3449
    %v3487 = vmul.f32 %v3419, %v3449
    %v3488 = vmul.f32 %v3420, %v3449
    %v3489 = vmul.f32 %v3421, %v3449
    %v3490 = vmul.f32 %v3422, %v3449
    %v3491 = vmul.f32 %v3423, %v3449
    %v3492 = vmul.f32 %v3424, %v3449
    %v3493 = vmul.f32 %v3425, %v3449
    %v3494 = vmul.f32 %v3426, %v3449
    %v3495 = vmul.f32 %v3427, %v3449
    %v3496 = vmul.f32 %v3428, %v3449
    %v3497 = vmul.f32 %v3429, %v3449
    %v3498 = vmul.f32 %v3430, %v3449
    %v3499 = vmul.f32 %v3431, %v3449
    %v3500 = vmul.f32 %v3432, %v3449
    %v3501 = vmul.f32 %v3433, %v3449
    %v3502 = vmul.f32 %v3434, %v3449
    %v3503 = vmul.f32 %v3435, %v3449
    %v3504 = vmul.f32 %v3436, %v3449
    %v3505 = vmul.f32 %v3437, %v3449
    %v3506 = vmul.f32 %v3438, %v3449
    %v3507 = vmul.f32 %v3439, %v3449
    %v3508 = vmul.f32 %v3440, %v3449
    %v3509 = vmul.f32 %v3441, %v3449
    %v3510 = vmul.f32 %v3442, %v3449
    %v3511 = vmul.f32 %v3443, %v3449
    %v3512 = vmul.f32 %v3444, %v3449
    %v3513 = vmul.f32 %v3445, %v3449
    %vm3514 = vcmp.eq.s32.totalorder %v2114, 1
    %vm3515 = vcmp.eq.s32.totalorder %v2129, 1
    %vm3516 = vcmp.eq.s32.totalorder %v2144, 1
    %vm3517 = vcmp.eq.s32.totalorder %v2159, 1
    %vm3518 = vcmp.eq.s32.totalorder %v2174, 1
    %vm3519 = vcmp.eq.s32.totalorder %v2189, 1
    %vm3520 = vcmp.eq.s32.totalorder %v2204, 1
    %vm3521 = vcmp.eq.s32.totalorder %v2219, 1
    %vm3522 = vcmp.eq.s32.totalorder %v2234, 1
    %vm3523 = vcmp.eq.s32.totalorder %v2249, 1
    %vm3524 = vcmp.eq.s32.totalorder %v2264, 1
    %vm3525 = vcmp.eq.s32.totalorder %v2279, 1
    %vm3526 = vcmp.eq.s32.totalorder %v2294, 1
    %vm3527 = vcmp.eq.s32.totalorder %v2309, 1
    %vm3528 = vcmp.eq.s32.totalorder %v2324, 1
    %vm3529 = vcmp.eq.s32.totalorder %v2339, 1
    %vm3530 = vcmp.eq.s32.totalorder %v2354, 1
    %vm3531 = vcmp.eq.s32.totalorder %v2369, 1
    %vm3532 = vcmp.eq.s32.totalorder %v2384, 1
    %vm3533 = vcmp.eq.s32.totalorder %v2399, 1
    %vm3534 = vcmp.eq.s32.totalorder %v2414, 1
    %vm3535 = vcmp.eq.s32.totalorder %v2429, 1
    %vm3536 = vcmp.eq.s32.totalorder %v2444, 1
    %vm3537 = vcmp.eq.s32.totalorder %v2459, 1
    %vm3538 = vcmp.eq.s32.totalorder %v2474, 1
    %vm3539 = vcmp.eq.s32.totalorder %v2489, 1
    %vm3540 = vcmp.eq.s32.totalorder %v2504, 1
    %vm3541 = vcmp.eq.s32.totalorder %v2519, 1
    %vm3542 = vcmp.eq.s32.totalorder %v2534, 1
    %vm3543 = vcmp.eq.s32.totalorder %v2549, 1
    %vm3544 = vcmp.eq.s32.totalorder %v2564, 1
    %vm3545 = vcmp.eq.s32.totalorder %v2579, 1
    %vm3546 = vcmp.eq.s32.totalorder %v2594, 1
    %vm3547 = vcmp.eq.s32.totalorder %v2609, 1
    %vm3548 = vcmp.eq.s32.totalorder %v2624, 1
    %vm3549 = vcmp.eq.s32.totalorder %v2639, 1
    %vm3550 = vcmp.eq.s32.totalorder %v2654, 1
    %vm3551 = vcmp.eq.s32.totalorder %v2669, 1
    %vm3552 = vcmp.eq.s32.totalorder %v2684, 1
    %vm3553 = vcmp.eq.s32.totalorder %v2699, 1
    %vm3554 = vcmp.eq.s32.totalorder %v2714, 1
    %vm3555 = vcmp.eq.s32.totalorder %v2729, 1
    %vm3556 = vcmp.eq.s32.totalorder %v2744, 1
    %vm3557 = vcmp.eq.s32.totalorder %v2759, 1
    %vm3558 = vcmp.eq.s32.totalorder %v2774, 1
    %vm3559 = vcmp.eq.s32.totalorder %v2789, 1
    %vm3560 = vcmp.eq.s32.totalorder %v2804, 1
    %vm3561 = vcmp.eq.s32.totalorder %v2819, 1
    %vm3562 = vcmp.eq.s32.totalorder %v2834, 1
    %vm3563 = vcmp.eq.s32.totalorder %v2849, 1
    %vm3564 = vcmp.eq.s32.totalorder %v2864, 1
    %vm3565 = vcmp.eq.s32.totalorder %v2879, 1
    %vm3566 = vcmp.eq.s32.totalorder %v2894, 1
    %vm3567 = vcmp.eq.s32.totalorder %v2909, 1
    %vm3568 = vcmp.eq.s32.totalorder %v2924, 1
    %vm3569 = vcmp.eq.s32.totalorder %v2939, 1
    %vm3570 = vcmp.eq.s32.totalorder %v2954, 1
    %vm3571 = vcmp.eq.s32.totalorder %v2969, 1
    %vm3572 = vcmp.eq.s32.totalorder %v2984, 1
    %vm3573 = vcmp.eq.s32.totalorder %v2999, 1
    %vm3574 = vcmp.eq.s32.totalorder %v3014, 1
    %vm3575 = vcmp.eq.s32.totalorder %v3029, 1
    %vm3576 = vcmp.eq.s32.totalorder %v3044, 1
    %vm3577 = vcmp.eq.s32.totalorder %v3059, 1
    %v3578 = vsel %vm3514, 1, 0
    %v3579 = vsel %vm3515, 1, 0
    %v3580 = vsel %vm3516, 1, 0
    %v3581 = vsel %vm3517, 1, 0
    %v3582 = vsel %vm3518, 1, 0
    %v3583 = vsel %vm3519, 1, 0
    %v3584 = vsel %vm3520, 1, 0
    %v3585 = vsel %vm3521, 1, 0
    %v3586 = vsel %vm3522, 1, 0
    %v3587 = vsel %vm3523, 1, 0
    %v3588 = vsel %vm3524, 1, 0
    %v3589 = vsel %vm3525, 1, 0
    %v3590 = vsel %vm3526, 1, 0
    %v3591 = vsel %vm3527, 1, 0
    %v3592 = vsel %vm3528, 1, 0
    %v3593 = vsel %vm3529, 1, 0
    %v3594 = vsel %vm3530, 1, 0
    %v3595 = vsel %vm3531, 1, 0
    %v3596 = vsel %vm3532, 1, 0
    %v3597 = vsel %vm3533, 1, 0
    %v3598 = vsel %vm3534, 1, 0
    %v3599 = vsel %vm3535, 1, 0
    %v3600 = vsel %vm3536, 1, 0
    %v3601 = vsel %vm3537, 1, 0
    %v3602 = vsel %vm3538, 1, 0
    %v3603 = vsel %vm3539, 1, 0
    %v3604 = vsel %vm3540, 1, 0
    %v3605 = vsel %vm3541, 1, 0
    %v3606 = vsel %vm3542, 1, 0
    %v3607 = vsel %vm3543, 1, 0
    %v3608 = vsel %vm3544, 1, 0
    %v3609 = vsel %vm3545, 1, 0
    %v3610 = vsel %vm3546, 1, 0
    %v3611 = vsel %vm3547, 1, 0
    %v3612 = vsel %vm3548, 1, 0
    %v3613 = vsel %vm3549, 1, 0
    %v3614 = vsel %vm3550, 1, 0
    %v3615 = vsel %vm3551, 1, 0
    %v3616 = vsel %vm3552, 1, 0
    %v3617 = vsel %vm3553, 1, 0
    %v3618 = vsel %vm3554, 1, 0
    %v3619 = vsel %vm3555, 1, 0
    %v3620 = vsel %vm3556, 1, 0
    %v3621 = vsel %vm3557, 1, 0
    %v3622 = vsel %vm3558, 1, 0
    %v3623 = vsel %vm3559, 1, 0
    %v3624 = vsel %vm3560, 1, 0
    %v3625 = vsel %vm3561, 1, 0
    %v3626 = vsel %vm3562, 1, 0
    %v3627 = vsel %vm3563, 1, 0
    %v3628 = vsel %vm3564, 1, 0
    %v3629 = vsel %vm3565, 1, 0
    %v3630 = vsel %vm3566, 1, 0
    %v3631 = vsel %vm3567, 1, 0
    %v3632 = vsel %vm3568, 1, 0
    %v3633 = vsel %vm3569, 1, 0
    %v3634 = vsel %vm3570, 1, 0
    %v3635 = vsel %vm3571, 1, 0
    %v3636 = vsel %vm3572, 1, 0
    %v3637 = vsel %vm3573, 1, 0
    %v3638 = vsel %vm3574, 1, 0
    %v3639 = vsel %vm3575, 1, 0
    %v3640 = vsel %vm3576, 1, 0
    %v3641 = vsel %vm3577, 1, 0
    %v3642 = vcvt.s32.f32 %v3578
    %v3643 = vcvt.s32.f32 %v3579
    %v3644 = vcvt.s32.f32 %v3580
    %v3645 = vcvt.s32.f32 %v3581
    %v3646 = vcvt.s32.f32 %v3582
    %v3647 = vcvt.s32.f32 %v3583
    %v3648 = vcvt.s32.f32 %v3584
    %v3649 = vcvt.s32.f32 %v3585
    %v3650 = vcvt.s32.f32 %v3586
    %v3651 = vcvt.s32.f32 %v3587
    %v3652 = vcvt.s32.f32 %v3588
    %v3653 = vcvt.s32.f32 %v3589
    %v3654 = vcvt.s32.f32 %v3590
    %v3655 = vcvt.s32.f32 %v3591
    %v3656 = vcvt.s32.f32 %v3592
    %v3657 = vcvt.s32.f32 %v3593
    %v3658 = vcvt.s32.f32 %v3594
    %v3659 = vcvt.s32.f32 %v3595
    %v3660 = vcvt.s32.f32 %v3596
    %v3661 = vcvt.s32.f32 %v3597
    %v3662 = vcvt.s32.f32 %v3598
    %v3663 = vcvt.s32.f32 %v3599
    %v3664 = vcvt.s32.f32 %v3600
    %v3665 = vcvt.s32.f32 %v3601
    %v3666 = vcvt.s32.f32 %v3602
    %v3667 = vcvt.s32.f32 %v3603
    %v3668 = vcvt.s32.f32 %v3604
    %v3669 = vcvt.s32.f32 %v3605
    %v3670 = vcvt.s32.f32 %v3606
    %v3671 = vcvt.s32.f32 %v3607
    %v3672 = vcvt.s32.f32 %v3608
    %v3673 = vcvt.s32.f32 %v3609
    %v3674 = vcvt.s32.f32 %v3610
    %v3675 = vcvt.s32.f32 %v3611
    %v3676 = vcvt.s32.f32 %v3612
    %v3677 = vcvt.s32.f32 %v3613
    %v3678 = vcvt.s32.f32 %v3614
    %v3679 = vcvt.s32.f32 %v3615
    %v3680 = vcvt.s32.f32 %v3616
    %v3681 = vcvt.s32.f32 %v3617
    %v3682 = vcvt.s32.f32 %v3618
    %v3683 = vcvt.s32.f32 %v3619
    %v3684 = vcvt.s32.f32 %v3620
    %v3685 = vcvt.s32.f32 %v3621
    %v3686 = vcvt.s32.f32 %v3622
    %v3687 = vcvt.s32.f32 %v3623
    %v3688 = vcvt.s32.f32 %v3624
    %v3689 = vcvt.s32.f32 %v3625
    %v3690 = vcvt.s32.f32 %v3626
    %v3691 = vcvt.s32.f32 %v3627
    %v3692 = vcvt.s32.f32 %v3628
    %v3693 = vcvt.s32.f32 %v3629
    %v3694 = vcvt.s32.f32 %v3630
    %v3695 = vcvt.s32.f32 %v3631
    %v3696 = vcvt.s32.f32 %v3632
    %v3697 = vcvt.s32.f32 %v3633
    %v3698 = vcvt.s32.f32 %v3634
    %v3699 = vcvt.s32.f32 %v3635
    %v3700 = vcvt.s32.f32 %v3636
    %v3701 = vcvt.s32.f32 %v3637
    %v3702 = vcvt.s32.f32 %v3638
    %v3703 = vcvt.s32.f32 %v3639
    %v3704 = vcvt.s32.f32 %v3640
    %v3705 = vcvt.s32.f32 %v3641
    %v3706 = vlaneseq
    %v3707 = vshrl.u32 %v3706, 7
    %v3708 = vsub.s32 1, %v3707
    %v3709 = vrot.slane %v3252, %v3708
    %v3710 = vmul.f32 %v3642, %v3709
    %v3711 = vmul.f32 %v3643, %v3709
    %v3712 = vmul.f32 %v3644, %v3709
    %v3713 = vmul.f32 %v3645, %v3709
    %v3714 = vmul.f32 %v3646, %v3709
    %v3715 = vmul.f32 %v3647, %v3709
    %v3716 = vmul.f32 %v3648, %v3709
    %v3717 = vmul.f32 %v3649, %v3709
    %v3718 = vmul.f32 %v3650, %v3709
    %v3719 = vmul.f32 %v3651, %v3709
    %v3720 = vmul.f32 %v3652, %v3709
    %v3721 = vmul.f32 %v3653, %v3709
    %v3722 = vmul.f32 %v3654, %v3709
    %v3723 = vmul.f32 %v3655, %v3709
    %v3724 = vmul.f32 %v3656, %v3709
    %v3725 = vmul.f32 %v3657, %v3709
    %v3726 = vmul.f32 %v3658, %v3709
    %v3727 = vmul.f32 %v3659, %v3709
    %v3728 = vmul.f32 %v3660, %v3709
    %v3729 = vmul.f32 %v3661, %v3709
    %v3730 = vmul.f32 %v3662, %v3709
    %v3731 = vmul.f32 %v3663, %v3709
    %v3732 = vmul.f32 %v3664, %v3709
    %v3733 = vmul.f32 %v3665, %v3709
    %v3734 = vmul.f32 %v3666, %v3709
    %v3735 = vmul.f32 %v3667, %v3709
    %v3736 = vmul.f32 %v3668, %v3709
    %v3737 = vmul.f32 %v3669, %v3709
    %v3738 = vmul.f32 %v3670, %v3709
    %v3739 = vmul.f32 %v3671, %v3709
    %v3740 = vmul.f32 %v3672, %v3709
    %v3741 = vmul.f32 %v3673, %v3709
    %v3742 = vmul.f32 %v3674, %v3709
    %v3743 = vmul.f32 %v3675, %v3709
    %v3744 = vmul.f32 %v3676, %v3709
    %v3745 = vmul.f32 %v3677, %v3709
    %v3746 = vmul.f32 %v3678, %v3709
    %v3747 = vmul.f32 %v3679, %v3709
    %v3748 = vmul.f32 %v3680, %v3709
    %v3749 = vmul.f32 %v3681, %v3709
    %v3750 = vmul.f32 %v3682, %v3709
    %v3751 = vmul.f32 %v3683, %v3709
    %v3752 = vmul.f32 %v3684, %v3709
    %v3753 = vmul.f32 %v3685, %v3709
    %v3754 = vmul.f32 %v3686, %v3709
    %v3755 = vmul.f32 %v3687, %v3709
    %v3756 = vmul.f32 %v3688, %v3709
    %v3757 = vmul.f32 %v3689, %v3709
    %v3758 = vmul.f32 %v3690, %v3709
    %v3759 = vmul.f32 %v3691, %v3709
    %v3760 = vmul.f32 %v3692, %v3709
    %v3761 = vmul.f32 %v3693, %v3709
    %v3762 = vmul.f32 %v3694, %v3709
    %v3763 = vmul.f32 %v3695, %v3709
    %v3764 = vmul.f32 %v3696, %v3709
    %v3765 = vmul.f32 %v3697, %v3709
    %v3766 = vmul.f32 %v3698, %v3709
    %v3767 = vmul.f32 %v3699, %v3709
    %v3768 = vmul.f32 %v3700, %v3709
    %v3769 = vmul.f32 %v3701, %v3709
    %v3770 = vmul.f32 %v3702, %v3709
    %v3771 = vmul.f32 %v3703, %v3709
    %v3772 = vmul.f32 %v3704, %v3709
    %v3773 = vmul.f32 %v3705, %v3709
    %v3774 = vadd.f32 %v3450, %v3710
    %v3775 = vadd.f32 %v3451, %v3711
    %v3776 = vadd.f32 %v3452, %v3712
    %v3777 = vadd.f32 %v3453, %v3713
    %v3778 = vadd.f32 %v3454, %v3714
    %v3779 = vadd.f32 %v3455, %v3715
    %v3780 = vadd.f32 %v3456, %v3716
    %v3781 = vadd.f32 %v3457, %v3717
    %v3782 = vadd.f32 %v3458, %v3718
    %v3783 = vadd.f32 %v3459, %v3719
    %v3784 = vadd.f32 %v3460, %v3720
    %v3785 = vadd.f32 %v3461, %v3721
    %v3786 = vadd.f32 %v3462, %v3722
    %v3787 = vadd.f32 %v3463, %v3723
    %v3788 = vadd.f32 %v3464, %v3724
    %v3789 = vadd.f32 %v3465, %v3725
    %v3790 = vadd.f32 %v3466, %v3726
    %v3791 = vadd.f32 %v3467, %v3727
    %v3792 = vadd.f32 %v3468, %v3728
    %v3793 = vadd.f32 %v3469, %v3729
    %v3794 = vadd.f32 %v3470, %v3730
    %v3795 = vadd.f32 %v3471, %v3731
    %v3796 = vadd.f32 %v3472, %v3732
    %v3797 = vadd.f32 %v3473, %v3733
    %v3798 = vadd.f32 %v3474, %v3734
    %v3799 = vadd.f32 %v3475, %v3735
    %v3800 = vadd.f32 %v3476, %v3736
    %v3801 = vadd.f32 %v3477, %v3737
    %v3802 = vadd.f32 %v3478, %v3738
    %v3803 = vadd.f32 %v3479, %v3739
    %v3804 = vadd.f32 %v3480, %v3740
    %v3805 = vadd.f32 %v3481, %v3741
    %v3806 = vadd.f32 %v3482, %v3742
    %v3807 = vadd.f32 %v3483, %v3743
    %v3808 = vadd.f32 %v3484, %v3744
    %v3809 = vadd.f32 %v3485, %v3745
    %v3810 = vadd.f32 %v3486, %v3746
    %v3811 = vadd.f32 %v3487, %v3747
    %v3812 = vadd.f32 %v3488, %v3748
    %v3813 = vadd.f32 %v3489, %v3749
    %v3814 = vadd.f32 %v3490, %v3750
    %v3815 = vadd.f32 %v3491, %v3751
    %v3816 = vadd.f32 %v3492, %v3752
    %v3817 = vadd.f32 %v3493, %v3753
    %v3818 = vadd.f32 %v3494, %v3754
    %v3819 = vadd.f32 %v3495, %v3755
    %v3820 = vadd.f32 %v3496, %v3756
    %v3821 = vadd.f32 %v3497, %v3757
    %v3822 = vadd.f32 %v3498, %v3758
    %v3823 = vadd.f32 %v3499, %v3759
    %v3824 = vadd.f32 %v3500, %v3760
    %v3825 = vadd.f32 %v3501, %v3761
    %v3826 = vadd.f32 %v3502, %v3762
    %v3827 = vadd.f32 %v3503, %v3763
    %v3828 = vadd.f32 %v3504, %v3764
    %v3829 = vadd.f32 %v3505, %v3765
    %v3830 = vadd.f32 %v3506, %v3766
    %v3831 = vadd.f32 %v3507, %v3767
    %v3832 = vadd.f32 %v3508, %v3768
    %v3833 = vadd.f32 %v3509, %v3769
    %v3834 = vadd.f32 %v3510, %v3770
    %v3835 = vadd.f32 %v3511, %v3771
    %v3836 = vadd.f32 %v3512, %v3772
    %v3837 = vadd.f32 %v3513, %v3773
    %vm3838 = vcmp.eq.s32.totalorder %v2114, 2
    %vm3839 = vcmp.eq.s32.totalorder %v2129, 2
    %vm3840 = vcmp.eq.s32.totalorder %v2144, 2
    %vm3841 = vcmp.eq.s32.totalorder %v2159, 2
    %vm3842 = vcmp.eq.s32.totalorder %v2174, 2
    %vm3843 = vcmp.eq.s32.totalorder %v2189, 2
    %vm3844 = vcmp.eq.s32.totalorder %v2204, 2
    %vm3845 = vcmp.eq.s32.totalorder %v2219, 2
    %vm3846 = vcmp.eq.s32.totalorder %v2234, 2
    %vm3847 = vcmp.eq.s32.totalorder %v2249, 2
    %vm3848 = vcmp.eq.s32.totalorder %v2264, 2
    %vm3849 = vcmp.eq.s32.totalorder %v2279, 2
    %vm3850 = vcmp.eq.s32.totalorder %v2294, 2
    %vm3851 = vcmp.eq.s32.totalorder %v2309, 2
    %vm3852 = vcmp.eq.s32.totalorder %v2324, 2
    %vm3853 = vcmp.eq.s32.totalorder %v2339, 2
    %vm3854 = vcmp.eq.s32.totalorder %v2354, 2
    %vm3855 = vcmp.eq.s32.totalorder %v2369, 2
    %vm3856 = vcmp.eq.s32.totalorder %v2384, 2
    %vm3857 = vcmp.eq.s32.totalorder %v2399, 2
    %vm3858 = vcmp.eq.s32.totalorder %v2414, 2
    %vm3859 = vcmp.eq.s32.totalorder %v2429, 2
    %vm3860 = vcmp.eq.s32.totalorder %v2444, 2
    %vm3861 = vcmp.eq.s32.totalorder %v2459, 2
    %vm3862 = vcmp.eq.s32.totalorder %v2474, 2
    %vm3863 = vcmp.eq.s32.totalorder %v2489, 2
    %vm3864 = vcmp.eq.s32.totalorder %v2504, 2
    %vm3865 = vcmp.eq.s32.totalorder %v2519, 2
    %vm3866 = vcmp.eq.s32.totalorder %v2534, 2
    %vm3867 = vcmp.eq.s32.totalorder %v2549, 2
    %vm3868 = vcmp.eq.s32.totalorder %v2564, 2
    %vm3869 = vcmp.eq.s32.totalorder %v2579, 2
    %vm3870 = vcmp.eq.s32.totalorder %v2594, 2
    %vm3871 = vcmp.eq.s32.totalorder %v2609, 2
    %vm3872 = vcmp.eq.s32.totalorder %v2624, 2
    %vm3873 = vcmp.eq.s32.totalorder %v2639, 2
    %vm3874 = vcmp.eq.s32.totalorder %v2654, 2
    %vm3875 = vcmp.eq.s32.totalorder %v2669, 2
    %vm3876 = vcmp.eq.s32.totalorder %v2684, 2
    %vm3877 = vcmp.eq.s32.totalorder %v2699, 2
    %vm3878 = vcmp.eq.s32.totalorder %v2714, 2
    %vm3879 = vcmp.eq.s32.totalorder %v2729, 2
    %vm3880 = vcmp.eq.s32.totalorder %v2744, 2
    %vm3881 = vcmp.eq.s32.totalorder %v2759, 2
    %vm3882 = vcmp.eq.s32.totalorder %v2774, 2
    %vm3883 = vcmp.eq.s32.totalorder %v2789, 2
    %vm3884 = vcmp.eq.s32.totalorder %v2804, 2
    %vm3885 = vcmp.eq.s32.totalorder %v2819, 2
    %vm3886 = vcmp.eq.s32.totalorder %v2834, 2
    %vm3887 = vcmp.eq.s32.totalorder %v2849, 2
    %vm3888 = vcmp.eq.s32.totalorder %v2864, 2
    %vm3889 = vcmp.eq.s32.totalorder %v2879, 2
    %vm3890 = vcmp.eq.s32.totalorder %v2894, 2
    %vm3891 = vcmp.eq.s32.totalorder %v2909, 2
    %vm3892 = vcmp.eq.s32.totalorder %v2924, 2
    %vm3893 = vcmp.eq.s32.totalorder %v2939, 2
    %vm3894 = vcmp.eq.s32.totalorder %v2954, 2
    %vm3895 = vcmp.eq.s32.totalorder %v2969, 2
    %vm3896 = vcmp.eq.s32.totalorder %v2984, 2
    %vm3897 = vcmp.eq.s32.totalorder %v2999, 2
    %vm3898 = vcmp.eq.s32.totalorder %v3014, 2
    %vm3899 = vcmp.eq.s32.totalorder %v3029, 2
    %vm3900 = vcmp.eq.s32.totalorder %v3044, 2
    %vm3901 = vcmp.eq.s32.totalorder %v3059, 2
    %v3902 = vsel %vm3838, 1, 0
    %v3903 = vsel %vm3839, 1, 0
    %v3904 = vsel %vm3840, 1, 0
    %v3905 = vsel %vm3841, 1, 0
    %v3906 = vsel %vm3842, 1, 0
    %v3907 = vsel %vm3843, 1, 0
    %v3908 = vsel %vm3844, 1, 0
    %v3909 = vsel %vm3845, 1, 0
    %v3910 = vsel %vm3846, 1, 0
    %v3911 = vsel %vm3847, 1, 0
    %v3912 = vsel %vm3848, 1, 0
    %v3913 = vsel %vm3849, 1, 0
    %v3914 = vsel %vm3850, 1, 0
    %v3915 = vsel %vm3851, 1, 0
    %v3916 = vsel %vm3852, 1, 0
    %v3917 = vsel %vm3853, 1, 0
    %v3918 = vsel %vm3854, 1, 0
    %v3919 = vsel %vm3855, 1, 0
    %v3920 = vsel %vm3856, 1, 0
    %v3921 = vsel %vm3857, 1, 0
    %v3922 = vsel %vm3858, 1, 0
    %v3923 = vsel %vm3859, 1, 0
    %v3924 = vsel %vm3860, 1, 0
    %v3925 = vsel %vm3861, 1, 0
    %v3926 = vsel %vm3862, 1, 0
    %v3927 = vsel %vm3863, 1, 0
    %v3928 = vsel %vm3864, 1, 0
    %v3929 = vsel %vm3865, 1, 0
    %v3930 = vsel %vm3866, 1, 0
    %v3931 = vsel %vm3867, 1, 0
    %v3932 = vsel %vm3868, 1, 0
    %v3933 = vsel %vm3869, 1, 0
    %v3934 = vsel %vm3870, 1, 0
    %v3935 = vsel %vm3871, 1, 0
    %v3936 = vsel %vm3872, 1, 0
    %v3937 = vsel %vm3873, 1, 0
    %v3938 = vsel %vm3874, 1, 0
    %v3939 = vsel %vm3875, 1, 0
    %v3940 = vsel %vm3876, 1, 0
    %v3941 = vsel %vm3877, 1, 0
    %v3942 = vsel %vm3878, 1, 0
    %v3943 = vsel %vm3879, 1, 0
    %v3944 = vsel %vm3880, 1, 0
    %v3945 = vsel %vm3881, 1, 0
    %v3946 = vsel %vm3882, 1, 0
    %v3947 = vsel %vm3883, 1, 0
    %v3948 = vsel %vm3884, 1, 0
    %v3949 = vsel %vm3885, 1, 0
    %v3950 = vsel %vm3886, 1, 0
    %v3951 = vsel %vm3887, 1, 0
    %v3952 = vsel %vm3888, 1, 0
    %v3953 = vsel %vm3889, 1, 0
    %v3954 = vsel %vm3890, 1, 0
    %v3955 = vsel %vm3891, 1, 0
    %v3956 = vsel %vm3892, 1, 0
    %v3957 = vsel %vm3893, 1, 0
    %v3958 = vsel %vm3894, 1, 0
    %v3959 = vsel %vm3895, 1, 0
    %v3960 = vsel %vm3896, 1, 0
    %v3961 = vsel %vm3897, 1, 0
    %v3962 = vsel %vm3898, 1, 0
    %v3963 = vsel %vm3899, 1, 0
    %v3964 = vsel %vm3900, 1, 0
    %v3965 = vsel %vm3901, 1, 0
    %v3966 = vcvt.s32.f32 %v3902
    %v3967 = vcvt.s32.f32 %v3903
    %v3968 = vcvt.s32.f32 %v3904
    %v3969 = vcvt.s32.f32 %v3905
    %v3970 = vcvt.s32.f32 %v3906
    %v3971 = vcvt.s32.f32 %v3907
    %v3972 = vcvt.s32.f32 %v3908
    %v3973 = vcvt.s32.f32 %v3909
    %v3974 = vcvt.s32.f32 %v3910
    %v3975 = vcvt.s32.f32 %v3911
    %v3976 = vcvt.s32.f32 %v3912
    %v3977 = vcvt.s32.f32 %v3913
    %v3978 = vcvt.s32.f32 %v3914
    %v3979 = vcvt.s32.f32 %v3915
    %v3980 = vcvt.s32.f32 %v3916
    %v3981 = vcvt.s32.f32 %v3917
    %v3982 = vcvt.s32.f32 %v3918
    %v3983 = vcvt.s32.f32 %v3919
    %v3984 = vcvt.s32.f32 %v3920
    %v3985 = vcvt.s32.f32 %v3921
    %v3986 = vcvt.s32.f32 %v3922
    %v3987 = vcvt.s32.f32 %v3923
    %v3988 = vcvt.s32.f32 %v3924
    %v3989 = vcvt.s32.f32 %v3925
    %v3990 = vcvt.s32.f32 %v3926
    %v3991 = vcvt.s32.f32 %v3927
    %v3992 = vcvt.s32.f32 %v3928
    %v3993 = vcvt.s32.f32 %v3929
    %v3994 = vcvt.s32.f32 %v3930
    %v3995 = vcvt.s32.f32 %v3931
    %v3996 = vcvt.s32.f32 %v3932
    %v3997 = vcvt.s32.f32 %v3933
    %v3998 = vcvt.s32.f32 %v3934
    %v3999 = vcvt.s32.f32 %v3935
    %v4000 = vcvt.s32.f32 %v3936
    %v4001 = vcvt.s32.f32 %v3937
    %v4002 = vcvt.s32.f32 %v3938
    %v4003 = vcvt.s32.f32 %v3939
    %v4004 = vcvt.s32.f32 %v3940
    %v4005 = vcvt.s32.f32 %v3941
    %v4006 = vcvt.s32.f32 %v3942
    %v4007 = vcvt.s32.f32 %v3943
    %v4008 = vcvt.s32.f32 %v3944
    %v4009 = vcvt.s32.f32 %v3945
    %v4010 = vcvt.s32.f32 %v3946
    %v4011 = vcvt.s32.f32 %v3947
    %v4012 = vcvt.s32.f32 %v3948
    %v4013 = vcvt.s32.f32 %v3949
    %v4014 = vcvt.s32.f32 %v3950
    %v4015 = vcvt.s32.f32 %v3951
    %v4016 = vcvt.s32.f32 %v3952
    %v4017 = vcvt.s32.f32 %v3953
    %v4018 = vcvt.s32.f32 %v3954
    %v4019 = vcvt.s32.f32 %v3955
    %v4020 = vcvt.s32.f32 %v3956
    %v4021 = vcvt.s32.f32 %v3957
    %v4022 = vcvt.s32.f32 %v3958
    %v4023 = vcvt.s32.f32 %v3959
    %v4024 = vcvt.s32.f32 %v3960
    %v4025 = vcvt.s32.f32 %v3961
    %v4026 = vcvt.s32.f32 %v3962
    %v4027 = vcvt.s32.f32 %v3963
    %v4028 = vcvt.s32.f32 %v3964
    %v4029 = vcvt.s32.f32 %v3965
    %v4030 = vlaneseq
    %v4031 = vshrl.u32 %v4030, 7
    %v4032 = vsub.s32 2, %v4031
    %v4033 = vrot.slane %v3252, %v4032
    %v4034 = vmul.f32 %v3966, %v4033
    %v4035 = vmul.f32 %v3967, %v4033
    %v4036 = vmul.f32 %v3968, %v4033
    %v4037 = vmul.f32 %v3969, %v4033
    %v4038 = vmul.f32 %v3970, %v4033
    %v4039 = vmul.f32 %v3971, %v4033
    %v4040 = vmul.f32 %v3972, %v4033
    %v4041 = vmul.f32 %v3973, %v4033
    %v4042 = vmul.f32 %v3974, %v4033
    %v4043 = vmul.f32 %v3975, %v4033
    %v4044 = vmul.f32 %v3976, %v4033
    %v4045 = vmul.f32 %v3977, %v4033
    %v4046 = vmul.f32 %v3978, %v4033
    %v4047 = vmul.f32 %v3979, %v4033
    %v4048 = vmul.f32 %v3980, %v4033
    %v4049 = vmul.f32 %v3981, %v4033
    %v4050 = vmul.f32 %v3982, %v4033
    %v4051 = vmul.f32 %v3983, %v4033
    %v4052 = vmul.f32 %v3984, %v4033
    %v4053 = vmul.f32 %v3985, %v4033
    %v4054 = vmul.f32 %v3986, %v4033
    %v4055 = vmul.f32 %v3987, %v4033
    %v4056 = vmul.f32 %v3988, %v4033
    %v4057 = vmul.f32 %v3989, %v4033
    %v4058 = vmul.f32 %v3990, %v4033
    %v4059 = vmul.f32 %v3991, %v4033
    %v4060 = vmul.f32 %v3992, %v4033
    %v4061 = vmul.f32 %v3993, %v4033
    %v4062 = vmul.f32 %v3994, %v4033
    %v4063 = vmul.f32 %v3995, %v4033
    %v4064 = vmul.f32 %v3996, %v4033
    %v4065 = vmul.f32 %v3997, %v4033
    %v4066 = vmul.f32 %v3998, %v4033
    %v4067 = vmul.f32 %v3999, %v4033
    %v4068 = vmul.f32 %v4000, %v4033
    %v4069 = vmul.f32 %v4001, %v4033
    %v4070 = vmul.f32 %v4002, %v4033
    %v4071 = vmul.f32 %v4003, %v4033
    %v4072 = vmul.f32 %v4004, %v4033
    %v4073 = vmul.f32 %v4005, %v4033
    %v4074 = vmul.f32 %v4006, %v4033
    %v4075 = vmul.f32 %v4007, %v4033
    %v4076 = vmul.f32 %v4008, %v4033
    %v4077 = vmul.f32 %v4009, %v4033
    %v4078 = vmul.f32 %v4010, %v4033
    %v4079 = vmul.f32 %v4011, %v4033
    %v4080 = vmul.f32 %v4012, %v4033
    %v4081 = vmul.f32 %v4013, %v4033
    %v4082 = vmul.f32 %v4014, %v4033
    %v4083 = vmul.f32 %v4015, %v4033
    %v4084 = vmul.f32 %v4016, %v4033
    %v4085 = vmul.f32 %v4017, %v4033
    %v4086 = vmul.f32 %v4018, %v4033
    %v4087 = vmul.f32 %v4019, %v4033
    %v4088 = vmul.f32 %v4020, %v4033
    %v4089 = vmul.f32 %v4021, %v4033
    %v4090 = vmul.f32 %v4022, %v4033
    %v4091 = vmul.f32 %v4023, %v4033
    %v4092 = vmul.f32 %v4024, %v4033
    %v4093 = vmul.f32 %v4025, %v4033
    %v4094 = vmul.f32 %v4026, %v4033
    %v4095 = vmul.f32 %v4027, %v4033
    %v4096 = vmul.f32 %v4028, %v4033
    %v4097 = vmul.f32 %v4029, %v4033
    %v4098 = vadd.f32 %v3774, %v4034
    %v4099 = vadd.f32 %v3775, %v4035
    %v4100 = vadd.f32 %v3776, %v4036
    %v4101 = vadd.f32 %v3777, %v4037
    %v4102 = vadd.f32 %v3778, %v4038
    %v4103 = vadd.f32 %v3779, %v4039
    %v4104 = vadd.f32 %v3780, %v4040
    %v4105 = vadd.f32 %v3781, %v4041
    %v4106 = vadd.f32 %v3782, %v4042
    %v4107 = vadd.f32 %v3783, %v4043
    %v4108 = vadd.f32 %v3784, %v4044
    %v4109 = vadd.f32 %v3785, %v4045
    %v4110 = vadd.f32 %v3786, %v4046
    %v4111 = vadd.f32 %v3787, %v4047
    %v4112 = vadd.f32 %v3788, %v4048
    %v4113 = vadd.f32 %v3789, %v4049
    %v4114 = vadd.f32 %v3790, %v4050
    %v4115 = vadd.f32 %v3791, %v4051
    %v4116 = vadd.f32 %v3792, %v4052
    %v4117 = vadd.f32 %v3793, %v4053
    %v4118 = vadd.f32 %v3794, %v4054
    %v4119 = vadd.f32 %v3795, %v4055
    %v4120 = vadd.f32 %v3796, %v4056
    %v4121 = vadd.f32 %v3797, %v4057
    %v4122 = vadd.f32 %v3798, %v4058
    %v4123 = vadd.f32 %v3799, %v4059
    %v4124 = vadd.f32 %v3800, %v4060
    %v4125 = vadd.f32 %v3801, %v4061
    %v4126 = vadd.f32 %v3802, %v4062
    %v4127 = vadd.f32 %v3803, %v4063
    %v4128 = vadd.f32 %v3804, %v4064
    %v4129 = vadd.f32 %v3805, %v4065
    %v4130 = vadd.f32 %v3806, %v4066
    %v4131 = vadd.f32 %v3807, %v4067
    %v4132 = vadd.f32 %v3808, %v4068
    %v4133 = vadd.f32 %v3809, %v4069
    %v4134 = vadd.f32 %v3810, %v4070
    %v4135 = vadd.f32 %v3811, %v4071
    %v4136 = vadd.f32 %v3812, %v4072
    %v4137 = vadd.f32 %v3813, %v4073
    %v4138 = vadd.f32 %v3814, %v4074
    %v4139 = vadd.f32 %v3815, %v4075
    %v4140 = vadd.f32 %v3816, %v4076
    %v4141 = vadd.f32 %v3817, %v4077
    %v4142 = vadd.f32 %v3818, %v4078
    %v4143 = vadd.f32 %v3819, %v4079
    %v4144 = vadd.f32 %v3820, %v4080
    %v4145 = vadd.f32 %v3821, %v4081
    %v4146 = vadd.f32 %v3822, %v4082
    %v4147 = vadd.f32 %v3823, %v4083
    %v4148 = vadd.f32 %v3824, %v4084
    %v4149 = vadd.f32 %v3825, %v4085
    %v4150 = vadd.f32 %v3826, %v4086
    %v4151 = vadd.f32 %v3827, %v4087
    %v4152 = vadd.f32 %v3828, %v4088
    %v4153 = vadd.f32 %v3829, %v4089
    %v4154 = vadd.f32 %v3830, %v4090
    %v4155 = vadd.f32 %v3831, %v4091
    %v4156 = vadd.f32 %v3832, %v4092
    %v4157 = vadd.f32 %v3833, %v4093
    %v4158 = vadd.f32 %v3834, %v4094
    %v4159 = vadd.f32 %v3835, %v4095
    %v4160 = vadd.f32 %v3836, %v4096
    %v4161 = vadd.f32 %v3837, %v4097
    %vm4162 = vcmp.eq.s32.totalorder %v2114, 3
    %vm4163 = vcmp.eq.s32.totalorder %v2129, 3
    %vm4164 = vcmp.eq.s32.totalorder %v2144, 3
    %vm4165 = vcmp.eq.s32.totalorder %v2159, 3
    %vm4166 = vcmp.eq.s32.totalorder %v2174, 3
    %vm4167 = vcmp.eq.s32.totalorder %v2189, 3
    %vm4168 = vcmp.eq.s32.totalorder %v2204, 3
    %vm4169 = vcmp.eq.s32.totalorder %v2219, 3
    %vm4170 = vcmp.eq.s32.totalorder %v2234, 3
    %vm4171 = vcmp.eq.s32.totalorder %v2249, 3
    %vm4172 = vcmp.eq.s32.totalorder %v2264, 3
    %vm4173 = vcmp.eq.s32.totalorder %v2279, 3
    %vm4174 = vcmp.eq.s32.totalorder %v2294, 3
    %vm4175 = vcmp.eq.s32.totalorder %v2309, 3
    %vm4176 = vcmp.eq.s32.totalorder %v2324, 3
    %vm4177 = vcmp.eq.s32.totalorder %v2339, 3
    %vm4178 = vcmp.eq.s32.totalorder %v2354, 3
    %vm4179 = vcmp.eq.s32.totalorder %v2369, 3
    %vm4180 = vcmp.eq.s32.totalorder %v2384, 3
    %vm4181 = vcmp.eq.s32.totalorder %v2399, 3
    %vm4182 = vcmp.eq.s32.totalorder %v2414, 3
    %vm4183 = vcmp.eq.s32.totalorder %v2429, 3
    %vm4184 = vcmp.eq.s32.totalorder %v2444, 3
    %vm4185 = vcmp.eq.s32.totalorder %v2459, 3
    %vm4186 = vcmp.eq.s32.totalorder %v2474, 3
    %vm4187 = vcmp.eq.s32.totalorder %v2489, 3
    %vm4188 = vcmp.eq.s32.totalorder %v2504, 3
    %vm4189 = vcmp.eq.s32.totalorder %v2519, 3
    %vm4190 = vcmp.eq.s32.totalorder %v2534, 3
    %vm4191 = vcmp.eq.s32.totalorder %v2549, 3
    %vm4192 = vcmp.eq.s32.totalorder %v2564, 3
    %vm4193 = vcmp.eq.s32.totalorder %v2579, 3
    %vm4194 = vcmp.eq.s32.totalorder %v2594, 3
    %vm4195 = vcmp.eq.s32.totalorder %v2609, 3
    %vm4196 = vcmp.eq.s32.totalorder %v2624, 3
    %vm4197 = vcmp.eq.s32.totalorder %v2639, 3
    %vm4198 = vcmp.eq.s32.totalorder %v2654, 3
    %vm4199 = vcmp.eq.s32.totalorder %v2669, 3
    %vm4200 = vcmp.eq.s32.totalorder %v2684, 3
    %vm4201 = vcmp.eq.s32.totalorder %v2699, 3
    %vm4202 = vcmp.eq.s32.totalorder %v2714, 3
    %vm4203 = vcmp.eq.s32.totalorder %v2729, 3
    %vm4204 = vcmp.eq.s32.totalorder %v2744, 3
    %vm4205 = vcmp.eq.s32.totalorder %v2759, 3
    %vm4206 = vcmp.eq.s32.totalorder %v2774, 3
    %vm4207 = vcmp.eq.s32.totalorder %v2789, 3
    %vm4208 = vcmp.eq.s32.totalorder %v2804, 3
    %vm4209 = vcmp.eq.s32.totalorder %v2819, 3
    %vm4210 = vcmp.eq.s32.totalorder %v2834, 3
    %vm4211 = vcmp.eq.s32.totalorder %v2849, 3
    %vm4212 = vcmp.eq.s32.totalorder %v2864, 3
    %vm4213 = vcmp.eq.s32.totalorder %v2879, 3
    %vm4214 = vcmp.eq.s32.totalorder %v2894, 3
    %vm4215 = vcmp.eq.s32.totalorder %v2909, 3
    %vm4216 = vcmp.eq.s32.totalorder %v2924, 3
    %vm4217 = vcmp.eq.s32.totalorder %v2939, 3
    %vm4218 = vcmp.eq.s32.totalorder %v2954, 3
    %vm4219 = vcmp.eq.s32.totalorder %v2969, 3
    %vm4220 = vcmp.eq.s32.totalorder %v2984, 3
    %vm4221 = vcmp.eq.s32.totalorder %v2999, 3
    %vm4222 = vcmp.eq.s32.totalorder %v3014, 3
    %vm4223 = vcmp.eq.s32.totalorder %v3029, 3
    %vm4224 = vcmp.eq.s32.totalorder %v3044, 3
    %vm4225 = vcmp.eq.s32.totalorder %v3059, 3
    %v4226 = vsel %vm4162, 1, 0
    %v4227 = vsel %vm4163, 1, 0
    %v4228 = vsel %vm4164, 1, 0
    %v4229 = vsel %vm4165, 1, 0
    %v4230 = vsel %vm4166, 1, 0
    %v4231 = vsel %vm4167, 1, 0
    %v4232 = vsel %vm4168, 1, 0
    %v4233 = vsel %vm4169, 1, 0
    %v4234 = vsel %vm4170, 1, 0
    %v4235 = vsel %vm4171, 1, 0
    %v4236 = vsel %vm4172, 1, 0
    %v4237 = vsel %vm4173, 1, 0
    %v4238 = vsel %vm4174, 1, 0
    %v4239 = vsel %vm4175, 1, 0
    %v4240 = vsel %vm4176, 1, 0
    %v4241 = vsel %vm4177, 1, 0
    %v4242 = vsel %vm4178, 1, 0
    %v4243 = vsel %vm4179, 1, 0
    %v4244 = vsel %vm4180, 1, 0
    %v4245 = vsel %vm4181, 1, 0
    %v4246 = vsel %vm4182, 1, 0
    %v4247 = vsel %vm4183, 1, 0
    %v4248 = vsel %vm4184, 1, 0
    %v4249 = vsel %vm4185, 1, 0
    %v4250 = vsel %vm4186, 1, 0
    %v4251 = vsel %vm4187, 1, 0
    %v4252 = vsel %vm4188, 1, 0
    %v4253 = vsel %vm4189, 1, 0
    %v4254 = vsel %vm4190, 1, 0
    %v4255 = vsel %vm4191, 1, 0
    %v4256 = vsel %vm4192, 1, 0
    %v4257 = vsel %vm4193, 1, 0
    %v4258 = vsel %vm4194, 1, 0
    %v4259 = vsel %vm4195, 1, 0
    %v4260 = vsel %vm4196, 1, 0
    %v4261 = vsel %vm4197, 1, 0
    %v4262 = vsel %vm4198, 1, 0
    %v4263 = vsel %vm4199, 1, 0
    %v4264 = vsel %vm4200, 1, 0
    %v4265 = vsel %vm4201, 1, 0
    %v4266 = vsel %vm4202, 1, 0
    %v4267 = vsel %vm4203, 1, 0
    %v4268 = vsel %vm4204, 1, 0
    %v4269 = vsel %vm4205, 1, 0
    %v4270 = vsel %vm4206, 1, 0
    %v4271 = vsel %vm4207, 1, 0
    %v4272 = vsel %vm4208, 1, 0
    %v4273 = vsel %vm4209, 1, 0
    %v4274 = vsel %vm4210, 1, 0
    %v4275 = vsel %vm4211, 1, 0
    %v4276 = vsel %vm4212, 1, 0
    %v4277 = vsel %vm4213, 1, 0
    %v4278 = vsel %vm4214, 1, 0
    %v4279 = vsel %vm4215, 1, 0
    %v4280 = vsel %vm4216, 1, 0
    %v4281 = vsel %vm4217, 1, 0
    %v4282 = vsel %vm4218, 1, 0
    %v4283 = vsel %vm4219, 1, 0
    %v4284 = vsel %vm4220, 1, 0
    %v4285 = vsel %vm4221, 1, 0
    %v4286 = vsel %vm4222, 1, 0
    %v4287 = vsel %vm4223, 1, 0
    %v4288 = vsel %vm4224, 1, 0
    %v4289 = vsel %vm4225, 1, 0
    %v4290 = vcvt.s32.f32 %v4226
    %v4291 = vcvt.s32.f32 %v4227
    %v4292 = vcvt.s32.f32 %v4228
    %v4293 = vcvt.s32.f32 %v4229
    %v4294 = vcvt.s32.f32 %v4230
    %v4295 = vcvt.s32.f32 %v4231
    %v4296 = vcvt.s32.f32 %v4232
    %v4297 = vcvt.s32.f32 %v4233
    %v4298 = vcvt.s32.f32 %v4234
    %v4299 = vcvt.s32.f32 %v4235
    %v4300 = vcvt.s32.f32 %v4236
    %v4301 = vcvt.s32.f32 %v4237
    %v4302 = vcvt.s32.f32 %v4238
    %v4303 = vcvt.s32.f32 %v4239
    %v4304 = vcvt.s32.f32 %v4240
    %v4305 = vcvt.s32.f32 %v4241
    %v4306 = vcvt.s32.f32 %v4242
    %v4307 = vcvt.s32.f32 %v4243
    %v4308 = vcvt.s32.f32 %v4244
    %v4309 = vcvt.s32.f32 %v4245
    %v4310 = vcvt.s32.f32 %v4246
    %v4311 = vcvt.s32.f32 %v4247
    %v4312 = vcvt.s32.f32 %v4248
    %v4313 = vcvt.s32.f32 %v4249
    %v4314 = vcvt.s32.f32 %v4250
    %v4315 = vcvt.s32.f32 %v4251
    %v4316 = vcvt.s32.f32 %v4252
    %v4317 = vcvt.s32.f32 %v4253
    %v4318 = vcvt.s32.f32 %v4254
    %v4319 = vcvt.s32.f32 %v4255
    %v4320 = vcvt.s32.f32 %v4256
    %v4321 = vcvt.s32.f32 %v4257
    %v4322 = vcvt.s32.f32 %v4258
    %v4323 = vcvt.s32.f32 %v4259
    %v4324 = vcvt.s32.f32 %v4260
    %v4325 = vcvt.s32.f32 %v4261
    %v4326 = vcvt.s32.f32 %v4262
    %v4327 = vcvt.s32.f32 %v4263
    %v4328 = vcvt.s32.f32 %v4264
    %v4329 = vcvt.s32.f32 %v4265
    %v4330 = vcvt.s32.f32 %v4266
    %v4331 = vcvt.s32.f32 %v4267
    %v4332 = vcvt.s32.f32 %v4268
    %v4333 = vcvt.s32.f32 %v4269
    %v4334 = vcvt.s32.f32 %v4270
    %v4335 = vcvt.s32.f32 %v4271
    %v4336 = vcvt.s32.f32 %v4272
    %v4337 = vcvt.s32.f32 %v4273
    %v4338 = vcvt.s32.f32 %v4274
    %v4339 = vcvt.s32.f32 %v4275
    %v4340 = vcvt.s32.f32 %v4276
    %v4341 = vcvt.s32.f32 %v4277
    %v4342 = vcvt.s32.f32 %v4278
    %v4343 = vcvt.s32.f32 %v4279
    %v4344 = vcvt.s32.f32 %v4280
    %v4345 = vcvt.s32.f32 %v4281
    %v4346 = vcvt.s32.f32 %v4282
    %v4347 = vcvt.s32.f32 %v4283
    %v4348 = vcvt.s32.f32 %v4284
    %v4349 = vcvt.s32.f32 %v4285
    %v4350 = vcvt.s32.f32 %v4286
    %v4351 = vcvt.s32.f32 %v4287
    %v4352 = vcvt.s32.f32 %v4288
    %v4353 = vcvt.s32.f32 %v4289
    %v4354 = vlaneseq
    %v4355 = vshrl.u32 %v4354, 7
    %v4356 = vsub.s32 3, %v4355
    %v4357 = vrot.slane %v3252, %v4356
    %v4358 = vmul.f32 %v4290, %v4357
    %v4359 = vmul.f32 %v4291, %v4357
    %v4360 = vmul.f32 %v4292, %v4357
    %v4361 = vmul.f32 %v4293, %v4357
    %v4362 = vmul.f32 %v4294, %v4357
    %v4363 = vmul.f32 %v4295, %v4357
    %v4364 = vmul.f32 %v4296, %v4357
    %v4365 = vmul.f32 %v4297, %v4357
    %v4366 = vmul.f32 %v4298, %v4357
    %v4367 = vmul.f32 %v4299, %v4357
    %v4368 = vmul.f32 %v4300, %v4357
    %v4369 = vmul.f32 %v4301, %v4357
    %v4370 = vmul.f32 %v4302, %v4357
    %v4371 = vmul.f32 %v4303, %v4357
    %v4372 = vmul.f32 %v4304, %v4357
    %v4373 = vmul.f32 %v4305, %v4357
    %v4374 = vmul.f32 %v4306, %v4357
    %v4375 = vmul.f32 %v4307, %v4357
    %v4376 = vmul.f32 %v4308, %v4357
    %v4377 = vmul.f32 %v4309, %v4357
    %v4378 = vmul.f32 %v4310, %v4357
    %v4379 = vmul.f32 %v4311, %v4357
    %v4380 = vmul.f32 %v4312, %v4357
    %v4381 = vmul.f32 %v4313, %v4357
    %v4382 = vmul.f32 %v4314, %v4357
    %v4383 = vmul.f32 %v4315, %v4357
    %v4384 = vmul.f32 %v4316, %v4357
    %v4385 = vmul.f32 %v4317, %v4357
    %v4386 = vmul.f32 %v4318, %v4357
    %v4387 = vmul.f32 %v4319, %v4357
    %v4388 = vmul.f32 %v4320, %v4357
    %v4389 = vmul.f32 %v4321, %v4357
    %v4390 = vmul.f32 %v4322, %v4357
    %v4391 = vmul.f32 %v4323, %v4357
    %v4392 = vmul.f32 %v4324, %v4357
    %v4393 = vmul.f32 %v4325, %v4357
    %v4394 = vmul.f32 %v4326, %v4357
    %v4395 = vmul.f32 %v4327, %v4357
    %v4396 = vmul.f32 %v4328, %v4357
    %v4397 = vmul.f32 %v4329, %v4357
    %v4398 = vmul.f32 %v4330, %v4357
    %v4399 = vmul.f32 %v4331, %v4357
    %v4400 = vmul.f32 %v4332, %v4357
    %v4401 = vmul.f32 %v4333, %v4357
    %v4402 = vmul.f32 %v4334, %v4357
    %v4403 = vmul.f32 %v4335, %v4357
    %v4404 = vmul.f32 %v4336, %v4357
    %v4405 = vmul.f32 %v4337, %v4357
    %v4406 = vmul.f32 %v4338, %v4357
    %v4407 = vmul.f32 %v4339, %v4357
    %v4408 = vmul.f32 %v4340, %v4357
    %v4409 = vmul.f32 %v4341, %v4357
    %v4410 = vmul.f32 %v4342, %v4357
    %v4411 = vmul.f32 %v4343, %v4357
    %v4412 = vmul.f32 %v4344, %v4357
    %v4413 = vmul.f32 %v4345, %v4357
    %v4414 = vmul.f32 %v4346, %v4357
    %v4415 = vmul.f32 %v4347, %v4357
    %v4416 = vmul.f32 %v4348, %v4357
    %v4417 = vmul.f32 %v4349, %v4357
    %v4418 = vmul.f32 %v4350, %v4357
    %v4419 = vmul.f32 %v4351, %v4357
    %v4420 = vmul.f32 %v4352, %v4357
    %v4421 = vmul.f32 %v4353, %v4357
    %v4422 = vadd.f32 %v4098, %v4358
    %v4423 = vadd.f32 %v4099, %v4359
    %v4424 = vadd.f32 %v4100, %v4360
    %v4425 = vadd.f32 %v4101, %v4361
    %v4426 = vadd.f32 %v4102, %v4362
    %v4427 = vadd.f32 %v4103, %v4363
    %v4428 = vadd.f32 %v4104, %v4364
    %v4429 = vadd.f32 %v4105, %v4365
    %v4430 = vadd.f32 %v4106, %v4366
    %v4431 = vadd.f32 %v4107, %v4367
    %v4432 = vadd.f32 %v4108, %v4368
    %v4433 = vadd.f32 %v4109, %v4369
    %v4434 = vadd.f32 %v4110, %v4370
    %v4435 = vadd.f32 %v4111, %v4371
    %v4436 = vadd.f32 %v4112, %v4372
    %v4437 = vadd.f32 %v4113, %v4373
    %v4438 = vadd.f32 %v4114, %v4374
    %v4439 = vadd.f32 %v4115, %v4375
    %v4440 = vadd.f32 %v4116, %v4376
    %v4441 = vadd.f32 %v4117, %v4377
    %v4442 = vadd.f32 %v4118, %v4378
    %v4443 = vadd.f32 %v4119, %v4379
    %v4444 = vadd.f32 %v4120, %v4380
    %v4445 = vadd.f32 %v4121, %v4381
    %v4446 = vadd.f32 %v4122, %v4382
    %v4447 = vadd.f32 %v4123, %v4383
    %v4448 = vadd.f32 %v4124, %v4384
    %v4449 = vadd.f32 %v4125, %v4385
    %v4450 = vadd.f32 %v4126, %v4386
    %v4451 = vadd.f32 %v4127, %v4387
    %v4452 = vadd.f32 %v4128, %v4388
    %v4453 = vadd.f32 %v4129, %v4389
    %v4454 = vadd.f32 %v4130, %v4390
    %v4455 = vadd.f32 %v4131, %v4391
    %v4456 = vadd.f32 %v4132, %v4392
    %v4457 = vadd.f32 %v4133, %v4393
    %v4458 = vadd.f32 %v4134, %v4394
    %v4459 = vadd.f32 %v4135, %v4395
    %v4460 = vadd.f32 %v4136, %v4396
    %v4461 = vadd.f32 %v4137, %v4397
    %v4462 = vadd.f32 %v4138, %v4398
    %v4463 = vadd.f32 %v4139, %v4399
    %v4464 = vadd.f32 %v4140, %v4400
    %v4465 = vadd.f32 %v4141, %v4401
    %v4466 = vadd.f32 %v4142, %v4402
    %v4467 = vadd.f32 %v4143, %v4403
    %v4468 = vadd.f32 %v4144, %v4404
    %v4469 = vadd.f32 %v4145, %v4405
    %v4470 = vadd.f32 %v4146, %v4406
    %v4471 = vadd.f32 %v4147, %v4407
    %v4472 = vadd.f32 %v4148, %v4408
    %v4473 = vadd.f32 %v4149, %v4409
    %v4474 = vadd.f32 %v4150, %v4410
    %v4475 = vadd.f32 %v4151, %v4411
    %v4476 = vadd.f32 %v4152, %v4412
    %v4477 = vadd.f32 %v4153, %v4413
    %v4478 = vadd.f32 %v4154, %v4414
    %v4479 = vadd.f32 %v4155, %v4415
    %v4480 = vadd.f32 %v4156, %v4416
    %v4481 = vadd.f32 %v4157, %v4417
    %v4482 = vadd.f32 %v4158, %v4418
    %v4483 = vadd.f32 %v4159, %v4419
    %v4484 = vadd.f32 %v4160, %v4420
    %v4485 = vadd.f32 %v4161, %v4421
    %vm4486 = vcmp.eq.s32.totalorder %v2114, 4
    %vm4487 = vcmp.eq.s32.totalorder %v2129, 4
    %vm4488 = vcmp.eq.s32.totalorder %v2144, 4
    %vm4489 = vcmp.eq.s32.totalorder %v2159, 4
    %vm4490 = vcmp.eq.s32.totalorder %v2174, 4
    %vm4491 = vcmp.eq.s32.totalorder %v2189, 4
    %vm4492 = vcmp.eq.s32.totalorder %v2204, 4
    %vm4493 = vcmp.eq.s32.totalorder %v2219, 4
    %vm4494 = vcmp.eq.s32.totalorder %v2234, 4
    %vm4495 = vcmp.eq.s32.totalorder %v2249, 4
    %vm4496 = vcmp.eq.s32.totalorder %v2264, 4
    %vm4497 = vcmp.eq.s32.totalorder %v2279, 4
    %vm4498 = vcmp.eq.s32.totalorder %v2294, 4
    %vm4499 = vcmp.eq.s32.totalorder %v2309, 4
    %vm4500 = vcmp.eq.s32.totalorder %v2324, 4
    %vm4501 = vcmp.eq.s32.totalorder %v2339, 4
    %vm4502 = vcmp.eq.s32.totalorder %v2354, 4
    %vm4503 = vcmp.eq.s32.totalorder %v2369, 4
    %vm4504 = vcmp.eq.s32.totalorder %v2384, 4
    %vm4505 = vcmp.eq.s32.totalorder %v2399, 4
    %vm4506 = vcmp.eq.s32.totalorder %v2414, 4
    %vm4507 = vcmp.eq.s32.totalorder %v2429, 4
    %vm4508 = vcmp.eq.s32.totalorder %v2444, 4
    %vm4509 = vcmp.eq.s32.totalorder %v2459, 4
    %vm4510 = vcmp.eq.s32.totalorder %v2474, 4
    %vm4511 = vcmp.eq.s32.totalorder %v2489, 4
    %vm4512 = vcmp.eq.s32.totalorder %v2504, 4
    %vm4513 = vcmp.eq.s32.totalorder %v2519, 4
    %vm4514 = vcmp.eq.s32.totalorder %v2534, 4
    %vm4515 = vcmp.eq.s32.totalorder %v2549, 4
    %vm4516 = vcmp.eq.s32.totalorder %v2564, 4
    %vm4517 = vcmp.eq.s32.totalorder %v2579, 4
    %vm4518 = vcmp.eq.s32.totalorder %v2594, 4
    %vm4519 = vcmp.eq.s32.totalorder %v2609, 4
    %vm4520 = vcmp.eq.s32.totalorder %v2624, 4
    %vm4521 = vcmp.eq.s32.totalorder %v2639, 4
    %vm4522 = vcmp.eq.s32.totalorder %v2654, 4
    %vm4523 = vcmp.eq.s32.totalorder %v2669, 4
    %vm4524 = vcmp.eq.s32.totalorder %v2684, 4
    %vm4525 = vcmp.eq.s32.totalorder %v2699, 4
    %vm4526 = vcmp.eq.s32.totalorder %v2714, 4
    %vm4527 = vcmp.eq.s32.totalorder %v2729, 4
    %vm4528 = vcmp.eq.s32.totalorder %v2744, 4
    %vm4529 = vcmp.eq.s32.totalorder %v2759, 4
    %vm4530 = vcmp.eq.s32.totalorder %v2774, 4
    %vm4531 = vcmp.eq.s32.totalorder %v2789, 4
    %vm4532 = vcmp.eq.s32.totalorder %v2804, 4
    %vm4533 = vcmp.eq.s32.totalorder %v2819, 4
    %vm4534 = vcmp.eq.s32.totalorder %v2834, 4
    %vm4535 = vcmp.eq.s32.totalorder %v2849, 4
    %vm4536 = vcmp.eq.s32.totalorder %v2864, 4
    %vm4537 = vcmp.eq.s32.totalorder %v2879, 4
    %vm4538 = vcmp.eq.s32.totalorder %v2894, 4
    %vm4539 = vcmp.eq.s32.totalorder %v2909, 4
    %vm4540 = vcmp.eq.s32.totalorder %v2924, 4
    %vm4541 = vcmp.eq.s32.totalorder %v2939, 4
    %vm4542 = vcmp.eq.s32.totalorder %v2954, 4
    %vm4543 = vcmp.eq.s32.totalorder %v2969, 4
    %vm4544 = vcmp.eq.s32.totalorder %v2984, 4
    %vm4545 = vcmp.eq.s32.totalorder %v2999, 4
    %vm4546 = vcmp.eq.s32.totalorder %v3014, 4
    %vm4547 = vcmp.eq.s32.totalorder %v3029, 4
    %vm4548 = vcmp.eq.s32.totalorder %v3044, 4
    %vm4549 = vcmp.eq.s32.totalorder %v3059, 4
    %v4550 = vsel %vm4486, 1, 0
    %v4551 = vsel %vm4487, 1, 0
    %v4552 = vsel %vm4488, 1, 0
    %v4553 = vsel %vm4489, 1, 0
    %v4554 = vsel %vm4490, 1, 0
    %v4555 = vsel %vm4491, 1, 0
    %v4556 = vsel %vm4492, 1, 0
    %v4557 = vsel %vm4493, 1, 0
    %v4558 = vsel %vm4494, 1, 0
    %v4559 = vsel %vm4495, 1, 0
    %v4560 = vsel %vm4496, 1, 0
    %v4561 = vsel %vm4497, 1, 0
    %v4562 = vsel %vm4498, 1, 0
    %v4563 = vsel %vm4499, 1, 0
    %v4564 = vsel %vm4500, 1, 0
    %v4565 = vsel %vm4501, 1, 0
    %v4566 = vsel %vm4502, 1, 0
    %v4567 = vsel %vm4503, 1, 0
    %v4568 = vsel %vm4504, 1, 0
    %v4569 = vsel %vm4505, 1, 0
    %v4570 = vsel %vm4506, 1, 0
    %v4571 = vsel %vm4507, 1, 0
    %v4572 = vsel %vm4508, 1, 0
    %v4573 = vsel %vm4509, 1, 0
    %v4574 = vsel %vm4510, 1, 0
    %v4575 = vsel %vm4511, 1, 0
    %v4576 = vsel %vm4512, 1, 0
    %v4577 = vsel %vm4513, 1, 0
    %v4578 = vsel %vm4514, 1, 0
    %v4579 = vsel %vm4515, 1, 0
    %v4580 = vsel %vm4516, 1, 0
    %v4581 = vsel %vm4517, 1, 0
    %v4582 = vsel %vm4518, 1, 0
    %v4583 = vsel %vm4519, 1, 0
    %v4584 = vsel %vm4520, 1, 0
    %v4585 = vsel %vm4521, 1, 0
    %v4586 = vsel %vm4522, 1, 0
    %v4587 = vsel %vm4523, 1, 0
    %v4588 = vsel %vm4524, 1, 0
    %v4589 = vsel %vm4525, 1, 0
    %v4590 = vsel %vm4526, 1, 0
    %v4591 = vsel %vm4527, 1, 0
    %v4592 = vsel %vm4528, 1, 0
    %v4593 = vsel %vm4529, 1, 0
    %v4594 = vsel %vm4530, 1, 0
    %v4595 = vsel %vm4531, 1, 0
    %v4596 = vsel %vm4532, 1, 0
    %v4597 = vsel %vm4533, 1, 0
    %v4598 = vsel %vm4534, 1, 0
    %v4599 = vsel %vm4535, 1, 0
    %v4600 = vsel %vm4536, 1, 0
    %v4601 = vsel %vm4537, 1, 0
    %v4602 = vsel %vm4538, 1, 0
    %v4603 = vsel %vm4539, 1, 0
    %v4604 = vsel %vm4540, 1, 0
    %v4605 = vsel %vm4541, 1, 0
    %v4606 = vsel %vm4542, 1, 0
    %v4607 = vsel %vm4543, 1, 0
    %v4608 = vsel %vm4544, 1, 0
    %v4609 = vsel %vm4545, 1, 0
    %v4610 = vsel %vm4546, 1, 0
    %v4611 = vsel %vm4547, 1, 0
    %v4612 = vsel %vm4548, 1, 0
    %v4613 = vsel %vm4549, 1, 0
    %v4614 = vcvt.s32.f32 %v4550
    %v4615 = vcvt.s32.f32 %v4551
    %v4616 = vcvt.s32.f32 %v4552
    %v4617 = vcvt.s32.f32 %v4553
    %v4618 = vcvt.s32.f32 %v4554
    %v4619 = vcvt.s32.f32 %v4555
    %v4620 = vcvt.s32.f32 %v4556
    %v4621 = vcvt.s32.f32 %v4557
    %v4622 = vcvt.s32.f32 %v4558
    %v4623 = vcvt.s32.f32 %v4559
    %v4624 = vcvt.s32.f32 %v4560
    %v4625 = vcvt.s32.f32 %v4561
    %v4626 = vcvt.s32.f32 %v4562
    %v4627 = vcvt.s32.f32 %v4563
    %v4628 = vcvt.s32.f32 %v4564
    %v4629 = vcvt.s32.f32 %v4565
    %v4630 = vcvt.s32.f32 %v4566
    %v4631 = vcvt.s32.f32 %v4567
    %v4632 = vcvt.s32.f32 %v4568
    %v4633 = vcvt.s32.f32 %v4569
    %v4634 = vcvt.s32.f32 %v4570
    %v4635 = vcvt.s32.f32 %v4571
    %v4636 = vcvt.s32.f32 %v4572
    %v4637 = vcvt.s32.f32 %v4573
    %v4638 = vcvt.s32.f32 %v4574
    %v4639 = vcvt.s32.f32 %v4575
    %v4640 = vcvt.s32.f32 %v4576
    %v4641 = vcvt.s32.f32 %v4577
    %v4642 = vcvt.s32.f32 %v4578
    %v4643 = vcvt.s32.f32 %v4579
    %v4644 = vcvt.s32.f32 %v4580
    %v4645 = vcvt.s32.f32 %v4581
    %v4646 = vcvt.s32.f32 %v4582
    %v4647 = vcvt.s32.f32 %v4583
    %v4648 = vcvt.s32.f32 %v4584
    %v4649 = vcvt.s32.f32 %v4585
    %v4650 = vcvt.s32.f32 %v4586
    %v4651 = vcvt.s32.f32 %v4587
    %v4652 = vcvt.s32.f32 %v4588
    %v4653 = vcvt.s32.f32 %v4589
    %v4654 = vcvt.s32.f32 %v4590
    %v4655 = vcvt.s32.f32 %v4591
    %v4656 = vcvt.s32.f32 %v4592
    %v4657 = vcvt.s32.f32 %v4593
    %v4658 = vcvt.s32.f32 %v4594
    %v4659 = vcvt.s32.f32 %v4595
    %v4660 = vcvt.s32.f32 %v4596
    %v4661 = vcvt.s32.f32 %v4597
    %v4662 = vcvt.s32.f32 %v4598
    %v4663 = vcvt.s32.f32 %v4599
    %v4664 = vcvt.s32.f32 %v4600
    %v4665 = vcvt.s32.f32 %v4601
    %v4666 = vcvt.s32.f32 %v4602
    %v4667 = vcvt.s32.f32 %v4603
    %v4668 = vcvt.s32.f32 %v4604
    %v4669 = vcvt.s32.f32 %v4605
    %v4670 = vcvt.s32.f32 %v4606
    %v4671 = vcvt.s32.f32 %v4607
    %v4672 = vcvt.s32.f32 %v4608
    %v4673 = vcvt.s32.f32 %v4609
    %v4674 = vcvt.s32.f32 %v4610
    %v4675 = vcvt.s32.f32 %v4611
    %v4676 = vcvt.s32.f32 %v4612
    %v4677 = vcvt.s32.f32 %v4613
    %v4678 = vlaneseq
    %v4679 = vshrl.u32 %v4678, 7
    %v4680 = vsub.s32 4, %v4679
    %v4681 = vrot.slane %v3252, %v4680
    %v4682 = vmul.f32 %v4614, %v4681
    %v4683 = vmul.f32 %v4615, %v4681
    %v4684 = vmul.f32 %v4616, %v4681
    %v4685 = vmul.f32 %v4617, %v4681
    %v4686 = vmul.f32 %v4618, %v4681
    %v4687 = vmul.f32 %v4619, %v4681
    %v4688 = vmul.f32 %v4620, %v4681
    %v4689 = vmul.f32 %v4621, %v4681
    %v4690 = vmul.f32 %v4622, %v4681
    %v4691 = vmul.f32 %v4623, %v4681
    %v4692 = vmul.f32 %v4624, %v4681
    %v4693 = vmul.f32 %v4625, %v4681
    %v4694 = vmul.f32 %v4626, %v4681
    %v4695 = vmul.f32 %v4627, %v4681
    %v4696 = vmul.f32 %v4628, %v4681
    %v4697 = vmul.f32 %v4629, %v4681
    %v4698 = vmul.f32 %v4630, %v4681
    %v4699 = vmul.f32 %v4631, %v4681
    %v4700 = vmul.f32 %v4632, %v4681
    %v4701 = vmul.f32 %v4633, %v4681
    %v4702 = vmul.f32 %v4634, %v4681
    %v4703 = vmul.f32 %v4635, %v4681
    %v4704 = vmul.f32 %v4636, %v4681
    %v4705 = vmul.f32 %v4637, %v4681
    %v4706 = vmul.f32 %v4638, %v4681
    %v4707 = vmul.f32 %v4639, %v4681
    %v4708 = vmul.f32 %v4640, %v4681
    %v4709 = vmul.f32 %v4641, %v4681
    %v4710 = vmul.f32 %v4642, %v4681
    %v4711 = vmul.f32 %v4643, %v4681
    %v4712 = vmul.f32 %v4644, %v4681
    %v4713 = vmul.f32 %v4645, %v4681
    %v4714 = vmul.f32 %v4646, %v4681
    %v4715 = vmul.f32 %v4647, %v4681
    %v4716 = vmul.f32 %v4648, %v4681
    %v4717 = vmul.f32 %v4649, %v4681
    %v4718 = vmul.f32 %v4650, %v4681
    %v4719 = vmul.f32 %v4651, %v4681
    %v4720 = vmul.f32 %v4652, %v4681
    %v4721 = vmul.f32 %v4653, %v4681
    %v4722 = vmul.f32 %v4654, %v4681
    %v4723 = vmul.f32 %v4655, %v4681
    %v4724 = vmul.f32 %v4656, %v4681
    %v4725 = vmul.f32 %v4657, %v4681
    %v4726 = vmul.f32 %v4658, %v4681
    %v4727 = vmul.f32 %v4659, %v4681
    %v4728 = vmul.f32 %v4660, %v4681
    %v4729 = vmul.f32 %v4661, %v4681
    %v4730 = vmul.f32 %v4662, %v4681
    %v4731 = vmul.f32 %v4663, %v4681
    %v4732 = vmul.f32 %v4664, %v4681
    %v4733 = vmul.f32 %v4665, %v4681
    %v4734 = vmul.f32 %v4666, %v4681
    %v4735 = vmul.f32 %v4667, %v4681
    %v4736 = vmul.f32 %v4668, %v4681
    %v4737 = vmul.f32 %v4669, %v4681
    %v4738 = vmul.f32 %v4670, %v4681
    %v4739 = vmul.f32 %v4671, %v4681
    %v4740 = vmul.f32 %v4672, %v4681
    %v4741 = vmul.f32 %v4673, %v4681
    %v4742 = vmul.f32 %v4674, %v4681
    %v4743 = vmul.f32 %v4675, %v4681
    %v4744 = vmul.f32 %v4676, %v4681
    %v4745 = vmul.f32 %v4677, %v4681
    %v4746 = vadd.f32 %v4422, %v4682
    %v4747 = vadd.f32 %v4423, %v4683
    %v4748 = vadd.f32 %v4424, %v4684
    %v4749 = vadd.f32 %v4425, %v4685
    %v4750 = vadd.f32 %v4426, %v4686
    %v4751 = vadd.f32 %v4427, %v4687
    %v4752 = vadd.f32 %v4428, %v4688
    %v4753 = vadd.f32 %v4429, %v4689
    %v4754 = vadd.f32 %v4430, %v4690
    %v4755 = vadd.f32 %v4431, %v4691
    %v4756 = vadd.f32 %v4432, %v4692
    %v4757 = vadd.f32 %v4433, %v4693
    %v4758 = vadd.f32 %v4434, %v4694
    %v4759 = vadd.f32 %v4435, %v4695
    %v4760 = vadd.f32 %v4436, %v4696
    %v4761 = vadd.f32 %v4437, %v4697
    %v4762 = vadd.f32 %v4438, %v4698
    %v4763 = vadd.f32 %v4439, %v4699
    %v4764 = vadd.f32 %v4440, %v4700
    %v4765 = vadd.f32 %v4441, %v4701
    %v4766 = vadd.f32 %v4442, %v4702
    %v4767 = vadd.f32 %v4443, %v4703
    %v4768 = vadd.f32 %v4444, %v4704
    %v4769 = vadd.f32 %v4445, %v4705
    %v4770 = vadd.f32 %v4446, %v4706
    %v4771 = vadd.f32 %v4447, %v4707
    %v4772 = vadd.f32 %v4448, %v4708
    %v4773 = vadd.f32 %v4449, %v4709
    %v4774 = vadd.f32 %v4450, %v4710
    %v4775 = vadd.f32 %v4451, %v4711
    %v4776 = vadd.f32 %v4452, %v4712
    %v4777 = vadd.f32 %v4453, %v4713
    %v4778 = vadd.f32 %v4454, %v4714
    %v4779 = vadd.f32 %v4455, %v4715
    %v4780 = vadd.f32 %v4456, %v4716
    %v4781 = vadd.f32 %v4457, %v4717
    %v4782 = vadd.f32 %v4458, %v4718
    %v4783 = vadd.f32 %v4459, %v4719
    %v4784 = vadd.f32 %v4460, %v4720
    %v4785 = vadd.f32 %v4461, %v4721
    %v4786 = vadd.f32 %v4462, %v4722
    %v4787 = vadd.f32 %v4463, %v4723
    %v4788 = vadd.f32 %v4464, %v4724
    %v4789 = vadd.f32 %v4465, %v4725
    %v4790 = vadd.f32 %v4466, %v4726
    %v4791 = vadd.f32 %v4467, %v4727
    %v4792 = vadd.f32 %v4468, %v4728
    %v4793 = vadd.f32 %v4469, %v4729
    %v4794 = vadd.f32 %v4470, %v4730
    %v4795 = vadd.f32 %v4471, %v4731
    %v4796 = vadd.f32 %v4472, %v4732
    %v4797 = vadd.f32 %v4473, %v4733
    %v4798 = vadd.f32 %v4474, %v4734
    %v4799 = vadd.f32 %v4475, %v4735
    %v4800 = vadd.f32 %v4476, %v4736
    %v4801 = vadd.f32 %v4477, %v4737
    %v4802 = vadd.f32 %v4478, %v4738
    %v4803 = vadd.f32 %v4479, %v4739
    %v4804 = vadd.f32 %v4480, %v4740
    %v4805 = vadd.f32 %v4481, %v4741
    %v4806 = vadd.f32 %v4482, %v4742
    %v4807 = vadd.f32 %v4483, %v4743
    %v4808 = vadd.f32 %v4484, %v4744
    %v4809 = vadd.f32 %v4485, %v4745
    %vm4810 = vcmp.eq.s32.totalorder %v2114, 5
    %vm4811 = vcmp.eq.s32.totalorder %v2129, 5
    %vm4812 = vcmp.eq.s32.totalorder %v2144, 5
    %vm4813 = vcmp.eq.s32.totalorder %v2159, 5
    %vm4814 = vcmp.eq.s32.totalorder %v2174, 5
    %vm4815 = vcmp.eq.s32.totalorder %v2189, 5
    %vm4816 = vcmp.eq.s32.totalorder %v2204, 5
    %vm4817 = vcmp.eq.s32.totalorder %v2219, 5
    %vm4818 = vcmp.eq.s32.totalorder %v2234, 5
    %vm4819 = vcmp.eq.s32.totalorder %v2249, 5
    %vm4820 = vcmp.eq.s32.totalorder %v2264, 5
    %vm4821 = vcmp.eq.s32.totalorder %v2279, 5
    %vm4822 = vcmp.eq.s32.totalorder %v2294, 5
    %vm4823 = vcmp.eq.s32.totalorder %v2309, 5
    %vm4824 = vcmp.eq.s32.totalorder %v2324, 5
    %vm4825 = vcmp.eq.s32.totalorder %v2339, 5
    %vm4826 = vcmp.eq.s32.totalorder %v2354, 5
    %vm4827 = vcmp.eq.s32.totalorder %v2369, 5
    %vm4828 = vcmp.eq.s32.totalorder %v2384, 5
    %vm4829 = vcmp.eq.s32.totalorder %v2399, 5
    %vm4830 = vcmp.eq.s32.totalorder %v2414, 5
    %vm4831 = vcmp.eq.s32.totalorder %v2429, 5
    %vm4832 = vcmp.eq.s32.totalorder %v2444, 5
    %vm4833 = vcmp.eq.s32.totalorder %v2459, 5
    %vm4834 = vcmp.eq.s32.totalorder %v2474, 5
    %vm4835 = vcmp.eq.s32.totalorder %v2489, 5
    %vm4836 = vcmp.eq.s32.totalorder %v2504, 5
    %vm4837 = vcmp.eq.s32.totalorder %v2519, 5
    %vm4838 = vcmp.eq.s32.totalorder %v2534, 5
    %vm4839 = vcmp.eq.s32.totalorder %v2549, 5
    %vm4840 = vcmp.eq.s32.totalorder %v2564, 5
    %vm4841 = vcmp.eq.s32.totalorder %v2579, 5
    %vm4842 = vcmp.eq.s32.totalorder %v2594, 5
    %vm4843 = vcmp.eq.s32.totalorder %v2609, 5
    %vm4844 = vcmp.eq.s32.totalorder %v2624, 5
    %vm4845 = vcmp.eq.s32.totalorder %v2639, 5
    %vm4846 = vcmp.eq.s32.totalorder %v2654, 5
    %vm4847 = vcmp.eq.s32.totalorder %v2669, 5
    %vm4848 = vcmp.eq.s32.totalorder %v2684, 5
    %vm4849 = vcmp.eq.s32.totalorder %v2699, 5
    %vm4850 = vcmp.eq.s32.totalorder %v2714, 5
    %vm4851 = vcmp.eq.s32.totalorder %v2729, 5
    %vm4852 = vcmp.eq.s32.totalorder %v2744, 5
    %vm4853 = vcmp.eq.s32.totalorder %v2759, 5
    %vm4854 = vcmp.eq.s32.totalorder %v2774, 5
    %vm4855 = vcmp.eq.s32.totalorder %v2789, 5
    %vm4856 = vcmp.eq.s32.totalorder %v2804, 5
    %vm4857 = vcmp.eq.s32.totalorder %v2819, 5
    %vm4858 = vcmp.eq.s32.totalorder %v2834, 5
    %vm4859 = vcmp.eq.s32.totalorder %v2849, 5
    %vm4860 = vcmp.eq.s32.totalorder %v2864, 5
    %vm4861 = vcmp.eq.s32.totalorder %v2879, 5
    %vm4862 = vcmp.eq.s32.totalorder %v2894, 5
    %vm4863 = vcmp.eq.s32.totalorder %v2909, 5
    %vm4864 = vcmp.eq.s32.totalorder %v2924, 5
    %vm4865 = vcmp.eq.s32.totalorder %v2939, 5
    %vm4866 = vcmp.eq.s32.totalorder %v2954, 5
    %vm4867 = vcmp.eq.s32.totalorder %v2969, 5
    %vm4868 = vcmp.eq.s32.totalorder %v2984, 5
    %vm4869 = vcmp.eq.s32.totalorder %v2999, 5
    %vm4870 = vcmp.eq.s32.totalorder %v3014, 5
    %vm4871 = vcmp.eq.s32.totalorder %v3029, 5
    %vm4872 = vcmp.eq.s32.totalorder %v3044, 5
    %vm4873 = vcmp.eq.s32.totalorder %v3059, 5
    %v4874 = vsel %vm4810, 1, 0
    %v4875 = vsel %vm4811, 1, 0
    %v4876 = vsel %vm4812, 1, 0
    %v4877 = vsel %vm4813, 1, 0
    %v4878 = vsel %vm4814, 1, 0
    %v4879 = vsel %vm4815, 1, 0
    %v4880 = vsel %vm4816, 1, 0
    %v4881 = vsel %vm4817, 1, 0
    %v4882 = vsel %vm4818, 1, 0
    %v4883 = vsel %vm4819, 1, 0
    %v4884 = vsel %vm4820, 1, 0
    %v4885 = vsel %vm4821, 1, 0
    %v4886 = vsel %vm4822, 1, 0
    %v4887 = vsel %vm4823, 1, 0
    %v4888 = vsel %vm4824, 1, 0
    %v4889 = vsel %vm4825, 1, 0
    %v4890 = vsel %vm4826, 1, 0
    %v4891 = vsel %vm4827, 1, 0
    %v4892 = vsel %vm4828, 1, 0
    %v4893 = vsel %vm4829, 1, 0
    %v4894 = vsel %vm4830, 1, 0
    %v4895 = vsel %vm4831, 1, 0
    %v4896 = vsel %vm4832, 1, 0
    %v4897 = vsel %vm4833, 1, 0
    %v4898 = vsel %vm4834, 1, 0
    %v4899 = vsel %vm4835, 1, 0
    %v4900 = vsel %vm4836, 1, 0
    %v4901 = vsel %vm4837, 1, 0
    %v4902 = vsel %vm4838, 1, 0
    %v4903 = vsel %vm4839, 1, 0
    %v4904 = vsel %vm4840, 1, 0
    %v4905 = vsel %vm4841, 1, 0
    %v4906 = vsel %vm4842, 1, 0
    %v4907 = vsel %vm4843, 1, 0
    %v4908 = vsel %vm4844, 1, 0
    %v4909 = vsel %vm4845, 1, 0
    %v4910 = vsel %vm4846, 1, 0
    %v4911 = vsel %vm4847, 1, 0
    %v4912 = vsel %vm4848, 1, 0
    %v4913 = vsel %vm4849, 1, 0
    %v4914 = vsel %vm4850, 1, 0
    %v4915 = vsel %vm4851, 1, 0
    %v4916 = vsel %vm4852, 1, 0
    %v4917 = vsel %vm4853, 1, 0
    %v4918 = vsel %vm4854, 1, 0
    %v4919 = vsel %vm4855, 1, 0
    %v4920 = vsel %vm4856, 1, 0
    %v4921 = vsel %vm4857, 1, 0
    %v4922 = vsel %vm4858, 1, 0
    %v4923 = vsel %vm4859, 1, 0
    %v4924 = vsel %vm4860, 1, 0
    %v4925 = vsel %vm4861, 1, 0
    %v4926 = vsel %vm4862, 1, 0
    %v4927 = vsel %vm4863, 1, 0
    %v4928 = vsel %vm4864, 1, 0
    %v4929 = vsel %vm4865, 1, 0
    %v4930 = vsel %vm4866, 1, 0
    %v4931 = vsel %vm4867, 1, 0
    %v4932 = vsel %vm4868, 1, 0
    %v4933 = vsel %vm4869, 1, 0
    %v4934 = vsel %vm4870, 1, 0
    %v4935 = vsel %vm4871, 1, 0
    %v4936 = vsel %vm4872, 1, 0
    %v4937 = vsel %vm4873, 1, 0
    %v4938 = vcvt.s32.f32 %v4874
    %v4939 = vcvt.s32.f32 %v4875
    %v4940 = vcvt.s32.f32 %v4876
    %v4941 = vcvt.s32.f32 %v4877
    %v4942 = vcvt.s32.f32 %v4878
    %v4943 = vcvt.s32.f32 %v4879
    %v4944 = vcvt.s32.f32 %v4880
    %v4945 = vcvt.s32.f32 %v4881
    %v4946 = vcvt.s32.f32 %v4882
    %v4947 = vcvt.s32.f32 %v4883
    %v4948 = vcvt.s32.f32 %v4884
    %v4949 = vcvt.s32.f32 %v4885
    %v4950 = vcvt.s32.f32 %v4886
    %v4951 = vcvt.s32.f32 %v4887
    %v4952 = vcvt.s32.f32 %v4888
    %v4953 = vcvt.s32.f32 %v4889
    %v4954 = vcvt.s32.f32 %v4890
    %v4955 = vcvt.s32.f32 %v4891
    %v4956 = vcvt.s32.f32 %v4892
    %v4957 = vcvt.s32.f32 %v4893
    %v4958 = vcvt.s32.f32 %v4894
    %v4959 = vcvt.s32.f32 %v4895
    %v4960 = vcvt.s32.f32 %v4896
    %v4961 = vcvt.s32.f32 %v4897
    %v4962 = vcvt.s32.f32 %v4898
    %v4963 = vcvt.s32.f32 %v4899
    %v4964 = vcvt.s32.f32 %v4900
    %v4965 = vcvt.s32.f32 %v4901
    %v4966 = vcvt.s32.f32 %v4902
    %v4967 = vcvt.s32.f32 %v4903
    %v4968 = vcvt.s32.f32 %v4904
    %v4969 = vcvt.s32.f32 %v4905
    %v4970 = vcvt.s32.f32 %v4906
    %v4971 = vcvt.s32.f32 %v4907
    %v4972 = vcvt.s32.f32 %v4908
    %v4973 = vcvt.s32.f32 %v4909
    %v4974 = vcvt.s32.f32 %v4910
    %v4975 = vcvt.s32.f32 %v4911
    %v4976 = vcvt.s32.f32 %v4912
    %v4977 = vcvt.s32.f32 %v4913
    %v4978 = vcvt.s32.f32 %v4914
    %v4979 = vcvt.s32.f32 %v4915
    %v4980 = vcvt.s32.f32 %v4916
    %v4981 = vcvt.s32.f32 %v4917
    %v4982 = vcvt.s32.f32 %v4918
    %v4983 = vcvt.s32.f32 %v4919
    %v4984 = vcvt.s32.f32 %v4920
    %v4985 = vcvt.s32.f32 %v4921
    %v4986 = vcvt.s32.f32 %v4922
    %v4987 = vcvt.s32.f32 %v4923
    %v4988 = vcvt.s32.f32 %v4924
    %v4989 = vcvt.s32.f32 %v4925
    %v4990 = vcvt.s32.f32 %v4926
    %v4991 = vcvt.s32.f32 %v4927
    %v4992 = vcvt.s32.f32 %v4928
    %v4993 = vcvt.s32.f32 %v4929
    %v4994 = vcvt.s32.f32 %v4930
    %v4995 = vcvt.s32.f32 %v4931
    %v4996 = vcvt.s32.f32 %v4932
    %v4997 = vcvt.s32.f32 %v4933
    %v4998 = vcvt.s32.f32 %v4934
    %v4999 = vcvt.s32.f32 %v4935
    %v5000 = vcvt.s32.f32 %v4936
    %v5001 = vcvt.s32.f32 %v4937
    %v5002 = vlaneseq
    %v5003 = vshrl.u32 %v5002, 7
    %v5004 = vsub.s32 5, %v5003
    %v5005 = vrot.slane %v3252, %v5004
    %v5006 = vmul.f32 %v4938, %v5005
    %v5007 = vmul.f32 %v4939, %v5005
    %v5008 = vmul.f32 %v4940, %v5005
    %v5009 = vmul.f32 %v4941, %v5005
    %v5010 = vmul.f32 %v4942, %v5005
    %v5011 = vmul.f32 %v4943, %v5005
    %v5012 = vmul.f32 %v4944, %v5005
    %v5013 = vmul.f32 %v4945, %v5005
    %v5014 = vmul.f32 %v4946, %v5005
    %v5015 = vmul.f32 %v4947, %v5005
    %v5016 = vmul.f32 %v4948, %v5005
    %v5017 = vmul.f32 %v4949, %v5005
    %v5018 = vmul.f32 %v4950, %v5005
    %v5019 = vmul.f32 %v4951, %v5005
    %v5020 = vmul.f32 %v4952, %v5005
    %v5021 = vmul.f32 %v4953, %v5005
    %v5022 = vmul.f32 %v4954, %v5005
    %v5023 = vmul.f32 %v4955, %v5005
    %v5024 = vmul.f32 %v4956, %v5005
    %v5025 = vmul.f32 %v4957, %v5005
    %v5026 = vmul.f32 %v4958, %v5005
    %v5027 = vmul.f32 %v4959, %v5005
    %v5028 = vmul.f32 %v4960, %v5005
    %v5029 = vmul.f32 %v4961, %v5005
    %v5030 = vmul.f32 %v4962, %v5005
    %v5031 = vmul.f32 %v4963, %v5005
    %v5032 = vmul.f32 %v4964, %v5005
    %v5033 = vmul.f32 %v4965, %v5005
    %v5034 = vmul.f32 %v4966, %v5005
    %v5035 = vmul.f32 %v4967, %v5005
    %v5036 = vmul.f32 %v4968, %v5005
    %v5037 = vmul.f32 %v4969, %v5005
    %v5038 = vmul.f32 %v4970, %v5005
    %v5039 = vmul.f32 %v4971, %v5005
    %v5040 = vmul.f32 %v4972, %v5005
    %v5041 = vmul.f32 %v4973, %v5005
    %v5042 = vmul.f32 %v4974, %v5005
    %v5043 = vmul.f32 %v4975, %v5005
    %v5044 = vmul.f32 %v4976, %v5005
    %v5045 = vmul.f32 %v4977, %v5005
    %v5046 = vmul.f32 %v4978, %v5005
    %v5047 = vmul.f32 %v4979, %v5005
    %v5048 = vmul.f32 %v4980, %v5005
    %v5049 = vmul.f32 %v4981, %v5005
    %v5050 = vmul.f32 %v4982, %v5005
    %v5051 = vmul.f32 %v4983, %v5005
    %v5052 = vmul.f32 %v4984, %v5005
    %v5053 = vmul.f32 %v4985, %v5005
    %v5054 = vmul.f32 %v4986, %v5005
    %v5055 = vmul.f32 %v4987, %v5005
    %v5056 = vmul.f32 %v4988, %v5005
    %v5057 = vmul.f32 %v4989, %v5005
    %v5058 = vmul.f32 %v4990, %v5005
    %v5059 = vmul.f32 %v4991, %v5005
    %v5060 = vmul.f32 %v4992, %v5005
    %v5061 = vmul.f32 %v4993, %v5005
    %v5062 = vmul.f32 %v4994, %v5005
    %v5063 = vmul.f32 %v4995, %v5005
    %v5064 = vmul.f32 %v4996, %v5005
    %v5065 = vmul.f32 %v4997, %v5005
    %v5066 = vmul.f32 %v4998, %v5005
    %v5067 = vmul.f32 %v4999, %v5005
    %v5068 = vmul.f32 %v5000, %v5005
    %v5069 = vmul.f32 %v5001, %v5005
    %v5070 = vadd.f32 %v4746, %v5006
    %v5071 = vadd.f32 %v4747, %v5007
    %v5072 = vadd.f32 %v4748, %v5008
    %v5073 = vadd.f32 %v4749, %v5009
    %v5074 = vadd.f32 %v4750, %v5010
    %v5075 = vadd.f32 %v4751, %v5011
    %v5076 = vadd.f32 %v4752, %v5012
    %v5077 = vadd.f32 %v4753, %v5013
    %v5078 = vadd.f32 %v4754, %v5014
    %v5079 = vadd.f32 %v4755, %v5015
    %v5080 = vadd.f32 %v4756, %v5016
    %v5081 = vadd.f32 %v4757, %v5017
    %v5082 = vadd.f32 %v4758, %v5018
    %v5083 = vadd.f32 %v4759, %v5019
    %v5084 = vadd.f32 %v4760, %v5020
    %v5085 = vadd.f32 %v4761, %v5021
    %v5086 = vadd.f32 %v4762, %v5022
    %v5087 = vadd.f32 %v4763, %v5023
    %v5088 = vadd.f32 %v4764, %v5024
    %v5089 = vadd.f32 %v4765, %v5025
    %v5090 = vadd.f32 %v4766, %v5026
    %v5091 = vadd.f32 %v4767, %v5027
    %v5092 = vadd.f32 %v4768, %v5028
    %v5093 = vadd.f32 %v4769, %v5029
    %v5094 = vadd.f32 %v4770, %v5030
    %v5095 = vadd.f32 %v4771, %v5031
    %v5096 = vadd.f32 %v4772, %v5032
    %v5097 = vadd.f32 %v4773, %v5033
    %v5098 = vadd.f32 %v4774, %v5034
    %v5099 = vadd.f32 %v4775, %v5035
    %v5100 = vadd.f32 %v4776, %v5036
    %v5101 = vadd.f32 %v4777, %v5037
    %v5102 = vadd.f32 %v4778, %v5038
    %v5103 = vadd.f32 %v4779, %v5039
    %v5104 = vadd.f32 %v4780, %v5040
    %v5105 = vadd.f32 %v4781, %v5041
    %v5106 = vadd.f32 %v4782, %v5042
    %v5107 = vadd.f32 %v4783, %v5043
    %v5108 = vadd.f32 %v4784, %v5044
    %v5109 = vadd.f32 %v4785, %v5045
    %v5110 = vadd.f32 %v4786, %v5046
    %v5111 = vadd.f32 %v4787, %v5047
    %v5112 = vadd.f32 %v4788, %v5048
    %v5113 = vadd.f32 %v4789, %v5049
    %v5114 = vadd.f32 %v4790, %v5050
    %v5115 = vadd.f32 %v4791, %v5051
    %v5116 = vadd.f32 %v4792, %v5052
    %v5117 = vadd.f32 %v4793, %v5053
    %v5118 = vadd.f32 %v4794, %v5054
    %v5119 = vadd.f32 %v4795, %v5055
    %v5120 = vadd.f32 %v4796, %v5056
    %v5121 = vadd.f32 %v4797, %v5057
    %v5122 = vadd.f32 %v4798, %v5058
    %v5123 = vadd.f32 %v4799, %v5059
    %v5124 = vadd.f32 %v4800, %v5060
    %v5125 = vadd.f32 %v4801, %v5061
    %v5126 = vadd.f32 %v4802, %v5062
    %v5127 = vadd.f32 %v4803, %v5063
    %v5128 = vadd.f32 %v4804, %v5064
    %v5129 = vadd.f32 %v4805, %v5065
    %v5130 = vadd.f32 %v4806, %v5066
    %v5131 = vadd.f32 %v4807, %v5067
    %v5132 = vadd.f32 %v4808, %v5068
    %v5133 = vadd.f32 %v4809, %v5069
    %vm5134 = vcmp.eq.s32.totalorder %v2114, 6
    %vm5135 = vcmp.eq.s32.totalorder %v2129, 6
    %vm5136 = vcmp.eq.s32.totalorder %v2144, 6
    %vm5137 = vcmp.eq.s32.totalorder %v2159, 6
    %vm5138 = vcmp.eq.s32.totalorder %v2174, 6
    %vm5139 = vcmp.eq.s32.totalorder %v2189, 6
    %vm5140 = vcmp.eq.s32.totalorder %v2204, 6
    %vm5141 = vcmp.eq.s32.totalorder %v2219, 6
    %vm5142 = vcmp.eq.s32.totalorder %v2234, 6
    %vm5143 = vcmp.eq.s32.totalorder %v2249, 6
    %vm5144 = vcmp.eq.s32.totalorder %v2264, 6
    %vm5145 = vcmp.eq.s32.totalorder %v2279, 6
    %vm5146 = vcmp.eq.s32.totalorder %v2294, 6
    %vm5147 = vcmp.eq.s32.totalorder %v2309, 6
    %vm5148 = vcmp.eq.s32.totalorder %v2324, 6
    %vm5149 = vcmp.eq.s32.totalorder %v2339, 6
    %vm5150 = vcmp.eq.s32.totalorder %v2354, 6
    %vm5151 = vcmp.eq.s32.totalorder %v2369, 6
    %vm5152 = vcmp.eq.s32.totalorder %v2384, 6
    %vm5153 = vcmp.eq.s32.totalorder %v2399, 6
    %vm5154 = vcmp.eq.s32.totalorder %v2414, 6
    %vm5155 = vcmp.eq.s32.totalorder %v2429, 6
    %vm5156 = vcmp.eq.s32.totalorder %v2444, 6
    %vm5157 = vcmp.eq.s32.totalorder %v2459, 6
    %vm5158 = vcmp.eq.s32.totalorder %v2474, 6
    %vm5159 = vcmp.eq.s32.totalorder %v2489, 6
    %vm5160 = vcmp.eq.s32.totalorder %v2504, 6
    %vm5161 = vcmp.eq.s32.totalorder %v2519, 6
    %vm5162 = vcmp.eq.s32.totalorder %v2534, 6
    %vm5163 = vcmp.eq.s32.totalorder %v2549, 6
    %vm5164 = vcmp.eq.s32.totalorder %v2564, 6
    %vm5165 = vcmp.eq.s32.totalorder %v2579, 6
    %vm5166 = vcmp.eq.s32.totalorder %v2594, 6
    %vm5167 = vcmp.eq.s32.totalorder %v2609, 6
    %vm5168 = vcmp.eq.s32.totalorder %v2624, 6
    %vm5169 = vcmp.eq.s32.totalorder %v2639, 6
    %vm5170 = vcmp.eq.s32.totalorder %v2654, 6
    %vm5171 = vcmp.eq.s32.totalorder %v2669, 6
    %vm5172 = vcmp.eq.s32.totalorder %v2684, 6
    %vm5173 = vcmp.eq.s32.totalorder %v2699, 6
    %vm5174 = vcmp.eq.s32.totalorder %v2714, 6
    %vm5175 = vcmp.eq.s32.totalorder %v2729, 6
    %vm5176 = vcmp.eq.s32.totalorder %v2744, 6
    %vm5177 = vcmp.eq.s32.totalorder %v2759, 6
    %vm5178 = vcmp.eq.s32.totalorder %v2774, 6
    %vm5179 = vcmp.eq.s32.totalorder %v2789, 6
    %vm5180 = vcmp.eq.s32.totalorder %v2804, 6
    %vm5181 = vcmp.eq.s32.totalorder %v2819, 6
    %vm5182 = vcmp.eq.s32.totalorder %v2834, 6
    %vm5183 = vcmp.eq.s32.totalorder %v2849, 6
    %vm5184 = vcmp.eq.s32.totalorder %v2864, 6
    %vm5185 = vcmp.eq.s32.totalorder %v2879, 6
    %vm5186 = vcmp.eq.s32.totalorder %v2894, 6
    %vm5187 = vcmp.eq.s32.totalorder %v2909, 6
    %vm5188 = vcmp.eq.s32.totalorder %v2924, 6
    %vm5189 = vcmp.eq.s32.totalorder %v2939, 6
    %vm5190 = vcmp.eq.s32.totalorder %v2954, 6
    %vm5191 = vcmp.eq.s32.totalorder %v2969, 6
    %vm5192 = vcmp.eq.s32.totalorder %v2984, 6
    %vm5193 = vcmp.eq.s32.totalorder %v2999, 6
    %vm5194 = vcmp.eq.s32.totalorder %v3014, 6
    %vm5195 = vcmp.eq.s32.totalorder %v3029, 6
    %vm5196 = vcmp.eq.s32.totalorder %v3044, 6
    %vm5197 = vcmp.eq.s32.totalorder %v3059, 6
    %v5198 = vsel %vm5134, 1, 0
    %v5199 = vsel %vm5135, 1, 0
    %v5200 = vsel %vm5136, 1, 0
    %v5201 = vsel %vm5137, 1, 0
    %v5202 = vsel %vm5138, 1, 0
    %v5203 = vsel %vm5139, 1, 0
    %v5204 = vsel %vm5140, 1, 0
    %v5205 = vsel %vm5141, 1, 0
    %v5206 = vsel %vm5142, 1, 0
    %v5207 = vsel %vm5143, 1, 0
    %v5208 = vsel %vm5144, 1, 0
    %v5209 = vsel %vm5145, 1, 0
    %v5210 = vsel %vm5146, 1, 0
    %v5211 = vsel %vm5147, 1, 0
    %v5212 = vsel %vm5148, 1, 0
    %v5213 = vsel %vm5149, 1, 0
    %v5214 = vsel %vm5150, 1, 0
    %v5215 = vsel %vm5151, 1, 0
    %v5216 = vsel %vm5152, 1, 0
    %v5217 = vsel %vm5153, 1, 0
    %v5218 = vsel %vm5154, 1, 0
    %v5219 = vsel %vm5155, 1, 0
    %v5220 = vsel %vm5156, 1, 0
    %v5221 = vsel %vm5157, 1, 0
    %v5222 = vsel %vm5158, 1, 0
    %v5223 = vsel %vm5159, 1, 0
    %v5224 = vsel %vm5160, 1, 0
    %v5225 = vsel %vm5161, 1, 0
    %v5226 = vsel %vm5162, 1, 0
    %v5227 = vsel %vm5163, 1, 0
    %v5228 = vsel %vm5164, 1, 0
    %v5229 = vsel %vm5165, 1, 0
    %v5230 = vsel %vm5166, 1, 0
    %v5231 = vsel %vm5167, 1, 0
    %v5232 = vsel %vm5168, 1, 0
    %v5233 = vsel %vm5169, 1, 0
    %v5234 = vsel %vm5170, 1, 0
    %v5235 = vsel %vm5171, 1, 0
    %v5236 = vsel %vm5172, 1, 0
    %v5237 = vsel %vm5173, 1, 0
    %v5238 = vsel %vm5174, 1, 0
    %v5239 = vsel %vm5175, 1, 0
    %v5240 = vsel %vm5176, 1, 0
    %v5241 = vsel %vm5177, 1, 0
    %v5242 = vsel %vm5178, 1, 0
    %v5243 = vsel %vm5179, 1, 0
    %v5244 = vsel %vm5180, 1, 0
    %v5245 = vsel %vm5181, 1, 0
    %v5246 = vsel %vm5182, 1, 0
    %v5247 = vsel %vm5183, 1, 0
    %v5248 = vsel %vm5184, 1, 0
    %v5249 = vsel %vm5185, 1, 0
    %v5250 = vsel %vm5186, 1, 0
    %v5251 = vsel %vm5187, 1, 0
    %v5252 = vsel %vm5188, 1, 0
    %v5253 = vsel %vm5189, 1, 0
    %v5254 = vsel %vm5190, 1, 0
    %v5255 = vsel %vm5191, 1, 0
    %v5256 = vsel %vm5192, 1, 0
    %v5257 = vsel %vm5193, 1, 0
    %v5258 = vsel %vm5194, 1, 0
    %v5259 = vsel %vm5195, 1, 0
    %v5260 = vsel %vm5196, 1, 0
    %v5261 = vsel %vm5197, 1, 0
    %v5262 = vcvt.s32.f32 %v5198
    %v5263 = vcvt.s32.f32 %v5199
    %v5264 = vcvt.s32.f32 %v5200
    %v5265 = vcvt.s32.f32 %v5201
    %v5266 = vcvt.s32.f32 %v5202
    %v5267 = vcvt.s32.f32 %v5203
    %v5268 = vcvt.s32.f32 %v5204
    %v5269 = vcvt.s32.f32 %v5205
    %v5270 = vcvt.s32.f32 %v5206
    %v5271 = vcvt.s32.f32 %v5207
    %v5272 = vcvt.s32.f32 %v5208
    %v5273 = vcvt.s32.f32 %v5209
    %v5274 = vcvt.s32.f32 %v5210
    %v5275 = vcvt.s32.f32 %v5211
    %v5276 = vcvt.s32.f32 %v5212
    %v5277 = vcvt.s32.f32 %v5213
    %v5278 = vcvt.s32.f32 %v5214
    %v5279 = vcvt.s32.f32 %v5215
    %v5280 = vcvt.s32.f32 %v5216
    %v5281 = vcvt.s32.f32 %v5217
    %v5282 = vcvt.s32.f32 %v5218
    %v5283 = vcvt.s32.f32 %v5219
    %v5284 = vcvt.s32.f32 %v5220
    %v5285 = vcvt.s32.f32 %v5221
    %v5286 = vcvt.s32.f32 %v5222
    %v5287 = vcvt.s32.f32 %v5223
    %v5288 = vcvt.s32.f32 %v5224
    %v5289 = vcvt.s32.f32 %v5225
    %v5290 = vcvt.s32.f32 %v5226
    %v5291 = vcvt.s32.f32 %v5227
    %v5292 = vcvt.s32.f32 %v5228
    %v5293 = vcvt.s32.f32 %v5229
    %v5294 = vcvt.s32.f32 %v5230
    %v5295 = vcvt.s32.f32 %v5231
    %v5296 = vcvt.s32.f32 %v5232
    %v5297 = vcvt.s32.f32 %v5233
    %v5298 = vcvt.s32.f32 %v5234
    %v5299 = vcvt.s32.f32 %v5235
    %v5300 = vcvt.s32.f32 %v5236
    %v5301 = vcvt.s32.f32 %v5237
    %v5302 = vcvt.s32.f32 %v5238
    %v5303 = vcvt.s32.f32 %v5239
    %v5304 = vcvt.s32.f32 %v5240
    %v5305 = vcvt.s32.f32 %v5241
    %v5306 = vcvt.s32.f32 %v5242
    %v5307 = vcvt.s32.f32 %v5243
    %v5308 = vcvt.s32.f32 %v5244
    %v5309 = vcvt.s32.f32 %v5245
    %v5310 = vcvt.s32.f32 %v5246
    %v5311 = vcvt.s32.f32 %v5247
    %v5312 = vcvt.s32.f32 %v5248
    %v5313 = vcvt.s32.f32 %v5249
    %v5314 = vcvt.s32.f32 %v5250
    %v5315 = vcvt.s32.f32 %v5251
    %v5316 = vcvt.s32.f32 %v5252
    %v5317 = vcvt.s32.f32 %v5253
    %v5318 = vcvt.s32.f32 %v5254
    %v5319 = vcvt.s32.f32 %v5255
    %v5320 = vcvt.s32.f32 %v5256
    %v5321 = vcvt.s32.f32 %v5257
    %v5322 = vcvt.s32.f32 %v5258
    %v5323 = vcvt.s32.f32 %v5259
    %v5324 = vcvt.s32.f32 %v5260
    %v5325 = vcvt.s32.f32 %v5261
    %v5326 = vlaneseq
    %v5327 = vshrl.u32 %v5326, 7
    %v5328 = vsub.s32 6, %v5327
    %v5329 = vrot.slane %v3252, %v5328
    %v5330 = vmul.f32 %v5262, %v5329
    %v5331 = vmul.f32 %v5263, %v5329
    %v5332 = vmul.f32 %v5264, %v5329
    %v5333 = vmul.f32 %v5265, %v5329
    %v5334 = vmul.f32 %v5266, %v5329
    %v5335 = vmul.f32 %v5267, %v5329
    %v5336 = vmul.f32 %v5268, %v5329
    %v5337 = vmul.f32 %v5269, %v5329
    %v5338 = vmul.f32 %v5270, %v5329
    %v5339 = vmul.f32 %v5271, %v5329
    %v5340 = vmul.f32 %v5272, %v5329
    %v5341 = vmul.f32 %v5273, %v5329
    %v5342 = vmul.f32 %v5274, %v5329
    %v5343 = vmul.f32 %v5275, %v5329
    %v5344 = vmul.f32 %v5276, %v5329
    %v5345 = vmul.f32 %v5277, %v5329
    %v5346 = vmul.f32 %v5278, %v5329
    %v5347 = vmul.f32 %v5279, %v5329
    %v5348 = vmul.f32 %v5280, %v5329
    %v5349 = vmul.f32 %v5281, %v5329
    %v5350 = vmul.f32 %v5282, %v5329
    %v5351 = vmul.f32 %v5283, %v5329
    %v5352 = vmul.f32 %v5284, %v5329
    %v5353 = vmul.f32 %v5285, %v5329
    %v5354 = vmul.f32 %v5286, %v5329
    %v5355 = vmul.f32 %v5287, %v5329
    %v5356 = vmul.f32 %v5288, %v5329
    %v5357 = vmul.f32 %v5289, %v5329
    %v5358 = vmul.f32 %v5290, %v5329
    %v5359 = vmul.f32 %v5291, %v5329
    %v5360 = vmul.f32 %v5292, %v5329
    %v5361 = vmul.f32 %v5293, %v5329
    %v5362 = vmul.f32 %v5294, %v5329
    %v5363 = vmul.f32 %v5295, %v5329
    %v5364 = vmul.f32 %v5296, %v5329
    %v5365 = vmul.f32 %v5297, %v5329
    %v5366 = vmul.f32 %v5298, %v5329
    %v5367 = vmul.f32 %v5299, %v5329
    %v5368 = vmul.f32 %v5300, %v5329
    %v5369 = vmul.f32 %v5301, %v5329
    %v5370 = vmul.f32 %v5302, %v5329
    %v5371 = vmul.f32 %v5303, %v5329
    %v5372 = vmul.f32 %v5304, %v5329
    %v5373 = vmul.f32 %v5305, %v5329
    %v5374 = vmul.f32 %v5306, %v5329
    %v5375 = vmul.f32 %v5307, %v5329
    %v5376 = vmul.f32 %v5308, %v5329
    %v5377 = vmul.f32 %v5309, %v5329
    %v5378 = vmul.f32 %v5310, %v5329
    %v5379 = vmul.f32 %v5311, %v5329
    %v5380 = vmul.f32 %v5312, %v5329
    %v5381 = vmul.f32 %v5313, %v5329
    %v5382 = vmul.f32 %v5314, %v5329
    %v5383 = vmul.f32 %v5315, %v5329
    %v5384 = vmul.f32 %v5316, %v5329
    %v5385 = vmul.f32 %v5317, %v5329
    %v5386 = vmul.f32 %v5318, %v5329
    %v5387 = vmul.f32 %v5319, %v5329
    %v5388 = vmul.f32 %v5320, %v5329
    %v5389 = vmul.f32 %v5321, %v5329
    %v5390 = vmul.f32 %v5322, %v5329
    %v5391 = vmul.f32 %v5323, %v5329
    %v5392 = vmul.f32 %v5324, %v5329
    %v5393 = vmul.f32 %v5325, %v5329
    %v5394 = vadd.f32 %v5070, %v5330
    %v5395 = vadd.f32 %v5071, %v5331
    %v5396 = vadd.f32 %v5072, %v5332
    %v5397 = vadd.f32 %v5073, %v5333
    %v5398 = vadd.f32 %v5074, %v5334
    %v5399 = vadd.f32 %v5075, %v5335
    %v5400 = vadd.f32 %v5076, %v5336
    %v5401 = vadd.f32 %v5077, %v5337
    %v5402 = vadd.f32 %v5078, %v5338
    %v5403 = vadd.f32 %v5079, %v5339
    %v5404 = vadd.f32 %v5080, %v5340
    %v5405 = vadd.f32 %v5081, %v5341
    %v5406 = vadd.f32 %v5082, %v5342
    %v5407 = vadd.f32 %v5083, %v5343
    %v5408 = vadd.f32 %v5084, %v5344
    %v5409 = vadd.f32 %v5085, %v5345
    %v5410 = vadd.f32 %v5086, %v5346
    %v5411 = vadd.f32 %v5087, %v5347
    %v5412 = vadd.f32 %v5088, %v5348
    %v5413 = vadd.f32 %v5089, %v5349
    %v5414 = vadd.f32 %v5090, %v5350
    %v5415 = vadd.f32 %v5091, %v5351
    %v5416 = vadd.f32 %v5092, %v5352
    %v5417 = vadd.f32 %v5093, %v5353
    %v5418 = vadd.f32 %v5094, %v5354
    %v5419 = vadd.f32 %v5095, %v5355
    %v5420 = vadd.f32 %v5096, %v5356
    %v5421 = vadd.f32 %v5097, %v5357
    %v5422 = vadd.f32 %v5098, %v5358
    %v5423 = vadd.f32 %v5099, %v5359
    %v5424 = vadd.f32 %v5100, %v5360
    %v5425 = vadd.f32 %v5101, %v5361
    %v5426 = vadd.f32 %v5102, %v5362
    %v5427 = vadd.f32 %v5103, %v5363
    %v5428 = vadd.f32 %v5104, %v5364
    %v5429 = vadd.f32 %v5105, %v5365
    %v5430 = vadd.f32 %v5106, %v5366
    %v5431 = vadd.f32 %v5107, %v5367
    %v5432 = vadd.f32 %v5108, %v5368
    %v5433 = vadd.f32 %v5109, %v5369
    %v5434 = vadd.f32 %v5110, %v5370
    %v5435 = vadd.f32 %v5111, %v5371
    %v5436 = vadd.f32 %v5112, %v5372
    %v5437 = vadd.f32 %v5113, %v5373
    %v5438 = vadd.f32 %v5114, %v5374
    %v5439 = vadd.f32 %v5115, %v5375
    %v5440 = vadd.f32 %v5116, %v5376
    %v5441 = vadd.f32 %v5117, %v5377
    %v5442 = vadd.f32 %v5118, %v5378
    %v5443 = vadd.f32 %v5119, %v5379
    %v5444 = vadd.f32 %v5120, %v5380
    %v5445 = vadd.f32 %v5121, %v5381
    %v5446 = vadd.f32 %v5122, %v5382
    %v5447 = vadd.f32 %v5123, %v5383
    %v5448 = vadd.f32 %v5124, %v5384
    %v5449 = vadd.f32 %v5125, %v5385
    %v5450 = vadd.f32 %v5126, %v5386
    %v5451 = vadd.f32 %v5127, %v5387
    %v5452 = vadd.f32 %v5128, %v5388
    %v5453 = vadd.f32 %v5129, %v5389
    %v5454 = vadd.f32 %v5130, %v5390
    %v5455 = vadd.f32 %v5131, %v5391
    %v5456 = vadd.f32 %v5132, %v5392
    %v5457 = vadd.f32 %v5133, %v5393
    %vm5458 = vcmp.eq.s32.totalorder %v2114, 7
    %vm5459 = vcmp.eq.s32.totalorder %v2129, 7
    %vm5460 = vcmp.eq.s32.totalorder %v2144, 7
    %vm5461 = vcmp.eq.s32.totalorder %v2159, 7
    %vm5462 = vcmp.eq.s32.totalorder %v2174, 7
    %vm5463 = vcmp.eq.s32.totalorder %v2189, 7
    %vm5464 = vcmp.eq.s32.totalorder %v2204, 7
    %vm5465 = vcmp.eq.s32.totalorder %v2219, 7
    %vm5466 = vcmp.eq.s32.totalorder %v2234, 7
    %vm5467 = vcmp.eq.s32.totalorder %v2249, 7
    %vm5468 = vcmp.eq.s32.totalorder %v2264, 7
    %vm5469 = vcmp.eq.s32.totalorder %v2279, 7
    %vm5470 = vcmp.eq.s32.totalorder %v2294, 7
    %vm5471 = vcmp.eq.s32.totalorder %v2309, 7
    %vm5472 = vcmp.eq.s32.totalorder %v2324, 7
    %vm5473 = vcmp.eq.s32.totalorder %v2339, 7
    %vm5474 = vcmp.eq.s32.totalorder %v2354, 7
    %vm5475 = vcmp.eq.s32.totalorder %v2369, 7
    %vm5476 = vcmp.eq.s32.totalorder %v2384, 7
    %vm5477 = vcmp.eq.s32.totalorder %v2399, 7
    %vm5478 = vcmp.eq.s32.totalorder %v2414, 7
    %vm5479 = vcmp.eq.s32.totalorder %v2429, 7
    %vm5480 = vcmp.eq.s32.totalorder %v2444, 7
    %vm5481 = vcmp.eq.s32.totalorder %v2459, 7
    %vm5482 = vcmp.eq.s32.totalorder %v2474, 7
    %vm5483 = vcmp.eq.s32.totalorder %v2489, 7
    %vm5484 = vcmp.eq.s32.totalorder %v2504, 7
    %vm5485 = vcmp.eq.s32.totalorder %v2519, 7
    %vm5486 = vcmp.eq.s32.totalorder %v2534, 7
    %vm5487 = vcmp.eq.s32.totalorder %v2549, 7
    %vm5488 = vcmp.eq.s32.totalorder %v2564, 7
    %vm5489 = vcmp.eq.s32.totalorder %v2579, 7
    %vm5490 = vcmp.eq.s32.totalorder %v2594, 7
    %vm5491 = vcmp.eq.s32.totalorder %v2609, 7
    %vm5492 = vcmp.eq.s32.totalorder %v2624, 7
    %vm5493 = vcmp.eq.s32.totalorder %v2639, 7
    %vm5494 = vcmp.eq.s32.totalorder %v2654, 7
    %vm5495 = vcmp.eq.s32.totalorder %v2669, 7
    %vm5496 = vcmp.eq.s32.totalorder %v2684, 7
    %vm5497 = vcmp.eq.s32.totalorder %v2699, 7
    %vm5498 = vcmp.eq.s32.totalorder %v2714, 7
    %vm5499 = vcmp.eq.s32.totalorder %v2729, 7
    %vm5500 = vcmp.eq.s32.totalorder %v2744, 7
    %vm5501 = vcmp.eq.s32.totalorder %v2759, 7
    %vm5502 = vcmp.eq.s32.totalorder %v2774, 7
    %vm5503 = vcmp.eq.s32.totalorder %v2789, 7
    %vm5504 = vcmp.eq.s32.totalorder %v2804, 7
    %vm5505 = vcmp.eq.s32.totalorder %v2819, 7
    %vm5506 = vcmp.eq.s32.totalorder %v2834, 7
    %vm5507 = vcmp.eq.s32.totalorder %v2849, 7
    %vm5508 = vcmp.eq.s32.totalorder %v2864, 7
    %vm5509 = vcmp.eq.s32.totalorder %v2879, 7
    %vm5510 = vcmp.eq.s32.totalorder %v2894, 7
    %vm5511 = vcmp.eq.s32.totalorder %v2909, 7
    %vm5512 = vcmp.eq.s32.totalorder %v2924, 7
    %vm5513 = vcmp.eq.s32.totalorder %v2939, 7
    %vm5514 = vcmp.eq.s32.totalorder %v2954, 7
    %vm5515 = vcmp.eq.s32.totalorder %v2969, 7
    %vm5516 = vcmp.eq.s32.totalorder %v2984, 7
    %vm5517 = vcmp.eq.s32.totalorder %v2999, 7
    %vm5518 = vcmp.eq.s32.totalorder %v3014, 7
    %vm5519 = vcmp.eq.s32.totalorder %v3029, 7
    %vm5520 = vcmp.eq.s32.totalorder %v3044, 7
    %vm5521 = vcmp.eq.s32.totalorder %v3059, 7
    %v5522 = vsel %vm5458, 1, 0
    %v5523 = vsel %vm5459, 1, 0
    %v5524 = vsel %vm5460, 1, 0
    %v5525 = vsel %vm5461, 1, 0
    %v5526 = vsel %vm5462, 1, 0
    %v5527 = vsel %vm5463, 1, 0
    %v5528 = vsel %vm5464, 1, 0
    %v5529 = vsel %vm5465, 1, 0
    %v5530 = vsel %vm5466, 1, 0
    %v5531 = vsel %vm5467, 1, 0
    %v5532 = vsel %vm5468, 1, 0
    %v5533 = vsel %vm5469, 1, 0
    %v5534 = vsel %vm5470, 1, 0
    %v5535 = vsel %vm5471, 1, 0
    %v5536 = vsel %vm5472, 1, 0
    %v5537 = vsel %vm5473, 1, 0
    %v5538 = vsel %vm5474, 1, 0
    %v5539 = vsel %vm5475, 1, 0
    %v5540 = vsel %vm5476, 1, 0
    %v5541 = vsel %vm5477, 1, 0
    %v5542 = vsel %vm5478, 1, 0
    %v5543 = vsel %vm5479, 1, 0
    %v5544 = vsel %vm5480, 1, 0
    %v5545 = vsel %vm5481, 1, 0
    %v5546 = vsel %vm5482, 1, 0
    %v5547 = vsel %vm5483, 1, 0
    %v5548 = vsel %vm5484, 1, 0
    %v5549 = vsel %vm5485, 1, 0
    %v5550 = vsel %vm5486, 1, 0
    %v5551 = vsel %vm5487, 1, 0
    %v5552 = vsel %vm5488, 1, 0
    %v5553 = vsel %vm5489, 1, 0
    %v5554 = vsel %vm5490, 1, 0
    %v5555 = vsel %vm5491, 1, 0
    %v5556 = vsel %vm5492, 1, 0
    %v5557 = vsel %vm5493, 1, 0
    %v5558 = vsel %vm5494, 1, 0
    %v5559 = vsel %vm5495, 1, 0
    %v5560 = vsel %vm5496, 1, 0
    %v5561 = vsel %vm5497, 1, 0
    %v5562 = vsel %vm5498, 1, 0
    %v5563 = vsel %vm5499, 1, 0
    %v5564 = vsel %vm5500, 1, 0
    %v5565 = vsel %vm5501, 1, 0
    %v5566 = vsel %vm5502, 1, 0
    %v5567 = vsel %vm5503, 1, 0
    %v5568 = vsel %vm5504, 1, 0
    %v5569 = vsel %vm5505, 1, 0
    %v5570 = vsel %vm5506, 1, 0
    %v5571 = vsel %vm5507, 1, 0
    %v5572 = vsel %vm5508, 1, 0
    %v5573 = vsel %vm5509, 1, 0
    %v5574 = vsel %vm5510, 1, 0
    %v5575 = vsel %vm5511, 1, 0
    %v5576 = vsel %vm5512, 1, 0
    %v5577 = vsel %vm5513, 1, 0
    %v5578 = vsel %vm5514, 1, 0
    %v5579 = vsel %vm5515, 1, 0
    %v5580 = vsel %vm5516, 1, 0
    %v5581 = vsel %vm5517, 1, 0
    %v5582 = vsel %vm5518, 1, 0
    %v5583 = vsel %vm5519, 1, 0
    %v5584 = vsel %vm5520, 1, 0
    %v5585 = vsel %vm5521, 1, 0
    %v5586 = vcvt.s32.f32 %v5522
    %v5587 = vcvt.s32.f32 %v5523
    %v5588 = vcvt.s32.f32 %v5524
    %v5589 = vcvt.s32.f32 %v5525
    %v5590 = vcvt.s32.f32 %v5526
    %v5591 = vcvt.s32.f32 %v5527
    %v5592 = vcvt.s32.f32 %v5528
    %v5593 = vcvt.s32.f32 %v5529
    %v5594 = vcvt.s32.f32 %v5530
    %v5595 = vcvt.s32.f32 %v5531
    %v5596 = vcvt.s32.f32 %v5532
    %v5597 = vcvt.s32.f32 %v5533
    %v5598 = vcvt.s32.f32 %v5534
    %v5599 = vcvt.s32.f32 %v5535
    %v5600 = vcvt.s32.f32 %v5536
    %v5601 = vcvt.s32.f32 %v5537
    %v5602 = vcvt.s32.f32 %v5538
    %v5603 = vcvt.s32.f32 %v5539
    %v5604 = vcvt.s32.f32 %v5540
    %v5605 = vcvt.s32.f32 %v5541
    %v5606 = vcvt.s32.f32 %v5542
    %v5607 = vcvt.s32.f32 %v5543
    %v5608 = vcvt.s32.f32 %v5544
    %v5609 = vcvt.s32.f32 %v5545
    %v5610 = vcvt.s32.f32 %v5546
    %v5611 = vcvt.s32.f32 %v5547
    %v5612 = vcvt.s32.f32 %v5548
    %v5613 = vcvt.s32.f32 %v5549
    %v5614 = vcvt.s32.f32 %v5550
    %v5615 = vcvt.s32.f32 %v5551
    %v5616 = vcvt.s32.f32 %v5552
    %v5617 = vcvt.s32.f32 %v5553
    %v5618 = vcvt.s32.f32 %v5554
    %v5619 = vcvt.s32.f32 %v5555
    %v5620 = vcvt.s32.f32 %v5556
    %v5621 = vcvt.s32.f32 %v5557
    %v5622 = vcvt.s32.f32 %v5558
    %v5623 = vcvt.s32.f32 %v5559
    %v5624 = vcvt.s32.f32 %v5560
    %v5625 = vcvt.s32.f32 %v5561
    %v5626 = vcvt.s32.f32 %v5562
    %v5627 = vcvt.s32.f32 %v5563
    %v5628 = vcvt.s32.f32 %v5564
    %v5629 = vcvt.s32.f32 %v5565
    %v5630 = vcvt.s32.f32 %v5566
    %v5631 = vcvt.s32.f32 %v5567
    %v5632 = vcvt.s32.f32 %v5568
    %v5633 = vcvt.s32.f32 %v5569
    %v5634 = vcvt.s32.f32 %v5570
    %v5635 = vcvt.s32.f32 %v5571
    %v5636 = vcvt.s32.f32 %v5572
    %v5637 = vcvt.s32.f32 %v5573
    %v5638 = vcvt.s32.f32 %v5574
    %v5639 = vcvt.s32.f32 %v5575
    %v5640 = vcvt.s32.f32 %v5576
    %v5641 = vcvt.s32.f32 %v5577
    %v5642 = vcvt.s32.f32 %v5578
    %v5643 = vcvt.s32.f32 %v5579
    %v5644 = vcvt.s32.f32 %v5580
    %v5645 = vcvt.s32.f32 %v5581
    %v5646 = vcvt.s32.f32 %v5582
    %v5647 = vcvt.s32.f32 %v5583
    %v5648 = vcvt.s32.f32 %v5584
    %v5649 = vcvt.s32.f32 %v5585
    %v5650 = vlaneseq
    %v5651 = vshrl.u32 %v5650, 7
    %v5652 = vsub.s32 7, %v5651
    %v5653 = vrot.slane %v3252, %v5652
    %v5654 = vmul.f32 %v5586, %v5653
    %v5655 = vmul.f32 %v5587, %v5653
    %v5656 = vmul.f32 %v5588, %v5653
    %v5657 = vmul.f32 %v5589, %v5653
    %v5658 = vmul.f32 %v5590, %v5653
    %v5659 = vmul.f32 %v5591, %v5653
    %v5660 = vmul.f32 %v5592, %v5653
    %v5661 = vmul.f32 %v5593, %v5653
    %v5662 = vmul.f32 %v5594, %v5653
    %v5663 = vmul.f32 %v5595, %v5653
    %v5664 = vmul.f32 %v5596, %v5653
    %v5665 = vmul.f32 %v5597, %v5653
    %v5666 = vmul.f32 %v5598, %v5653
    %v5667 = vmul.f32 %v5599, %v5653
    %v5668 = vmul.f32 %v5600, %v5653
    %v5669 = vmul.f32 %v5601, %v5653
    %v5670 = vmul.f32 %v5602, %v5653
    %v5671 = vmul.f32 %v5603, %v5653
    %v5672 = vmul.f32 %v5604, %v5653
    %v5673 = vmul.f32 %v5605, %v5653
    %v5674 = vmul.f32 %v5606, %v5653
    %v5675 = vmul.f32 %v5607, %v5653
    %v5676 = vmul.f32 %v5608, %v5653
    %v5677 = vmul.f32 %v5609, %v5653
    %v5678 = vmul.f32 %v5610, %v5653
    %v5679 = vmul.f32 %v5611, %v5653
    %v5680 = vmul.f32 %v5612, %v5653
    %v5681 = vmul.f32 %v5613, %v5653
    %v5682 = vmul.f32 %v5614, %v5653
    %v5683 = vmul.f32 %v5615, %v5653
    %v5684 = vmul.f32 %v5616, %v5653
    %v5685 = vmul.f32 %v5617, %v5653
    %v5686 = vmul.f32 %v5618, %v5653
    %v5687 = vmul.f32 %v5619, %v5653
    %v5688 = vmul.f32 %v5620, %v5653
    %v5689 = vmul.f32 %v5621, %v5653
    %v5690 = vmul.f32 %v5622, %v5653
    %v5691 = vmul.f32 %v5623, %v5653
    %v5692 = vmul.f32 %v5624, %v5653
    %v5693 = vmul.f32 %v5625, %v5653
    %v5694 = vmul.f32 %v5626, %v5653
    %v5695 = vmul.f32 %v5627, %v5653
    %v5696 = vmul.f32 %v5628, %v5653
    %v5697 = vmul.f32 %v5629, %v5653
    %v5698 = vmul.f32 %v5630, %v5653
    %v5699 = vmul.f32 %v5631, %v5653
    %v5700 = vmul.f32 %v5632, %v5653
    %v5701 = vmul.f32 %v5633, %v5653
    %v5702 = vmul.f32 %v5634, %v5653
    %v5703 = vmul.f32 %v5635, %v5653
    %v5704 = vmul.f32 %v5636, %v5653
    %v5705 = vmul.f32 %v5637, %v5653
    %v5706 = vmul.f32 %v5638, %v5653
    %v5707 = vmul.f32 %v5639, %v5653
    %v5708 = vmul.f32 %v5640, %v5653
    %v5709 = vmul.f32 %v5641, %v5653
    %v5710 = vmul.f32 %v5642, %v5653
    %v5711 = vmul.f32 %v5643, %v5653
    %v5712 = vmul.f32 %v5644, %v5653
    %v5713 = vmul.f32 %v5645, %v5653
    %v5714 = vmul.f32 %v5646, %v5653
    %v5715 = vmul.f32 %v5647, %v5653
    %v5716 = vmul.f32 %v5648, %v5653
    %v5717 = vmul.f32 %v5649, %v5653
    %v5718 = vadd.f32 %v5394, %v5654
    %v5719 = vadd.f32 %v5395, %v5655
    %v5720 = vadd.f32 %v5396, %v5656
    %v5721 = vadd.f32 %v5397, %v5657
    %v5722 = vadd.f32 %v5398, %v5658
    %v5723 = vadd.f32 %v5399, %v5659
    %v5724 = vadd.f32 %v5400, %v5660
    %v5725 = vadd.f32 %v5401, %v5661
    %v5726 = vadd.f32 %v5402, %v5662
    %v5727 = vadd.f32 %v5403, %v5663
    %v5728 = vadd.f32 %v5404, %v5664
    %v5729 = vadd.f32 %v5405, %v5665
    %v5730 = vadd.f32 %v5406, %v5666
    %v5731 = vadd.f32 %v5407, %v5667
    %v5732 = vadd.f32 %v5408, %v5668
    %v5733 = vadd.f32 %v5409, %v5669
    %v5734 = vadd.f32 %v5410, %v5670
    %v5735 = vadd.f32 %v5411, %v5671
    %v5736 = vadd.f32 %v5412, %v5672
    %v5737 = vadd.f32 %v5413, %v5673
    %v5738 = vadd.f32 %v5414, %v5674
    %v5739 = vadd.f32 %v5415, %v5675
    %v5740 = vadd.f32 %v5416, %v5676
    %v5741 = vadd.f32 %v5417, %v5677
    %v5742 = vadd.f32 %v5418, %v5678
    %v5743 = vadd.f32 %v5419, %v5679
    %v5744 = vadd.f32 %v5420, %v5680
    %v5745 = vadd.f32 %v5421, %v5681
    %v5746 = vadd.f32 %v5422, %v5682
    %v5747 = vadd.f32 %v5423, %v5683
    %v5748 = vadd.f32 %v5424, %v5684
    %v5749 = vadd.f32 %v5425, %v5685
    %v5750 = vadd.f32 %v5426, %v5686
    %v5751 = vadd.f32 %v5427, %v5687
    %v5752 = vadd.f32 %v5428, %v5688
    %v5753 = vadd.f32 %v5429, %v5689
    %v5754 = vadd.f32 %v5430, %v5690
    %v5755 = vadd.f32 %v5431, %v5691
    %v5756 = vadd.f32 %v5432, %v5692
    %v5757 = vadd.f32 %v5433, %v5693
    %v5758 = vadd.f32 %v5434, %v5694
    %v5759 = vadd.f32 %v5435, %v5695
    %v5760 = vadd.f32 %v5436, %v5696
    %v5761 = vadd.f32 %v5437, %v5697
    %v5762 = vadd.f32 %v5438, %v5698
    %v5763 = vadd.f32 %v5439, %v5699
    %v5764 = vadd.f32 %v5440, %v5700
    %v5765 = vadd.f32 %v5441, %v5701
    %v5766 = vadd.f32 %v5442, %v5702
    %v5767 = vadd.f32 %v5443, %v5703
    %v5768 = vadd.f32 %v5444, %v5704
    %v5769 = vadd.f32 %v5445, %v5705
    %v5770 = vadd.f32 %v5446, %v5706
    %v5771 = vadd.f32 %v5447, %v5707
    %v5772 = vadd.f32 %v5448, %v5708
    %v5773 = vadd.f32 %v5449, %v5709
    %v5774 = vadd.f32 %v5450, %v5710
    %v5775 = vadd.f32 %v5451, %v5711
    %v5776 = vadd.f32 %v5452, %v5712
    %v5777 = vadd.f32 %v5453, %v5713
    %v5778 = vadd.f32 %v5454, %v5714
    %v5779 = vadd.f32 %v5455, %v5715
    %v5780 = vadd.f32 %v5456, %v5716
    %v5781 = vadd.f32 %v5457, %v5717
    %vm5782 = vcmp.eq.s32.totalorder %v2114, 8
    %vm5783 = vcmp.eq.s32.totalorder %v2129, 8
    %vm5784 = vcmp.eq.s32.totalorder %v2144, 8
    %vm5785 = vcmp.eq.s32.totalorder %v2159, 8
    %vm5786 = vcmp.eq.s32.totalorder %v2174, 8
    %vm5787 = vcmp.eq.s32.totalorder %v2189, 8
    %vm5788 = vcmp.eq.s32.totalorder %v2204, 8
    %vm5789 = vcmp.eq.s32.totalorder %v2219, 8
    %vm5790 = vcmp.eq.s32.totalorder %v2234, 8
    %vm5791 = vcmp.eq.s32.totalorder %v2249, 8
    %vm5792 = vcmp.eq.s32.totalorder %v2264, 8
    %vm5793 = vcmp.eq.s32.totalorder %v2279, 8
    %vm5794 = vcmp.eq.s32.totalorder %v2294, 8
    %vm5795 = vcmp.eq.s32.totalorder %v2309, 8
    %vm5796 = vcmp.eq.s32.totalorder %v2324, 8
    %vm5797 = vcmp.eq.s32.totalorder %v2339, 8
    %vm5798 = vcmp.eq.s32.totalorder %v2354, 8
    %vm5799 = vcmp.eq.s32.totalorder %v2369, 8
    %vm5800 = vcmp.eq.s32.totalorder %v2384, 8
    %vm5801 = vcmp.eq.s32.totalorder %v2399, 8
    %vm5802 = vcmp.eq.s32.totalorder %v2414, 8
    %vm5803 = vcmp.eq.s32.totalorder %v2429, 8
    %vm5804 = vcmp.eq.s32.totalorder %v2444, 8
    %vm5805 = vcmp.eq.s32.totalorder %v2459, 8
    %vm5806 = vcmp.eq.s32.totalorder %v2474, 8
    %vm5807 = vcmp.eq.s32.totalorder %v2489, 8
    %vm5808 = vcmp.eq.s32.totalorder %v2504, 8
    %vm5809 = vcmp.eq.s32.totalorder %v2519, 8
    %vm5810 = vcmp.eq.s32.totalorder %v2534, 8
    %vm5811 = vcmp.eq.s32.totalorder %v2549, 8
    %vm5812 = vcmp.eq.s32.totalorder %v2564, 8
    %vm5813 = vcmp.eq.s32.totalorder %v2579, 8
    %vm5814 = vcmp.eq.s32.totalorder %v2594, 8
    %vm5815 = vcmp.eq.s32.totalorder %v2609, 8
    %vm5816 = vcmp.eq.s32.totalorder %v2624, 8
    %vm5817 = vcmp.eq.s32.totalorder %v2639, 8
    %vm5818 = vcmp.eq.s32.totalorder %v2654, 8
    %vm5819 = vcmp.eq.s32.totalorder %v2669, 8
    %vm5820 = vcmp.eq.s32.totalorder %v2684, 8
    %vm5821 = vcmp.eq.s32.totalorder %v2699, 8
    %vm5822 = vcmp.eq.s32.totalorder %v2714, 8
    %vm5823 = vcmp.eq.s32.totalorder %v2729, 8
    %vm5824 = vcmp.eq.s32.totalorder %v2744, 8
    %vm5825 = vcmp.eq.s32.totalorder %v2759, 8
    %vm5826 = vcmp.eq.s32.totalorder %v2774, 8
    %vm5827 = vcmp.eq.s32.totalorder %v2789, 8
    %vm5828 = vcmp.eq.s32.totalorder %v2804, 8
    %vm5829 = vcmp.eq.s32.totalorder %v2819, 8
    %vm5830 = vcmp.eq.s32.totalorder %v2834, 8
    %vm5831 = vcmp.eq.s32.totalorder %v2849, 8
    %vm5832 = vcmp.eq.s32.totalorder %v2864, 8
    %vm5833 = vcmp.eq.s32.totalorder %v2879, 8
    %vm5834 = vcmp.eq.s32.totalorder %v2894, 8
    %vm5835 = vcmp.eq.s32.totalorder %v2909, 8
    %vm5836 = vcmp.eq.s32.totalorder %v2924, 8
    %vm5837 = vcmp.eq.s32.totalorder %v2939, 8
    %vm5838 = vcmp.eq.s32.totalorder %v2954, 8
    %vm5839 = vcmp.eq.s32.totalorder %v2969, 8
    %vm5840 = vcmp.eq.s32.totalorder %v2984, 8
    %vm5841 = vcmp.eq.s32.totalorder %v2999, 8
    %vm5842 = vcmp.eq.s32.totalorder %v3014, 8
    %vm5843 = vcmp.eq.s32.totalorder %v3029, 8
    %vm5844 = vcmp.eq.s32.totalorder %v3044, 8
    %vm5845 = vcmp.eq.s32.totalorder %v3059, 8
    %v5846 = vsel %vm5782, 1, 0
    %v5847 = vsel %vm5783, 1, 0
    %v5848 = vsel %vm5784, 1, 0
    %v5849 = vsel %vm5785, 1, 0
    %v5850 = vsel %vm5786, 1, 0
    %v5851 = vsel %vm5787, 1, 0
    %v5852 = vsel %vm5788, 1, 0
    %v5853 = vsel %vm5789, 1, 0
    %v5854 = vsel %vm5790, 1, 0
    %v5855 = vsel %vm5791, 1, 0
    %v5856 = vsel %vm5792, 1, 0
    %v5857 = vsel %vm5793, 1, 0
    %v5858 = vsel %vm5794, 1, 0
    %v5859 = vsel %vm5795, 1, 0
    %v5860 = vsel %vm5796, 1, 0
    %v5861 = vsel %vm5797, 1, 0
    %v5862 = vsel %vm5798, 1, 0
    %v5863 = vsel %vm5799, 1, 0
    %v5864 = vsel %vm5800, 1, 0
    %v5865 = vsel %vm5801, 1, 0
    %v5866 = vsel %vm5802, 1, 0
    %v5867 = vsel %vm5803, 1, 0
    %v5868 = vsel %vm5804, 1, 0
    %v5869 = vsel %vm5805, 1, 0
    %v5870 = vsel %vm5806, 1, 0
    %v5871 = vsel %vm5807, 1, 0
    %v5872 = vsel %vm5808, 1, 0
    %v5873 = vsel %vm5809, 1, 0
    %v5874 = vsel %vm5810, 1, 0
    %v5875 = vsel %vm5811, 1, 0
    %v5876 = vsel %vm5812, 1, 0
    %v5877 = vsel %vm5813, 1, 0
    %v5878 = vsel %vm5814, 1, 0
    %v5879 = vsel %vm5815, 1, 0
    %v5880 = vsel %vm5816, 1, 0
    %v5881 = vsel %vm5817, 1, 0
    %v5882 = vsel %vm5818, 1, 0
    %v5883 = vsel %vm5819, 1, 0
    %v5884 = vsel %vm5820, 1, 0
    %v5885 = vsel %vm5821, 1, 0
    %v5886 = vsel %vm5822, 1, 0
    %v5887 = vsel %vm5823, 1, 0
    %v5888 = vsel %vm5824, 1, 0
    %v5889 = vsel %vm5825, 1, 0
    %v5890 = vsel %vm5826, 1, 0
    %v5891 = vsel %vm5827, 1, 0
    %v5892 = vsel %vm5828, 1, 0
    %v5893 = vsel %vm5829, 1, 0
    %v5894 = vsel %vm5830, 1, 0
    %v5895 = vsel %vm5831, 1, 0
    %v5896 = vsel %vm5832, 1, 0
    %v5897 = vsel %vm5833, 1, 0
    %v5898 = vsel %vm5834, 1, 0
    %v5899 = vsel %vm5835, 1, 0
    %v5900 = vsel %vm5836, 1, 0
    %v5901 = vsel %vm5837, 1, 0
    %v5902 = vsel %vm5838, 1, 0
    %v5903 = vsel %vm5839, 1, 0
    %v5904 = vsel %vm5840, 1, 0
    %v5905 = vsel %vm5841, 1, 0
    %v5906 = vsel %vm5842, 1, 0
    %v5907 = vsel %vm5843, 1, 0
    %v5908 = vsel %vm5844, 1, 0
    %v5909 = vsel %vm5845, 1, 0
    %v5910 = vcvt.s32.f32 %v5846
    %v5911 = vcvt.s32.f32 %v5847
    %v5912 = vcvt.s32.f32 %v5848
    %v5913 = vcvt.s32.f32 %v5849
    %v5914 = vcvt.s32.f32 %v5850
    %v5915 = vcvt.s32.f32 %v5851
    %v5916 = vcvt.s32.f32 %v5852
    %v5917 = vcvt.s32.f32 %v5853
    %v5918 = vcvt.s32.f32 %v5854
    %v5919 = vcvt.s32.f32 %v5855
    %v5920 = vcvt.s32.f32 %v5856
    %v5921 = vcvt.s32.f32 %v5857
    %v5922 = vcvt.s32.f32 %v5858
    %v5923 = vcvt.s32.f32 %v5859
    %v5924 = vcvt.s32.f32 %v5860
    %v5925 = vcvt.s32.f32 %v5861
    %v5926 = vcvt.s32.f32 %v5862
    %v5927 = vcvt.s32.f32 %v5863
    %v5928 = vcvt.s32.f32 %v5864
    %v5929 = vcvt.s32.f32 %v5865
    %v5930 = vcvt.s32.f32 %v5866
    %v5931 = vcvt.s32.f32 %v5867
    %v5932 = vcvt.s32.f32 %v5868
    %v5933 = vcvt.s32.f32 %v5869
    %v5934 = vcvt.s32.f32 %v5870
    %v5935 = vcvt.s32.f32 %v5871
    %v5936 = vcvt.s32.f32 %v5872
    %v5937 = vcvt.s32.f32 %v5873
    %v5938 = vcvt.s32.f32 %v5874
    %v5939 = vcvt.s32.f32 %v5875
    %v5940 = vcvt.s32.f32 %v5876
    %v5941 = vcvt.s32.f32 %v5877
    %v5942 = vcvt.s32.f32 %v5878
    %v5943 = vcvt.s32.f32 %v5879
    %v5944 = vcvt.s32.f32 %v5880
    %v5945 = vcvt.s32.f32 %v5881
    %v5946 = vcvt.s32.f32 %v5882
    %v5947 = vcvt.s32.f32 %v5883
    %v5948 = vcvt.s32.f32 %v5884
    %v5949 = vcvt.s32.f32 %v5885
    %v5950 = vcvt.s32.f32 %v5886
    %v5951 = vcvt.s32.f32 %v5887
    %v5952 = vcvt.s32.f32 %v5888
    %v5953 = vcvt.s32.f32 %v5889
    %v5954 = vcvt.s32.f32 %v5890
    %v5955 = vcvt.s32.f32 %v5891
    %v5956 = vcvt.s32.f32 %v5892
    %v5957 = vcvt.s32.f32 %v5893
    %v5958 = vcvt.s32.f32 %v5894
    %v5959 = vcvt.s32.f32 %v5895
    %v5960 = vcvt.s32.f32 %v5896
    %v5961 = vcvt.s32.f32 %v5897
    %v5962 = vcvt.s32.f32 %v5898
    %v5963 = vcvt.s32.f32 %v5899
    %v5964 = vcvt.s32.f32 %v5900
    %v5965 = vcvt.s32.f32 %v5901
    %v5966 = vcvt.s32.f32 %v5902
    %v5967 = vcvt.s32.f32 %v5903
    %v5968 = vcvt.s32.f32 %v5904
    %v5969 = vcvt.s32.f32 %v5905
    %v5970 = vcvt.s32.f32 %v5906
    %v5971 = vcvt.s32.f32 %v5907
    %v5972 = vcvt.s32.f32 %v5908
    %v5973 = vcvt.s32.f32 %v5909
    %v5974 = vlaneseq
    %v5975 = vshrl.u32 %v5974, 7
    %v5976 = vsub.s32 0, %v5975
    %v5977 = vrot.slane %v3253, %v5976
    %v5978 = vmul.f32 %v5910, %v5977
    %v5979 = vmul.f32 %v5911, %v5977
    %v5980 = vmul.f32 %v5912, %v5977
    %v5981 = vmul.f32 %v5913, %v5977
    %v5982 = vmul.f32 %v5914, %v5977
    %v5983 = vmul.f32 %v5915, %v5977
    %v5984 = vmul.f32 %v5916, %v5977
    %v5985 = vmul.f32 %v5917, %v5977
    %v5986 = vmul.f32 %v5918, %v5977
    %v5987 = vmul.f32 %v5919, %v5977
    %v5988 = vmul.f32 %v5920, %v5977
    %v5989 = vmul.f32 %v5921, %v5977
    %v5990 = vmul.f32 %v5922, %v5977
    %v5991 = vmul.f32 %v5923, %v5977
    %v5992 = vmul.f32 %v5924, %v5977
    %v5993 = vmul.f32 %v5925, %v5977
    %v5994 = vmul.f32 %v5926, %v5977
    %v5995 = vmul.f32 %v5927, %v5977
    %v5996 = vmul.f32 %v5928, %v5977
    %v5997 = vmul.f32 %v5929, %v5977
    %v5998 = vmul.f32 %v5930, %v5977
    %v5999 = vmul.f32 %v5931, %v5977
    %v6000 = vmul.f32 %v5932, %v5977
    %v6001 = vmul.f32 %v5933, %v5977
    %v6002 = vmul.f32 %v5934, %v5977
    %v6003 = vmul.f32 %v5935, %v5977
    %v6004 = vmul.f32 %v5936, %v5977
    %v6005 = vmul.f32 %v5937, %v5977
    %v6006 = vmul.f32 %v5938, %v5977
    %v6007 = vmul.f32 %v5939, %v5977
    %v6008 = vmul.f32 %v5940, %v5977
    %v6009 = vmul.f32 %v5941, %v5977
    %v6010 = vmul.f32 %v5942, %v5977
    %v6011 = vmul.f32 %v5943, %v5977
    %v6012 = vmul.f32 %v5944, %v5977
    %v6013 = vmul.f32 %v5945, %v5977
    %v6014 = vmul.f32 %v5946, %v5977
    %v6015 = vmul.f32 %v5947, %v5977
    %v6016 = vmul.f32 %v5948, %v5977
    %v6017 = vmul.f32 %v5949, %v5977
    %v6018 = vmul.f32 %v5950, %v5977
    %v6019 = vmul.f32 %v5951, %v5977
    %v6020 = vmul.f32 %v5952, %v5977
    %v6021 = vmul.f32 %v5953, %v5977
    %v6022 = vmul.f32 %v5954, %v5977
    %v6023 = vmul.f32 %v5955, %v5977
    %v6024 = vmul.f32 %v5956, %v5977
    %v6025 = vmul.f32 %v5957, %v5977
    %v6026 = vmul.f32 %v5958, %v5977
    %v6027 = vmul.f32 %v5959, %v5977
    %v6028 = vmul.f32 %v5960, %v5977
    %v6029 = vmul.f32 %v5961, %v5977
    %v6030 = vmul.f32 %v5962, %v5977
    %v6031 = vmul.f32 %v5963, %v5977
    %v6032 = vmul.f32 %v5964, %v5977
    %v6033 = vmul.f32 %v5965, %v5977
    %v6034 = vmul.f32 %v5966, %v5977
    %v6035 = vmul.f32 %v5967, %v5977
    %v6036 = vmul.f32 %v5968, %v5977
    %v6037 = vmul.f32 %v5969, %v5977
    %v6038 = vmul.f32 %v5970, %v5977
    %v6039 = vmul.f32 %v5971, %v5977
    %v6040 = vmul.f32 %v5972, %v5977
    %v6041 = vmul.f32 %v5973, %v5977
    %v6042 = vadd.f32 %v5718, %v5978
    %v6043 = vadd.f32 %v5719, %v5979
    %v6044 = vadd.f32 %v5720, %v5980
    %v6045 = vadd.f32 %v5721, %v5981
    %v6046 = vadd.f32 %v5722, %v5982
    %v6047 = vadd.f32 %v5723, %v5983
    %v6048 = vadd.f32 %v5724, %v5984
    %v6049 = vadd.f32 %v5725, %v5985
    %v6050 = vadd.f32 %v5726, %v5986
    %v6051 = vadd.f32 %v5727, %v5987
    %v6052 = vadd.f32 %v5728, %v5988
    %v6053 = vadd.f32 %v5729, %v5989
    %v6054 = vadd.f32 %v5730, %v5990
    %v6055 = vadd.f32 %v5731, %v5991
    %v6056 = vadd.f32 %v5732, %v5992
    %v6057 = vadd.f32 %v5733, %v5993
    %v6058 = vadd.f32 %v5734, %v5994
    %v6059 = vadd.f32 %v5735, %v5995
    %v6060 = vadd.f32 %v5736, %v5996
    %v6061 = vadd.f32 %v5737, %v5997
    %v6062 = vadd.f32 %v5738, %v5998
    %v6063 = vadd.f32 %v5739, %v5999
    %v6064 = vadd.f32 %v5740, %v6000
    %v6065 = vadd.f32 %v5741, %v6001
    %v6066 = vadd.f32 %v5742, %v6002
    %v6067 = vadd.f32 %v5743, %v6003
    %v6068 = vadd.f32 %v5744, %v6004
    %v6069 = vadd.f32 %v5745, %v6005
    %v6070 = vadd.f32 %v5746, %v6006
    %v6071 = vadd.f32 %v5747, %v6007
    %v6072 = vadd.f32 %v5748, %v6008
    %v6073 = vadd.f32 %v5749, %v6009
    %v6074 = vadd.f32 %v5750, %v6010
    %v6075 = vadd.f32 %v5751, %v6011
    %v6076 = vadd.f32 %v5752, %v6012
    %v6077 = vadd.f32 %v5753, %v6013
    %v6078 = vadd.f32 %v5754, %v6014
    %v6079 = vadd.f32 %v5755, %v6015
    %v6080 = vadd.f32 %v5756, %v6016
    %v6081 = vadd.f32 %v5757, %v6017
    %v6082 = vadd.f32 %v5758, %v6018
    %v6083 = vadd.f32 %v5759, %v6019
    %v6084 = vadd.f32 %v5760, %v6020
    %v6085 = vadd.f32 %v5761, %v6021
    %v6086 = vadd.f32 %v5762, %v6022
    %v6087 = vadd.f32 %v5763, %v6023
    %v6088 = vadd.f32 %v5764, %v6024
    %v6089 = vadd.f32 %v5765, %v6025
    %v6090 = vadd.f32 %v5766, %v6026
    %v6091 = vadd.f32 %v5767, %v6027
    %v6092 = vadd.f32 %v5768, %v6028
    %v6093 = vadd.f32 %v5769, %v6029
    %v6094 = vadd.f32 %v5770, %v6030
    %v6095 = vadd.f32 %v5771, %v6031
    %v6096 = vadd.f32 %v5772, %v6032
    %v6097 = vadd.f32 %v5773, %v6033
    %v6098 = vadd.f32 %v5774, %v6034
    %v6099 = vadd.f32 %v5775, %v6035
    %v6100 = vadd.f32 %v5776, %v6036
    %v6101 = vadd.f32 %v5777, %v6037
    %v6102 = vadd.f32 %v5778, %v6038
    %v6103 = vadd.f32 %v5779, %v6039
    %v6104 = vadd.f32 %v5780, %v6040
    %v6105 = vadd.f32 %v5781, %v6041
    %vm6106 = vcmp.eq.s32.totalorder %v2114, 9
    %vm6107 = vcmp.eq.s32.totalorder %v2129, 9
    %vm6108 = vcmp.eq.s32.totalorder %v2144, 9
    %vm6109 = vcmp.eq.s32.totalorder %v2159, 9
    %vm6110 = vcmp.eq.s32.totalorder %v2174, 9
    %vm6111 = vcmp.eq.s32.totalorder %v2189, 9
    %vm6112 = vcmp.eq.s32.totalorder %v2204, 9
    %vm6113 = vcmp.eq.s32.totalorder %v2219, 9
    %vm6114 = vcmp.eq.s32.totalorder %v2234, 9
    %vm6115 = vcmp.eq.s32.totalorder %v2249, 9
    %vm6116 = vcmp.eq.s32.totalorder %v2264, 9
    %vm6117 = vcmp.eq.s32.totalorder %v2279, 9
    %vm6118 = vcmp.eq.s32.totalorder %v2294, 9
    %vm6119 = vcmp.eq.s32.totalorder %v2309, 9
    %vm6120 = vcmp.eq.s32.totalorder %v2324, 9
    %vm6121 = vcmp.eq.s32.totalorder %v2339, 9
    %vm6122 = vcmp.eq.s32.totalorder %v2354, 9
    %vm6123 = vcmp.eq.s32.totalorder %v2369, 9
    %vm6124 = vcmp.eq.s32.totalorder %v2384, 9
    %vm6125 = vcmp.eq.s32.totalorder %v2399, 9
    %vm6126 = vcmp.eq.s32.totalorder %v2414, 9
    %vm6127 = vcmp.eq.s32.totalorder %v2429, 9
    %vm6128 = vcmp.eq.s32.totalorder %v2444, 9
    %vm6129 = vcmp.eq.s32.totalorder %v2459, 9
    %vm6130 = vcmp.eq.s32.totalorder %v2474, 9
    %vm6131 = vcmp.eq.s32.totalorder %v2489, 9
    %vm6132 = vcmp.eq.s32.totalorder %v2504, 9
    %vm6133 = vcmp.eq.s32.totalorder %v2519, 9
    %vm6134 = vcmp.eq.s32.totalorder %v2534, 9
    %vm6135 = vcmp.eq.s32.totalorder %v2549, 9
    %vm6136 = vcmp.eq.s32.totalorder %v2564, 9
    %vm6137 = vcmp.eq.s32.totalorder %v2579, 9
    %vm6138 = vcmp.eq.s32.totalorder %v2594, 9
    %vm6139 = vcmp.eq.s32.totalorder %v2609, 9
    %vm6140 = vcmp.eq.s32.totalorder %v2624, 9
    %vm6141 = vcmp.eq.s32.totalorder %v2639, 9
    %vm6142 = vcmp.eq.s32.totalorder %v2654, 9
    %vm6143 = vcmp.eq.s32.totalorder %v2669, 9
    %vm6144 = vcmp.eq.s32.totalorder %v2684, 9
    %vm6145 = vcmp.eq.s32.totalorder %v2699, 9
    %vm6146 = vcmp.eq.s32.totalorder %v2714, 9
    %vm6147 = vcmp.eq.s32.totalorder %v2729, 9
    %vm6148 = vcmp.eq.s32.totalorder %v2744, 9
    %vm6149 = vcmp.eq.s32.totalorder %v2759, 9
    %vm6150 = vcmp.eq.s32.totalorder %v2774, 9
    %vm6151 = vcmp.eq.s32.totalorder %v2789, 9
    %vm6152 = vcmp.eq.s32.totalorder %v2804, 9
    %vm6153 = vcmp.eq.s32.totalorder %v2819, 9
    %vm6154 = vcmp.eq.s32.totalorder %v2834, 9
    %vm6155 = vcmp.eq.s32.totalorder %v2849, 9
    %vm6156 = vcmp.eq.s32.totalorder %v2864, 9
    %vm6157 = vcmp.eq.s32.totalorder %v2879, 9
    %vm6158 = vcmp.eq.s32.totalorder %v2894, 9
    %vm6159 = vcmp.eq.s32.totalorder %v2909, 9
    %vm6160 = vcmp.eq.s32.totalorder %v2924, 9
    %vm6161 = vcmp.eq.s32.totalorder %v2939, 9
    %vm6162 = vcmp.eq.s32.totalorder %v2954, 9
    %vm6163 = vcmp.eq.s32.totalorder %v2969, 9
    %vm6164 = vcmp.eq.s32.totalorder %v2984, 9
    %vm6165 = vcmp.eq.s32.totalorder %v2999, 9
    %vm6166 = vcmp.eq.s32.totalorder %v3014, 9
    %vm6167 = vcmp.eq.s32.totalorder %v3029, 9
    %vm6168 = vcmp.eq.s32.totalorder %v3044, 9
    %vm6169 = vcmp.eq.s32.totalorder %v3059, 9
    %v6170 = vsel %vm6106, 1, 0
    %v6171 = vsel %vm6107, 1, 0
    %v6172 = vsel %vm6108, 1, 0
    %v6173 = vsel %vm6109, 1, 0
    %v6174 = vsel %vm6110, 1, 0
    %v6175 = vsel %vm6111, 1, 0
    %v6176 = vsel %vm6112, 1, 0
    %v6177 = vsel %vm6113, 1, 0
    %v6178 = vsel %vm6114, 1, 0
    %v6179 = vsel %vm6115, 1, 0
    %v6180 = vsel %vm6116, 1, 0
    %v6181 = vsel %vm6117, 1, 0
    %v6182 = vsel %vm6118, 1, 0
    %v6183 = vsel %vm6119, 1, 0
    %v6184 = vsel %vm6120, 1, 0
    %v6185 = vsel %vm6121, 1, 0
    %v6186 = vsel %vm6122, 1, 0
    %v6187 = vsel %vm6123, 1, 0
    %v6188 = vsel %vm6124, 1, 0
    %v6189 = vsel %vm6125, 1, 0
    %v6190 = vsel %vm6126, 1, 0
    %v6191 = vsel %vm6127, 1, 0
    %v6192 = vsel %vm6128, 1, 0
    %v6193 = vsel %vm6129, 1, 0
    %v6194 = vsel %vm6130, 1, 0
    %v6195 = vsel %vm6131, 1, 0
    %v6196 = vsel %vm6132, 1, 0
    %v6197 = vsel %vm6133, 1, 0
    %v6198 = vsel %vm6134, 1, 0
    %v6199 = vsel %vm6135, 1, 0
    %v6200 = vsel %vm6136, 1, 0
    %v6201 = vsel %vm6137, 1, 0
    %v6202 = vsel %vm6138, 1, 0
    %v6203 = vsel %vm6139, 1, 0
    %v6204 = vsel %vm6140, 1, 0
    %v6205 = vsel %vm6141, 1, 0
    %v6206 = vsel %vm6142, 1, 0
    %v6207 = vsel %vm6143, 1, 0
    %v6208 = vsel %vm6144, 1, 0
    %v6209 = vsel %vm6145, 1, 0
    %v6210 = vsel %vm6146, 1, 0
    %v6211 = vsel %vm6147, 1, 0
    %v6212 = vsel %vm6148, 1, 0
    %v6213 = vsel %vm6149, 1, 0
    %v6214 = vsel %vm6150, 1, 0
    %v6215 = vsel %vm6151, 1, 0
    %v6216 = vsel %vm6152, 1, 0
    %v6217 = vsel %vm6153, 1, 0
    %v6218 = vsel %vm6154, 1, 0
    %v6219 = vsel %vm6155, 1, 0
    %v6220 = vsel %vm6156, 1, 0
    %v6221 = vsel %vm6157, 1, 0
    %v6222 = vsel %vm6158, 1, 0
    %v6223 = vsel %vm6159, 1, 0
    %v6224 = vsel %vm6160, 1, 0
    %v6225 = vsel %vm6161, 1, 0
    %v6226 = vsel %vm6162, 1, 0
    %v6227 = vsel %vm6163, 1, 0
    %v6228 = vsel %vm6164, 1, 0
    %v6229 = vsel %vm6165, 1, 0
    %v6230 = vsel %vm6166, 1, 0
    %v6231 = vsel %vm6167, 1, 0
    %v6232 = vsel %vm6168, 1, 0
    %v6233 = vsel %vm6169, 1, 0
    %v6234 = vcvt.s32.f32 %v6170
    %v6235 = vcvt.s32.f32 %v6171
    %v6236 = vcvt.s32.f32 %v6172
    %v6237 = vcvt.s32.f32 %v6173
    %v6238 = vcvt.s32.f32 %v6174
    %v6239 = vcvt.s32.f32 %v6175
    %v6240 = vcvt.s32.f32 %v6176
    %v6241 = vcvt.s32.f32 %v6177
    %v6242 = vcvt.s32.f32 %v6178
    %v6243 = vcvt.s32.f32 %v6179
    %v6244 = vcvt.s32.f32 %v6180
    %v6245 = vcvt.s32.f32 %v6181
    %v6246 = vcvt.s32.f32 %v6182
    %v6247 = vcvt.s32.f32 %v6183
    %v6248 = vcvt.s32.f32 %v6184
    %v6249 = vcvt.s32.f32 %v6185
    %v6250 = vcvt.s32.f32 %v6186
    %v6251 = vcvt.s32.f32 %v6187
    %v6252 = vcvt.s32.f32 %v6188
    %v6253 = vcvt.s32.f32 %v6189
    %v6254 = vcvt.s32.f32 %v6190
    %v6255 = vcvt.s32.f32 %v6191
    %v6256 = vcvt.s32.f32 %v6192
    %v6257 = vcvt.s32.f32 %v6193
    %v6258 = vcvt.s32.f32 %v6194
    %v6259 = vcvt.s32.f32 %v6195
    %v6260 = vcvt.s32.f32 %v6196
    %v6261 = vcvt.s32.f32 %v6197
    %v6262 = vcvt.s32.f32 %v6198
    %v6263 = vcvt.s32.f32 %v6199
    %v6264 = vcvt.s32.f32 %v6200
    %v6265 = vcvt.s32.f32 %v6201
    %v6266 = vcvt.s32.f32 %v6202
    %v6267 = vcvt.s32.f32 %v6203
    %v6268 = vcvt.s32.f32 %v6204
    %v6269 = vcvt.s32.f32 %v6205
    %v6270 = vcvt.s32.f32 %v6206
    %v6271 = vcvt.s32.f32 %v6207
    %v6272 = vcvt.s32.f32 %v6208
    %v6273 = vcvt.s32.f32 %v6209
    %v6274 = vcvt.s32.f32 %v6210
    %v6275 = vcvt.s32.f32 %v6211
    %v6276 = vcvt.s32.f32 %v6212
    %v6277 = vcvt.s32.f32 %v6213
    %v6278 = vcvt.s32.f32 %v6214
    %v6279 = vcvt.s32.f32 %v6215
    %v6280 = vcvt.s32.f32 %v6216
    %v6281 = vcvt.s32.f32 %v6217
    %v6282 = vcvt.s32.f32 %v6218
    %v6283 = vcvt.s32.f32 %v6219
    %v6284 = vcvt.s32.f32 %v6220
    %v6285 = vcvt.s32.f32 %v6221
    %v6286 = vcvt.s32.f32 %v6222
    %v6287 = vcvt.s32.f32 %v6223
    %v6288 = vcvt.s32.f32 %v6224
    %v6289 = vcvt.s32.f32 %v6225
    %v6290 = vcvt.s32.f32 %v6226
    %v6291 = vcvt.s32.f32 %v6227
    %v6292 = vcvt.s32.f32 %v6228
    %v6293 = vcvt.s32.f32 %v6229
    %v6294 = vcvt.s32.f32 %v6230
    %v6295 = vcvt.s32.f32 %v6231
    %v6296 = vcvt.s32.f32 %v6232
    %v6297 = vcvt.s32.f32 %v6233
    %v6298 = vlaneseq
    %v6299 = vshrl.u32 %v6298, 7
    %v6300 = vsub.s32 1, %v6299
    %v6301 = vrot.slane %v3253, %v6300
    %v6302 = vmul.f32 %v6234, %v6301
    %v6303 = vmul.f32 %v6235, %v6301
    %v6304 = vmul.f32 %v6236, %v6301
    %v6305 = vmul.f32 %v6237, %v6301
    %v6306 = vmul.f32 %v6238, %v6301
    %v6307 = vmul.f32 %v6239, %v6301
    %v6308 = vmul.f32 %v6240, %v6301
    %v6309 = vmul.f32 %v6241, %v6301
    %v6310 = vmul.f32 %v6242, %v6301
    %v6311 = vmul.f32 %v6243, %v6301
    %v6312 = vmul.f32 %v6244, %v6301
    %v6313 = vmul.f32 %v6245, %v6301
    %v6314 = vmul.f32 %v6246, %v6301
    %v6315 = vmul.f32 %v6247, %v6301
    %v6316 = vmul.f32 %v6248, %v6301
    %v6317 = vmul.f32 %v6249, %v6301
    %v6318 = vmul.f32 %v6250, %v6301
    %v6319 = vmul.f32 %v6251, %v6301
    %v6320 = vmul.f32 %v6252, %v6301
    %v6321 = vmul.f32 %v6253, %v6301
    %v6322 = vmul.f32 %v6254, %v6301
    %v6323 = vmul.f32 %v6255, %v6301
    %v6324 = vmul.f32 %v6256, %v6301
    %v6325 = vmul.f32 %v6257, %v6301
    %v6326 = vmul.f32 %v6258, %v6301
    %v6327 = vmul.f32 %v6259, %v6301
    %v6328 = vmul.f32 %v6260, %v6301
    %v6329 = vmul.f32 %v6261, %v6301
    %v6330 = vmul.f32 %v6262, %v6301
    %v6331 = vmul.f32 %v6263, %v6301
    %v6332 = vmul.f32 %v6264, %v6301
    %v6333 = vmul.f32 %v6265, %v6301
    %v6334 = vmul.f32 %v6266, %v6301
    %v6335 = vmul.f32 %v6267, %v6301
    %v6336 = vmul.f32 %v6268, %v6301
    %v6337 = vmul.f32 %v6269, %v6301
    %v6338 = vmul.f32 %v6270, %v6301
    %v6339 = vmul.f32 %v6271, %v6301
    %v6340 = vmul.f32 %v6272, %v6301
    %v6341 = vmul.f32 %v6273, %v6301
    %v6342 = vmul.f32 %v6274, %v6301
    %v6343 = vmul.f32 %v6275, %v6301
    %v6344 = vmul.f32 %v6276, %v6301
    %v6345 = vmul.f32 %v6277, %v6301
    %v6346 = vmul.f32 %v6278, %v6301
    %v6347 = vmul.f32 %v6279, %v6301
    %v6348 = vmul.f32 %v6280, %v6301
    %v6349 = vmul.f32 %v6281, %v6301
    %v6350 = vmul.f32 %v6282, %v6301
    %v6351 = vmul.f32 %v6283, %v6301
    %v6352 = vmul.f32 %v6284, %v6301
    %v6353 = vmul.f32 %v6285, %v6301
    %v6354 = vmul.f32 %v6286, %v6301
    %v6355 = vmul.f32 %v6287, %v6301
    %v6356 = vmul.f32 %v6288, %v6301
    %v6357 = vmul.f32 %v6289, %v6301
    %v6358 = vmul.f32 %v6290, %v6301
    %v6359 = vmul.f32 %v6291, %v6301
    %v6360 = vmul.f32 %v6292, %v6301
    %v6361 = vmul.f32 %v6293, %v6301
    %v6362 = vmul.f32 %v6294, %v6301
    %v6363 = vmul.f32 %v6295, %v6301
    %v6364 = vmul.f32 %v6296, %v6301
    %v6365 = vmul.f32 %v6297, %v6301
    %v6366 = vadd.f32 %v6042, %v6302
    %v6367 = vadd.f32 %v6043, %v6303
    %v6368 = vadd.f32 %v6044, %v6304
    %v6369 = vadd.f32 %v6045, %v6305
    %v6370 = vadd.f32 %v6046, %v6306
    %v6371 = vadd.f32 %v6047, %v6307
    %v6372 = vadd.f32 %v6048, %v6308
    %v6373 = vadd.f32 %v6049, %v6309
    %v6374 = vadd.f32 %v6050, %v6310
    %v6375 = vadd.f32 %v6051, %v6311
    %v6376 = vadd.f32 %v6052, %v6312
    %v6377 = vadd.f32 %v6053, %v6313
    %v6378 = vadd.f32 %v6054, %v6314
    %v6379 = vadd.f32 %v6055, %v6315
    %v6380 = vadd.f32 %v6056, %v6316
    %v6381 = vadd.f32 %v6057, %v6317
    %v6382 = vadd.f32 %v6058, %v6318
    %v6383 = vadd.f32 %v6059, %v6319
    %v6384 = vadd.f32 %v6060, %v6320
    %v6385 = vadd.f32 %v6061, %v6321
    %v6386 = vadd.f32 %v6062, %v6322
    %v6387 = vadd.f32 %v6063, %v6323
    %v6388 = vadd.f32 %v6064, %v6324
    %v6389 = vadd.f32 %v6065, %v6325
    %v6390 = vadd.f32 %v6066, %v6326
    %v6391 = vadd.f32 %v6067, %v6327
    %v6392 = vadd.f32 %v6068, %v6328
    %v6393 = vadd.f32 %v6069, %v6329
    %v6394 = vadd.f32 %v6070, %v6330
    %v6395 = vadd.f32 %v6071, %v6331
    %v6396 = vadd.f32 %v6072, %v6332
    %v6397 = vadd.f32 %v6073, %v6333
    %v6398 = vadd.f32 %v6074, %v6334
    %v6399 = vadd.f32 %v6075, %v6335
    %v6400 = vadd.f32 %v6076, %v6336
    %v6401 = vadd.f32 %v6077, %v6337
    %v6402 = vadd.f32 %v6078, %v6338
    %v6403 = vadd.f32 %v6079, %v6339
    %v6404 = vadd.f32 %v6080, %v6340
    %v6405 = vadd.f32 %v6081, %v6341
    %v6406 = vadd.f32 %v6082, %v6342
    %v6407 = vadd.f32 %v6083, %v6343
    %v6408 = vadd.f32 %v6084, %v6344
    %v6409 = vadd.f32 %v6085, %v6345
    %v6410 = vadd.f32 %v6086, %v6346
    %v6411 = vadd.f32 %v6087, %v6347
    %v6412 = vadd.f32 %v6088, %v6348
    %v6413 = vadd.f32 %v6089, %v6349
    %v6414 = vadd.f32 %v6090, %v6350
    %v6415 = vadd.f32 %v6091, %v6351
    %v6416 = vadd.f32 %v6092, %v6352
    %v6417 = vadd.f32 %v6093, %v6353
    %v6418 = vadd.f32 %v6094, %v6354
    %v6419 = vadd.f32 %v6095, %v6355
    %v6420 = vadd.f32 %v6096, %v6356
    %v6421 = vadd.f32 %v6097, %v6357
    %v6422 = vadd.f32 %v6098, %v6358
    %v6423 = vadd.f32 %v6099, %v6359
    %v6424 = vadd.f32 %v6100, %v6360
    %v6425 = vadd.f32 %v6101, %v6361
    %v6426 = vadd.f32 %v6102, %v6362
    %v6427 = vadd.f32 %v6103, %v6363
    %v6428 = vadd.f32 %v6104, %v6364
    %v6429 = vadd.f32 %v6105, %v6365
    %vm6430 = vcmp.eq.s32.totalorder %v2114, 10
    %vm6431 = vcmp.eq.s32.totalorder %v2129, 10
    %vm6432 = vcmp.eq.s32.totalorder %v2144, 10
    %vm6433 = vcmp.eq.s32.totalorder %v2159, 10
    %vm6434 = vcmp.eq.s32.totalorder %v2174, 10
    %vm6435 = vcmp.eq.s32.totalorder %v2189, 10
    %vm6436 = vcmp.eq.s32.totalorder %v2204, 10
    %vm6437 = vcmp.eq.s32.totalorder %v2219, 10
    %vm6438 = vcmp.eq.s32.totalorder %v2234, 10
    %vm6439 = vcmp.eq.s32.totalorder %v2249, 10
    %vm6440 = vcmp.eq.s32.totalorder %v2264, 10
    %vm6441 = vcmp.eq.s32.totalorder %v2279, 10
    %vm6442 = vcmp.eq.s32.totalorder %v2294, 10
    %vm6443 = vcmp.eq.s32.totalorder %v2309, 10
    %vm6444 = vcmp.eq.s32.totalorder %v2324, 10
    %vm6445 = vcmp.eq.s32.totalorder %v2339, 10
    %vm6446 = vcmp.eq.s32.totalorder %v2354, 10
    %vm6447 = vcmp.eq.s32.totalorder %v2369, 10
    %vm6448 = vcmp.eq.s32.totalorder %v2384, 10
    %vm6449 = vcmp.eq.s32.totalorder %v2399, 10
    %vm6450 = vcmp.eq.s32.totalorder %v2414, 10
    %vm6451 = vcmp.eq.s32.totalorder %v2429, 10
    %vm6452 = vcmp.eq.s32.totalorder %v2444, 10
    %vm6453 = vcmp.eq.s32.totalorder %v2459, 10
    %vm6454 = vcmp.eq.s32.totalorder %v2474, 10
    %vm6455 = vcmp.eq.s32.totalorder %v2489, 10
    %vm6456 = vcmp.eq.s32.totalorder %v2504, 10
    %vm6457 = vcmp.eq.s32.totalorder %v2519, 10
    %vm6458 = vcmp.eq.s32.totalorder %v2534, 10
    %vm6459 = vcmp.eq.s32.totalorder %v2549, 10
    %vm6460 = vcmp.eq.s32.totalorder %v2564, 10
    %vm6461 = vcmp.eq.s32.totalorder %v2579, 10
    %vm6462 = vcmp.eq.s32.totalorder %v2594, 10
    %vm6463 = vcmp.eq.s32.totalorder %v2609, 10
    %vm6464 = vcmp.eq.s32.totalorder %v2624, 10
    %vm6465 = vcmp.eq.s32.totalorder %v2639, 10
    %vm6466 = vcmp.eq.s32.totalorder %v2654, 10
    %vm6467 = vcmp.eq.s32.totalorder %v2669, 10
    %vm6468 = vcmp.eq.s32.totalorder %v2684, 10
    %vm6469 = vcmp.eq.s32.totalorder %v2699, 10
    %vm6470 = vcmp.eq.s32.totalorder %v2714, 10
    %vm6471 = vcmp.eq.s32.totalorder %v2729, 10
    %vm6472 = vcmp.eq.s32.totalorder %v2744, 10
    %vm6473 = vcmp.eq.s32.totalorder %v2759, 10
    %vm6474 = vcmp.eq.s32.totalorder %v2774, 10
    %vm6475 = vcmp.eq.s32.totalorder %v2789, 10
    %vm6476 = vcmp.eq.s32.totalorder %v2804, 10
    %vm6477 = vcmp.eq.s32.totalorder %v2819, 10
    %vm6478 = vcmp.eq.s32.totalorder %v2834, 10
    %vm6479 = vcmp.eq.s32.totalorder %v2849, 10
    %vm6480 = vcmp.eq.s32.totalorder %v2864, 10
    %vm6481 = vcmp.eq.s32.totalorder %v2879, 10
    %vm6482 = vcmp.eq.s32.totalorder %v2894, 10
    %vm6483 = vcmp.eq.s32.totalorder %v2909, 10
    %vm6484 = vcmp.eq.s32.totalorder %v2924, 10
    %vm6485 = vcmp.eq.s32.totalorder %v2939, 10
    %vm6486 = vcmp.eq.s32.totalorder %v2954, 10
    %vm6487 = vcmp.eq.s32.totalorder %v2969, 10
    %vm6488 = vcmp.eq.s32.totalorder %v2984, 10
    %vm6489 = vcmp.eq.s32.totalorder %v2999, 10
    %vm6490 = vcmp.eq.s32.totalorder %v3014, 10
    %vm6491 = vcmp.eq.s32.totalorder %v3029, 10
    %vm6492 = vcmp.eq.s32.totalorder %v3044, 10
    %vm6493 = vcmp.eq.s32.totalorder %v3059, 10
    %v6494 = vsel %vm6430, 1, 0
    %v6495 = vsel %vm6431, 1, 0
    %v6496 = vsel %vm6432, 1, 0
    %v6497 = vsel %vm6433, 1, 0
    %v6498 = vsel %vm6434, 1, 0
    %v6499 = vsel %vm6435, 1, 0
    %v6500 = vsel %vm6436, 1, 0
    %v6501 = vsel %vm6437, 1, 0
    %v6502 = vsel %vm6438, 1, 0
    %v6503 = vsel %vm6439, 1, 0
    %v6504 = vsel %vm6440, 1, 0
    %v6505 = vsel %vm6441, 1, 0
    %v6506 = vsel %vm6442, 1, 0
    %v6507 = vsel %vm6443, 1, 0
    %v6508 = vsel %vm6444, 1, 0
    %v6509 = vsel %vm6445, 1, 0
    %v6510 = vsel %vm6446, 1, 0
    %v6511 = vsel %vm6447, 1, 0
    %v6512 = vsel %vm6448, 1, 0
    %v6513 = vsel %vm6449, 1, 0
    %v6514 = vsel %vm6450, 1, 0
    %v6515 = vsel %vm6451, 1, 0
    %v6516 = vsel %vm6452, 1, 0
    %v6517 = vsel %vm6453, 1, 0
    %v6518 = vsel %vm6454, 1, 0
    %v6519 = vsel %vm6455, 1, 0
    %v6520 = vsel %vm6456, 1, 0
    %v6521 = vsel %vm6457, 1, 0
    %v6522 = vsel %vm6458, 1, 0
    %v6523 = vsel %vm6459, 1, 0
    %v6524 = vsel %vm6460, 1, 0
    %v6525 = vsel %vm6461, 1, 0
    %v6526 = vsel %vm6462, 1, 0
    %v6527 = vsel %vm6463, 1, 0
    %v6528 = vsel %vm6464, 1, 0
    %v6529 = vsel %vm6465, 1, 0
    %v6530 = vsel %vm6466, 1, 0
    %v6531 = vsel %vm6467, 1, 0
    %v6532 = vsel %vm6468, 1, 0
    %v6533 = vsel %vm6469, 1, 0
    %v6534 = vsel %vm6470, 1, 0
    %v6535 = vsel %vm6471, 1, 0
    %v6536 = vsel %vm6472, 1, 0
    %v6537 = vsel %vm6473, 1, 0
    %v6538 = vsel %vm6474, 1, 0
    %v6539 = vsel %vm6475, 1, 0
    %v6540 = vsel %vm6476, 1, 0
    %v6541 = vsel %vm6477, 1, 0
    %v6542 = vsel %vm6478, 1, 0
    %v6543 = vsel %vm6479, 1, 0
    %v6544 = vsel %vm6480, 1, 0
    %v6545 = vsel %vm6481, 1, 0
    %v6546 = vsel %vm6482, 1, 0
    %v6547 = vsel %vm6483, 1, 0
    %v6548 = vsel %vm6484, 1, 0
    %v6549 = vsel %vm6485, 1, 0
    %v6550 = vsel %vm6486, 1, 0
    %v6551 = vsel %vm6487, 1, 0
    %v6552 = vsel %vm6488, 1, 0
    %v6553 = vsel %vm6489, 1, 0
    %v6554 = vsel %vm6490, 1, 0
    %v6555 = vsel %vm6491, 1, 0
    %v6556 = vsel %vm6492, 1, 0
    %v6557 = vsel %vm6493, 1, 0
    %v6558 = vcvt.s32.f32 %v6494
    %v6559 = vcvt.s32.f32 %v6495
    %v6560 = vcvt.s32.f32 %v6496
    %v6561 = vcvt.s32.f32 %v6497
    %v6562 = vcvt.s32.f32 %v6498
    %v6563 = vcvt.s32.f32 %v6499
    %v6564 = vcvt.s32.f32 %v6500
    %v6565 = vcvt.s32.f32 %v6501
    %v6566 = vcvt.s32.f32 %v6502
    %v6567 = vcvt.s32.f32 %v6503
    %v6568 = vcvt.s32.f32 %v6504
    %v6569 = vcvt.s32.f32 %v6505
    %v6570 = vcvt.s32.f32 %v6506
    %v6571 = vcvt.s32.f32 %v6507
    %v6572 = vcvt.s32.f32 %v6508
    %v6573 = vcvt.s32.f32 %v6509
    %v6574 = vcvt.s32.f32 %v6510
    %v6575 = vcvt.s32.f32 %v6511
    %v6576 = vcvt.s32.f32 %v6512
    %v6577 = vcvt.s32.f32 %v6513
    %v6578 = vcvt.s32.f32 %v6514
    %v6579 = vcvt.s32.f32 %v6515
    %v6580 = vcvt.s32.f32 %v6516
    %v6581 = vcvt.s32.f32 %v6517
    %v6582 = vcvt.s32.f32 %v6518
    %v6583 = vcvt.s32.f32 %v6519
    %v6584 = vcvt.s32.f32 %v6520
    %v6585 = vcvt.s32.f32 %v6521
    %v6586 = vcvt.s32.f32 %v6522
    %v6587 = vcvt.s32.f32 %v6523
    %v6588 = vcvt.s32.f32 %v6524
    %v6589 = vcvt.s32.f32 %v6525
    %v6590 = vcvt.s32.f32 %v6526
    %v6591 = vcvt.s32.f32 %v6527
    %v6592 = vcvt.s32.f32 %v6528
    %v6593 = vcvt.s32.f32 %v6529
    %v6594 = vcvt.s32.f32 %v6530
    %v6595 = vcvt.s32.f32 %v6531
    %v6596 = vcvt.s32.f32 %v6532
    %v6597 = vcvt.s32.f32 %v6533
    %v6598 = vcvt.s32.f32 %v6534
    %v6599 = vcvt.s32.f32 %v6535
    %v6600 = vcvt.s32.f32 %v6536
    %v6601 = vcvt.s32.f32 %v6537
    %v6602 = vcvt.s32.f32 %v6538
    %v6603 = vcvt.s32.f32 %v6539
    %v6604 = vcvt.s32.f32 %v6540
    %v6605 = vcvt.s32.f32 %v6541
    %v6606 = vcvt.s32.f32 %v6542
    %v6607 = vcvt.s32.f32 %v6543
    %v6608 = vcvt.s32.f32 %v6544
    %v6609 = vcvt.s32.f32 %v6545
    %v6610 = vcvt.s32.f32 %v6546
    %v6611 = vcvt.s32.f32 %v6547
    %v6612 = vcvt.s32.f32 %v6548
    %v6613 = vcvt.s32.f32 %v6549
    %v6614 = vcvt.s32.f32 %v6550
    %v6615 = vcvt.s32.f32 %v6551
    %v6616 = vcvt.s32.f32 %v6552
    %v6617 = vcvt.s32.f32 %v6553
    %v6618 = vcvt.s32.f32 %v6554
    %v6619 = vcvt.s32.f32 %v6555
    %v6620 = vcvt.s32.f32 %v6556
    %v6621 = vcvt.s32.f32 %v6557
    %v6622 = vlaneseq
    %v6623 = vshrl.u32 %v6622, 7
    %v6624 = vsub.s32 2, %v6623
    %v6625 = vrot.slane %v3253, %v6624
    %v6626 = vmul.f32 %v6558, %v6625
    %v6627 = vmul.f32 %v6559, %v6625
    %v6628 = vmul.f32 %v6560, %v6625
    %v6629 = vmul.f32 %v6561, %v6625
    %v6630 = vmul.f32 %v6562, %v6625
    %v6631 = vmul.f32 %v6563, %v6625
    %v6632 = vmul.f32 %v6564, %v6625
    %v6633 = vmul.f32 %v6565, %v6625
    %v6634 = vmul.f32 %v6566, %v6625
    %v6635 = vmul.f32 %v6567, %v6625
    %v6636 = vmul.f32 %v6568, %v6625
    %v6637 = vmul.f32 %v6569, %v6625
    %v6638 = vmul.f32 %v6570, %v6625
    %v6639 = vmul.f32 %v6571, %v6625
    %v6640 = vmul.f32 %v6572, %v6625
    %v6641 = vmul.f32 %v6573, %v6625
    %v6642 = vmul.f32 %v6574, %v6625
    %v6643 = vmul.f32 %v6575, %v6625
    %v6644 = vmul.f32 %v6576, %v6625
    %v6645 = vmul.f32 %v6577, %v6625
    %v6646 = vmul.f32 %v6578, %v6625
    %v6647 = vmul.f32 %v6579, %v6625
    %v6648 = vmul.f32 %v6580, %v6625
    %v6649 = vmul.f32 %v6581, %v6625
    %v6650 = vmul.f32 %v6582, %v6625
    %v6651 = vmul.f32 %v6583, %v6625
    %v6652 = vmul.f32 %v6584, %v6625
    %v6653 = vmul.f32 %v6585, %v6625
    %v6654 = vmul.f32 %v6586, %v6625
    %v6655 = vmul.f32 %v6587, %v6625
    %v6656 = vmul.f32 %v6588, %v6625
    %v6657 = vmul.f32 %v6589, %v6625
    %v6658 = vmul.f32 %v6590, %v6625
    %v6659 = vmul.f32 %v6591, %v6625
    %v6660 = vmul.f32 %v6592, %v6625
    %v6661 = vmul.f32 %v6593, %v6625
    %v6662 = vmul.f32 %v6594, %v6625
    %v6663 = vmul.f32 %v6595, %v6625
    %v6664 = vmul.f32 %v6596, %v6625
    %v6665 = vmul.f32 %v6597, %v6625
    %v6666 = vmul.f32 %v6598, %v6625
    %v6667 = vmul.f32 %v6599, %v6625
    %v6668 = vmul.f32 %v6600, %v6625
    %v6669 = vmul.f32 %v6601, %v6625
    %v6670 = vmul.f32 %v6602, %v6625
    %v6671 = vmul.f32 %v6603, %v6625
    %v6672 = vmul.f32 %v6604, %v6625
    %v6673 = vmul.f32 %v6605, %v6625
    %v6674 = vmul.f32 %v6606, %v6625
    %v6675 = vmul.f32 %v6607, %v6625
    %v6676 = vmul.f32 %v6608, %v6625
    %v6677 = vmul.f32 %v6609, %v6625
    %v6678 = vmul.f32 %v6610, %v6625
    %v6679 = vmul.f32 %v6611, %v6625
    %v6680 = vmul.f32 %v6612, %v6625
    %v6681 = vmul.f32 %v6613, %v6625
    %v6682 = vmul.f32 %v6614, %v6625
    %v6683 = vmul.f32 %v6615, %v6625
    %v6684 = vmul.f32 %v6616, %v6625
    %v6685 = vmul.f32 %v6617, %v6625
    %v6686 = vmul.f32 %v6618, %v6625
    %v6687 = vmul.f32 %v6619, %v6625
    %v6688 = vmul.f32 %v6620, %v6625
    %v6689 = vmul.f32 %v6621, %v6625
    %v6690 = vadd.f32 %v6366, %v6626
    %v6691 = vadd.f32 %v6367, %v6627
    %v6692 = vadd.f32 %v6368, %v6628
    %v6693 = vadd.f32 %v6369, %v6629
    %v6694 = vadd.f32 %v6370, %v6630
    %v6695 = vadd.f32 %v6371, %v6631
    %v6696 = vadd.f32 %v6372, %v6632
    %v6697 = vadd.f32 %v6373, %v6633
    %v6698 = vadd.f32 %v6374, %v6634
    %v6699 = vadd.f32 %v6375, %v6635
    %v6700 = vadd.f32 %v6376, %v6636
    %v6701 = vadd.f32 %v6377, %v6637
    %v6702 = vadd.f32 %v6378, %v6638
    %v6703 = vadd.f32 %v6379, %v6639
    %v6704 = vadd.f32 %v6380, %v6640
    %v6705 = vadd.f32 %v6381, %v6641
    %v6706 = vadd.f32 %v6382, %v6642
    %v6707 = vadd.f32 %v6383, %v6643
    %v6708 = vadd.f32 %v6384, %v6644
    %v6709 = vadd.f32 %v6385, %v6645
    %v6710 = vadd.f32 %v6386, %v6646
    %v6711 = vadd.f32 %v6387, %v6647
    %v6712 = vadd.f32 %v6388, %v6648
    %v6713 = vadd.f32 %v6389, %v6649
    %v6714 = vadd.f32 %v6390, %v6650
    %v6715 = vadd.f32 %v6391, %v6651
    %v6716 = vadd.f32 %v6392, %v6652
    %v6717 = vadd.f32 %v6393, %v6653
    %v6718 = vadd.f32 %v6394, %v6654
    %v6719 = vadd.f32 %v6395, %v6655
    %v6720 = vadd.f32 %v6396, %v6656
    %v6721 = vadd.f32 %v6397, %v6657
    %v6722 = vadd.f32 %v6398, %v6658
    %v6723 = vadd.f32 %v6399, %v6659
    %v6724 = vadd.f32 %v6400, %v6660
    %v6725 = vadd.f32 %v6401, %v6661
    %v6726 = vadd.f32 %v6402, %v6662
    %v6727 = vadd.f32 %v6403, %v6663
    %v6728 = vadd.f32 %v6404, %v6664
    %v6729 = vadd.f32 %v6405, %v6665
    %v6730 = vadd.f32 %v6406, %v6666
    %v6731 = vadd.f32 %v6407, %v6667
    %v6732 = vadd.f32 %v6408, %v6668
    %v6733 = vadd.f32 %v6409, %v6669
    %v6734 = vadd.f32 %v6410, %v6670
    %v6735 = vadd.f32 %v6411, %v6671
    %v6736 = vadd.f32 %v6412, %v6672
    %v6737 = vadd.f32 %v6413, %v6673
    %v6738 = vadd.f32 %v6414, %v6674
    %v6739 = vadd.f32 %v6415, %v6675
    %v6740 = vadd.f32 %v6416, %v6676
    %v6741 = vadd.f32 %v6417, %v6677
    %v6742 = vadd.f32 %v6418, %v6678
    %v6743 = vadd.f32 %v6419, %v6679
    %v6744 = vadd.f32 %v6420, %v6680
    %v6745 = vadd.f32 %v6421, %v6681
    %v6746 = vadd.f32 %v6422, %v6682
    %v6747 = vadd.f32 %v6423, %v6683
    %v6748 = vadd.f32 %v6424, %v6684
    %v6749 = vadd.f32 %v6425, %v6685
    %v6750 = vadd.f32 %v6426, %v6686
    %v6751 = vadd.f32 %v6427, %v6687
    %v6752 = vadd.f32 %v6428, %v6688
    %v6753 = vadd.f32 %v6429, %v6689
    %vm6754 = vcmp.eq.s32.totalorder %v2114, 11
    %vm6755 = vcmp.eq.s32.totalorder %v2129, 11
    %vm6756 = vcmp.eq.s32.totalorder %v2144, 11
    %vm6757 = vcmp.eq.s32.totalorder %v2159, 11
    %vm6758 = vcmp.eq.s32.totalorder %v2174, 11
    %vm6759 = vcmp.eq.s32.totalorder %v2189, 11
    %vm6760 = vcmp.eq.s32.totalorder %v2204, 11
    %vm6761 = vcmp.eq.s32.totalorder %v2219, 11
    %vm6762 = vcmp.eq.s32.totalorder %v2234, 11
    %vm6763 = vcmp.eq.s32.totalorder %v2249, 11
    %vm6764 = vcmp.eq.s32.totalorder %v2264, 11
    %vm6765 = vcmp.eq.s32.totalorder %v2279, 11
    %vm6766 = vcmp.eq.s32.totalorder %v2294, 11
    %vm6767 = vcmp.eq.s32.totalorder %v2309, 11
    %vm6768 = vcmp.eq.s32.totalorder %v2324, 11
    %vm6769 = vcmp.eq.s32.totalorder %v2339, 11
    %vm6770 = vcmp.eq.s32.totalorder %v2354, 11
    %vm6771 = vcmp.eq.s32.totalorder %v2369, 11
    %vm6772 = vcmp.eq.s32.totalorder %v2384, 11
    %vm6773 = vcmp.eq.s32.totalorder %v2399, 11
    %vm6774 = vcmp.eq.s32.totalorder %v2414, 11
    %vm6775 = vcmp.eq.s32.totalorder %v2429, 11
    %vm6776 = vcmp.eq.s32.totalorder %v2444, 11
    %vm6777 = vcmp.eq.s32.totalorder %v2459, 11
    %vm6778 = vcmp.eq.s32.totalorder %v2474, 11
    %vm6779 = vcmp.eq.s32.totalorder %v2489, 11
    %vm6780 = vcmp.eq.s32.totalorder %v2504, 11
    %vm6781 = vcmp.eq.s32.totalorder %v2519, 11
    %vm6782 = vcmp.eq.s32.totalorder %v2534, 11
    %vm6783 = vcmp.eq.s32.totalorder %v2549, 11
    %vm6784 = vcmp.eq.s32.totalorder %v2564, 11
    %vm6785 = vcmp.eq.s32.totalorder %v2579, 11
    %vm6786 = vcmp.eq.s32.totalorder %v2594, 11
    %vm6787 = vcmp.eq.s32.totalorder %v2609, 11
    %vm6788 = vcmp.eq.s32.totalorder %v2624, 11
    %vm6789 = vcmp.eq.s32.totalorder %v2639, 11
    %vm6790 = vcmp.eq.s32.totalorder %v2654, 11
    %vm6791 = vcmp.eq.s32.totalorder %v2669, 11
    %vm6792 = vcmp.eq.s32.totalorder %v2684, 11
    %vm6793 = vcmp.eq.s32.totalorder %v2699, 11
    %vm6794 = vcmp.eq.s32.totalorder %v2714, 11
    %vm6795 = vcmp.eq.s32.totalorder %v2729, 11
    %vm6796 = vcmp.eq.s32.totalorder %v2744, 11
    %vm6797 = vcmp.eq.s32.totalorder %v2759, 11
    %vm6798 = vcmp.eq.s32.totalorder %v2774, 11
    %vm6799 = vcmp.eq.s32.totalorder %v2789, 11
    %vm6800 = vcmp.eq.s32.totalorder %v2804, 11
    %vm6801 = vcmp.eq.s32.totalorder %v2819, 11
    %vm6802 = vcmp.eq.s32.totalorder %v2834, 11
    %vm6803 = vcmp.eq.s32.totalorder %v2849, 11
    %vm6804 = vcmp.eq.s32.totalorder %v2864, 11
    %vm6805 = vcmp.eq.s32.totalorder %v2879, 11
    %vm6806 = vcmp.eq.s32.totalorder %v2894, 11
    %vm6807 = vcmp.eq.s32.totalorder %v2909, 11
    %vm6808 = vcmp.eq.s32.totalorder %v2924, 11
    %vm6809 = vcmp.eq.s32.totalorder %v2939, 11
    %vm6810 = vcmp.eq.s32.totalorder %v2954, 11
    %vm6811 = vcmp.eq.s32.totalorder %v2969, 11
    %vm6812 = vcmp.eq.s32.totalorder %v2984, 11
    %vm6813 = vcmp.eq.s32.totalorder %v2999, 11
    %vm6814 = vcmp.eq.s32.totalorder %v3014, 11
    %vm6815 = vcmp.eq.s32.totalorder %v3029, 11
    %vm6816 = vcmp.eq.s32.totalorder %v3044, 11
    %vm6817 = vcmp.eq.s32.totalorder %v3059, 11
    %v6818 = vsel %vm6754, 1, 0
    %v6819 = vsel %vm6755, 1, 0
    %v6820 = vsel %vm6756, 1, 0
    %v6821 = vsel %vm6757, 1, 0
    %v6822 = vsel %vm6758, 1, 0
    %v6823 = vsel %vm6759, 1, 0
    %v6824 = vsel %vm6760, 1, 0
    %v6825 = vsel %vm6761, 1, 0
    %v6826 = vsel %vm6762, 1, 0
    %v6827 = vsel %vm6763, 1, 0
    %v6828 = vsel %vm6764, 1, 0
    %v6829 = vsel %vm6765, 1, 0
    %v6830 = vsel %vm6766, 1, 0
    %v6831 = vsel %vm6767, 1, 0
    %v6832 = vsel %vm6768, 1, 0
    %v6833 = vsel %vm6769, 1, 0
    %v6834 = vsel %vm6770, 1, 0
    %v6835 = vsel %vm6771, 1, 0
    %v6836 = vsel %vm6772, 1, 0
    %v6837 = vsel %vm6773, 1, 0
    %v6838 = vsel %vm6774, 1, 0
    %v6839 = vsel %vm6775, 1, 0
    %v6840 = vsel %vm6776, 1, 0
    %v6841 = vsel %vm6777, 1, 0
    %v6842 = vsel %vm6778, 1, 0
    %v6843 = vsel %vm6779, 1, 0
    %v6844 = vsel %vm6780, 1, 0
    %v6845 = vsel %vm6781, 1, 0
    %v6846 = vsel %vm6782, 1, 0
    %v6847 = vsel %vm6783, 1, 0
    %v6848 = vsel %vm6784, 1, 0
    %v6849 = vsel %vm6785, 1, 0
    %v6850 = vsel %vm6786, 1, 0
    %v6851 = vsel %vm6787, 1, 0
    %v6852 = vsel %vm6788, 1, 0
    %v6853 = vsel %vm6789, 1, 0
    %v6854 = vsel %vm6790, 1, 0
    %v6855 = vsel %vm6791, 1, 0
    %v6856 = vsel %vm6792, 1, 0
    %v6857 = vsel %vm6793, 1, 0
    %v6858 = vsel %vm6794, 1, 0
    %v6859 = vsel %vm6795, 1, 0
    %v6860 = vsel %vm6796, 1, 0
    %v6861 = vsel %vm6797, 1, 0
    %v6862 = vsel %vm6798, 1, 0
    %v6863 = vsel %vm6799, 1, 0
    %v6864 = vsel %vm6800, 1, 0
    %v6865 = vsel %vm6801, 1, 0
    %v6866 = vsel %vm6802, 1, 0
    %v6867 = vsel %vm6803, 1, 0
    %v6868 = vsel %vm6804, 1, 0
    %v6869 = vsel %vm6805, 1, 0
    %v6870 = vsel %vm6806, 1, 0
    %v6871 = vsel %vm6807, 1, 0
    %v6872 = vsel %vm6808, 1, 0
    %v6873 = vsel %vm6809, 1, 0
    %v6874 = vsel %vm6810, 1, 0
    %v6875 = vsel %vm6811, 1, 0
    %v6876 = vsel %vm6812, 1, 0
    %v6877 = vsel %vm6813, 1, 0
    %v6878 = vsel %vm6814, 1, 0
    %v6879 = vsel %vm6815, 1, 0
    %v6880 = vsel %vm6816, 1, 0
    %v6881 = vsel %vm6817, 1, 0
    %v6882 = vcvt.s32.f32 %v6818
    %v6883 = vcvt.s32.f32 %v6819
    %v6884 = vcvt.s32.f32 %v6820
    %v6885 = vcvt.s32.f32 %v6821
    %v6886 = vcvt.s32.f32 %v6822
    %v6887 = vcvt.s32.f32 %v6823
    %v6888 = vcvt.s32.f32 %v6824
    %v6889 = vcvt.s32.f32 %v6825
    %v6890 = vcvt.s32.f32 %v6826
    %v6891 = vcvt.s32.f32 %v6827
    %v6892 = vcvt.s32.f32 %v6828
    %v6893 = vcvt.s32.f32 %v6829
    %v6894 = vcvt.s32.f32 %v6830
    %v6895 = vcvt.s32.f32 %v6831
    %v6896 = vcvt.s32.f32 %v6832
    %v6897 = vcvt.s32.f32 %v6833
    %v6898 = vcvt.s32.f32 %v6834
    %v6899 = vcvt.s32.f32 %v6835
    %v6900 = vcvt.s32.f32 %v6836
    %v6901 = vcvt.s32.f32 %v6837
    %v6902 = vcvt.s32.f32 %v6838
    %v6903 = vcvt.s32.f32 %v6839
    %v6904 = vcvt.s32.f32 %v6840
    %v6905 = vcvt.s32.f32 %v6841
    %v6906 = vcvt.s32.f32 %v6842
    %v6907 = vcvt.s32.f32 %v6843
    %v6908 = vcvt.s32.f32 %v6844
    %v6909 = vcvt.s32.f32 %v6845
    %v6910 = vcvt.s32.f32 %v6846
    %v6911 = vcvt.s32.f32 %v6847
    %v6912 = vcvt.s32.f32 %v6848
    %v6913 = vcvt.s32.f32 %v6849
    %v6914 = vcvt.s32.f32 %v6850
    %v6915 = vcvt.s32.f32 %v6851
    %v6916 = vcvt.s32.f32 %v6852
    %v6917 = vcvt.s32.f32 %v6853
    %v6918 = vcvt.s32.f32 %v6854
    %v6919 = vcvt.s32.f32 %v6855
    %v6920 = vcvt.s32.f32 %v6856
    %v6921 = vcvt.s32.f32 %v6857
    %v6922 = vcvt.s32.f32 %v6858
    %v6923 = vcvt.s32.f32 %v6859
    %v6924 = vcvt.s32.f32 %v6860
    %v6925 = vcvt.s32.f32 %v6861
    %v6926 = vcvt.s32.f32 %v6862
    %v6927 = vcvt.s32.f32 %v6863
    %v6928 = vcvt.s32.f32 %v6864
    %v6929 = vcvt.s32.f32 %v6865
    %v6930 = vcvt.s32.f32 %v6866
    %v6931 = vcvt.s32.f32 %v6867
    %v6932 = vcvt.s32.f32 %v6868
    %v6933 = vcvt.s32.f32 %v6869
    %v6934 = vcvt.s32.f32 %v6870
    %v6935 = vcvt.s32.f32 %v6871
    %v6936 = vcvt.s32.f32 %v6872
    %v6937 = vcvt.s32.f32 %v6873
    %v6938 = vcvt.s32.f32 %v6874
    %v6939 = vcvt.s32.f32 %v6875
    %v6940 = vcvt.s32.f32 %v6876
    %v6941 = vcvt.s32.f32 %v6877
    %v6942 = vcvt.s32.f32 %v6878
    %v6943 = vcvt.s32.f32 %v6879
    %v6944 = vcvt.s32.f32 %v6880
    %v6945 = vcvt.s32.f32 %v6881
    %v6946 = vlaneseq
    %v6947 = vshrl.u32 %v6946, 7
    %v6948 = vsub.s32 3, %v6947
    %v6949 = vrot.slane %v3253, %v6948
    %v6950 = vmul.f32 %v6882, %v6949
    %v6951 = vmul.f32 %v6883, %v6949
    %v6952 = vmul.f32 %v6884, %v6949
    %v6953 = vmul.f32 %v6885, %v6949
    %v6954 = vmul.f32 %v6886, %v6949
    %v6955 = vmul.f32 %v6887, %v6949
    %v6956 = vmul.f32 %v6888, %v6949
    %v6957 = vmul.f32 %v6889, %v6949
    %v6958 = vmul.f32 %v6890, %v6949
    %v6959 = vmul.f32 %v6891, %v6949
    %v6960 = vmul.f32 %v6892, %v6949
    %v6961 = vmul.f32 %v6893, %v6949
    %v6962 = vmul.f32 %v6894, %v6949
    %v6963 = vmul.f32 %v6895, %v6949
    %v6964 = vmul.f32 %v6896, %v6949
    %v6965 = vmul.f32 %v6897, %v6949
    %v6966 = vmul.f32 %v6898, %v6949
    %v6967 = vmul.f32 %v6899, %v6949
    %v6968 = vmul.f32 %v6900, %v6949
    %v6969 = vmul.f32 %v6901, %v6949
    %v6970 = vmul.f32 %v6902, %v6949
    %v6971 = vmul.f32 %v6903, %v6949
    %v6972 = vmul.f32 %v6904, %v6949
    %v6973 = vmul.f32 %v6905, %v6949
    %v6974 = vmul.f32 %v6906, %v6949
    %v6975 = vmul.f32 %v6907, %v6949
    %v6976 = vmul.f32 %v6908, %v6949
    %v6977 = vmul.f32 %v6909, %v6949
    %v6978 = vmul.f32 %v6910, %v6949
    %v6979 = vmul.f32 %v6911, %v6949
    %v6980 = vmul.f32 %v6912, %v6949
    %v6981 = vmul.f32 %v6913, %v6949
    %v6982 = vmul.f32 %v6914, %v6949
    %v6983 = vmul.f32 %v6915, %v6949
    %v6984 = vmul.f32 %v6916, %v6949
    %v6985 = vmul.f32 %v6917, %v6949
    %v6986 = vmul.f32 %v6918, %v6949
    %v6987 = vmul.f32 %v6919, %v6949
    %v6988 = vmul.f32 %v6920, %v6949
    %v6989 = vmul.f32 %v6921, %v6949
    %v6990 = vmul.f32 %v6922, %v6949
    %v6991 = vmul.f32 %v6923, %v6949
    %v6992 = vmul.f32 %v6924, %v6949
    %v6993 = vmul.f32 %v6925, %v6949
    %v6994 = vmul.f32 %v6926, %v6949
    %v6995 = vmul.f32 %v6927, %v6949
    %v6996 = vmul.f32 %v6928, %v6949
    %v6997 = vmul.f32 %v6929, %v6949
    %v6998 = vmul.f32 %v6930, %v6949
    %v6999 = vmul.f32 %v6931, %v6949
    %v7000 = vmul.f32 %v6932, %v6949
    %v7001 = vmul.f32 %v6933, %v6949
    %v7002 = vmul.f32 %v6934, %v6949
    %v7003 = vmul.f32 %v6935, %v6949
    %v7004 = vmul.f32 %v6936, %v6949
    %v7005 = vmul.f32 %v6937, %v6949
    %v7006 = vmul.f32 %v6938, %v6949
    %v7007 = vmul.f32 %v6939, %v6949
    %v7008 = vmul.f32 %v6940, %v6949
    %v7009 = vmul.f32 %v6941, %v6949
    %v7010 = vmul.f32 %v6942, %v6949
    %v7011 = vmul.f32 %v6943, %v6949
    %v7012 = vmul.f32 %v6944, %v6949
    %v7013 = vmul.f32 %v6945, %v6949
    %v7014 = vadd.f32 %v6690, %v6950
    %v7015 = vadd.f32 %v6691, %v6951
    %v7016 = vadd.f32 %v6692, %v6952
    %v7017 = vadd.f32 %v6693, %v6953
    %v7018 = vadd.f32 %v6694, %v6954
    %v7019 = vadd.f32 %v6695, %v6955
    %v7020 = vadd.f32 %v6696, %v6956
    %v7021 = vadd.f32 %v6697, %v6957
    %v7022 = vadd.f32 %v6698, %v6958
    %v7023 = vadd.f32 %v6699, %v6959
    %v7024 = vadd.f32 %v6700, %v6960
    %v7025 = vadd.f32 %v6701, %v6961
    %v7026 = vadd.f32 %v6702, %v6962
    %v7027 = vadd.f32 %v6703, %v6963
    %v7028 = vadd.f32 %v6704, %v6964
    %v7029 = vadd.f32 %v6705, %v6965
    %v7030 = vadd.f32 %v6706, %v6966
    %v7031 = vadd.f32 %v6707, %v6967
    %v7032 = vadd.f32 %v6708, %v6968
    %v7033 = vadd.f32 %v6709, %v6969
    %v7034 = vadd.f32 %v6710, %v6970
    %v7035 = vadd.f32 %v6711, %v6971
    %v7036 = vadd.f32 %v6712, %v6972
    %v7037 = vadd.f32 %v6713, %v6973
    %v7038 = vadd.f32 %v6714, %v6974
    %v7039 = vadd.f32 %v6715, %v6975
    %v7040 = vadd.f32 %v6716, %v6976
    %v7041 = vadd.f32 %v6717, %v6977
    %v7042 = vadd.f32 %v6718, %v6978
    %v7043 = vadd.f32 %v6719, %v6979
    %v7044 = vadd.f32 %v6720, %v6980
    %v7045 = vadd.f32 %v6721, %v6981
    %v7046 = vadd.f32 %v6722, %v6982
    %v7047 = vadd.f32 %v6723, %v6983
    %v7048 = vadd.f32 %v6724, %v6984
    %v7049 = vadd.f32 %v6725, %v6985
    %v7050 = vadd.f32 %v6726, %v6986
    %v7051 = vadd.f32 %v6727, %v6987
    %v7052 = vadd.f32 %v6728, %v6988
    %v7053 = vadd.f32 %v6729, %v6989
    %v7054 = vadd.f32 %v6730, %v6990
    %v7055 = vadd.f32 %v6731, %v6991
    %v7056 = vadd.f32 %v6732, %v6992
    %v7057 = vadd.f32 %v6733, %v6993
    %v7058 = vadd.f32 %v6734, %v6994
    %v7059 = vadd.f32 %v6735, %v6995
    %v7060 = vadd.f32 %v6736, %v6996
    %v7061 = vadd.f32 %v6737, %v6997
    %v7062 = vadd.f32 %v6738, %v6998
    %v7063 = vadd.f32 %v6739, %v6999
    %v7064 = vadd.f32 %v6740, %v7000
    %v7065 = vadd.f32 %v6741, %v7001
    %v7066 = vadd.f32 %v6742, %v7002
    %v7067 = vadd.f32 %v6743, %v7003
    %v7068 = vadd.f32 %v6744, %v7004
    %v7069 = vadd.f32 %v6745, %v7005
    %v7070 = vadd.f32 %v6746, %v7006
    %v7071 = vadd.f32 %v6747, %v7007
    %v7072 = vadd.f32 %v6748, %v7008
    %v7073 = vadd.f32 %v6749, %v7009
    %v7074 = vadd.f32 %v6750, %v7010
    %v7075 = vadd.f32 %v6751, %v7011
    %v7076 = vadd.f32 %v6752, %v7012
    %v7077 = vadd.f32 %v6753, %v7013
    %vm7078 = vcmp.eq.s32.totalorder %v2114, 12
    %vm7079 = vcmp.eq.s32.totalorder %v2129, 12
    %vm7080 = vcmp.eq.s32.totalorder %v2144, 12
    %vm7081 = vcmp.eq.s32.totalorder %v2159, 12
    %vm7082 = vcmp.eq.s32.totalorder %v2174, 12
    %vm7083 = vcmp.eq.s32.totalorder %v2189, 12
    %vm7084 = vcmp.eq.s32.totalorder %v2204, 12
    %vm7085 = vcmp.eq.s32.totalorder %v2219, 12
    %vm7086 = vcmp.eq.s32.totalorder %v2234, 12
    %vm7087 = vcmp.eq.s32.totalorder %v2249, 12
    %vm7088 = vcmp.eq.s32.totalorder %v2264, 12
    %vm7089 = vcmp.eq.s32.totalorder %v2279, 12
    %vm7090 = vcmp.eq.s32.totalorder %v2294, 12
    %vm7091 = vcmp.eq.s32.totalorder %v2309, 12
    %vm7092 = vcmp.eq.s32.totalorder %v2324, 12
    %vm7093 = vcmp.eq.s32.totalorder %v2339, 12
    %vm7094 = vcmp.eq.s32.totalorder %v2354, 12
    %vm7095 = vcmp.eq.s32.totalorder %v2369, 12
    %vm7096 = vcmp.eq.s32.totalorder %v2384, 12
    %vm7097 = vcmp.eq.s32.totalorder %v2399, 12
    %vm7098 = vcmp.eq.s32.totalorder %v2414, 12
    %vm7099 = vcmp.eq.s32.totalorder %v2429, 12
    %vm7100 = vcmp.eq.s32.totalorder %v2444, 12
    %vm7101 = vcmp.eq.s32.totalorder %v2459, 12
    %vm7102 = vcmp.eq.s32.totalorder %v2474, 12
    %vm7103 = vcmp.eq.s32.totalorder %v2489, 12
    %vm7104 = vcmp.eq.s32.totalorder %v2504, 12
    %vm7105 = vcmp.eq.s32.totalorder %v2519, 12
    %vm7106 = vcmp.eq.s32.totalorder %v2534, 12
    %vm7107 = vcmp.eq.s32.totalorder %v2549, 12
    %vm7108 = vcmp.eq.s32.totalorder %v2564, 12
    %vm7109 = vcmp.eq.s32.totalorder %v2579, 12
    %vm7110 = vcmp.eq.s32.totalorder %v2594, 12
    %vm7111 = vcmp.eq.s32.totalorder %v2609, 12
    %vm7112 = vcmp.eq.s32.totalorder %v2624, 12
    %vm7113 = vcmp.eq.s32.totalorder %v2639, 12
    %vm7114 = vcmp.eq.s32.totalorder %v2654, 12
    %vm7115 = vcmp.eq.s32.totalorder %v2669, 12
    %vm7116 = vcmp.eq.s32.totalorder %v2684, 12
    %vm7117 = vcmp.eq.s32.totalorder %v2699, 12
    %vm7118 = vcmp.eq.s32.totalorder %v2714, 12
    %vm7119 = vcmp.eq.s32.totalorder %v2729, 12
    %vm7120 = vcmp.eq.s32.totalorder %v2744, 12
    %vm7121 = vcmp.eq.s32.totalorder %v2759, 12
    %vm7122 = vcmp.eq.s32.totalorder %v2774, 12
    %vm7123 = vcmp.eq.s32.totalorder %v2789, 12
    %vm7124 = vcmp.eq.s32.totalorder %v2804, 12
    %vm7125 = vcmp.eq.s32.totalorder %v2819, 12
    %vm7126 = vcmp.eq.s32.totalorder %v2834, 12
    %vm7127 = vcmp.eq.s32.totalorder %v2849, 12
    %vm7128 = vcmp.eq.s32.totalorder %v2864, 12
    %vm7129 = vcmp.eq.s32.totalorder %v2879, 12
    %vm7130 = vcmp.eq.s32.totalorder %v2894, 12
    %vm7131 = vcmp.eq.s32.totalorder %v2909, 12
    %vm7132 = vcmp.eq.s32.totalorder %v2924, 12
    %vm7133 = vcmp.eq.s32.totalorder %v2939, 12
    %vm7134 = vcmp.eq.s32.totalorder %v2954, 12
    %vm7135 = vcmp.eq.s32.totalorder %v2969, 12
    %vm7136 = vcmp.eq.s32.totalorder %v2984, 12
    %vm7137 = vcmp.eq.s32.totalorder %v2999, 12
    %vm7138 = vcmp.eq.s32.totalorder %v3014, 12
    %vm7139 = vcmp.eq.s32.totalorder %v3029, 12
    %vm7140 = vcmp.eq.s32.totalorder %v3044, 12
    %vm7141 = vcmp.eq.s32.totalorder %v3059, 12
    %v7142 = vsel %vm7078, 1, 0
    %v7143 = vsel %vm7079, 1, 0
    %v7144 = vsel %vm7080, 1, 0
    %v7145 = vsel %vm7081, 1, 0
    %v7146 = vsel %vm7082, 1, 0
    %v7147 = vsel %vm7083, 1, 0
    %v7148 = vsel %vm7084, 1, 0
    %v7149 = vsel %vm7085, 1, 0
    %v7150 = vsel %vm7086, 1, 0
    %v7151 = vsel %vm7087, 1, 0
    %v7152 = vsel %vm7088, 1, 0
    %v7153 = vsel %vm7089, 1, 0
    %v7154 = vsel %vm7090, 1, 0
    %v7155 = vsel %vm7091, 1, 0
    %v7156 = vsel %vm7092, 1, 0
    %v7157 = vsel %vm7093, 1, 0
    %v7158 = vsel %vm7094, 1, 0
    %v7159 = vsel %vm7095, 1, 0
    %v7160 = vsel %vm7096, 1, 0
    %v7161 = vsel %vm7097, 1, 0
    %v7162 = vsel %vm7098, 1, 0
    %v7163 = vsel %vm7099, 1, 0
    %v7164 = vsel %vm7100, 1, 0
    %v7165 = vsel %vm7101, 1, 0
    %v7166 = vsel %vm7102, 1, 0
    %v7167 = vsel %vm7103, 1, 0
    %v7168 = vsel %vm7104, 1, 0
    %v7169 = vsel %vm7105, 1, 0
    %v7170 = vsel %vm7106, 1, 0
    %v7171 = vsel %vm7107, 1, 0
    %v7172 = vsel %vm7108, 1, 0
    %v7173 = vsel %vm7109, 1, 0
    %v7174 = vsel %vm7110, 1, 0
    %v7175 = vsel %vm7111, 1, 0
    %v7176 = vsel %vm7112, 1, 0
    %v7177 = vsel %vm7113, 1, 0
    %v7178 = vsel %vm7114, 1, 0
    %v7179 = vsel %vm7115, 1, 0
    %v7180 = vsel %vm7116, 1, 0
    %v7181 = vsel %vm7117, 1, 0
    %v7182 = vsel %vm7118, 1, 0
    %v7183 = vsel %vm7119, 1, 0
    %v7184 = vsel %vm7120, 1, 0
    %v7185 = vsel %vm7121, 1, 0
    %v7186 = vsel %vm7122, 1, 0
    %v7187 = vsel %vm7123, 1, 0
    %v7188 = vsel %vm7124, 1, 0
    %v7189 = vsel %vm7125, 1, 0
    %v7190 = vsel %vm7126, 1, 0
    %v7191 = vsel %vm7127, 1, 0
    %v7192 = vsel %vm7128, 1, 0
    %v7193 = vsel %vm7129, 1, 0
    %v7194 = vsel %vm7130, 1, 0
    %v7195 = vsel %vm7131, 1, 0
    %v7196 = vsel %vm7132, 1, 0
    %v7197 = vsel %vm7133, 1, 0
    %v7198 = vsel %vm7134, 1, 0
    %v7199 = vsel %vm7135, 1, 0
    %v7200 = vsel %vm7136, 1, 0
    %v7201 = vsel %vm7137, 1, 0
    %v7202 = vsel %vm7138, 1, 0
    %v7203 = vsel %vm7139, 1, 0
    %v7204 = vsel %vm7140, 1, 0
    %v7205 = vsel %vm7141, 1, 0
    %v7206 = vcvt.s32.f32 %v7142
    %v7207 = vcvt.s32.f32 %v7143
    %v7208 = vcvt.s32.f32 %v7144
    %v7209 = vcvt.s32.f32 %v7145
    %v7210 = vcvt.s32.f32 %v7146
    %v7211 = vcvt.s32.f32 %v7147
    %v7212 = vcvt.s32.f32 %v7148
    %v7213 = vcvt.s32.f32 %v7149
    %v7214 = vcvt.s32.f32 %v7150
    %v7215 = vcvt.s32.f32 %v7151
    %v7216 = vcvt.s32.f32 %v7152
    %v7217 = vcvt.s32.f32 %v7153
    %v7218 = vcvt.s32.f32 %v7154
    %v7219 = vcvt.s32.f32 %v7155
    %v7220 = vcvt.s32.f32 %v7156
    %v7221 = vcvt.s32.f32 %v7157
    %v7222 = vcvt.s32.f32 %v7158
    %v7223 = vcvt.s32.f32 %v7159
    %v7224 = vcvt.s32.f32 %v7160
    %v7225 = vcvt.s32.f32 %v7161
    %v7226 = vcvt.s32.f32 %v7162
    %v7227 = vcvt.s32.f32 %v7163
    %v7228 = vcvt.s32.f32 %v7164
    %v7229 = vcvt.s32.f32 %v7165
    %v7230 = vcvt.s32.f32 %v7166
    %v7231 = vcvt.s32.f32 %v7167
    %v7232 = vcvt.s32.f32 %v7168
    %v7233 = vcvt.s32.f32 %v7169
    %v7234 = vcvt.s32.f32 %v7170
    %v7235 = vcvt.s32.f32 %v7171
    %v7236 = vcvt.s32.f32 %v7172
    %v7237 = vcvt.s32.f32 %v7173
    %v7238 = vcvt.s32.f32 %v7174
    %v7239 = vcvt.s32.f32 %v7175
    %v7240 = vcvt.s32.f32 %v7176
    %v7241 = vcvt.s32.f32 %v7177
    %v7242 = vcvt.s32.f32 %v7178
    %v7243 = vcvt.s32.f32 %v7179
    %v7244 = vcvt.s32.f32 %v7180
    %v7245 = vcvt.s32.f32 %v7181
    %v7246 = vcvt.s32.f32 %v7182
    %v7247 = vcvt.s32.f32 %v7183
    %v7248 = vcvt.s32.f32 %v7184
    %v7249 = vcvt.s32.f32 %v7185
    %v7250 = vcvt.s32.f32 %v7186
    %v7251 = vcvt.s32.f32 %v7187
    %v7252 = vcvt.s32.f32 %v7188
    %v7253 = vcvt.s32.f32 %v7189
    %v7254 = vcvt.s32.f32 %v7190
    %v7255 = vcvt.s32.f32 %v7191
    %v7256 = vcvt.s32.f32 %v7192
    %v7257 = vcvt.s32.f32 %v7193
    %v7258 = vcvt.s32.f32 %v7194
    %v7259 = vcvt.s32.f32 %v7195
    %v7260 = vcvt.s32.f32 %v7196
    %v7261 = vcvt.s32.f32 %v7197
    %v7262 = vcvt.s32.f32 %v7198
    %v7263 = vcvt.s32.f32 %v7199
    %v7264 = vcvt.s32.f32 %v7200
    %v7265 = vcvt.s32.f32 %v7201
    %v7266 = vcvt.s32.f32 %v7202
    %v7267 = vcvt.s32.f32 %v7203
    %v7268 = vcvt.s32.f32 %v7204
    %v7269 = vcvt.s32.f32 %v7205
    %v7270 = vlaneseq
    %v7271 = vshrl.u32 %v7270, 7
    %v7272 = vsub.s32 4, %v7271
    %v7273 = vrot.slane %v3253, %v7272
    %v7274 = vmul.f32 %v7206, %v7273
    %v7275 = vmul.f32 %v7207, %v7273
    %v7276 = vmul.f32 %v7208, %v7273
    %v7277 = vmul.f32 %v7209, %v7273
    %v7278 = vmul.f32 %v7210, %v7273
    %v7279 = vmul.f32 %v7211, %v7273
    %v7280 = vmul.f32 %v7212, %v7273
    %v7281 = vmul.f32 %v7213, %v7273
    %v7282 = vmul.f32 %v7214, %v7273
    %v7283 = vmul.f32 %v7215, %v7273
    %v7284 = vmul.f32 %v7216, %v7273
    %v7285 = vmul.f32 %v7217, %v7273
    %v7286 = vmul.f32 %v7218, %v7273
    %v7287 = vmul.f32 %v7219, %v7273
    %v7288 = vmul.f32 %v7220, %v7273
    %v7289 = vmul.f32 %v7221, %v7273
    %v7290 = vmul.f32 %v7222, %v7273
    %v7291 = vmul.f32 %v7223, %v7273
    %v7292 = vmul.f32 %v7224, %v7273
    %v7293 = vmul.f32 %v7225, %v7273
    %v7294 = vmul.f32 %v7226, %v7273
    %v7295 = vmul.f32 %v7227, %v7273
    %v7296 = vmul.f32 %v7228, %v7273
    %v7297 = vmul.f32 %v7229, %v7273
    %v7298 = vmul.f32 %v7230, %v7273
    %v7299 = vmul.f32 %v7231, %v7273
    %v7300 = vmul.f32 %v7232, %v7273
    %v7301 = vmul.f32 %v7233, %v7273
    %v7302 = vmul.f32 %v7234, %v7273
    %v7303 = vmul.f32 %v7235, %v7273
    %v7304 = vmul.f32 %v7236, %v7273
    %v7305 = vmul.f32 %v7237, %v7273
    %v7306 = vmul.f32 %v7238, %v7273
    %v7307 = vmul.f32 %v7239, %v7273
    %v7308 = vmul.f32 %v7240, %v7273
    %v7309 = vmul.f32 %v7241, %v7273
    %v7310 = vmul.f32 %v7242, %v7273
    %v7311 = vmul.f32 %v7243, %v7273
    %v7312 = vmul.f32 %v7244, %v7273
    %v7313 = vmul.f32 %v7245, %v7273
    %v7314 = vmul.f32 %v7246, %v7273
    %v7315 = vmul.f32 %v7247, %v7273
    %v7316 = vmul.f32 %v7248, %v7273
    %v7317 = vmul.f32 %v7249, %v7273
    %v7318 = vmul.f32 %v7250, %v7273
    %v7319 = vmul.f32 %v7251, %v7273
    %v7320 = vmul.f32 %v7252, %v7273
    %v7321 = vmul.f32 %v7253, %v7273
    %v7322 = vmul.f32 %v7254, %v7273
    %v7323 = vmul.f32 %v7255, %v7273
    %v7324 = vmul.f32 %v7256, %v7273
    %v7325 = vmul.f32 %v7257, %v7273
    %v7326 = vmul.f32 %v7258, %v7273
    %v7327 = vmul.f32 %v7259, %v7273
    %v7328 = vmul.f32 %v7260, %v7273
    %v7329 = vmul.f32 %v7261, %v7273
    %v7330 = vmul.f32 %v7262, %v7273
    %v7331 = vmul.f32 %v7263, %v7273
    %v7332 = vmul.f32 %v7264, %v7273
    %v7333 = vmul.f32 %v7265, %v7273
    %v7334 = vmul.f32 %v7266, %v7273
    %v7335 = vmul.f32 %v7267, %v7273
    %v7336 = vmul.f32 %v7268, %v7273
    %v7337 = vmul.f32 %v7269, %v7273
    %v7338 = vadd.f32 %v7014, %v7274
    %v7339 = vadd.f32 %v7015, %v7275
    %v7340 = vadd.f32 %v7016, %v7276
    %v7341 = vadd.f32 %v7017, %v7277
    %v7342 = vadd.f32 %v7018, %v7278
    %v7343 = vadd.f32 %v7019, %v7279
    %v7344 = vadd.f32 %v7020, %v7280
    %v7345 = vadd.f32 %v7021, %v7281
    %v7346 = vadd.f32 %v7022, %v7282
    %v7347 = vadd.f32 %v7023, %v7283
    %v7348 = vadd.f32 %v7024, %v7284
    %v7349 = vadd.f32 %v7025, %v7285
    %v7350 = vadd.f32 %v7026, %v7286
    %v7351 = vadd.f32 %v7027, %v7287
    %v7352 = vadd.f32 %v7028, %v7288
    %v7353 = vadd.f32 %v7029, %v7289
    %v7354 = vadd.f32 %v7030, %v7290
    %v7355 = vadd.f32 %v7031, %v7291
    %v7356 = vadd.f32 %v7032, %v7292
    %v7357 = vadd.f32 %v7033, %v7293
    %v7358 = vadd.f32 %v7034, %v7294
    %v7359 = vadd.f32 %v7035, %v7295
    %v7360 = vadd.f32 %v7036, %v7296
    %v7361 = vadd.f32 %v7037, %v7297
    %v7362 = vadd.f32 %v7038, %v7298
    %v7363 = vadd.f32 %v7039, %v7299
    %v7364 = vadd.f32 %v7040, %v7300
    %v7365 = vadd.f32 %v7041, %v7301
    %v7366 = vadd.f32 %v7042, %v7302
    %v7367 = vadd.f32 %v7043, %v7303
    %v7368 = vadd.f32 %v7044, %v7304
    %v7369 = vadd.f32 %v7045, %v7305
    %v7370 = vadd.f32 %v7046, %v7306
    %v7371 = vadd.f32 %v7047, %v7307
    %v7372 = vadd.f32 %v7048, %v7308
    %v7373 = vadd.f32 %v7049, %v7309
    %v7374 = vadd.f32 %v7050, %v7310
    %v7375 = vadd.f32 %v7051, %v7311
    %v7376 = vadd.f32 %v7052, %v7312
    %v7377 = vadd.f32 %v7053, %v7313
    %v7378 = vadd.f32 %v7054, %v7314
    %v7379 = vadd.f32 %v7055, %v7315
    %v7380 = vadd.f32 %v7056, %v7316
    %v7381 = vadd.f32 %v7057, %v7317
    %v7382 = vadd.f32 %v7058, %v7318
    %v7383 = vadd.f32 %v7059, %v7319
    %v7384 = vadd.f32 %v7060, %v7320
    %v7385 = vadd.f32 %v7061, %v7321
    %v7386 = vadd.f32 %v7062, %v7322
    %v7387 = vadd.f32 %v7063, %v7323
    %v7388 = vadd.f32 %v7064, %v7324
    %v7389 = vadd.f32 %v7065, %v7325
    %v7390 = vadd.f32 %v7066, %v7326
    %v7391 = vadd.f32 %v7067, %v7327
    %v7392 = vadd.f32 %v7068, %v7328
    %v7393 = vadd.f32 %v7069, %v7329
    %v7394 = vadd.f32 %v7070, %v7330
    %v7395 = vadd.f32 %v7071, %v7331
    %v7396 = vadd.f32 %v7072, %v7332
    %v7397 = vadd.f32 %v7073, %v7333
    %v7398 = vadd.f32 %v7074, %v7334
    %v7399 = vadd.f32 %v7075, %v7335
    %v7400 = vadd.f32 %v7076, %v7336
    %v7401 = vadd.f32 %v7077, %v7337
    %vm7402 = vcmp.eq.s32.totalorder %v2114, 13
    %vm7403 = vcmp.eq.s32.totalorder %v2129, 13
    %vm7404 = vcmp.eq.s32.totalorder %v2144, 13
    %vm7405 = vcmp.eq.s32.totalorder %v2159, 13
    %vm7406 = vcmp.eq.s32.totalorder %v2174, 13
    %vm7407 = vcmp.eq.s32.totalorder %v2189, 13
    %vm7408 = vcmp.eq.s32.totalorder %v2204, 13
    %vm7409 = vcmp.eq.s32.totalorder %v2219, 13
    %vm7410 = vcmp.eq.s32.totalorder %v2234, 13
    %vm7411 = vcmp.eq.s32.totalorder %v2249, 13
    %vm7412 = vcmp.eq.s32.totalorder %v2264, 13
    %vm7413 = vcmp.eq.s32.totalorder %v2279, 13
    %vm7414 = vcmp.eq.s32.totalorder %v2294, 13
    %vm7415 = vcmp.eq.s32.totalorder %v2309, 13
    %vm7416 = vcmp.eq.s32.totalorder %v2324, 13
    %vm7417 = vcmp.eq.s32.totalorder %v2339, 13
    %vm7418 = vcmp.eq.s32.totalorder %v2354, 13
    %vm7419 = vcmp.eq.s32.totalorder %v2369, 13
    %vm7420 = vcmp.eq.s32.totalorder %v2384, 13
    %vm7421 = vcmp.eq.s32.totalorder %v2399, 13
    %vm7422 = vcmp.eq.s32.totalorder %v2414, 13
    %vm7423 = vcmp.eq.s32.totalorder %v2429, 13
    %vm7424 = vcmp.eq.s32.totalorder %v2444, 13
    %vm7425 = vcmp.eq.s32.totalorder %v2459, 13
    %vm7426 = vcmp.eq.s32.totalorder %v2474, 13
    %vm7427 = vcmp.eq.s32.totalorder %v2489, 13
    %vm7428 = vcmp.eq.s32.totalorder %v2504, 13
    %vm7429 = vcmp.eq.s32.totalorder %v2519, 13
    %vm7430 = vcmp.eq.s32.totalorder %v2534, 13
    %vm7431 = vcmp.eq.s32.totalorder %v2549, 13
    %vm7432 = vcmp.eq.s32.totalorder %v2564, 13
    %vm7433 = vcmp.eq.s32.totalorder %v2579, 13
    %vm7434 = vcmp.eq.s32.totalorder %v2594, 13
    %vm7435 = vcmp.eq.s32.totalorder %v2609, 13
    %vm7436 = vcmp.eq.s32.totalorder %v2624, 13
    %vm7437 = vcmp.eq.s32.totalorder %v2639, 13
    %vm7438 = vcmp.eq.s32.totalorder %v2654, 13
    %vm7439 = vcmp.eq.s32.totalorder %v2669, 13
    %vm7440 = vcmp.eq.s32.totalorder %v2684, 13
    %vm7441 = vcmp.eq.s32.totalorder %v2699, 13
    %vm7442 = vcmp.eq.s32.totalorder %v2714, 13
    %vm7443 = vcmp.eq.s32.totalorder %v2729, 13
    %vm7444 = vcmp.eq.s32.totalorder %v2744, 13
    %vm7445 = vcmp.eq.s32.totalorder %v2759, 13
    %vm7446 = vcmp.eq.s32.totalorder %v2774, 13
    %vm7447 = vcmp.eq.s32.totalorder %v2789, 13
    %vm7448 = vcmp.eq.s32.totalorder %v2804, 13
    %vm7449 = vcmp.eq.s32.totalorder %v2819, 13
    %vm7450 = vcmp.eq.s32.totalorder %v2834, 13
    %vm7451 = vcmp.eq.s32.totalorder %v2849, 13
    %vm7452 = vcmp.eq.s32.totalorder %v2864, 13
    %vm7453 = vcmp.eq.s32.totalorder %v2879, 13
    %vm7454 = vcmp.eq.s32.totalorder %v2894, 13
    %vm7455 = vcmp.eq.s32.totalorder %v2909, 13
    %vm7456 = vcmp.eq.s32.totalorder %v2924, 13
    %vm7457 = vcmp.eq.s32.totalorder %v2939, 13
    %vm7458 = vcmp.eq.s32.totalorder %v2954, 13
    %vm7459 = vcmp.eq.s32.totalorder %v2969, 13
    %vm7460 = vcmp.eq.s32.totalorder %v2984, 13
    %vm7461 = vcmp.eq.s32.totalorder %v2999, 13
    %vm7462 = vcmp.eq.s32.totalorder %v3014, 13
    %vm7463 = vcmp.eq.s32.totalorder %v3029, 13
    %vm7464 = vcmp.eq.s32.totalorder %v3044, 13
    %vm7465 = vcmp.eq.s32.totalorder %v3059, 13
    %v7466 = vsel %vm7402, 1, 0
    %v7467 = vsel %vm7403, 1, 0
    %v7468 = vsel %vm7404, 1, 0
    %v7469 = vsel %vm7405, 1, 0
    %v7470 = vsel %vm7406, 1, 0
    %v7471 = vsel %vm7407, 1, 0
    %v7472 = vsel %vm7408, 1, 0
    %v7473 = vsel %vm7409, 1, 0
    %v7474 = vsel %vm7410, 1, 0
    %v7475 = vsel %vm7411, 1, 0
    %v7476 = vsel %vm7412, 1, 0
    %v7477 = vsel %vm7413, 1, 0
    %v7478 = vsel %vm7414, 1, 0
    %v7479 = vsel %vm7415, 1, 0
    %v7480 = vsel %vm7416, 1, 0
    %v7481 = vsel %vm7417, 1, 0
    %v7482 = vsel %vm7418, 1, 0
    %v7483 = vsel %vm7419, 1, 0
    %v7484 = vsel %vm7420, 1, 0
    %v7485 = vsel %vm7421, 1, 0
    %v7486 = vsel %vm7422, 1, 0
    %v7487 = vsel %vm7423, 1, 0
    %v7488 = vsel %vm7424, 1, 0
    %v7489 = vsel %vm7425, 1, 0
    %v7490 = vsel %vm7426, 1, 0
    %v7491 = vsel %vm7427, 1, 0
    %v7492 = vsel %vm7428, 1, 0
    %v7493 = vsel %vm7429, 1, 0
    %v7494 = vsel %vm7430, 1, 0
    %v7495 = vsel %vm7431, 1, 0
    %v7496 = vsel %vm7432, 1, 0
    %v7497 = vsel %vm7433, 1, 0
    %v7498 = vsel %vm7434, 1, 0
    %v7499 = vsel %vm7435, 1, 0
    %v7500 = vsel %vm7436, 1, 0
    %v7501 = vsel %vm7437, 1, 0
    %v7502 = vsel %vm7438, 1, 0
    %v7503 = vsel %vm7439, 1, 0
    %v7504 = vsel %vm7440, 1, 0
    %v7505 = vsel %vm7441, 1, 0
    %v7506 = vsel %vm7442, 1, 0
    %v7507 = vsel %vm7443, 1, 0
    %v7508 = vsel %vm7444, 1, 0
    %v7509 = vsel %vm7445, 1, 0
    %v7510 = vsel %vm7446, 1, 0
    %v7511 = vsel %vm7447, 1, 0
    %v7512 = vsel %vm7448, 1, 0
    %v7513 = vsel %vm7449, 1, 0
    %v7514 = vsel %vm7450, 1, 0
    %v7515 = vsel %vm7451, 1, 0
    %v7516 = vsel %vm7452, 1, 0
    %v7517 = vsel %vm7453, 1, 0
    %v7518 = vsel %vm7454, 1, 0
    %v7519 = vsel %vm7455, 1, 0
    %v7520 = vsel %vm7456, 1, 0
    %v7521 = vsel %vm7457, 1, 0
    %v7522 = vsel %vm7458, 1, 0
    %v7523 = vsel %vm7459, 1, 0
    %v7524 = vsel %vm7460, 1, 0
    %v7525 = vsel %vm7461, 1, 0
    %v7526 = vsel %vm7462, 1, 0
    %v7527 = vsel %vm7463, 1, 0
    %v7528 = vsel %vm7464, 1, 0
    %v7529 = vsel %vm7465, 1, 0
    %v7530 = vcvt.s32.f32 %v7466
    %v7531 = vcvt.s32.f32 %v7467
    %v7532 = vcvt.s32.f32 %v7468
    %v7533 = vcvt.s32.f32 %v7469
    %v7534 = vcvt.s32.f32 %v7470
    %v7535 = vcvt.s32.f32 %v7471
    %v7536 = vcvt.s32.f32 %v7472
    %v7537 = vcvt.s32.f32 %v7473
    %v7538 = vcvt.s32.f32 %v7474
    %v7539 = vcvt.s32.f32 %v7475
    %v7540 = vcvt.s32.f32 %v7476
    %v7541 = vcvt.s32.f32 %v7477
    %v7542 = vcvt.s32.f32 %v7478
    %v7543 = vcvt.s32.f32 %v7479
    %v7544 = vcvt.s32.f32 %v7480
    %v7545 = vcvt.s32.f32 %v7481
    %v7546 = vcvt.s32.f32 %v7482
    %v7547 = vcvt.s32.f32 %v7483
    %v7548 = vcvt.s32.f32 %v7484
    %v7549 = vcvt.s32.f32 %v7485
    %v7550 = vcvt.s32.f32 %v7486
    %v7551 = vcvt.s32.f32 %v7487
    %v7552 = vcvt.s32.f32 %v7488
    %v7553 = vcvt.s32.f32 %v7489
    %v7554 = vcvt.s32.f32 %v7490
    %v7555 = vcvt.s32.f32 %v7491
    %v7556 = vcvt.s32.f32 %v7492
    %v7557 = vcvt.s32.f32 %v7493
    %v7558 = vcvt.s32.f32 %v7494
    %v7559 = vcvt.s32.f32 %v7495
    %v7560 = vcvt.s32.f32 %v7496
    %v7561 = vcvt.s32.f32 %v7497
    %v7562 = vcvt.s32.f32 %v7498
    %v7563 = vcvt.s32.f32 %v7499
    %v7564 = vcvt.s32.f32 %v7500
    %v7565 = vcvt.s32.f32 %v7501
    %v7566 = vcvt.s32.f32 %v7502
    %v7567 = vcvt.s32.f32 %v7503
    %v7568 = vcvt.s32.f32 %v7504
    %v7569 = vcvt.s32.f32 %v7505
    %v7570 = vcvt.s32.f32 %v7506
    %v7571 = vcvt.s32.f32 %v7507
    %v7572 = vcvt.s32.f32 %v7508
    %v7573 = vcvt.s32.f32 %v7509
    %v7574 = vcvt.s32.f32 %v7510
    %v7575 = vcvt.s32.f32 %v7511
    %v7576 = vcvt.s32.f32 %v7512
    %v7577 = vcvt.s32.f32 %v7513
    %v7578 = vcvt.s32.f32 %v7514
    %v7579 = vcvt.s32.f32 %v7515
    %v7580 = vcvt.s32.f32 %v7516
    %v7581 = vcvt.s32.f32 %v7517
    %v7582 = vcvt.s32.f32 %v7518
    %v7583 = vcvt.s32.f32 %v7519
    %v7584 = vcvt.s32.f32 %v7520
    %v7585 = vcvt.s32.f32 %v7521
    %v7586 = vcvt.s32.f32 %v7522
    %v7587 = vcvt.s32.f32 %v7523
    %v7588 = vcvt.s32.f32 %v7524
    %v7589 = vcvt.s32.f32 %v7525
    %v7590 = vcvt.s32.f32 %v7526
    %v7591 = vcvt.s32.f32 %v7527
    %v7592 = vcvt.s32.f32 %v7528
    %v7593 = vcvt.s32.f32 %v7529
    %v7594 = vlaneseq
    %v7595 = vshrl.u32 %v7594, 7
    %v7596 = vsub.s32 5, %v7595
    %v7597 = vrot.slane %v3253, %v7596
    %v7598 = vmul.f32 %v7530, %v7597
    %v7599 = vmul.f32 %v7531, %v7597
    %v7600 = vmul.f32 %v7532, %v7597
    %v7601 = vmul.f32 %v7533, %v7597
    %v7602 = vmul.f32 %v7534, %v7597
    %v7603 = vmul.f32 %v7535, %v7597
    %v7604 = vmul.f32 %v7536, %v7597
    %v7605 = vmul.f32 %v7537, %v7597
    %v7606 = vmul.f32 %v7538, %v7597
    %v7607 = vmul.f32 %v7539, %v7597
    %v7608 = vmul.f32 %v7540, %v7597
    %v7609 = vmul.f32 %v7541, %v7597
    %v7610 = vmul.f32 %v7542, %v7597
    %v7611 = vmul.f32 %v7543, %v7597
    %v7612 = vmul.f32 %v7544, %v7597
    %v7613 = vmul.f32 %v7545, %v7597
    %v7614 = vmul.f32 %v7546, %v7597
    %v7615 = vmul.f32 %v7547, %v7597
    %v7616 = vmul.f32 %v7548, %v7597
    %v7617 = vmul.f32 %v7549, %v7597
    %v7618 = vmul.f32 %v7550, %v7597
    %v7619 = vmul.f32 %v7551, %v7597
    %v7620 = vmul.f32 %v7552, %v7597
    %v7621 = vmul.f32 %v7553, %v7597
    %v7622 = vmul.f32 %v7554, %v7597
    %v7623 = vmul.f32 %v7555, %v7597
    %v7624 = vmul.f32 %v7556, %v7597
    %v7625 = vmul.f32 %v7557, %v7597
    %v7626 = vmul.f32 %v7558, %v7597
    %v7627 = vmul.f32 %v7559, %v7597
    %v7628 = vmul.f32 %v7560, %v7597
    %v7629 = vmul.f32 %v7561, %v7597
    %v7630 = vmul.f32 %v7562, %v7597
    %v7631 = vmul.f32 %v7563, %v7597
    %v7632 = vmul.f32 %v7564, %v7597
    %v7633 = vmul.f32 %v7565, %v7597
    %v7634 = vmul.f32 %v7566, %v7597
    %v7635 = vmul.f32 %v7567, %v7597
    %v7636 = vmul.f32 %v7568, %v7597
    %v7637 = vmul.f32 %v7569, %v7597
    %v7638 = vmul.f32 %v7570, %v7597
    %v7639 = vmul.f32 %v7571, %v7597
    %v7640 = vmul.f32 %v7572, %v7597
    %v7641 = vmul.f32 %v7573, %v7597
    %v7642 = vmul.f32 %v7574, %v7597
    %v7643 = vmul.f32 %v7575, %v7597
    %v7644 = vmul.f32 %v7576, %v7597
    %v7645 = vmul.f32 %v7577, %v7597
    %v7646 = vmul.f32 %v7578, %v7597
    %v7647 = vmul.f32 %v7579, %v7597
    %v7648 = vmul.f32 %v7580, %v7597
    %v7649 = vmul.f32 %v7581, %v7597
    %v7650 = vmul.f32 %v7582, %v7597
    %v7651 = vmul.f32 %v7583, %v7597
    %v7652 = vmul.f32 %v7584, %v7597
    %v7653 = vmul.f32 %v7585, %v7597
    %v7654 = vmul.f32 %v7586, %v7597
    %v7655 = vmul.f32 %v7587, %v7597
    %v7656 = vmul.f32 %v7588, %v7597
    %v7657 = vmul.f32 %v7589, %v7597
    %v7658 = vmul.f32 %v7590, %v7597
    %v7659 = vmul.f32 %v7591, %v7597
    %v7660 = vmul.f32 %v7592, %v7597
    %v7661 = vmul.f32 %v7593, %v7597
    %v7662 = vadd.f32 %v7338, %v7598
    %v7663 = vadd.f32 %v7339, %v7599
    %v7664 = vadd.f32 %v7340, %v7600
    %v7665 = vadd.f32 %v7341, %v7601
    %v7666 = vadd.f32 %v7342, %v7602
    %v7667 = vadd.f32 %v7343, %v7603
    %v7668 = vadd.f32 %v7344, %v7604
    %v7669 = vadd.f32 %v7345, %v7605
    %v7670 = vadd.f32 %v7346, %v7606
    %v7671 = vadd.f32 %v7347, %v7607
    %v7672 = vadd.f32 %v7348, %v7608
    %v7673 = vadd.f32 %v7349, %v7609
    %v7674 = vadd.f32 %v7350, %v7610
    %v7675 = vadd.f32 %v7351, %v7611
    %v7676 = vadd.f32 %v7352, %v7612
    %v7677 = vadd.f32 %v7353, %v7613
    %v7678 = vadd.f32 %v7354, %v7614
    %v7679 = vadd.f32 %v7355, %v7615
    %v7680 = vadd.f32 %v7356, %v7616
    %v7681 = vadd.f32 %v7357, %v7617
    %v7682 = vadd.f32 %v7358, %v7618
    %v7683 = vadd.f32 %v7359, %v7619
    %v7684 = vadd.f32 %v7360, %v7620
    %v7685 = vadd.f32 %v7361, %v7621
    %v7686 = vadd.f32 %v7362, %v7622
    %v7687 = vadd.f32 %v7363, %v7623
    %v7688 = vadd.f32 %v7364, %v7624
    %v7689 = vadd.f32 %v7365, %v7625
    %v7690 = vadd.f32 %v7366, %v7626
    %v7691 = vadd.f32 %v7367, %v7627
    %v7692 = vadd.f32 %v7368, %v7628
    %v7693 = vadd.f32 %v7369, %v7629
    %v7694 = vadd.f32 %v7370, %v7630
    %v7695 = vadd.f32 %v7371, %v7631
    %v7696 = vadd.f32 %v7372, %v7632
    %v7697 = vadd.f32 %v7373, %v7633
    %v7698 = vadd.f32 %v7374, %v7634
    %v7699 = vadd.f32 %v7375, %v7635
    %v7700 = vadd.f32 %v7376, %v7636
    %v7701 = vadd.f32 %v7377, %v7637
    %v7702 = vadd.f32 %v7378, %v7638
    %v7703 = vadd.f32 %v7379, %v7639
    %v7704 = vadd.f32 %v7380, %v7640
    %v7705 = vadd.f32 %v7381, %v7641
    %v7706 = vadd.f32 %v7382, %v7642
    %v7707 = vadd.f32 %v7383, %v7643
    %v7708 = vadd.f32 %v7384, %v7644
    %v7709 = vadd.f32 %v7385, %v7645
    %v7710 = vadd.f32 %v7386, %v7646
    %v7711 = vadd.f32 %v7387, %v7647
    %v7712 = vadd.f32 %v7388, %v7648
    %v7713 = vadd.f32 %v7389, %v7649
    %v7714 = vadd.f32 %v7390, %v7650
    %v7715 = vadd.f32 %v7391, %v7651
    %v7716 = vadd.f32 %v7392, %v7652
    %v7717 = vadd.f32 %v7393, %v7653
    %v7718 = vadd.f32 %v7394, %v7654
    %v7719 = vadd.f32 %v7395, %v7655
    %v7720 = vadd.f32 %v7396, %v7656
    %v7721 = vadd.f32 %v7397, %v7657
    %v7722 = vadd.f32 %v7398, %v7658
    %v7723 = vadd.f32 %v7399, %v7659
    %v7724 = vadd.f32 %v7400, %v7660
    %v7725 = vadd.f32 %v7401, %v7661
    %vm7726 = vcmp.eq.s32.totalorder %v2114, 14
    %vm7727 = vcmp.eq.s32.totalorder %v2129, 14
    %vm7728 = vcmp.eq.s32.totalorder %v2144, 14
    %vm7729 = vcmp.eq.s32.totalorder %v2159, 14
    %vm7730 = vcmp.eq.s32.totalorder %v2174, 14
    %vm7731 = vcmp.eq.s32.totalorder %v2189, 14
    %vm7732 = vcmp.eq.s32.totalorder %v2204, 14
    %vm7733 = vcmp.eq.s32.totalorder %v2219, 14
    %vm7734 = vcmp.eq.s32.totalorder %v2234, 14
    %vm7735 = vcmp.eq.s32.totalorder %v2249, 14
    %vm7736 = vcmp.eq.s32.totalorder %v2264, 14
    %vm7737 = vcmp.eq.s32.totalorder %v2279, 14
    %vm7738 = vcmp.eq.s32.totalorder %v2294, 14
    %vm7739 = vcmp.eq.s32.totalorder %v2309, 14
    %vm7740 = vcmp.eq.s32.totalorder %v2324, 14
    %vm7741 = vcmp.eq.s32.totalorder %v2339, 14
    %vm7742 = vcmp.eq.s32.totalorder %v2354, 14
    %vm7743 = vcmp.eq.s32.totalorder %v2369, 14
    %vm7744 = vcmp.eq.s32.totalorder %v2384, 14
    %vm7745 = vcmp.eq.s32.totalorder %v2399, 14
    %vm7746 = vcmp.eq.s32.totalorder %v2414, 14
    %vm7747 = vcmp.eq.s32.totalorder %v2429, 14
    %vm7748 = vcmp.eq.s32.totalorder %v2444, 14
    %vm7749 = vcmp.eq.s32.totalorder %v2459, 14
    %vm7750 = vcmp.eq.s32.totalorder %v2474, 14
    %vm7751 = vcmp.eq.s32.totalorder %v2489, 14
    %vm7752 = vcmp.eq.s32.totalorder %v2504, 14
    %vm7753 = vcmp.eq.s32.totalorder %v2519, 14
    %vm7754 = vcmp.eq.s32.totalorder %v2534, 14
    %vm7755 = vcmp.eq.s32.totalorder %v2549, 14
    %vm7756 = vcmp.eq.s32.totalorder %v2564, 14
    %vm7757 = vcmp.eq.s32.totalorder %v2579, 14
    %vm7758 = vcmp.eq.s32.totalorder %v2594, 14
    %vm7759 = vcmp.eq.s32.totalorder %v2609, 14
    %vm7760 = vcmp.eq.s32.totalorder %v2624, 14
    %vm7761 = vcmp.eq.s32.totalorder %v2639, 14
    %vm7762 = vcmp.eq.s32.totalorder %v2654, 14
    %vm7763 = vcmp.eq.s32.totalorder %v2669, 14
    %vm7764 = vcmp.eq.s32.totalorder %v2684, 14
    %vm7765 = vcmp.eq.s32.totalorder %v2699, 14
    %vm7766 = vcmp.eq.s32.totalorder %v2714, 14
    %vm7767 = vcmp.eq.s32.totalorder %v2729, 14
    %vm7768 = vcmp.eq.s32.totalorder %v2744, 14
    %vm7769 = vcmp.eq.s32.totalorder %v2759, 14
    %vm7770 = vcmp.eq.s32.totalorder %v2774, 14
    %vm7771 = vcmp.eq.s32.totalorder %v2789, 14
    %vm7772 = vcmp.eq.s32.totalorder %v2804, 14
    %vm7773 = vcmp.eq.s32.totalorder %v2819, 14
    %vm7774 = vcmp.eq.s32.totalorder %v2834, 14
    %vm7775 = vcmp.eq.s32.totalorder %v2849, 14
    %vm7776 = vcmp.eq.s32.totalorder %v2864, 14
    %vm7777 = vcmp.eq.s32.totalorder %v2879, 14
    %vm7778 = vcmp.eq.s32.totalorder %v2894, 14
    %vm7779 = vcmp.eq.s32.totalorder %v2909, 14
    %vm7780 = vcmp.eq.s32.totalorder %v2924, 14
    %vm7781 = vcmp.eq.s32.totalorder %v2939, 14
    %vm7782 = vcmp.eq.s32.totalorder %v2954, 14
    %vm7783 = vcmp.eq.s32.totalorder %v2969, 14
    %vm7784 = vcmp.eq.s32.totalorder %v2984, 14
    %vm7785 = vcmp.eq.s32.totalorder %v2999, 14
    %vm7786 = vcmp.eq.s32.totalorder %v3014, 14
    %vm7787 = vcmp.eq.s32.totalorder %v3029, 14
    %vm7788 = vcmp.eq.s32.totalorder %v3044, 14
    %vm7789 = vcmp.eq.s32.totalorder %v3059, 14
    %v7790 = vsel %vm7726, 1, 0
    %v7791 = vsel %vm7727, 1, 0
    %v7792 = vsel %vm7728, 1, 0
    %v7793 = vsel %vm7729, 1, 0
    %v7794 = vsel %vm7730, 1, 0
    %v7795 = vsel %vm7731, 1, 0
    %v7796 = vsel %vm7732, 1, 0
    %v7797 = vsel %vm7733, 1, 0
    %v7798 = vsel %vm7734, 1, 0
    %v7799 = vsel %vm7735, 1, 0
    %v7800 = vsel %vm7736, 1, 0
    %v7801 = vsel %vm7737, 1, 0
    %v7802 = vsel %vm7738, 1, 0
    %v7803 = vsel %vm7739, 1, 0
    %v7804 = vsel %vm7740, 1, 0
    %v7805 = vsel %vm7741, 1, 0
    %v7806 = vsel %vm7742, 1, 0
    %v7807 = vsel %vm7743, 1, 0
    %v7808 = vsel %vm7744, 1, 0
    %v7809 = vsel %vm7745, 1, 0
    %v7810 = vsel %vm7746, 1, 0
    %v7811 = vsel %vm7747, 1, 0
    %v7812 = vsel %vm7748, 1, 0
    %v7813 = vsel %vm7749, 1, 0
    %v7814 = vsel %vm7750, 1, 0
    %v7815 = vsel %vm7751, 1, 0
    %v7816 = vsel %vm7752, 1, 0
    %v7817 = vsel %vm7753, 1, 0
    %v7818 = vsel %vm7754, 1, 0
    %v7819 = vsel %vm7755, 1, 0
    %v7820 = vsel %vm7756, 1, 0
    %v7821 = vsel %vm7757, 1, 0
    %v7822 = vsel %vm7758, 1, 0
    %v7823 = vsel %vm7759, 1, 0
    %v7824 = vsel %vm7760, 1, 0
    %v7825 = vsel %vm7761, 1, 0
    %v7826 = vsel %vm7762, 1, 0
    %v7827 = vsel %vm7763, 1, 0
    %v7828 = vsel %vm7764, 1, 0
    %v7829 = vsel %vm7765, 1, 0
    %v7830 = vsel %vm7766, 1, 0
    %v7831 = vsel %vm7767, 1, 0
    %v7832 = vsel %vm7768, 1, 0
    %v7833 = vsel %vm7769, 1, 0
    %v7834 = vsel %vm7770, 1, 0
    %v7835 = vsel %vm7771, 1, 0
    %v7836 = vsel %vm7772, 1, 0
    %v7837 = vsel %vm7773, 1, 0
    %v7838 = vsel %vm7774, 1, 0
    %v7839 = vsel %vm7775, 1, 0
    %v7840 = vsel %vm7776, 1, 0
    %v7841 = vsel %vm7777, 1, 0
    %v7842 = vsel %vm7778, 1, 0
    %v7843 = vsel %vm7779, 1, 0
    %v7844 = vsel %vm7780, 1, 0
    %v7845 = vsel %vm7781, 1, 0
    %v7846 = vsel %vm7782, 1, 0
    %v7847 = vsel %vm7783, 1, 0
    %v7848 = vsel %vm7784, 1, 0
    %v7849 = vsel %vm7785, 1, 0
    %v7850 = vsel %vm7786, 1, 0
    %v7851 = vsel %vm7787, 1, 0
    %v7852 = vsel %vm7788, 1, 0
    %v7853 = vsel %vm7789, 1, 0
    %v7854 = vcvt.s32.f32 %v7790
    %v7855 = vcvt.s32.f32 %v7791
    %v7856 = vcvt.s32.f32 %v7792
    %v7857 = vcvt.s32.f32 %v7793
    %v7858 = vcvt.s32.f32 %v7794
    %v7859 = vcvt.s32.f32 %v7795
    %v7860 = vcvt.s32.f32 %v7796
    %v7861 = vcvt.s32.f32 %v7797
    %v7862 = vcvt.s32.f32 %v7798
    %v7863 = vcvt.s32.f32 %v7799
    %v7864 = vcvt.s32.f32 %v7800
    %v7865 = vcvt.s32.f32 %v7801
    %v7866 = vcvt.s32.f32 %v7802
    %v7867 = vcvt.s32.f32 %v7803
    %v7868 = vcvt.s32.f32 %v7804
    %v7869 = vcvt.s32.f32 %v7805
    %v7870 = vcvt.s32.f32 %v7806
    %v7871 = vcvt.s32.f32 %v7807
    %v7872 = vcvt.s32.f32 %v7808
    %v7873 = vcvt.s32.f32 %v7809
    %v7874 = vcvt.s32.f32 %v7810
    %v7875 = vcvt.s32.f32 %v7811
    %v7876 = vcvt.s32.f32 %v7812
    %v7877 = vcvt.s32.f32 %v7813
    %v7878 = vcvt.s32.f32 %v7814
    %v7879 = vcvt.s32.f32 %v7815
    %v7880 = vcvt.s32.f32 %v7816
    %v7881 = vcvt.s32.f32 %v7817
    %v7882 = vcvt.s32.f32 %v7818
    %v7883 = vcvt.s32.f32 %v7819
    %v7884 = vcvt.s32.f32 %v7820
    %v7885 = vcvt.s32.f32 %v7821
    %v7886 = vcvt.s32.f32 %v7822
    %v7887 = vcvt.s32.f32 %v7823
    %v7888 = vcvt.s32.f32 %v7824
    %v7889 = vcvt.s32.f32 %v7825
    %v7890 = vcvt.s32.f32 %v7826
    %v7891 = vcvt.s32.f32 %v7827
    %v7892 = vcvt.s32.f32 %v7828
    %v7893 = vcvt.s32.f32 %v7829
    %v7894 = vcvt.s32.f32 %v7830
    %v7895 = vcvt.s32.f32 %v7831
    %v7896 = vcvt.s32.f32 %v7832
    %v7897 = vcvt.s32.f32 %v7833
    %v7898 = vcvt.s32.f32 %v7834
    %v7899 = vcvt.s32.f32 %v7835
    %v7900 = vcvt.s32.f32 %v7836
    %v7901 = vcvt.s32.f32 %v7837
    %v7902 = vcvt.s32.f32 %v7838
    %v7903 = vcvt.s32.f32 %v7839
    %v7904 = vcvt.s32.f32 %v7840
    %v7905 = vcvt.s32.f32 %v7841
    %v7906 = vcvt.s32.f32 %v7842
    %v7907 = vcvt.s32.f32 %v7843
    %v7908 = vcvt.s32.f32 %v7844
    %v7909 = vcvt.s32.f32 %v7845
    %v7910 = vcvt.s32.f32 %v7846
    %v7911 = vcvt.s32.f32 %v7847
    %v7912 = vcvt.s32.f32 %v7848
    %v7913 = vcvt.s32.f32 %v7849
    %v7914 = vcvt.s32.f32 %v7850
    %v7915 = vcvt.s32.f32 %v7851
    %v7916 = vcvt.s32.f32 %v7852
    %v7917 = vcvt.s32.f32 %v7853
    %v7918 = vlaneseq
    %v7919 = vshrl.u32 %v7918, 7
    %v7920 = vsub.s32 6, %v7919
    %v7921 = vrot.slane %v3253, %v7920
    %v7922 = vmul.f32 %v7854, %v7921
    %v7923 = vmul.f32 %v7855, %v7921
    %v7924 = vmul.f32 %v7856, %v7921
    %v7925 = vmul.f32 %v7857, %v7921
    %v7926 = vmul.f32 %v7858, %v7921
    %v7927 = vmul.f32 %v7859, %v7921
    %v7928 = vmul.f32 %v7860, %v7921
    %v7929 = vmul.f32 %v7861, %v7921
    %v7930 = vmul.f32 %v7862, %v7921
    %v7931 = vmul.f32 %v7863, %v7921
    %v7932 = vmul.f32 %v7864, %v7921
    %v7933 = vmul.f32 %v7865, %v7921
    %v7934 = vmul.f32 %v7866, %v7921
    %v7935 = vmul.f32 %v7867, %v7921
    %v7936 = vmul.f32 %v7868, %v7921
    %v7937 = vmul.f32 %v7869, %v7921
    %v7938 = vmul.f32 %v7870, %v7921
    %v7939 = vmul.f32 %v7871, %v7921
    %v7940 = vmul.f32 %v7872, %v7921
    %v7941 = vmul.f32 %v7873, %v7921
    %v7942 = vmul.f32 %v7874, %v7921
    %v7943 = vmul.f32 %v7875, %v7921
    %v7944 = vmul.f32 %v7876, %v7921
    %v7945 = vmul.f32 %v7877, %v7921
    %v7946 = vmul.f32 %v7878, %v7921
    %v7947 = vmul.f32 %v7879, %v7921
    %v7948 = vmul.f32 %v7880, %v7921
    %v7949 = vmul.f32 %v7881, %v7921
    %v7950 = vmul.f32 %v7882, %v7921
    %v7951 = vmul.f32 %v7883, %v7921
    %v7952 = vmul.f32 %v7884, %v7921
    %v7953 = vmul.f32 %v7885, %v7921
    %v7954 = vmul.f32 %v7886, %v7921
    %v7955 = vmul.f32 %v7887, %v7921
    %v7956 = vmul.f32 %v7888, %v7921
    %v7957 = vmul.f32 %v7889, %v7921
    %v7958 = vmul.f32 %v7890, %v7921
    %v7959 = vmul.f32 %v7891, %v7921
    %v7960 = vmul.f32 %v7892, %v7921
    %v7961 = vmul.f32 %v7893, %v7921
    %v7962 = vmul.f32 %v7894, %v7921
    %v7963 = vmul.f32 %v7895, %v7921
    %v7964 = vmul.f32 %v7896, %v7921
    %v7965 = vmul.f32 %v7897, %v7921
    %v7966 = vmul.f32 %v7898, %v7921
    %v7967 = vmul.f32 %v7899, %v7921
    %v7968 = vmul.f32 %v7900, %v7921
    %v7969 = vmul.f32 %v7901, %v7921
    %v7970 = vmul.f32 %v7902, %v7921
    %v7971 = vmul.f32 %v7903, %v7921
    %v7972 = vmul.f32 %v7904, %v7921
    %v7973 = vmul.f32 %v7905, %v7921
    %v7974 = vmul.f32 %v7906, %v7921
    %v7975 = vmul.f32 %v7907, %v7921
    %v7976 = vmul.f32 %v7908, %v7921
    %v7977 = vmul.f32 %v7909, %v7921
    %v7978 = vmul.f32 %v7910, %v7921
    %v7979 = vmul.f32 %v7911, %v7921
    %v7980 = vmul.f32 %v7912, %v7921
    %v7981 = vmul.f32 %v7913, %v7921
    %v7982 = vmul.f32 %v7914, %v7921
    %v7983 = vmul.f32 %v7915, %v7921
    %v7984 = vmul.f32 %v7916, %v7921
    %v7985 = vmul.f32 %v7917, %v7921
    %v7986 = vadd.f32 %v7662, %v7922
    %v7987 = vadd.f32 %v7663, %v7923
    %v7988 = vadd.f32 %v7664, %v7924
    %v7989 = vadd.f32 %v7665, %v7925
    %v7990 = vadd.f32 %v7666, %v7926
    %v7991 = vadd.f32 %v7667, %v7927
    %v7992 = vadd.f32 %v7668, %v7928
    %v7993 = vadd.f32 %v7669, %v7929
    %v7994 = vadd.f32 %v7670, %v7930
    %v7995 = vadd.f32 %v7671, %v7931
    %v7996 = vadd.f32 %v7672, %v7932
    %v7997 = vadd.f32 %v7673, %v7933
    %v7998 = vadd.f32 %v7674, %v7934
    %v7999 = vadd.f32 %v7675, %v7935
    %v8000 = vadd.f32 %v7676, %v7936
    %v8001 = vadd.f32 %v7677, %v7937
    %v8002 = vadd.f32 %v7678, %v7938
    %v8003 = vadd.f32 %v7679, %v7939
    %v8004 = vadd.f32 %v7680, %v7940
    %v8005 = vadd.f32 %v7681, %v7941
    %v8006 = vadd.f32 %v7682, %v7942
    %v8007 = vadd.f32 %v7683, %v7943
    %v8008 = vadd.f32 %v7684, %v7944
    %v8009 = vadd.f32 %v7685, %v7945
    %v8010 = vadd.f32 %v7686, %v7946
    %v8011 = vadd.f32 %v7687, %v7947
    %v8012 = vadd.f32 %v7688, %v7948
    %v8013 = vadd.f32 %v7689, %v7949
    %v8014 = vadd.f32 %v7690, %v7950
    %v8015 = vadd.f32 %v7691, %v7951
    %v8016 = vadd.f32 %v7692, %v7952
    %v8017 = vadd.f32 %v7693, %v7953
    %v8018 = vadd.f32 %v7694, %v7954
    %v8019 = vadd.f32 %v7695, %v7955
    %v8020 = vadd.f32 %v7696, %v7956
    %v8021 = vadd.f32 %v7697, %v7957
    %v8022 = vadd.f32 %v7698, %v7958
    %v8023 = vadd.f32 %v7699, %v7959
    %v8024 = vadd.f32 %v7700, %v7960
    %v8025 = vadd.f32 %v7701, %v7961
    %v8026 = vadd.f32 %v7702, %v7962
    %v8027 = vadd.f32 %v7703, %v7963
    %v8028 = vadd.f32 %v7704, %v7964
    %v8029 = vadd.f32 %v7705, %v7965
    %v8030 = vadd.f32 %v7706, %v7966
    %v8031 = vadd.f32 %v7707, %v7967
    %v8032 = vadd.f32 %v7708, %v7968
    %v8033 = vadd.f32 %v7709, %v7969
    %v8034 = vadd.f32 %v7710, %v7970
    %v8035 = vadd.f32 %v7711, %v7971
    %v8036 = vadd.f32 %v7712, %v7972
    %v8037 = vadd.f32 %v7713, %v7973
    %v8038 = vadd.f32 %v7714, %v7974
    %v8039 = vadd.f32 %v7715, %v7975
    %v8040 = vadd.f32 %v7716, %v7976
    %v8041 = vadd.f32 %v7717, %v7977
    %v8042 = vadd.f32 %v7718, %v7978
    %v8043 = vadd.f32 %v7719, %v7979
    %v8044 = vadd.f32 %v7720, %v7980
    %v8045 = vadd.f32 %v7721, %v7981
    %v8046 = vadd.f32 %v7722, %v7982
    %v8047 = vadd.f32 %v7723, %v7983
    %v8048 = vadd.f32 %v7724, %v7984
    %v8049 = vadd.f32 %v7725, %v7985
    %vm8050 = vcmp.eq.s32.totalorder %v2114, 15
    %vm8051 = vcmp.eq.s32.totalorder %v2129, 15
    %vm8052 = vcmp.eq.s32.totalorder %v2144, 15
    %vm8053 = vcmp.eq.s32.totalorder %v2159, 15
    %vm8054 = vcmp.eq.s32.totalorder %v2174, 15
    %vm8055 = vcmp.eq.s32.totalorder %v2189, 15
    %vm8056 = vcmp.eq.s32.totalorder %v2204, 15
    %vm8057 = vcmp.eq.s32.totalorder %v2219, 15
    %vm8058 = vcmp.eq.s32.totalorder %v2234, 15
    %vm8059 = vcmp.eq.s32.totalorder %v2249, 15
    %vm8060 = vcmp.eq.s32.totalorder %v2264, 15
    %vm8061 = vcmp.eq.s32.totalorder %v2279, 15
    %vm8062 = vcmp.eq.s32.totalorder %v2294, 15
    %vm8063 = vcmp.eq.s32.totalorder %v2309, 15
    %vm8064 = vcmp.eq.s32.totalorder %v2324, 15
    %vm8065 = vcmp.eq.s32.totalorder %v2339, 15
    %vm8066 = vcmp.eq.s32.totalorder %v2354, 15
    %vm8067 = vcmp.eq.s32.totalorder %v2369, 15
    %vm8068 = vcmp.eq.s32.totalorder %v2384, 15
    %vm8069 = vcmp.eq.s32.totalorder %v2399, 15
    %vm8070 = vcmp.eq.s32.totalorder %v2414, 15
    %vm8071 = vcmp.eq.s32.totalorder %v2429, 15
    %vm8072 = vcmp.eq.s32.totalorder %v2444, 15
    %vm8073 = vcmp.eq.s32.totalorder %v2459, 15
    %vm8074 = vcmp.eq.s32.totalorder %v2474, 15
    %vm8075 = vcmp.eq.s32.totalorder %v2489, 15
    %vm8076 = vcmp.eq.s32.totalorder %v2504, 15
    %vm8077 = vcmp.eq.s32.totalorder %v2519, 15
    %vm8078 = vcmp.eq.s32.totalorder %v2534, 15
    %vm8079 = vcmp.eq.s32.totalorder %v2549, 15
    %vm8080 = vcmp.eq.s32.totalorder %v2564, 15
    %vm8081 = vcmp.eq.s32.totalorder %v2579, 15
    %vm8082 = vcmp.eq.s32.totalorder %v2594, 15
    %vm8083 = vcmp.eq.s32.totalorder %v2609, 15
    %vm8084 = vcmp.eq.s32.totalorder %v2624, 15
    %vm8085 = vcmp.eq.s32.totalorder %v2639, 15
    %vm8086 = vcmp.eq.s32.totalorder %v2654, 15
    %vm8087 = vcmp.eq.s32.totalorder %v2669, 15
    %vm8088 = vcmp.eq.s32.totalorder %v2684, 15
    %vm8089 = vcmp.eq.s32.totalorder %v2699, 15
    %vm8090 = vcmp.eq.s32.totalorder %v2714, 15
    %vm8091 = vcmp.eq.s32.totalorder %v2729, 15
    %vm8092 = vcmp.eq.s32.totalorder %v2744, 15
    %vm8093 = vcmp.eq.s32.totalorder %v2759, 15
    %vm8094 = vcmp.eq.s32.totalorder %v2774, 15
    %vm8095 = vcmp.eq.s32.totalorder %v2789, 15
    %vm8096 = vcmp.eq.s32.totalorder %v2804, 15
    %vm8097 = vcmp.eq.s32.totalorder %v2819, 15
    %vm8098 = vcmp.eq.s32.totalorder %v2834, 15
    %vm8099 = vcmp.eq.s32.totalorder %v2849, 15
    %vm8100 = vcmp.eq.s32.totalorder %v2864, 15
    %vm8101 = vcmp.eq.s32.totalorder %v2879, 15
    %vm8102 = vcmp.eq.s32.totalorder %v2894, 15
    %vm8103 = vcmp.eq.s32.totalorder %v2909, 15
    %vm8104 = vcmp.eq.s32.totalorder %v2924, 15
    %vm8105 = vcmp.eq.s32.totalorder %v2939, 15
    %vm8106 = vcmp.eq.s32.totalorder %v2954, 15
    %vm8107 = vcmp.eq.s32.totalorder %v2969, 15
    %vm8108 = vcmp.eq.s32.totalorder %v2984, 15
    %vm8109 = vcmp.eq.s32.totalorder %v2999, 15
    %vm8110 = vcmp.eq.s32.totalorder %v3014, 15
    %vm8111 = vcmp.eq.s32.totalorder %v3029, 15
    %vm8112 = vcmp.eq.s32.totalorder %v3044, 15
    %vm8113 = vcmp.eq.s32.totalorder %v3059, 15
    %v8114 = vsel %vm8050, 1, 0
    %v8115 = vsel %vm8051, 1, 0
    %v8116 = vsel %vm8052, 1, 0
    %v8117 = vsel %vm8053, 1, 0
    %v8118 = vsel %vm8054, 1, 0
    %v8119 = vsel %vm8055, 1, 0
    %v8120 = vsel %vm8056, 1, 0
    %v8121 = vsel %vm8057, 1, 0
    %v8122 = vsel %vm8058, 1, 0
    %v8123 = vsel %vm8059, 1, 0
    %v8124 = vsel %vm8060, 1, 0
    %v8125 = vsel %vm8061, 1, 0
    %v8126 = vsel %vm8062, 1, 0
    %v8127 = vsel %vm8063, 1, 0
    %v8128 = vsel %vm8064, 1, 0
    %v8129 = vsel %vm8065, 1, 0
    %v8130 = vsel %vm8066, 1, 0
    %v8131 = vsel %vm8067, 1, 0
    %v8132 = vsel %vm8068, 1, 0
    %v8133 = vsel %vm8069, 1, 0
    %v8134 = vsel %vm8070, 1, 0
    %v8135 = vsel %vm8071, 1, 0
    %v8136 = vsel %vm8072, 1, 0
    %v8137 = vsel %vm8073, 1, 0
    %v8138 = vsel %vm8074, 1, 0
    %v8139 = vsel %vm8075, 1, 0
    %v8140 = vsel %vm8076, 1, 0
    %v8141 = vsel %vm8077, 1, 0
    %v8142 = vsel %vm8078, 1, 0
    %v8143 = vsel %vm8079, 1, 0
    %v8144 = vsel %vm8080, 1, 0
    %v8145 = vsel %vm8081, 1, 0
    %v8146 = vsel %vm8082, 1, 0
    %v8147 = vsel %vm8083, 1, 0
    %v8148 = vsel %vm8084, 1, 0
    %v8149 = vsel %vm8085, 1, 0
    %v8150 = vsel %vm8086, 1, 0
    %v8151 = vsel %vm8087, 1, 0
    %v8152 = vsel %vm8088, 1, 0
    %v8153 = vsel %vm8089, 1, 0
    %v8154 = vsel %vm8090, 1, 0
    %v8155 = vsel %vm8091, 1, 0
    %v8156 = vsel %vm8092, 1, 0
    %v8157 = vsel %vm8093, 1, 0
    %v8158 = vsel %vm8094, 1, 0
    %v8159 = vsel %vm8095, 1, 0
    %v8160 = vsel %vm8096, 1, 0
    %v8161 = vsel %vm8097, 1, 0
    %v8162 = vsel %vm8098, 1, 0
    %v8163 = vsel %vm8099, 1, 0
    %v8164 = vsel %vm8100, 1, 0
    %v8165 = vsel %vm8101, 1, 0
    %v8166 = vsel %vm8102, 1, 0
    %v8167 = vsel %vm8103, 1, 0
    %v8168 = vsel %vm8104, 1, 0
    %v8169 = vsel %vm8105, 1, 0
    %v8170 = vsel %vm8106, 1, 0
    %v8171 = vsel %vm8107, 1, 0
    %v8172 = vsel %vm8108, 1, 0
    %v8173 = vsel %vm8109, 1, 0
    %v8174 = vsel %vm8110, 1, 0
    %v8175 = vsel %vm8111, 1, 0
    %v8176 = vsel %vm8112, 1, 0
    %v8177 = vsel %vm8113, 1, 0
    %v8178 = vcvt.s32.f32 %v8114
    %v8179 = vcvt.s32.f32 %v8115
    %v8180 = vcvt.s32.f32 %v8116
    %v8181 = vcvt.s32.f32 %v8117
    %v8182 = vcvt.s32.f32 %v8118
    %v8183 = vcvt.s32.f32 %v8119
    %v8184 = vcvt.s32.f32 %v8120
    %v8185 = vcvt.s32.f32 %v8121
    %v8186 = vcvt.s32.f32 %v8122
    %v8187 = vcvt.s32.f32 %v8123
    %v8188 = vcvt.s32.f32 %v8124
    %v8189 = vcvt.s32.f32 %v8125
    %v8190 = vcvt.s32.f32 %v8126
    %v8191 = vcvt.s32.f32 %v8127
    %v8192 = vcvt.s32.f32 %v8128
    %v8193 = vcvt.s32.f32 %v8129
    %v8194 = vcvt.s32.f32 %v8130
    %v8195 = vcvt.s32.f32 %v8131
    %v8196 = vcvt.s32.f32 %v8132
    %v8197 = vcvt.s32.f32 %v8133
    %v8198 = vcvt.s32.f32 %v8134
    %v8199 = vcvt.s32.f32 %v8135
    %v8200 = vcvt.s32.f32 %v8136
    %v8201 = vcvt.s32.f32 %v8137
    %v8202 = vcvt.s32.f32 %v8138
    %v8203 = vcvt.s32.f32 %v8139
    %v8204 = vcvt.s32.f32 %v8140
    %v8205 = vcvt.s32.f32 %v8141
    %v8206 = vcvt.s32.f32 %v8142
    %v8207 = vcvt.s32.f32 %v8143
    %v8208 = vcvt.s32.f32 %v8144
    %v8209 = vcvt.s32.f32 %v8145
    %v8210 = vcvt.s32.f32 %v8146
    %v8211 = vcvt.s32.f32 %v8147
    %v8212 = vcvt.s32.f32 %v8148
    %v8213 = vcvt.s32.f32 %v8149
    %v8214 = vcvt.s32.f32 %v8150
    %v8215 = vcvt.s32.f32 %v8151
    %v8216 = vcvt.s32.f32 %v8152
    %v8217 = vcvt.s32.f32 %v8153
    %v8218 = vcvt.s32.f32 %v8154
    %v8219 = vcvt.s32.f32 %v8155
    %v8220 = vcvt.s32.f32 %v8156
    %v8221 = vcvt.s32.f32 %v8157
    %v8222 = vcvt.s32.f32 %v8158
    %v8223 = vcvt.s32.f32 %v8159
    %v8224 = vcvt.s32.f32 %v8160
    %v8225 = vcvt.s32.f32 %v8161
    %v8226 = vcvt.s32.f32 %v8162
    %v8227 = vcvt.s32.f32 %v8163
    %v8228 = vcvt.s32.f32 %v8164
    %v8229 = vcvt.s32.f32 %v8165
    %v8230 = vcvt.s32.f32 %v8166
    %v8231 = vcvt.s32.f32 %v8167
    %v8232 = vcvt.s32.f32 %v8168
    %v8233 = vcvt.s32.f32 %v8169
    %v8234 = vcvt.s32.f32 %v8170
    %v8235 = vcvt.s32.f32 %v8171
    %v8236 = vcvt.s32.f32 %v8172
    %v8237 = vcvt.s32.f32 %v8173
    %v8238 = vcvt.s32.f32 %v8174
    %v8239 = vcvt.s32.f32 %v8175
    %v8240 = vcvt.s32.f32 %v8176
    %v8241 = vcvt.s32.f32 %v8177
    %v8242 = vlaneseq
    %v8243 = vshrl.u32 %v8242, 7
    %v8244 = vsub.s32 7, %v8243
    %v8245 = vrot.slane %v3253, %v8244
    %v8246 = vmul.f32 %v8178, %v8245
    %v8247 = vmul.f32 %v8179, %v8245
    %v8248 = vmul.f32 %v8180, %v8245
    %v8249 = vmul.f32 %v8181, %v8245
    %v8250 = vmul.f32 %v8182, %v8245
    %v8251 = vmul.f32 %v8183, %v8245
    %v8252 = vmul.f32 %v8184, %v8245
    %v8253 = vmul.f32 %v8185, %v8245
    %v8254 = vmul.f32 %v8186, %v8245
    %v8255 = vmul.f32 %v8187, %v8245
    %v8256 = vmul.f32 %v8188, %v8245
    %v8257 = vmul.f32 %v8189, %v8245
    %v8258 = vmul.f32 %v8190, %v8245
    %v8259 = vmul.f32 %v8191, %v8245
    %v8260 = vmul.f32 %v8192, %v8245
    %v8261 = vmul.f32 %v8193, %v8245
    %v8262 = vmul.f32 %v8194, %v8245
    %v8263 = vmul.f32 %v8195, %v8245
    %v8264 = vmul.f32 %v8196, %v8245
    %v8265 = vmul.f32 %v8197, %v8245
    %v8266 = vmul.f32 %v8198, %v8245
    %v8267 = vmul.f32 %v8199, %v8245
    %v8268 = vmul.f32 %v8200, %v8245
    %v8269 = vmul.f32 %v8201, %v8245
    %v8270 = vmul.f32 %v8202, %v8245
    %v8271 = vmul.f32 %v8203, %v8245
    %v8272 = vmul.f32 %v8204, %v8245
    %v8273 = vmul.f32 %v8205, %v8245
    %v8274 = vmul.f32 %v8206, %v8245
    %v8275 = vmul.f32 %v8207, %v8245
    %v8276 = vmul.f32 %v8208, %v8245
    %v8277 = vmul.f32 %v8209, %v8245
    %v8278 = vmul.f32 %v8210, %v8245
    %v8279 = vmul.f32 %v8211, %v8245
    %v8280 = vmul.f32 %v8212, %v8245
    %v8281 = vmul.f32 %v8213, %v8245
    %v8282 = vmul.f32 %v8214, %v8245
    %v8283 = vmul.f32 %v8215, %v8245
    %v8284 = vmul.f32 %v8216, %v8245
    %v8285 = vmul.f32 %v8217, %v8245
    %v8286 = vmul.f32 %v8218, %v8245
    %v8287 = vmul.f32 %v8219, %v8245
    %v8288 = vmul.f32 %v8220, %v8245
    %v8289 = vmul.f32 %v8221, %v8245
    %v8290 = vmul.f32 %v8222, %v8245
    %v8291 = vmul.f32 %v8223, %v8245
    %v8292 = vmul.f32 %v8224, %v8245
    %v8293 = vmul.f32 %v8225, %v8245
    %v8294 = vmul.f32 %v8226, %v8245
    %v8295 = vmul.f32 %v8227, %v8245
    %v8296 = vmul.f32 %v8228, %v8245
    %v8297 = vmul.f32 %v8229, %v8245
    %v8298 = vmul.f32 %v8230, %v8245
    %v8299 = vmul.f32 %v8231, %v8245
    %v8300 = vmul.f32 %v8232, %v8245
    %v8301 = vmul.f32 %v8233, %v8245
    %v8302 = vmul.f32 %v8234, %v8245
    %v8303 = vmul.f32 %v8235, %v8245
    %v8304 = vmul.f32 %v8236, %v8245
    %v8305 = vmul.f32 %v8237, %v8245
    %v8306 = vmul.f32 %v8238, %v8245
    %v8307 = vmul.f32 %v8239, %v8245
    %v8308 = vmul.f32 %v8240, %v8245
    %v8309 = vmul.f32 %v8241, %v8245
    %v8310 = vadd.f32 %v7986, %v8246
    %v8311 = vadd.f32 %v7987, %v8247
    %v8312 = vadd.f32 %v7988, %v8248
    %v8313 = vadd.f32 %v7989, %v8249
    %v8314 = vadd.f32 %v7990, %v8250
    %v8315 = vadd.f32 %v7991, %v8251
    %v8316 = vadd.f32 %v7992, %v8252
    %v8317 = vadd.f32 %v7993, %v8253
    %v8318 = vadd.f32 %v7994, %v8254
    %v8319 = vadd.f32 %v7995, %v8255
    %v8320 = vadd.f32 %v7996, %v8256
    %v8321 = vadd.f32 %v7997, %v8257
    %v8322 = vadd.f32 %v7998, %v8258
    %v8323 = vadd.f32 %v7999, %v8259
    %v8324 = vadd.f32 %v8000, %v8260
    %v8325 = vadd.f32 %v8001, %v8261
    %v8326 = vadd.f32 %v8002, %v8262
    %v8327 = vadd.f32 %v8003, %v8263
    %v8328 = vadd.f32 %v8004, %v8264
    %v8329 = vadd.f32 %v8005, %v8265
    %v8330 = vadd.f32 %v8006, %v8266
    %v8331 = vadd.f32 %v8007, %v8267
    %v8332 = vadd.f32 %v8008, %v8268
    %v8333 = vadd.f32 %v8009, %v8269
    %v8334 = vadd.f32 %v8010, %v8270
    %v8335 = vadd.f32 %v8011, %v8271
    %v8336 = vadd.f32 %v8012, %v8272
    %v8337 = vadd.f32 %v8013, %v8273
    %v8338 = vadd.f32 %v8014, %v8274
    %v8339 = vadd.f32 %v8015, %v8275
    %v8340 = vadd.f32 %v8016, %v8276
    %v8341 = vadd.f32 %v8017, %v8277
    %v8342 = vadd.f32 %v8018, %v8278
    %v8343 = vadd.f32 %v8019, %v8279
    %v8344 = vadd.f32 %v8020, %v8280
    %v8345 = vadd.f32 %v8021, %v8281
    %v8346 = vadd.f32 %v8022, %v8282
    %v8347 = vadd.f32 %v8023, %v8283
    %v8348 = vadd.f32 %v8024, %v8284
    %v8349 = vadd.f32 %v8025, %v8285
    %v8350 = vadd.f32 %v8026, %v8286
    %v8351 = vadd.f32 %v8027, %v8287
    %v8352 = vadd.f32 %v8028, %v8288
    %v8353 = vadd.f32 %v8029, %v8289
    %v8354 = vadd.f32 %v8030, %v8290
    %v8355 = vadd.f32 %v8031, %v8291
    %v8356 = vadd.f32 %v8032, %v8292
    %v8357 = vadd.f32 %v8033, %v8293
    %v8358 = vadd.f32 %v8034, %v8294
    %v8359 = vadd.f32 %v8035, %v8295
    %v8360 = vadd.f32 %v8036, %v8296
    %v8361 = vadd.f32 %v8037, %v8297
    %v8362 = vadd.f32 %v8038, %v8298
    %v8363 = vadd.f32 %v8039, %v8299
    %v8364 = vadd.f32 %v8040, %v8300
    %v8365 = vadd.f32 %v8041, %v8301
    %v8366 = vadd.f32 %v8042, %v8302
    %v8367 = vadd.f32 %v8043, %v8303
    %v8368 = vadd.f32 %v8044, %v8304
    %v8369 = vadd.f32 %v8045, %v8305
    %v8370 = vadd.f32 %v8046, %v8306
    %v8371 = vadd.f32 %v8047, %v8307
    %v8372 = vadd.f32 %v8048, %v8308
    %v8373 = vadd.f32 %v8049, %v8309
    %vm8374 = vcmask 31744
    %8375 = vst.msk [vmem:[%s4] sm:$0xff] %vm8374, %v8310
    %8376 = vst.msk [vmem:[%s4 + $0x8] sm:$0xff] %vm8374, %v8311
    %8377 = vst.msk [vmem:[%s4 + $0x10] sm:$0xff] %vm8374, %v8312
    %8378 = vst.msk [vmem:[%s4 + $0x18] sm:$0xff] %vm8374, %v8313
    %8379 = vst.msk [vmem:[%s4 + $0x20] sm:$0xff] %vm8374, %v8314
    %8380 = vst.msk [vmem:[%s4 + $0x28] sm:$0xff] %vm8374, %v8315
    %8381 = vst.msk [vmem:[%s4 + $0x30] sm:$0xff] %vm8374, %v8316
    %8382 = vst.msk [vmem:[%s4 + $0x38] sm:$0xff] %vm8374, %v8317
    %8383 = vst.msk [vmem:[%s4 + $0x40] sm:$0xff] %vm8374, %v8318
    %8384 = vst.msk [vmem:[%s4 + $0x48] sm:$0xff] %vm8374, %v8319
    %8385 = vst.msk [vmem:[%s4 + $0x50] sm:$0xff] %vm8374, %v8320
    %8386 = vst.msk [vmem:[%s4 + $0x58] sm:$0xff] %vm8374, %v8321
    %8387 = vst.msk [vmem:[%s4 + $0x60] sm:$0xff] %vm8374, %v8322
    %8388 = vst.msk [vmem:[%s4 + $0x68] sm:$0xff] %vm8374, %v8323
    %8389 = vst.msk [vmem:[%s4 + $0x70] sm:$0xff] %vm8374, %v8324
    %8390 = vst.msk [vmem:[%s4 + $0x78] sm:$0xff] %vm8374, %v8325
    %8391 = vst.msk [vmem:[%s4 + $0x80] sm:$0xff] %vm8374, %v8326
    %8392 = vst.msk [vmem:[%s4 + $0x88] sm:$0xff] %vm8374, %v8327
    %8393 = vst.msk [vmem:[%s4 + $0x90] sm:$0xff] %vm8374, %v8328
    %8394 = vst.msk [vmem:[%s4 + $0x98] sm:$0xff] %vm8374, %v8329
    %8395 = vst.msk [vmem:[%s4 + $0xa0] sm:$0xff] %vm8374, %v8330
    %8396 = vst.msk [vmem:[%s4 + $0xa8] sm:$0xff] %vm8374, %v8331
    %8397 = vst.msk [vmem:[%s4 + $0xb0] sm:$0xff] %vm8374, %v8332
    %8398 = vst.msk [vmem:[%s4 + $0xb8] sm:$0xff] %vm8374, %v8333
    %8399 = vst.msk [vmem:[%s4 + $0xc0] sm:$0xff] %vm8374, %v8334
    %8400 = vst.msk [vmem:[%s4 + $0xc8] sm:$0xff] %vm8374, %v8335
    %8401 = vst.msk [vmem:[%s4 + $0xd0] sm:$0xff] %vm8374, %v8336
    %8402 = vst.msk [vmem:[%s4 + $0xd8] sm:$0xff] %vm8374, %v8337
    %8403 = vst.msk [vmem:[%s4 + $0xe0] sm:$0xff] %vm8374, %v8338
    %8404 = vst.msk [vmem:[%s4 + $0xe8] sm:$0xff] %vm8374, %v8339
    %8405 = vst.msk [vmem:[%s4 + $0xf0] sm:$0xff] %vm8374, %v8340
    %8406 = vst.msk [vmem:[%s4 + $0xf8] sm:$0xff] %vm8374, %v8341
    %8407 = vst.msk [vmem:[%s4 + $0x100] sm:$0xff] %vm8374, %v8342
    %8408 = vst.msk [vmem:[%s4 + $0x108] sm:$0xff] %vm8374, %v8343
    %8409 = vst.msk [vmem:[%s4 + $0x110] sm:$0xff] %vm8374, %v8344
    %8410 = vst.msk [vmem:[%s4 + $0x118] sm:$0xff] %vm8374, %v8345
    %8411 = vst.msk [vmem:[%s4 + $0x120] sm:$0xff] %vm8374, %v8346
    %8412 = vst.msk [vmem:[%s4 + $0x128] sm:$0xff] %vm8374, %v8347
    %8413 = vst.msk [vmem:[%s4 + $0x130] sm:$0xff] %vm8374, %v8348
    %8414 = vst.msk [vmem:[%s4 + $0x138] sm:$0xff] %vm8374, %v8349
    %8415 = vst.msk [vmem:[%s4 + $0x140] sm:$0xff] %vm8374, %v8350
    %8416 = vst.msk [vmem:[%s4 + $0x148] sm:$0xff] %vm8374, %v8351
    %8417 = vst.msk [vmem:[%s4 + $0x150] sm:$0xff] %vm8374, %v8352
    %8418 = vst.msk [vmem:[%s4 + $0x158] sm:$0xff] %vm8374, %v8353
    %8419 = vst.msk [vmem:[%s4 + $0x160] sm:$0xff] %vm8374, %v8354
    %8420 = vst.msk [vmem:[%s4 + $0x168] sm:$0xff] %vm8374, %v8355
    %8421 = vst.msk [vmem:[%s4 + $0x170] sm:$0xff] %vm8374, %v8356
    %8422 = vst.msk [vmem:[%s4 + $0x178] sm:$0xff] %vm8374, %v8357
    %8423 = vst.msk [vmem:[%s4 + $0x180] sm:$0xff] %vm8374, %v8358
    %8424 = vst.msk [vmem:[%s4 + $0x188] sm:$0xff] %vm8374, %v8359
    %8425 = vst.msk [vmem:[%s4 + $0x190] sm:$0xff] %vm8374, %v8360
    %8426 = vst.msk [vmem:[%s4 + $0x198] sm:$0xff] %vm8374, %v8361
    %8427 = vst.msk [vmem:[%s4 + $0x1a0] sm:$0xff] %vm8374, %v8362
    %8428 = vst.msk [vmem:[%s4 + $0x1a8] sm:$0xff] %vm8374, %v8363
    %8429 = vst.msk [vmem:[%s4 + $0x1b0] sm:$0xff] %vm8374, %v8364
    %8430 = vst.msk [vmem:[%s4 + $0x1b8] sm:$0xff] %vm8374, %v8365
    %8431 = vst.msk [vmem:[%s4 + $0x1c0] sm:$0xff] %vm8374, %v8366
    %8432 = vst.msk [vmem:[%s4 + $0x1c8] sm:$0xff] %vm8374, %v8367
    %8433 = vst.msk [vmem:[%s4 + $0x1d0] sm:$0xff] %vm8374, %v8368
    %8434 = vst.msk [vmem:[%s4 + $0x1d8] sm:$0xff] %vm8374, %v8369
    %8435 = vst.msk [vmem:[%s4 + $0x1e0] sm:$0xff] %vm8374, %v8370
    %8436 = vst.msk [vmem:[%s4 + $0x1e8] sm:$0xff] %vm8374, %v8371
    %8437 = vst.msk [vmem:[%s4 + $0x1f0] sm:$0xff] %vm8374, %v8372
    %8438 = vst.msk [vmem:[%s4 + $0x1f8] sm:$0xff] %vm8374, %v8373
    %8439 = vst.msk [vmem:[%s5] sm:$0xff] %vm1779, %v3188
    %8440 = vst.msk [vmem:[%s5 + $0x8] sm:$0xff] %vm1779, %v3189
    %8441 = vst.msk [vmem:[%s5 + $0x10] sm:$0xff] %vm1779, %v3190
    %8442 = vst.msk [vmem:[%s5 + $0x18] sm:$0xff] %vm1779, %v3191
    %8443 = vst.msk [vmem:[%s5 + $0x20] sm:$0xff] %vm1779, %v3192
    %8444 = vst.msk [vmem:[%s5 + $0x28] sm:$0xff] %vm1779, %v3193
    %8445 = vst.msk [vmem:[%s5 + $0x30] sm:$0xff] %vm1779, %v3194
    %8446 = vst.msk [vmem:[%s5 + $0x38] sm:$0xff] %vm1779, %v3195
    %8447 = vst.msk [vmem:[%s5 + $0x40] sm:$0xff] %vm1779, %v3196
    %8448 = vst.msk [vmem:[%s5 + $0x48] sm:$0xff] %vm1779, %v3197
    %8449 = vst.msk [vmem:[%s5 + $0x50] sm:$0xff] %vm1779, %v3198
    %8450 = vst.msk [vmem:[%s5 + $0x58] sm:$0xff] %vm1779, %v3199
    %8451 = vst.msk [vmem:[%s5 + $0x60] sm:$0xff] %vm1779, %v3200
    %8452 = vst.msk [vmem:[%s5 + $0x68] sm:$0xff] %vm1779, %v3201
    %8453 = vst.msk [vmem:[%s5 + $0x70] sm:$0xff] %vm1779, %v3202
    %8454 = vst.msk [vmem:[%s5 + $0x78] sm:$0xff] %vm1779, %v3203
    %8455 = vst.msk [vmem:[%s5 + $0x80] sm:$0xff] %vm1779, %v3204
    %8456 = vst.msk [vmem:[%s5 + $0x88] sm:$0xff] %vm1779, %v3205
    %8457 = vst.msk [vmem:[%s5 + $0x90] sm:$0xff] %vm1779, %v3206
    %8458 = vst.msk [vmem:[%s5 + $0x98] sm:$0xff] %vm1779, %v3207
    %8459 = vst.msk [vmem:[%s5 + $0xa0] sm:$0xff] %vm1779, %v3208
    %8460 = vst.msk [vmem:[%s5 + $0xa8] sm:$0xff] %vm1779, %v3209
    %8461 = vst.msk [vmem:[%s5 + $0xb0] sm:$0xff] %vm1779, %v3210
    %8462 = vst.msk [vmem:[%s5 + $0xb8] sm:$0xff] %vm1779, %v3211
    %8463 = vst.msk [vmem:[%s5 + $0xc0] sm:$0xff] %vm1779, %v3212
    %8464 = vst.msk [vmem:[%s5 + $0xc8] sm:$0xff] %vm1779, %v3213
    %8465 = vst.msk [vmem:[%s5 + $0xd0] sm:$0xff] %vm1779, %v3214
    %8466 = vst.msk [vmem:[%s5 + $0xd8] sm:$0xff] %vm1779, %v3215
    %8467 = vst.msk [vmem:[%s5 + $0xe0] sm:$0xff] %vm1779, %v3216
    %8468 = vst.msk [vmem:[%s5 + $0xe8] sm:$0xff] %vm1779, %v3217
    %8469 = vst.msk [vmem:[%s5 + $0xf0] sm:$0xff] %vm1779, %v3218
    %8470 = vst.msk [vmem:[%s5 + $0xf8] sm:$0xff] %vm1779, %v3219
    %8471 = vst.msk [vmem:[%s5 + $0x100] sm:$0xff] %vm1779, %v3220
    %8472 = vst.msk [vmem:[%s5 + $0x108] sm:$0xff] %vm1779, %v3221
    %8473 = vst.msk [vmem:[%s5 + $0x110] sm:$0xff] %vm1779, %v3222
    %8474 = vst.msk [vmem:[%s5 + $0x118] sm:$0xff] %vm1779, %v3223
    %8475 = vst.msk [vmem:[%s5 + $0x120] sm:$0xff] %vm1779, %v3224
    %8476 = vst.msk [vmem:[%s5 + $0x128] sm:$0xff] %vm1779, %v3225
    %8477 = vst.msk [vmem:[%s5 + $0x130] sm:$0xff] %vm1779, %v3226
    %8478 = vst.msk [vmem:[%s5 + $0x138] sm:$0xff] %vm1779, %v3227
    %8479 = vst.msk [vmem:[%s5 + $0x140] sm:$0xff] %vm1779, %v3228
    %8480 = vst.msk [vmem:[%s5 + $0x148] sm:$0xff] %vm1779, %v3229
    %8481 = vst.msk [vmem:[%s5 + $0x150] sm:$0xff] %vm1779, %v3230
    %8482 = vst.msk [vmem:[%s5 + $0x158] sm:$0xff] %vm1779, %v3231
    %8483 = vst.msk [vmem:[%s5 + $0x160] sm:$0xff] %vm1779, %v3232
    %8484 = vst.msk [vmem:[%s5 + $0x168] sm:$0xff] %vm1779, %v3233
    %8485 = vst.msk [vmem:[%s5 + $0x170] sm:$0xff] %vm1779, %v3234
    %8486 = vst.msk [vmem:[%s5 + $0x178] sm:$0xff] %vm1779, %v3235
    %8487 = vst.msk [vmem:[%s5 + $0x180] sm:$0xff] %vm1779, %v3236
    %8488 = vst.msk [vmem:[%s5 + $0x188] sm:$0xff] %vm1779, %v3237
    %8489 = vst.msk [vmem:[%s5 + $0x190] sm:$0xff] %vm1779, %v3238
    %8490 = vst.msk [vmem:[%s5 + $0x198] sm:$0xff] %vm1779, %v3239
    %8491 = vst.msk [vmem:[%s5 + $0x1a0] sm:$0xff] %vm1779, %v3240
    %8492 = vst.msk [vmem:[%s5 + $0x1a8] sm:$0xff] %vm1779, %v3241
    %8493 = vst.msk [vmem:[%s5 + $0x1b0] sm:$0xff] %vm1779, %v3242
    %8494 = vst.msk [vmem:[%s5 + $0x1b8] sm:$0xff] %vm1779, %v3243
    %8495 = vst.msk [vmem:[%s5 + $0x1c0] sm:$0xff] %vm1779, %v3244
    %8496 = vst.msk [vmem:[%s5 + $0x1c8] sm:$0xff] %vm1779, %v3245
    %8497 = vst.msk [vmem:[%s5 + $0x1d0] sm:$0xff] %vm1779, %v3246
    %8498 = vst.msk [vmem:[%s5 + $0x1d8] sm:$0xff] %vm1779, %v3247
    %8499 = vst.msk [vmem:[%s5 + $0x1e0] sm:$0xff] %vm1779, %v3248
    %8500 = vst.msk [vmem:[%s5 + $0x1e8] sm:$0xff] %vm1779, %v3249
    %8501 = vst.msk [vmem:[%s5 + $0x1f0] sm:$0xff] %vm1779, %v3250
    %8502 = vst.msk [vmem:[%s5 + $0x1f8] sm:$0xff] %vm1779, %v3251
    %s8503 = smul.u32 0, 512
    %v8504 = vlaneseq
    %v8505 = vshrl.u32 %v8504, 7
    %v8506 = vadd.s32 %v8505, 8
    %v8507 = vadd.s32 %v8505, 16
    %v8508 = vadd.s32 %v8505, 24
    %v8509 = vadd.s32 %v8505, 32
    %v8510 = vadd.s32 %v8505, 40
    %v8511 = vadd.s32 %v8505, 48
    %v8512 = vadd.s32 %v8505, 56
    %v8513 = vadd.s32 %v8505, 64
    %v8514 = vadd.s32 %v8505, 72
    %v8515 = vadd.s32 %v8505, 80
    %v8516 = vadd.s32 %v8505, 88
    %v8517 = vadd.s32 %v8505, 96
    %v8518 = vadd.s32 %v8505, 104
    %v8519 = vadd.s32 %v8505, 112
    %v8520 = vadd.s32 %v8505, 120
    %v8521 = vadd.s32 %v8505, 128
    %v8522 = vadd.s32 %v8505, 136
    %v8523 = vadd.s32 %v8505, 144
    %v8524 = vadd.s32 %v8505, 152
    %v8525 = vadd.s32 %v8505, 160
    %v8526 = vadd.s32 %v8505, 168
    %v8527 = vadd.s32 %v8505, 176
    %v8528 = vadd.s32 %v8505, 184
    %v8529 = vadd.s32 %v8505, 192
    %v8530 = vadd.s32 %v8505, 200
    %v8531 = vadd.s32 %v8505, 208
    %v8532 = vadd.s32 %v8505, 216
    %v8533 = vadd.s32 %v8505, 224
    %v8534 = vadd.s32 %v8505, 232
    %v8535 = vadd.s32 %v8505, 240
    %v8536 = vadd.s32 %v8505, 248
    %v8537 = vadd.s32 %v8505, 256
    %v8538 = vadd.s32 %v8505, 264
    %v8539 = vadd.s32 %v8505, 272
    %v8540 = vadd.s32 %v8505, 280
    %v8541 = vadd.s32 %v8505, 288
    %v8542 = vadd.s32 %v8505, 296
    %v8543 = vadd.s32 %v8505, 304
    %v8544 = vadd.s32 %v8505, 312
    %v8545 = vadd.s32 %v8505, 320
    %v8546 = vadd.s32 %v8505, 328
    %v8547 = vadd.s32 %v8505, 336
    %v8548 = vadd.s32 %v8505, 344
    %v8549 = vadd.s32 %v8505, 352
    %v8550 = vadd.s32 %v8505, 360
    %v8551 = vadd.s32 %v8505, 368
    %v8552 = vadd.s32 %v8505, 376
    %v8553 = vadd.s32 %v8505, 384
    %v8554 = vadd.s32 %v8505, 392
    %v8555 = vadd.s32 %v8505, 400
    %v8556 = vadd.s32 %v8505, 408
    %v8557 = vadd.s32 %v8505, 416
    %v8558 = vadd.s32 %v8505, 424
    %v8559 = vadd.s32 %v8505, 432
    %v8560 = vadd.s32 %v8505, 440
    %v8561 = vadd.s32 %v8505, 448
    %v8562 = vadd.s32 %v8505, 456
    %v8563 = vadd.s32 %v8505, 464
    %v8564 = vadd.s32 %v8505, 472
    %v8565 = vadd.s32 %v8505, 480
    %v8566 = vadd.s32 %v8505, 488
    %v8567 = vadd.s32 %v8505, 496
    %v8568 = vadd.s32 %v8505, 504
    %v8569 = vstv %s8503
    %v8570 = vadd.s32 %v8569, %v8505
    %v8571 = vadd.s32 %v8569, %v8506
    %v8572 = vadd.s32 %v8569, %v8507
    %v8573 = vadd.s32 %v8569, %v8508
    %v8574 = vadd.s32 %v8569, %v8509
    %v8575 = vadd.s32 %v8569, %v8510
    %v8576 = vadd.s32 %v8569, %v8511
    %v8577 = vadd.s32 %v8569, %v8512
    %v8578 = vadd.s32 %v8569, %v8513
    %v8579 = vadd.s32 %v8569, %v8514
    %v8580 = vadd.s32 %v8569, %v8515
    %v8581 = vadd.s32 %v8569, %v8516
    %v8582 = vadd.s32 %v8569, %v8517
    %v8583 = vadd.s32 %v8569, %v8518
    %v8584 = vadd.s32 %v8569, %v8519
    %v8585 = vadd.s32 %v8569, %v8520
    %v8586 = vadd.s32 %v8569, %v8521
    %v8587 = vadd.s32 %v8569, %v8522
    %v8588 = vadd.s32 %v8569, %v8523
    %v8589 = vadd.s32 %v8569, %v8524
    %v8590 = vadd.s32 %v8569, %v8525
    %v8591 = vadd.s32 %v8569, %v8526
    %v8592 = vadd.s32 %v8569, %v8527
    %v8593 = vadd.s32 %v8569, %v8528
    %v8594 = vadd.s32 %v8569, %v8529
    %v8595 = vadd.s32 %v8569, %v8530
    %v8596 = vadd.s32 %v8569, %v8531
    %v8597 = vadd.s32 %v8569, %v8532
    %v8598 = vadd.s32 %v8569, %v8533
    %v8599 = vadd.s32 %v8569, %v8534
    %v8600 = vadd.s32 %v8569, %v8535
    %v8601 = vadd.s32 %v8569, %v8536
    %v8602 = vadd.s32 %v8569, %v8537
    %v8603 = vadd.s32 %v8569, %v8538
    %v8604 = vadd.s32 %v8569, %v8539
    %v8605 = vadd.s32 %v8569, %v8540
    %v8606 = vadd.s32 %v8569, %v8541
    %v8607 = vadd.s32 %v8569, %v8542
    %v8608 = vadd.s32 %v8569, %v8543
    %v8609 = vadd.s32 %v8569, %v8544
    %v8610 = vadd.s32 %v8569, %v8545
    %v8611 = vadd.s32 %v8569, %v8546
    %v8612 = vadd.s32 %v8569, %v8547
    %v8613 = vadd.s32 %v8569, %v8548
    %v8614 = vadd.s32 %v8569, %v8549
    %v8615 = vadd.s32 %v8569, %v8550
    %v8616 = vadd.s32 %v8569, %v8551
    %v8617 = vadd.s32 %v8569, %v8552
    %v8618 = vadd.s32 %v8569, %v8553
    %v8619 = vadd.s32 %v8569, %v8554
    %v8620 = vadd.s32 %v8569, %v8555
    %v8621 = vadd.s32 %v8569, %v8556
    %v8622 = vadd.s32 %v8569, %v8557
    %v8623 = vadd.s32 %v8569, %v8558
    %v8624 = vadd.s32 %v8569, %v8559
    %v8625 = vadd.s32 %v8569, %v8560
    %v8626 = vadd.s32 %v8569, %v8561
    %v8627 = vadd.s32 %v8569, %v8562
    %v8628 = vadd.s32 %v8569, %v8563
    %v8629 = vadd.s32 %v8569, %v8564
    %v8630 = vadd.s32 %v8569, %v8565
    %v8631 = vadd.s32 %v8569, %v8566
    %v8632 = vadd.s32 %v8569, %v8567
    %v8633 = vadd.s32 %v8569, %v8568
    %vm8634 = vcmp.lt.s32.totalorder %v8570, 512
    %vm8635 = vcmp.lt.s32.totalorder %v8571, 512
    %vm8636 = vcmp.lt.s32.totalorder %v8572, 512
    %vm8637 = vcmp.lt.s32.totalorder %v8573, 512
    %vm8638 = vcmp.lt.s32.totalorder %v8574, 512
    %vm8639 = vcmp.lt.s32.totalorder %v8575, 512
    %vm8640 = vcmp.lt.s32.totalorder %v8576, 512
    %vm8641 = vcmp.lt.s32.totalorder %v8577, 512
    %vm8642 = vcmp.lt.s32.totalorder %v8578, 512
    %vm8643 = vcmp.lt.s32.totalorder %v8579, 512
    %vm8644 = vcmp.lt.s32.totalorder %v8580, 512
    %vm8645 = vcmp.lt.s32.totalorder %v8581, 512
    %vm8646 = vcmp.lt.s32.totalorder %v8582, 512
    %vm8647 = vcmp.lt.s32.totalorder %v8583, 512
    %vm8648 = vcmp.lt.s32.totalorder %v8584, 512
    %vm8649 = vcmp.lt.s32.totalorder %v8585, 512
    %vm8650 = vcmp.lt.s32.totalorder %v8586, 512
    %vm8651 = vcmp.lt.s32.totalorder %v8587, 512
    %vm8652 = vcmp.lt.s32.totalorder %v8588, 512
    %vm8653 = vcmp.lt.s32.totalorder %v8589, 512
    %vm8654 = vcmp.lt.s32.totalorder %v8590, 512
    %vm8655 = vcmp.lt.s32.totalorder %v8591, 512
    %vm8656 = vcmp.lt.s32.totalorder %v8592, 512
    %vm8657 = vcmp.lt.s32.totalorder %v8593, 512
    %vm8658 = vcmp.lt.s32.totalorder %v8594, 512
    %vm8659 = vcmp.lt.s32.totalorder %v8595, 512
    %vm8660 = vcmp.lt.s32.totalorder %v8596, 512
    %vm8661 = vcmp.lt.s32.totalorder %v8597, 512
    %vm8662 = vcmp.lt.s32.totalorder %v8598, 512
    %vm8663 = vcmp.lt.s32.totalorder %v8599, 512
    %vm8664 = vcmp.lt.s32.totalorder %v8600, 512
    %vm8665 = vcmp.lt.s32.totalorder %v8601, 512
    %vm8666 = vcmp.lt.s32.totalorder %v8602, 512
    %vm8667 = vcmp.lt.s32.totalorder %v8603, 512
    %vm8668 = vcmp.lt.s32.totalorder %v8604, 512
    %vm8669 = vcmp.lt.s32.totalorder %v8605, 512
    %vm8670 = vcmp.lt.s32.totalorder %v8606, 512
    %vm8671 = vcmp.lt.s32.totalorder %v8607, 512
    %vm8672 = vcmp.lt.s32.totalorder %v8608, 512
    %vm8673 = vcmp.lt.s32.totalorder %v8609, 512
    %vm8674 = vcmp.lt.s32.totalorder %v8610, 512
    %vm8675 = vcmp.lt.s32.totalorder %v8611, 512
    %vm8676 = vcmp.lt.s32.totalorder %v8612, 512
    %vm8677 = vcmp.lt.s32.totalorder %v8613, 512
    %vm8678 = vcmp.lt.s32.totalorder %v8614, 512
    %vm8679 = vcmp.lt.s32.totalorder %v8615, 512
    %vm8680 = vcmp.lt.s32.totalorder %v8616, 512
    %vm8681 = vcmp.lt.s32.totalorder %v8617, 512
    %vm8682 = vcmp.lt.s32.totalorder %v8618, 512
    %vm8683 = vcmp.lt.s32.totalorder %v8619, 512
    %vm8684 = vcmp.lt.s32.totalorder %v8620, 512
    %vm8685 = vcmp.lt.s32.totalorder %v8621, 512
    %vm8686 = vcmp.lt.s32.totalorder %v8622, 512
    %vm8687 = vcmp.lt.s32.totalorder %v8623, 512
    %vm8688 = vcmp.lt.s32.totalorder %v8624, 512
    %vm8689 = vcmp.lt.s32.totalorder %v8625, 512
    %vm8690 = vcmp.lt.s32.totalorder %v8626, 512
    %vm8691 = vcmp.lt.s32.totalorder %v8627, 512
    %vm8692 = vcmp.lt.s32.totalorder %v8628, 512
    %vm8693 = vcmp.lt.s32.totalorder %v8629, 512
    %vm8694 = vcmp.lt.s32.totalorder %v8630, 512
    %vm8695 = vcmp.lt.s32.totalorder %v8631, 512
    %vm8696 = vcmp.lt.s32.totalorder %v8632, 512
    %vm8697 = vcmp.lt.s32.totalorder %v8633, 512
    %v8698 = vsel %vm8634, 1, 0
    %v8699 = vsel %vm8635, 1, 0
    %v8700 = vsel %vm8636, 1, 0
    %v8701 = vsel %vm8637, 1, 0
    %v8702 = vsel %vm8638, 1, 0
    %v8703 = vsel %vm8639, 1, 0
    %v8704 = vsel %vm8640, 1, 0
    %v8705 = vsel %vm8641, 1, 0
    %v8706 = vsel %vm8642, 1, 0
    %v8707 = vsel %vm8643, 1, 0
    %v8708 = vsel %vm8644, 1, 0
    %v8709 = vsel %vm8645, 1, 0
    %v8710 = vsel %vm8646, 1, 0
    %v8711 = vsel %vm8647, 1, 0
    %v8712 = vsel %vm8648, 1, 0
    %v8713 = vsel %vm8649, 1, 0
    %v8714 = vsel %vm8650, 1, 0
    %v8715 = vsel %vm8651, 1, 0
    %v8716 = vsel %vm8652, 1, 0
    %v8717 = vsel %vm8653, 1, 0
    %v8718 = vsel %vm8654, 1, 0
    %v8719 = vsel %vm8655, 1, 0
    %v8720 = vsel %vm8656, 1, 0
    %v8721 = vsel %vm8657, 1, 0
    %v8722 = vsel %vm8658, 1, 0
    %v8723 = vsel %vm8659, 1, 0
    %v8724 = vsel %vm8660, 1, 0
    %v8725 = vsel %vm8661, 1, 0
    %v8726 = vsel %vm8662, 1, 0
    %v8727 = vsel %vm8663, 1, 0
    %v8728 = vsel %vm8664, 1, 0
    %v8729 = vsel %vm8665, 1, 0
    %v8730 = vsel %vm8666, 1, 0
    %v8731 = vsel %vm8667, 1, 0
    %v8732 = vsel %vm8668, 1, 0
    %v8733 = vsel %vm8669, 1, 0
    %v8734 = vsel %vm8670, 1, 0
    %v8735 = vsel %vm8671, 1, 0
    %v8736 = vsel %vm8672, 1, 0
    %v8737 = vsel %vm8673, 1, 0
    %v8738 = vsel %vm8674, 1, 0
    %v8739 = vsel %vm8675, 1, 0
    %v8740 = vsel %vm8676, 1, 0
    %v8741 = vsel %vm8677, 1, 0
    %v8742 = vsel %vm8678, 1, 0
    %v8743 = vsel %vm8679, 1, 0
    %v8744 = vsel %vm8680, 1, 0
    %v8745 = vsel %vm8681, 1, 0
    %v8746 = vsel %vm8682, 1, 0
    %v8747 = vsel %vm8683, 1, 0
    %v8748 = vsel %vm8684, 1, 0
    %v8749 = vsel %vm8685, 1, 0
    %v8750 = vsel %vm8686, 1, 0
    %v8751 = vsel %vm8687, 1, 0
    %v8752 = vsel %vm8688, 1, 0
    %v8753 = vsel %vm8689, 1, 0
    %v8754 = vsel %vm8690, 1, 0
    %v8755 = vsel %vm8691, 1, 0
    %v8756 = vsel %vm8692, 1, 0
    %v8757 = vsel %vm8693, 1, 0
    %v8758 = vsel %vm8694, 1, 0
    %v8759 = vsel %vm8695, 1, 0
    %v8760 = vsel %vm8696, 1, 0
    %v8761 = vsel %vm8697, 1, 0
    %v8762 = vcvt.s32.f32 %v8698
    %v8763 = vcvt.s32.f32 %v8699
    %v8764 = vcvt.s32.f32 %v8700
    %v8765 = vcvt.s32.f32 %v8701
    %v8766 = vcvt.s32.f32 %v8702
    %v8767 = vcvt.s32.f32 %v8703
    %v8768 = vcvt.s32.f32 %v8704
    %v8769 = vcvt.s32.f32 %v8705
    %v8770 = vcvt.s32.f32 %v8706
    %v8771 = vcvt.s32.f32 %v8707
    %v8772 = vcvt.s32.f32 %v8708
    %v8773 = vcvt.s32.f32 %v8709
    %v8774 = vcvt.s32.f32 %v8710
    %v8775 = vcvt.s32.f32 %v8711
    %v8776 = vcvt.s32.f32 %v8712
    %v8777 = vcvt.s32.f32 %v8713
    %v8778 = vcvt.s32.f32 %v8714
    %v8779 = vcvt.s32.f32 %v8715
    %v8780 = vcvt.s32.f32 %v8716
    %v8781 = vcvt.s32.f32 %v8717
    %v8782 = vcvt.s32.f32 %v8718
    %v8783 = vcvt.s32.f32 %v8719
    %v8784 = vcvt.s32.f32 %v8720
    %v8785 = vcvt.s32.f32 %v8721
    %v8786 = vcvt.s32.f32 %v8722
    %v8787 = vcvt.s32.f32 %v8723
    %v8788 = vcvt.s32.f32 %v8724
    %v8789 = vcvt.s32.f32 %v8725
    %v8790 = vcvt.s32.f32 %v8726
    %v8791 = vcvt.s32.f32 %v8727
    %v8792 = vcvt.s32.f32 %v8728
    %v8793 = vcvt.s32.f32 %v8729
    %v8794 = vcvt.s32.f32 %v8730
    %v8795 = vcvt.s32.f32 %v8731
    %v8796 = vcvt.s32.f32 %v8732
    %v8797 = vcvt.s32.f32 %v8733
    %v8798 = vcvt.s32.f32 %v8734
    %v8799 = vcvt.s32.f32 %v8735
    %v8800 = vcvt.s32.f32 %v8736
    %v8801 = vcvt.s32.f32 %v8737
    %v8802 = vcvt.s32.f32 %v8738
    %v8803 = vcvt.s32.f32 %v8739
    %v8804 = vcvt.s32.f32 %v8740
    %v8805 = vcvt.s32.f32 %v8741
    %v8806 = vcvt.s32.f32 %v8742
    %v8807 = vcvt.s32.f32 %v8743
    %v8808 = vcvt.s32.f32 %v8744
    %v8809 = vcvt.s32.f32 %v8745
    %v8810 = vcvt.s32.f32 %v8746
    %v8811 = vcvt.s32.f32 %v8747
    %v8812 = vcvt.s32.f32 %v8748
    %v8813 = vcvt.s32.f32 %v8749
    %v8814 = vcvt.s32.f32 %v8750
    %v8815 = vcvt.s32.f32 %v8751
    %v8816 = vcvt.s32.f32 %v8752
    %v8817 = vcvt.s32.f32 %v8753
    %v8818 = vcvt.s32.f32 %v8754
    %v8819 = vcvt.s32.f32 %v8755
    %v8820 = vcvt.s32.f32 %v8756
    %v8821 = vcvt.s32.f32 %v8757
    %v8822 = vcvt.s32.f32 %v8758
    %v8823 = vcvt.s32.f32 %v8759
    %v8824 = vcvt.s32.f32 %v8760
    %v8825 = vcvt.s32.f32 %v8761
    %v8826 = vsub.f32 %v8310, %v22
    %v8827 = vsub.f32 %v8311, %v23
    %v8828 = vsub.f32 %v8312, %v24
    %v8829 = vsub.f32 %v8313, %v25
    %v8830 = vsub.f32 %v8314, %v26
    %v8831 = vsub.f32 %v8315, %v27
    %v8832 = vsub.f32 %v8316, %v28
    %v8833 = vsub.f32 %v8317, %v29
    %v8834 = vsub.f32 %v8318, %v30
    %v8835 = vsub.f32 %v8319, %v31
    %v8836 = vsub.f32 %v8320, %v32
    %v8837 = vsub.f32 %v8321, %v33
    %v8838 = vsub.f32 %v8322, %v34
    %v8839 = vsub.f32 %v8323, %v35
    %v8840 = vsub.f32 %v8324, %v36
    %v8841 = vsub.f32 %v8325, %v37
    %v8842 = vsub.f32 %v8326, %v38
    %v8843 = vsub.f32 %v8327, %v39
    %v8844 = vsub.f32 %v8328, %v40
    %v8845 = vsub.f32 %v8329, %v41
    %v8846 = vsub.f32 %v8330, %v42
    %v8847 = vsub.f32 %v8331, %v43
    %v8848 = vsub.f32 %v8332, %v44
    %v8849 = vsub.f32 %v8333, %v45
    %v8850 = vsub.f32 %v8334, %v46
    %v8851 = vsub.f32 %v8335, %v47
    %v8852 = vsub.f32 %v8336, %v48
    %v8853 = vsub.f32 %v8337, %v49
    %v8854 = vsub.f32 %v8338, %v50
    %v8855 = vsub.f32 %v8339, %v51
    %v8856 = vsub.f32 %v8340, %v52
    %v8857 = vsub.f32 %v8341, %v53
    %v8858 = vsub.f32 %v8342, %v54
    %v8859 = vsub.f32 %v8343, %v55
    %v8860 = vsub.f32 %v8344, %v56
    %v8861 = vsub.f32 %v8345, %v57
    %v8862 = vsub.f32 %v8346, %v58
    %v8863 = vsub.f32 %v8347, %v59
    %v8864 = vsub.f32 %v8348, %v60
    %v8865 = vsub.f32 %v8349, %v61
    %v8866 = vsub.f32 %v8350, %v62
    %v8867 = vsub.f32 %v8351, %v63
    %v8868 = vsub.f32 %v8352, %v64
    %v8869 = vsub.f32 %v8353, %v65
    %v8870 = vsub.f32 %v8354, %v66
    %v8871 = vsub.f32 %v8355, %v67
    %v8872 = vsub.f32 %v8356, %v68
    %v8873 = vsub.f32 %v8357, %v69
    %v8874 = vsub.f32 %v8358, %v70
    %v8875 = vsub.f32 %v8359, %v71
    %v8876 = vsub.f32 %v8360, %v72
    %v8877 = vsub.f32 %v8361, %v73
    %v8878 = vsub.f32 %v8362, %v74
    %v8879 = vsub.f32 %v8363, %v75
    %v8880 = vsub.f32 %v8364, %v76
    %v8881 = vsub.f32 %v8365, %v77
    %v8882 = vsub.f32 %v8366, %v78
    %v8883 = vsub.f32 %v8367, %v79
    %v8884 = vsub.f32 %v8368, %v80
    %v8885 = vsub.f32 %v8369, %v81
    %v8886 = vsub.f32 %v8370, %v82
    %v8887 = vsub.f32 %v8371, %v83
    %v8888 = vsub.f32 %v8372, %v84
    %v8889 = vsub.f32 %v8373, %v85
    %v8890 = vmul.f32 %v8762, %v8826
    %v8891 = vmul.f32 %v8763, %v8827
    %v8892 = vmul.f32 %v8764, %v8828
    %v8893 = vmul.f32 %v8765, %v8829
    %v8894 = vmul.f32 %v8766, %v8830
    %v8895 = vmul.f32 %v8767, %v8831
    %v8896 = vmul.f32 %v8768, %v8832
    %v8897 = vmul.f32 %v8769, %v8833
    %v8898 = vmul.f32 %v8770, %v8834
    %v8899 = vmul.f32 %v8771, %v8835
    %v8900 = vmul.f32 %v8772, %v8836
    %v8901 = vmul.f32 %v8773, %v8837
    %v8902 = vmul.f32 %v8774, %v8838
    %v8903 = vmul.f32 %v8775, %v8839
    %v8904 = vmul.f32 %v8776, %v8840
    %v8905 = vmul.f32 %v8777, %v8841
    %v8906 = vmul.f32 %v8778, %v8842
    %v8907 = vmul.f32 %v8779, %v8843
    %v8908 = vmul.f32 %v8780, %v8844
    %v8909 = vmul.f32 %v8781, %v8845
    %v8910 = vmul.f32 %v8782, %v8846
    %v8911 = vmul.f32 %v8783, %v8847
    %v8912 = vmul.f32 %v8784, %v8848
    %v8913 = vmul.f32 %v8785, %v8849
    %v8914 = vmul.f32 %v8786, %v8850
    %v8915 = vmul.f32 %v8787, %v8851
    %v8916 = vmul.f32 %v8788, %v8852
    %v8917 = vmul.f32 %v8789, %v8853
    %v8918 = vmul.f32 %v8790, %v8854
    %v8919 = vmul.f32 %v8791, %v8855
    %v8920 = vmul.f32 %v8792, %v8856
    %v8921 = vmul.f32 %v8793, %v8857
    %v8922 = vmul.f32 %v8794, %v8858
    %v8923 = vmul.f32 %v8795, %v8859
    %v8924 = vmul.f32 %v8796, %v8860
    %v8925 = vmul.f32 %v8797, %v8861
    %v8926 = vmul.f32 %v8798, %v8862
    %v8927 = vmul.f32 %v8799, %v8863
    %v8928 = vmul.f32 %v8800, %v8864
    %v8929 = vmul.f32 %v8801, %v8865
    %v8930 = vmul.f32 %v8802, %v8866
    %v8931 = vmul.f32 %v8803, %v8867
    %v8932 = vmul.f32 %v8804, %v8868
    %v8933 = vmul.f32 %v8805, %v8869
    %v8934 = vmul.f32 %v8806, %v8870
    %v8935 = vmul.f32 %v8807, %v8871
    %v8936 = vmul.f32 %v8808, %v8872
    %v8937 = vmul.f32 %v8809, %v8873
    %v8938 = vmul.f32 %v8810, %v8874
    %v8939 = vmul.f32 %v8811, %v8875
    %v8940 = vmul.f32 %v8812, %v8876
    %v8941 = vmul.f32 %v8813, %v8877
    %v8942 = vmul.f32 %v8814, %v8878
    %v8943 = vmul.f32 %v8815, %v8879
    %v8944 = vmul.f32 %v8816, %v8880
    %v8945 = vmul.f32 %v8817, %v8881
    %v8946 = vmul.f32 %v8818, %v8882
    %v8947 = vmul.f32 %v8819, %v8883
    %v8948 = vmul.f32 %v8820, %v8884
    %v8949 = vmul.f32 %v8821, %v8885
    %v8950 = vmul.f32 %v8822, %v8886
    %v8951 = vmul.f32 %v8823, %v8887
    %v8952 = vmul.f32 %v8824, %v8888
    %v8953 = vmul.f32 %v8825, %v8889
    %v8954 = vmul.f32 %v8890, %v8826
    %v8955 = vmul.f32 %v8891, %v8827
    %v8956 = vmul.f32 %v8892, %v8828
    %v8957 = vmul.f32 %v8893, %v8829
    %v8958 = vmul.f32 %v8894, %v8830
    %v8959 = vmul.f32 %v8895, %v8831
    %v8960 = vmul.f32 %v8896, %v8832
    %v8961 = vmul.f32 %v8897, %v8833
    %v8962 = vmul.f32 %v8898, %v8834
    %v8963 = vmul.f32 %v8899, %v8835
    %v8964 = vmul.f32 %v8900, %v8836
    %v8965 = vmul.f32 %v8901, %v8837
    %v8966 = vmul.f32 %v8902, %v8838
    %v8967 = vmul.f32 %v8903, %v8839
    %v8968 = vmul.f32 %v8904, %v8840
    %v8969 = vmul.f32 %v8905, %v8841
    %v8970 = vmul.f32 %v8906, %v8842
    %v8971 = vmul.f32 %v8907, %v8843
    %v8972 = vmul.f32 %v8908, %v8844
    %v8973 = vmul.f32 %v8909, %v8845
    %v8974 = vmul.f32 %v8910, %v8846
    %v8975 = vmul.f32 %v8911, %v8847
    %v8976 = vmul.f32 %v8912, %v8848
    %v8977 = vmul.f32 %v8913, %v8849
    %v8978 = vmul.f32 %v8914, %v8850
    %v8979 = vmul.f32 %v8915, %v8851
    %v8980 = vmul.f32 %v8916, %v8852
    %v8981 = vmul.f32 %v8917, %v8853
    %v8982 = vmul.f32 %v8918, %v8854
    %v8983 = vmul.f32 %v8919, %v8855
    %v8984 = vmul.f32 %v8920, %v8856
    %v8985 = vmul.f32 %v8921, %v8857
    %v8986 = vmul.f32 %v8922, %v8858
    %v8987 = vmul.f32 %v8923, %v8859
    %v8988 = vmul.f32 %v8924, %v8860
    %v8989 = vmul.f32 %v8925, %v8861
    %v8990 = vmul.f32 %v8926, %v8862
    %v8991 = vmul.f32 %v8927, %v8863
    %v8992 = vmul.f32 %v8928, %v8864
    %v8993 = vmul.f32 %v8929, %v8865
    %v8994 = vmul.f32 %v8930, %v8866
    %v8995 = vmul.f32 %v8931, %v8867
    %v8996 = vmul.f32 %v8932, %v8868
    %v8997 = vmul.f32 %v8933, %v8869
    %v8998 = vmul.f32 %v8934, %v8870
    %v8999 = vmul.f32 %v8935, %v8871
    %v9000 = vmul.f32 %v8936, %v8872
    %v9001 = vmul.f32 %v8937, %v8873
    %v9002 = vmul.f32 %v8938, %v8874
    %v9003 = vmul.f32 %v8939, %v8875
    %v9004 = vmul.f32 %v8940, %v8876
    %v9005 = vmul.f32 %v8941, %v8877
    %v9006 = vmul.f32 %v8942, %v8878
    %v9007 = vmul.f32 %v8943, %v8879
    %v9008 = vmul.f32 %v8944, %v8880
    %v9009 = vmul.f32 %v8945, %v8881
    %v9010 = vmul.f32 %v8946, %v8882
    %v9011 = vmul.f32 %v8947, %v8883
    %v9012 = vmul.f32 %v8948, %v8884
    %v9013 = vmul.f32 %v8949, %v8885
    %v9014 = vmul.f32 %v8950, %v8886
    %v9015 = vmul.f32 %v8951, %v8887
    %v9016 = vmul.f32 %v8952, %v8888
    %v9017 = vmul.f32 %v8953, %v8889
    %v9018 = vsel %vm8374, %v8954, 0.0
    %v9019 = vsel %vm8374, %v8955, 0.0
    %v9020 = vadd.f32 %v9018, %v9019
    %v9021 = vsel %vm8374, %v8956, 0.0
    %v9022 = vadd.f32 %v9020, %v9021
    %v9023 = vsel %vm8374, %v8957, 0.0
    %v9024 = vadd.f32 %v9022, %v9023
    %v9025 = vsel %vm8374, %v8958, 0.0
    %v9026 = vadd.f32 %v9024, %v9025
    %v9027 = vsel %vm8374, %v8959, 0.0
    %v9028 = vadd.f32 %v9026, %v9027
    %v9029 = vsel %vm8374, %v8960, 0.0
    %v9030 = vadd.f32 %v9028, %v9029
    %v9031 = vsel %vm8374, %v8961, 0.0
    %v9032 = vadd.f32 %v9030, %v9031
    %v9033 = vsel %vm8374, %v8962, 0.0
    %v9034 = vadd.f32 %v9032, %v9033
    %v9035 = vsel %vm8374, %v8963, 0.0
    %v9036 = vadd.f32 %v9034, %v9035
    %v9037 = vsel %vm8374, %v8964, 0.0
    %v9038 = vadd.f32 %v9036, %v9037
    %v9039 = vsel %vm8374, %v8965, 0.0
    %v9040 = vadd.f32 %v9038, %v9039
    %v9041 = vsel %vm8374, %v8966, 0.0
    %v9042 = vadd.f32 %v9040, %v9041
    %v9043 = vsel %vm8374, %v8967, 0.0
    %v9044 = vadd.f32 %v9042, %v9043
    %v9045 = vsel %vm8374, %v8968, 0.0
    %v9046 = vadd.f32 %v9044, %v9045
    %v9047 = vsel %vm8374, %v8969, 0.0
    %v9048 = vadd.f32 %v9046, %v9047
    %v9049 = vsel %vm8374, %v8970, 0.0
    %v9050 = vadd.f32 %v9048, %v9049
    %v9051 = vsel %vm8374, %v8971, 0.0
    %v9052 = vadd.f32 %v9050, %v9051
    %v9053 = vsel %vm8374, %v8972, 0.0
    %v9054 = vadd.f32 %v9052, %v9053
    %v9055 = vsel %vm8374, %v8973, 0.0
    %v9056 = vadd.f32 %v9054, %v9055
    %v9057 = vsel %vm8374, %v8974, 0.0
    %v9058 = vadd.f32 %v9056, %v9057
    %v9059 = vsel %vm8374, %v8975, 0.0
    %v9060 = vadd.f32 %v9058, %v9059
    %v9061 = vsel %vm8374, %v8976, 0.0
    %v9062 = vadd.f32 %v9060, %v9061
    %v9063 = vsel %vm8374, %v8977, 0.0
    %v9064 = vadd.f32 %v9062, %v9063
    %v9065 = vsel %vm8374, %v8978, 0.0
    %v9066 = vadd.f32 %v9064, %v9065
    %v9067 = vsel %vm8374, %v8979, 0.0
    %v9068 = vadd.f32 %v9066, %v9067
    %v9069 = vsel %vm8374, %v8980, 0.0
    %v9070 = vadd.f32 %v9068, %v9069
    %v9071 = vsel %vm8374, %v8981, 0.0
    %v9072 = vadd.f32 %v9070, %v9071
    %v9073 = vsel %vm8374, %v8982, 0.0
    %v9074 = vadd.f32 %v9072, %v9073
    %v9075 = vsel %vm8374, %v8983, 0.0
    %v9076 = vadd.f32 %v9074, %v9075
    %v9077 = vsel %vm8374, %v8984, 0.0
    %v9078 = vadd.f32 %v9076, %v9077
    %v9079 = vsel %vm8374, %v8985, 0.0
    %v9080 = vadd.f32 %v9078, %v9079
    %v9081 = vsel %vm8374, %v8986, 0.0
    %v9082 = vadd.f32 %v9080, %v9081
    %v9083 = vsel %vm8374, %v8987, 0.0
    %v9084 = vadd.f32 %v9082, %v9083
    %v9085 = vsel %vm8374, %v8988, 0.0
    %v9086 = vadd.f32 %v9084, %v9085
    %v9087 = vsel %vm8374, %v8989, 0.0
    %v9088 = vadd.f32 %v9086, %v9087
    %v9089 = vsel %vm8374, %v8990, 0.0
    %v9090 = vadd.f32 %v9088, %v9089
    %v9091 = vsel %vm8374, %v8991, 0.0
    %v9092 = vadd.f32 %v9090, %v9091
    %v9093 = vsel %vm8374, %v8992, 0.0
    %v9094 = vadd.f32 %v9092, %v9093
    %v9095 = vsel %vm8374, %v8993, 0.0
    %v9096 = vadd.f32 %v9094, %v9095
    %v9097 = vsel %vm8374, %v8994, 0.0
    %v9098 = vadd.f32 %v9096, %v9097
    %v9099 = vsel %vm8374, %v8995, 0.0
    %v9100 = vadd.f32 %v9098, %v9099
    %v9101 = vsel %vm8374, %v8996, 0.0
    %v9102 = vadd.f32 %v9100, %v9101
    %v9103 = vsel %vm8374, %v8997, 0.0
    %v9104 = vadd.f32 %v9102, %v9103
    %v9105 = vsel %vm8374, %v8998, 0.0
    %v9106 = vadd.f32 %v9104, %v9105
    %v9107 = vsel %vm8374, %v8999, 0.0
    %v9108 = vadd.f32 %v9106, %v9107
    %v9109 = vsel %vm8374, %v9000, 0.0
    %v9110 = vadd.f32 %v9108, %v9109
    %v9111 = vsel %vm8374, %v9001, 0.0
    %v9112 = vadd.f32 %v9110, %v9111
    %v9113 = vsel %vm8374, %v9002, 0.0
    %v9114 = vadd.f32 %v9112, %v9113
    %v9115 = vsel %vm8374, %v9003, 0.0
    %v9116 = vadd.f32 %v9114, %v9115
    %v9117 = vsel %vm8374, %v9004, 0.0
    %v9118 = vadd.f32 %v9116, %v9117
    %v9119 = vsel %vm8374, %v9005, 0.0
    %v9120 = vadd.f32 %v9118, %v9119
    %v9121 = vsel %vm8374, %v9006, 0.0
    %v9122 = vadd.f32 %v9120, %v9121
    %v9123 = vsel %vm8374, %v9007, 0.0
    %v9124 = vadd.f32 %v9122, %v9123
    %v9125 = vsel %vm8374, %v9008, 0.0
    %v9126 = vadd.f32 %v9124, %v9125
    %v9127 = vsel %vm8374, %v9009, 0.0
    %v9128 = vadd.f32 %v9126, %v9127
    %v9129 = vsel %vm8374, %v9010, 0.0
    %v9130 = vadd.f32 %v9128, %v9129
    %v9131 = vsel %vm8374, %v9011, 0.0
    %v9132 = vadd.f32 %v9130, %v9131
    %v9133 = vsel %vm8374, %v9012, 0.0
    %v9134 = vadd.f32 %v9132, %v9133
    %v9135 = vsel %vm8374, %v9013, 0.0
    %v9136 = vadd.f32 %v9134, %v9135
    %v9137 = vsel %vm8374, %v9014, 0.0
    %v9138 = vadd.f32 %v9136, %v9137
    %v9139 = vsel %vm8374, %v9015, 0.0
    %v9140 = vadd.f32 %v9138, %v9139
    %v9141 = vsel %vm8374, %v9016, 0.0
    %v9142 = vadd.f32 %v9140, %v9141
    %v9143 = vsel %vm8374, %v9017, 0.0
    %v9144 = vadd.f32 %v9142, %v9143
    %v9145 = vrot.slane %v9144, 4
    %v9146 = vadd.f32 %v9144, %v9145
    %v9147 = vrot.slane %v9146, 2
    %v9148 = vadd.f32 %v9146, %v9147
    %v9149 = vrot.slane %v9148, 1
    %v9150 = vadd.f32 %v9148, %v9149
    %v9151 = vsel %vm8374, %v9150, 0.0
    %9152 = vadd.xlane.f32.xlu0 %v9151
    %v9153 = vpop.xlane.xlu0 %9152
    %vm9154 = vcmask 0
    %9155 = vst.msk [vmem:[#allocation2] sm:$0x1] %vm9154, %v9153
    %v9156 = vmul.f32 %v8762, %v3188
    %v9157 = vmul.f32 %v8763, %v3189
    %v9158 = vmul.f32 %v8764, %v3190
    %v9159 = vmul.f32 %v8765, %v3191
    %v9160 = vmul.f32 %v8766, %v3192
    %v9161 = vmul.f32 %v8767, %v3193
    %v9162 = vmul.f32 %v8768, %v3194
    %v9163 = vmul.f32 %v8769, %v3195
    %v9164 = vmul.f32 %v8770, %v3196
    %v9165 = vmul.f32 %v8771, %v3197
    %v9166 = vmul.f32 %v8772, %v3198
    %v9167 = vmul.f32 %v8773, %v3199
    %v9168 = vmul.f32 %v8774, %v3200
    %v9169 = vmul.f32 %v8775, %v3201
    %v9170 = vmul.f32 %v8776, %v3202
    %v9171 = vmul.f32 %v8777, %v3203
    %v9172 = vmul.f32 %v8778, %v3204
    %v9173 = vmul.f32 %v8779, %v3205
    %v9174 = vmul.f32 %v8780, %v3206
    %v9175 = vmul.f32 %v8781, %v3207
    %v9176 = vmul.f32 %v8782, %v3208
    %v9177 = vmul.f32 %v8783, %v3209
    %v9178 = vmul.f32 %v8784, %v3210
    %v9179 = vmul.f32 %v8785, %v3211
    %v9180 = vmul.f32 %v8786, %v3212
    %v9181 = vmul.f32 %v8787, %v3213
    %v9182 = vmul.f32 %v8788, %v3214
    %v9183 = vmul.f32 %v8789, %v3215
    %v9184 = vmul.f32 %v8790, %v3216
    %v9185 = vmul.f32 %v8791, %v3217
    %v9186 = vmul.f32 %v8792, %v3218
    %v9187 = vmul.f32 %v8793, %v3219
    %v9188 = vmul.f32 %v8794, %v3220
    %v9189 = vmul.f32 %v8795, %v3221
    %v9190 = vmul.f32 %v8796, %v3222
    %v9191 = vmul.f32 %v8797, %v3223
    %v9192 = vmul.f32 %v8798, %v3224
    %v9193 = vmul.f32 %v8799, %v3225
    %v9194 = vmul.f32 %v8800, %v3226
    %v9195 = vmul.f32 %v8801, %v3227
    %v9196 = vmul.f32 %v8802, %v3228
    %v9197 = vmul.f32 %v8803, %v3229
    %v9198 = vmul.f32 %v8804, %v3230
    %v9199 = vmul.f32 %v8805, %v3231
    %v9200 = vmul.f32 %v8806, %v3232
    %v9201 = vmul.f32 %v8807, %v3233
    %v9202 = vmul.f32 %v8808, %v3234
    %v9203 = vmul.f32 %v8809, %v3235
    %v9204 = vmul.f32 %v8810, %v3236
    %v9205 = vmul.f32 %v8811, %v3237
    %v9206 = vmul.f32 %v8812, %v3238
    %v9207 = vmul.f32 %v8813, %v3239
    %v9208 = vmul.f32 %v8814, %v3240
    %v9209 = vmul.f32 %v8815, %v3241
    %v9210 = vmul.f32 %v8816, %v3242
    %v9211 = vmul.f32 %v8817, %v3243
    %v9212 = vmul.f32 %v8818, %v3244
    %v9213 = vmul.f32 %v8819, %v3245
    %v9214 = vmul.f32 %v8820, %v3246
    %v9215 = vmul.f32 %v8821, %v3247
    %v9216 = vmul.f32 %v8822, %v3248
    %v9217 = vmul.f32 %v8823, %v3249
    %v9218 = vmul.f32 %v8824, %v3250
    %v9219 = vmul.f32 %v8825, %v3251
    %v9220 = vsel %vm1779, %v9156, 0.0
    %v9221 = vsel %vm1779, %v9157, 0.0
    %v9222 = vadd.f32 %v9220, %v9221
    %v9223 = vsel %vm1779, %v9158, 0.0
    %v9224 = vadd.f32 %v9222, %v9223
    %v9225 = vsel %vm1779, %v9159, 0.0
    %v9226 = vadd.f32 %v9224, %v9225
    %v9227 = vsel %vm1779, %v9160, 0.0
    %v9228 = vadd.f32 %v9226, %v9227
    %v9229 = vsel %vm1779, %v9161, 0.0
    %v9230 = vadd.f32 %v9228, %v9229
    %v9231 = vsel %vm1779, %v9162, 0.0
    %v9232 = vadd.f32 %v9230, %v9231
    %v9233 = vsel %vm1779, %v9163, 0.0
    %v9234 = vadd.f32 %v9232, %v9233
    %v9235 = vsel %vm1779, %v9164, 0.0
    %v9236 = vadd.f32 %v9234, %v9235
    %v9237 = vsel %vm1779, %v9165, 0.0
    %v9238 = vadd.f32 %v9236, %v9237
    %v9239 = vsel %vm1779, %v9166, 0.0
    %v9240 = vadd.f32 %v9238, %v9239
    %v9241 = vsel %vm1779, %v9167, 0.0
    %v9242 = vadd.f32 %v9240, %v9241
    %v9243 = vsel %vm1779, %v9168, 0.0
    %v9244 = vadd.f32 %v9242, %v9243
    %v9245 = vsel %vm1779, %v9169, 0.0
    %v9246 = vadd.f32 %v9244, %v9245
    %v9247 = vsel %vm1779, %v9170, 0.0
    %v9248 = vadd.f32 %v9246, %v9247
    %v9249 = vsel %vm1779, %v9171, 0.0
    %v9250 = vadd.f32 %v9248, %v9249
    %v9251 = vsel %vm1779, %v9172, 0.0
    %v9252 = vadd.f32 %v9250, %v9251
    %v9253 = vsel %vm1779, %v9173, 0.0
    %v9254 = vadd.f32 %v9252, %v9253
    %v9255 = vsel %vm1779, %v9174, 0.0
    %v9256 = vadd.f32 %v9254, %v9255
    %v9257 = vsel %vm1779, %v9175, 0.0
    %v9258 = vadd.f32 %v9256, %v9257
    %v9259 = vsel %vm1779, %v9176, 0.0
    %v9260 = vadd.f32 %v9258, %v9259
    %v9261 = vsel %vm1779, %v9177, 0.0
    %v9262 = vadd.f32 %v9260, %v9261
    %v9263 = vsel %vm1779, %v9178, 0.0
    %v9264 = vadd.f32 %v9262, %v9263
    %v9265 = vsel %vm1779, %v9179, 0.0
    %v9266 = vadd.f32 %v9264, %v9265
    %v9267 = vsel %vm1779, %v9180, 0.0
    %v9268 = vadd.f32 %v9266, %v9267
    %v9269 = vsel %vm1779, %v9181, 0.0
    %v9270 = vadd.f32 %v9268, %v9269
    %v9271 = vsel %vm1779, %v9182, 0.0
    %v9272 = vadd.f32 %v9270, %v9271
    %v9273 = vsel %vm1779, %v9183, 0.0
    %v9274 = vadd.f32 %v9272, %v9273
    %v9275 = vsel %vm1779, %v9184, 0.0
    %v9276 = vadd.f32 %v9274, %v9275
    %v9277 = vsel %vm1779, %v9185, 0.0
    %v9278 = vadd.f32 %v9276, %v9277
    %v9279 = vsel %vm1779, %v9186, 0.0
    %v9280 = vadd.f32 %v9278, %v9279
    %v9281 = vsel %vm1779, %v9187, 0.0
    %v9282 = vadd.f32 %v9280, %v9281
    %v9283 = vsel %vm1779, %v9188, 0.0
    %v9284 = vadd.f32 %v9282, %v9283
    %v9285 = vsel %vm1779, %v9189, 0.0
    %v9286 = vadd.f32 %v9284, %v9285
    %v9287 = vsel %vm1779, %v9190, 0.0
    %v9288 = vadd.f32 %v9286, %v9287
    %v9289 = vsel %vm1779, %v9191, 0.0
    %v9290 = vadd.f32 %v9288, %v9289
    %v9291 = vsel %vm1779, %v9192, 0.0
    %v9292 = vadd.f32 %v9290, %v9291
    %v9293 = vsel %vm1779, %v9193, 0.0
    %v9294 = vadd.f32 %v9292, %v9293
    %v9295 = vsel %vm1779, %v9194, 0.0
    %v9296 = vadd.f32 %v9294, %v9295
    %v9297 = vsel %vm1779, %v9195, 0.0
    %v9298 = vadd.f32 %v9296, %v9297
    %v9299 = vsel %vm1779, %v9196, 0.0
    %v9300 = vadd.f32 %v9298, %v9299
    %v9301 = vsel %vm1779, %v9197, 0.0
    %v9302 = vadd.f32 %v9300, %v9301
    %v9303 = vsel %vm1779, %v9198, 0.0
    %v9304 = vadd.f32 %v9302, %v9303
    %v9305 = vsel %vm1779, %v9199, 0.0
    %v9306 = vadd.f32 %v9304, %v9305
    %v9307 = vsel %vm1779, %v9200, 0.0
    %v9308 = vadd.f32 %v9306, %v9307
    %v9309 = vsel %vm1779, %v9201, 0.0
    %v9310 = vadd.f32 %v9308, %v9309
    %v9311 = vsel %vm1779, %v9202, 0.0
    %v9312 = vadd.f32 %v9310, %v9311
    %v9313 = vsel %vm1779, %v9203, 0.0
    %v9314 = vadd.f32 %v9312, %v9313
    %v9315 = vsel %vm1779, %v9204, 0.0
    %v9316 = vadd.f32 %v9314, %v9315
    %v9317 = vsel %vm1779, %v9205, 0.0
    %v9318 = vadd.f32 %v9316, %v9317
    %v9319 = vsel %vm1779, %v9206, 0.0
    %v9320 = vadd.f32 %v9318, %v9319
    %v9321 = vsel %vm1779, %v9207, 0.0
    %v9322 = vadd.f32 %v9320, %v9321
    %v9323 = vsel %vm1779, %v9208, 0.0
    %v9324 = vadd.f32 %v9322, %v9323
    %v9325 = vsel %vm1779, %v9209, 0.0
    %v9326 = vadd.f32 %v9324, %v9325
    %v9327 = vsel %vm1779, %v9210, 0.0
    %v9328 = vadd.f32 %v9326, %v9327
    %v9329 = vsel %vm1779, %v9211, 0.0
    %v9330 = vadd.f32 %v9328, %v9329
    %v9331 = vsel %vm1779, %v9212, 0.0
    %v9332 = vadd.f32 %v9330, %v9331
    %v9333 = vsel %vm1779, %v9213, 0.0
    %v9334 = vadd.f32 %v9332, %v9333
    %v9335 = vsel %vm1779, %v9214, 0.0
    %v9336 = vadd.f32 %v9334, %v9335
    %v9337 = vsel %vm1779, %v9215, 0.0
    %v9338 = vadd.f32 %v9336, %v9337
    %v9339 = vsel %vm1779, %v9216, 0.0
    %v9340 = vadd.f32 %v9338, %v9339
    %v9341 = vsel %vm1779, %v9217, 0.0
    %v9342 = vadd.f32 %v9340, %v9341
    %v9343 = vsel %vm1779, %v9218, 0.0
    %v9344 = vadd.f32 %v9342, %v9343
    %v9345 = vsel %vm1779, %v9219, 0.0
    %v9346 = vadd.f32 %v9344, %v9345
    %v9347 = vrot.slane %v9346, 4
    %v9348 = vadd.f32 %v9346, %v9347
    %v9349 = vrot.slane %v9348, 2
    %v9350 = vadd.f32 %v9348, %v9349
    %v9351 = vrot.slane %v9350, 1
    %v9352 = vadd.f32 %v9350, %v9351
    %vm9353 = vcmask 122880
    %9354 = vst.msk [vmem:[%s7] sm:$0x1] %vm9353, %v9352
    // Predicated region
    $region18: #{vector_quantizer_forward.1} parent=1 // pred_check
      _
    $region19: #{vector_quantizer_forward.1} parent=1 // pred_check_branch
      %9356 = sbr.rel (0) target = $region21
    $region20: #{vector_quantizer_forward.1} parent=1 // pred_region
      _
    $region21: #{vector_quantizer_forward.1} parent=1 // pred_fallthru
      _
    // Predicated region
    $region22: #{vector_quantizer_forward.1} parent=1 // pred_check
      _
    $region23: #{vector_quantizer_forward.1} parent=1 // pred_check_branch
      %9358 = sbr.rel (0) target = $region25
    $region24: #{vector_quantizer_forward.1} parent=1 // pred_region
      _
    $region25: #{vector_quantizer_forward.1} parent=1 // pred_fallthru
      _
    // Predicated region
    $region26: #{vector_quantizer_forward.1} parent=1 // pred_check
      _
    $region27: #{vector_quantizer_forward.1} parent=1 // pred_check_branch
      %9360 = sbr.rel (0) target = $region29
    $region28: #{vector_quantizer_forward.1} parent=1 // pred_region
      %s9362 = ssub.s32 16, 16
      %9363 = vsyncadd [#allocation3], %s9362
      %s9365 = sshll.u32 [#allocation2], 4
      %s9366 = int_to_ptr.vmem [resolvable:$true] %s9365
      %9368 = dma.vmem_to_hbm [thread:$0]  %s9366, 16, %s6, [#allocation3]
    $region29: #{vector_quantizer_forward.1} parent=1 // pred_fallthru
      _
    // Predicated region
    $region30: #{vector_quantizer_forward.1} parent=1 // pred_check
      _
    $region31: #{vector_quantizer_forward.1} parent=1 // pred_check_branch
      %9370 = sbr.rel (0) target = $region33
    $region32: #{vector_quantizer_forward.1} parent=1 // pred_region
      _
    $region33: #{vector_quantizer_forward.1} parent=1 // pred_fallthru
      _
    // Predicated region
    $region34: #{vector_quantizer_forward.1} parent=1 // pred_check
      _
    $region35: #{vector_quantizer_forward.1} parent=1 // pred_check_branch
      %9372 = sbr.rel (0) target = $region37
    $region36: #{vector_quantizer_forward.1} parent=1 // pred_region
      _
    $region37: #{vector_quantizer_forward.1} parent=1 // pred_fallthru
      _
    // Predicated region
    $region38: #{vector_quantizer_forward.1} parent=1 // pred_check
      _
    $region39: #{vector_quantizer_forward.1} parent=1 // pred_check_branch
      %9374 = sbr.rel (0) target = $region41
    $region40: #{vector_quantizer_forward.1} parent=1 // pred_region
      _
    $region41: #{vector_quantizer_forward.1} parent=1 // pred_fallthru
      _
    // Predicated region
    $region42: #{vector_quantizer_forward.1} parent=1 // pred_check
      _
    $region43: #{vector_quantizer_forward.1} parent=1 // pred_check_branch
      %9376 = sbr.rel (0) target = $region45
    $region44: #{vector_quantizer_forward.1} parent=1 // pred_region
      %9377 = dma.done [#allocation3], 16
    $region45: #{vector_quantizer_forward.1} parent=1 // pred_fallthru
      _
    // Predicated region
    $region46: #{vector_quantizer_forward.1} parent=1 // pred_check
      _
    $region47: #{vector_quantizer_forward.1} parent=1 // pred_check_branch
      %9379 = sbr.rel (0) target = $region49
    $region48: #{vector_quantizer_forward.1} parent=1 // pred_region
      _
    $region49: #{vector_quantizer_forward.1} parent=1 // pred_fallthru
      _
    %9380 = vsyncpa [#allocation3], 1

</llo_original>
